<compile_context>
chip_gen: v7x
topology: tpu7x:2x2x1
jax: 0.10.0
libtpu: 0.0.40
codegen_flags: <defaults>
</compile_context>

<pallas_src>
import numpy as np
import jax
import jax.numpy as jnp
from jax import lax
from jax.experimental import pallas as pl
from jax.experimental.pallas import tpu as pltpu

N_EMBD = 32
BLOCK_SIZE = 8          # T
N_HEAD = 4
HEAD_SIZE = N_EMBD // N_HEAD
N_LAYER = 4
VOCAB_SIZE = 65         # len(set(text)) in the original script (tiny-Shakespeare)
VOCAB_PAD = 128         # lm_head padded to a full 128-lane tile (dense stores)
LN_EPS = 1e-5
NEG_INF = -1e30         # additive mask value (exp -> 0, no -inf NaN hazards)


def _layernorm(h, g, b):
    mu = jnp.mean(h, axis=-1, keepdims=True)
    var = jnp.mean((h - mu) ** 2, axis=-1, keepdims=True)
    return (h - mu) * lax.rsqrt(var + LN_EPS) * g + b


def _mm(a, w):
    """MXU matmul with bf16 operands and f32 accumulation."""
    return jnp.dot(a.astype(jnp.bfloat16), w.astype(jnp.bfloat16),
                   preferred_element_type=jnp.float32)


def model_kernel(mask_ref, x_ref,
                 ln1g_ref, ln1b_ref, wqkv_ref, wproj_ref, bproj_ref,
                 ln2g_ref, ln2b_ref, w1_ref, b1_ref, w2_ref, b2_ref,
                 lmw_ref, lmb_ref, out_ref):
    # x_ref: (R, C) row slab = Bt batch elements * T positions (f32)
    # mask_ref: (R, R) f32 additive block-diagonal causal mask (0 / -1e30)
    x = x_ref[...]
    bias = mask_ref[...]
    C, HS, H = N_EMBD, HEAD_SIZE, N_HEAD
    scale = float(C) ** -0.5   # torch code scales by n_embd**-0.5 (intentional)

    for l in range(N_LAYER):
        # ---- causal multi-head self-attention branch ----
        h1 = _layernorm(x, ln1g_ref[l], ln1b_ref[l])
        qkv = _mm(h1, wqkv_ref[l])                                    # (R, 3C) f32

        # head-stacked q, k, v: (H, R, HS)  (lane slices -> new leading axis)
        q = jnp.stack([qkv[:, h * HS:(h + 1) * HS] for h in range(H)], axis=0)
        k = jnp.stack([qkv[:, C + h * HS:C + (h + 1) * HS] for h in range(H)], axis=0)
        v = jnp.stack([qkv[:, 2 * C + h * HS:2 * C + (h + 1) * HS] for h in range(H)], axis=0)

        # scores for all heads in one batched MXU call: (H, R, R)
        s = lax.dot_general(q.astype(jnp.bfloat16), k.astype(jnp.bfloat16),
                            (((2,), (2,)), ((0,), (0,))),
                            preferred_element_type=jnp.float32) * scale
        s = s + bias                                    # mask broadcast over heads

        # single softmax chain over the head-stacked tensor (f32)
        m = jnp.max(s, axis=-1, keepdims=True)
        e = jnp.exp(s - m)
        denom = jnp.sum(e, axis=-1, keepdims=True)
        p = e * pl.reciprocal(denom, approx=True)       # EUP reciprocal

        # p @ v for all heads in one batched MXU call: (H, R, HS)
        ho = lax.dot_general(p.astype(jnp.bfloat16), v.astype(jnp.bfloat16),
                             (((2,), (1,)), ((0,), (0,))),
                             preferred_element_type=jnp.float32)

        # lane-concat heads and apply the output projection ONCE: (R, C)
        cat = jnp.concatenate([ho[h] for h in range(H)], axis=-1)
        x = x + _mm(cat, wproj_ref[l]) + bproj_ref[l]

        # ---- feed-forward branch ----
        h2 = _layernorm(x, ln2g_ref[l], ln2b_ref[l])
        f = jnp.maximum(_mm(h2, w1_ref[l]) + b1_ref[l], 0.0)
        x = x + _mm(f, w2_ref[l]) + b2_ref[l]

    # NOTE: the original PyTorch forward never applies ln_f -> straight to lm_head.
    logits = _mm(x, lmw_ref[...]) + lmb_ref[...]
    out_ref[...] = logits.astype(out_ref.dtype)


def _tensorcores_per_chip():
    """Heuristic TensorCore count per chip (only used to decide slab splitting)."""
    try:
        kind = jax.devices()[0].device_kind.lower()
    except Exception:
        return 1
    if "v7" in kind:
        return 2
    if "lite" in kind or "v5e" in kind or "v6" in kind:
        return 1
    if "v4" in kind or "v5" in kind:   # v4 / v5p megacore: 2 TCs per device
        return 2
    return 1


def _slab_batches(B, T, num_cores, target_rows=128):
    """Largest divisor of B such that Bt*T <= target_rows, keeping at least one
    slab per TensorCore on multi-core chips.  Single-core chips get one big
    slab (no pointless grid steps)."""
    max_bt = max(1, target_rows // T)
    if num_cores > 1 and B >= num_cores:
        max_bt = min(max_bt, max(1, B // num_cores))
    bt = 1
    for d in range(1, min(B, max_bt) + 1):
        if B % d == 0:
            bt = d
    return bt


def make_params(key):
    C, L = N_EMBD, N_LAYER
    ks = iter(jax.random.split(key, 24))

    def rnd(shape, scale):
        return jax.random.normal(next(ks), shape, jnp.float32) * scale

    # lm_head padded to 128 lanes ONCE here (dense, unmasked stores in kernel)
    lm_w = jnp.zeros((C, VOCAB_PAD), jnp.float32).at[:, :VOCAB_SIZE].set(
        rnd((C, VOCAB_SIZE), 0.3))
    lm_b = jnp.zeros((1, VOCAB_PAD), jnp.float32).at[:, :VOCAB_SIZE].set(
        rnd((1, VOCAB_SIZE), 0.02))

    return {
        "tok_emb": rnd((VOCAB_SIZE, C), 1.0),
        "pos_emb": rnd((BLOCK_SIZE, C), 1.0),
        # per-layer weights stacked on a leading (L, ...) axis; matmul weights bf16
        "ln1_g": 1.0 + rnd((L, 1, C), 0.1), "ln1_b": rnd((L, 1, C), 0.02),
        "w_qkv": rnd((L, C, 3 * C), 0.1).astype(jnp.bfloat16),   # [Wq | Wk | Wv], head-major
        "w_proj": rnd((L, C, C), 0.1).astype(jnp.bfloat16),
        "b_proj": rnd((L, 1, C), 0.02),
        "ln2_g": 1.0 + rnd((L, 1, C), 0.1), "ln2_b": rnd((L, 1, C), 0.02),
        "w1": rnd((L, C, 4 * C), 0.1).astype(jnp.bfloat16), "b1": rnd((L, 1, 4 * C), 0.02),
        "w2": rnd((L, 4 * C, C), 0.1).astype(jnp.bfloat16), "b2": rnd((L, 1, C), 0.02),
        "lm_w": lm_w.astype(jnp.bfloat16), "lm_b": lm_b,
        # ln_f exists in the PyTorch module but its forward never calls it; kept unused.
        "lnf_g": 1.0 + rnd((1, C), 0.1), "lnf_b": rnd((1, C), 0.02),
    }


def bigram_forward(idx, p):
    """idx: (B, T) int32 token ids -> logits (B, T, vocab_size)."""
    B, T = idx.shape
    assert T == BLOCK_SIZE
    C = N_EMBD

    # embedding gathers in the wrapper (plain JAX); kernel gets dense rows
    x = jnp.take(p["tok_emb"], idx, axis=0) + p["pos_emb"][:T][None, :, :]
    x = x.reshape(B * T, C).astype(jnp.float32)

    bt = _slab_batches(B, T, _tensorcores_per_chip())
    R = bt * T                      # rows per slab (multiple of 8, <= 128)
    grid = (B // bt,)

    # block-diagonal causal additive mask (host-side constant, DMA'd once):
    # row r attends to col c iff c <= r and c is inside r's own T-row block.
    r = np.arange(R)
    allowed = (r[None, :] <= r[:, None]) & (r[None, :] >= (r[:, None] // T) * T)
    mask_bias = jnp.asarray(np.where(allowed, 0.0, NEG_INF), dtype=jnp.float32)

    rows = lambda i: (i, 0)

    def full(arr):
        # whole-array block with constant index_map -> fetched once
        nd = arr.ndim
        return pl.BlockSpec(arr.shape, lambda i, n=nd: (0,) * n)

    in_specs = [
        full(mask_bias),                                 # additive causal mask
        pl.BlockSpec((R, C), rows),                      # x row slab
        full(p["ln1_g"]), full(p["ln1_b"]),
        full(p["w_qkv"]), full(p["w_proj"]), full(p["b_proj"]),
        full(p["ln2_g"]), full(p["ln2_b"]),
        full(p["w1"]), full(p["b1"]), full(p["w2"]), full(p["b2"]),
        full(p["lm_w"]), full(p["lm_b"]),
    ]
    out_spec = pl.BlockSpec((R, VOCAB_PAD), rows)

    fn = pl.pallas_call(
        model_kernel,
        out_shape=jax.ShapeDtypeStruct((B * T, VOCAB_PAD), jnp.float32),
        grid_spec=pltpu.PrefetchScalarGridSpec(
            num_scalar_prefetch=0,
            grid=grid,
            in_specs=in_specs,
            out_specs=out_spec,
        ),
        compiler_params=pltpu.CompilerParams(
            dimension_semantics=("parallel",)),
    )
    logits = fn(mask_bias, x,
                p["ln1_g"], p["ln1_b"], p["w_qkv"], p["w_proj"], p["b_proj"],
                p["ln2_g"], p["ln2_b"], p["w1"], p["b1"], p["w2"], p["b2"],
                p["lm_w"], p["lm_b"])
    return logits[:, :VOCAB_SIZE].reshape(B, T, VOCAB_SIZE)


def reference_forward(idx, p, matmul_dtype=jnp.float32):
    """Pure-JAX reference matching the PyTorch forward (eval mode, targets=None).
    matmul_dtype=bfloat16 mirrors the kernel's MXU operand precision."""
    md = matmul_dtype

    def ln(h, g, b):
        mu = jnp.mean(h, axis=-1, keepdims=True)
        var = jnp.mean((h - mu) ** 2, axis=-1, keepdims=True)
        return (h - mu) * lax.rsqrt(var + LN_EPS) * g + b

    def mm(a, w):
        return jnp.dot(a.astype(md), w.astype(md), preferred_element_type=jnp.float32)

    B, T = idx.shape
    C = N_EMBD
    x = jnp.take(p["tok_emb"], idx, axis=0) + p["pos_emb"][:T][None, :, :]
    tril = jnp.tril(jnp.ones((T, T)))
    for l in range(N_LAYER):
        h1 = ln(x, p["ln1_g"][l], p["ln1_b"][l])
        qkv = mm(h1, p["w_qkv"][l])
        q, k, v = qkv[..., :C], qkv[..., C:2 * C], qkv[..., 2 * C:]
        outs = []
        for h in range(N_HEAD):
            sl = slice(h * HEAD_SIZE, (h + 1) * HEAD_SIZE)
            wei = jnp.einsum("btd,bsd->bts", q[..., sl].astype(md), k[..., sl].astype(md),
                             preferred_element_type=jnp.float32) * (C ** -0.5)
            wei = jnp.where(tril == 0, -jnp.inf, wei)
            wei = jax.nn.softmax(wei, axis=-1)
            outs.append(jnp.einsum("bts,bsd->btd", wei.astype(md), v[..., sl].astype(md),
                                   preferred_element_type=jnp.float32))
        cat = jnp.concatenate(outs, axis=-1)
        x = x + mm(cat, p["w_proj"][l]) + p["b_proj"][l]
        h2 = ln(x, p["ln2_g"][l], p["ln2_b"][l])
        f = jax.nn.relu(mm(h2, p["w1"][l]) + p["b1"][l])
        x = x + mm(f, p["w2"][l]) + p["b2"][l]
    # the original forward never applies ln_f
    logits = mm(x, p["lm_w"]) + p["lm_b"]
    return logits[..., :VOCAB_SIZE]


if __name__ == "__main__":
    key = jax.random.PRNGKey(0)
    kp, ki = jax.random.split(key)
    params = make_params(kp)

    B = 8
    idx = jax.random.randint(ki, (B, BLOCK_SIZE), 0, VOCAB_SIZE, dtype=jnp.int32)

    logits = jax.block_until_ready(bigram_forward(idx, params))
    assert logits.shape == (B, BLOCK_SIZE, VOCAB_SIZE)

    # Primary check: reference with matmul operands in bf16 (same MXU precision
    # as the kernel); residual gap is the approximate EUP reciprocal in softmax.
    ref_mxu = reference_forward(idx, params, matmul_dtype=jnp.bfloat16)
    err = float(jnp.max(jnp.abs(logits - ref_mxu)))
    assert jnp.allclose(logits, ref_mxu, rtol=2e-2, atol=2e-2), err

    # Sanity bound vs the full-f32 reference (gap is bf16 MXU rounding).
    ref_f32 = reference_forward(idx, params, matmul_dtype=jnp.float32)
    assert float(jnp.max(jnp.abs(logits - ref_f32))) < 0.5

    print("KERNEL_OK")
</pallas_src>

<mosaic_0001>
module attributes {stable_mosaic.version = 11 : i64} {
  func.func @model_kernel(%arg0: i32, %arg1: memref<64x64xf32, #tpu.memory_space<vmem>>, %arg2: memref<64x32xf32, #tpu.memory_space<vmem>>, %arg3: memref<4x1x32xf32, #tpu.memory_space<vmem>>, %arg4: memref<4x1x32xf32, #tpu.memory_space<vmem>>, %arg5: memref<4x32x96xbf16, #tpu.memory_space<vmem>>, %arg6: memref<4x32x32xbf16, #tpu.memory_space<vmem>>, %arg7: memref<4x1x32xf32, #tpu.memory_space<vmem>>, %arg8: memref<4x1x32xf32, #tpu.memory_space<vmem>>, %arg9: memref<4x1x32xf32, #tpu.memory_space<vmem>>, %arg10: memref<4x32x128xbf16, #tpu.memory_space<vmem>>, %arg11: memref<4x1x128xf32, #tpu.memory_space<vmem>>, %arg12: memref<4x128x32xbf16, #tpu.memory_space<vmem>>, %arg13: memref<4x1x32xf32, #tpu.memory_space<vmem>>, %arg14: memref<32x128xbf16, #tpu.memory_space<vmem>>, %arg15: memref<1x128xf32, #tpu.memory_space<vmem>>, %arg16: memref<64x128xf32, #tpu.memory_space<vmem>>) attributes {dimension_semantics = [#tpu.dimension_semantics<parallel>], iteration_bounds = array<i64: 1>, scalar_prefetch = 0 : i64, scratch_operands = 0 : i64, tpu.core_type = #tpu.core_type<tc>, window_params = [{pipeline_mode = #tpu.pipeline_mode<synchronous>, transform_indices = @transform_0, window_bounds = array<i64: 64, 64>}, {transform_indices = @transform_1, window_bounds = array<i64: 64, 32>}, {pipeline_mode = #tpu.pipeline_mode<synchronous>, transform_indices = @transform_2, window_bounds = array<i64: 4, 1, 32>}, {pipeline_mode = #tpu.pipeline_mode<synchronous>, transform_indices = @transform_3, window_bounds = array<i64: 4, 1, 32>}, {pipeline_mode = #tpu.pipeline_mode<synchronous>, transform_indices = @transform_4, window_bounds = array<i64: 4, 32, 96>}, {pipeline_mode = #tpu.pipeline_mode<synchronous>, transform_indices = @transform_5, window_bounds = array<i64: 4, 32, 32>}, {pipeline_mode = #tpu.pipeline_mode<synchronous>, transform_indices = @transform_6, window_bounds = array<i64: 4, 1, 32>}, {pipeline_mode = #tpu.pipeline_mode<synchronous>, transform_indices = @transform_7, window_bounds = array<i64: 4, 1, 32>}, {pipeline_mode = #tpu.pipeline_mode<synchronous>, transform_indices = @transform_8, window_bounds = array<i64: 4, 1, 32>}, {pipeline_mode = #tpu.pipeline_mode<synchronous>, transform_indices = @transform_9, window_bounds = array<i64: 4, 32, 128>}, {pipeline_mode = #tpu.pipeline_mode<synchronous>, transform_indices = @transform_10, window_bounds = array<i64: 4, 1, 128>}, {pipeline_mode = #tpu.pipeline_mode<synchronous>, transform_indices = @transform_11, window_bounds = array<i64: 4, 128, 32>}, {pipeline_mode = #tpu.pipeline_mode<synchronous>, transform_indices = @transform_12, window_bounds = array<i64: 4, 1, 32>}, {pipeline_mode = #tpu.pipeline_mode<synchronous>, transform_indices = @transform_13, window_bounds = array<i64: 32, 128>}, {pipeline_mode = #tpu.pipeline_mode<synchronous>, transform_indices = @transform_14, window_bounds = array<i64: 1, 128>}, {transform_indices = @transform_15, window_bounds = array<i64: 64, 128>}]} {
    %c0 = arith.constant 0 : index
    %c0_0 = arith.constant 0 : index
    %0 = vector.load %arg2[%c0, %c0_0] : memref<64x32xf32, #tpu.memory_space<vmem>>, vector<64x32xf32>
    %c0_1 = arith.constant 0 : index
    %c0_2 = arith.constant 0 : index
    %1 = vector.load %arg1[%c0_1, %c0_2] : memref<64x64xf32, #tpu.memory_space<vmem>>, vector<64x64xf32>
    %c0_3 = arith.constant 0 : index
    %c0_4 = arith.constant 0 : index
    %c0_5 = arith.constant 0 : index
    %2 = vector.load %arg3[%c0_3, %c0_4, %c0_5] : memref<4x1x32xf32, #tpu.memory_space<vmem>>, vector<1x1x32xf32>
    %3 = vector.shape_cast %2 : vector<1x1x32xf32> to vector<1x32xf32>
    %c0_6 = arith.constant 0 : index
    %c0_7 = arith.constant 0 : index
    %c0_8 = arith.constant 0 : index
    %4 = vector.load %arg4[%c0_6, %c0_7, %c0_8] : memref<4x1x32xf32, #tpu.memory_space<vmem>>, vector<1x1x32xf32>
    %5 = vector.shape_cast %4 : vector<1x1x32xf32> to vector<1x32xf32>
    %cst = arith.constant dense<0.000000e+00> : vector<64xf32>
    %6 = vector.multi_reduction <add>, %0, %cst [1] : vector<64x32xf32> to vector<64xf32>
    %7 = vector.shape_cast %6 : vector<64xf32> to vector<64x1xf32>
    %cst_9 = arith.constant 3.200000e+01 : f32
    %8 = vector.broadcast %cst_9 : f32 to vector<64x1xf32>
    %9 = arith.divf %7, %8 : vector<64x1xf32>
    %10 = vector.broadcast %9 : vector<64x1xf32> to vector<64x32xf32>
    %11 = arith.subf %0, %10 : vector<64x32xf32>
    %12 = arith.mulf %11, %11 : vector<64x32xf32>
    %cst_10 = arith.constant dense<0.000000e+00> : vector<64xf32>
    %13 = vector.multi_reduction <add>, %12, %cst_10 [1] : vector<64x32xf32> to vector<64xf32>
    %14 = vector.shape_cast %13 : vector<64xf32> to vector<64x1xf32>
    %cst_11 = arith.constant 3.200000e+01 : f32
    %15 = vector.broadcast %cst_11 : f32 to vector<64x1xf32>
    %16 = arith.divf %14, %15 : vector<64x1xf32>
    %17 = vector.broadcast %9 : vector<64x1xf32> to vector<64x32xf32>
    %18 = arith.subf %0, %17 : vector<64x32xf32>
    %cst_12 = arith.constant 9.99999974E-6 : f32
    %19 = vector.broadcast %cst_12 : f32 to vector<64x1xf32>
    %20 = arith.addf %16, %19 : vector<64x1xf32>
    %21 = math.rsqrt %20 : vector<64x1xf32>
    %22 = vector.broadcast %21 : vector<64x1xf32> to vector<64x32xf32>
    %23 = arith.mulf %18, %22 : vector<64x32xf32>
    %24 = vector.broadcast %3 : vector<1x32xf32> to vector<64x32xf32>
    %25 = arith.mulf %23, %24 : vector<64x32xf32>
    %26 = vector.broadcast %5 : vector<1x32xf32> to vector<64x32xf32>
    %27 = arith.addf %25, %26 : vector<64x32xf32>
    %c0_13 = arith.constant 0 : index
    %c0_14 = arith.constant 0 : index
    %c0_15 = arith.constant 0 : index
    %28 = vector.load %arg5[%c0_13, %c0_14, %c0_15] : memref<4x32x96xbf16, #tpu.memory_space<vmem>>, vector<1x32x96xbf16>
    %29 = vector.shape_cast %28 : vector<1x32x96xbf16> to vector<32x96xbf16>
    %30 = arith.truncf %27 : vector<64x32xf32> to vector<64x32xbf16>
    %cst_16 = arith.constant dense<0.000000e+00> : vector<64x96xf32>
    %31 = tpu.matmul %30, %29, %cst_16 {dimension_numbers = #tpu.dot_dimension_numbers<[1], [0], [0], [1], [0, 0, 1, 1], [], []>} : vector<64x32xbf16>, vector<32x96xbf16>, vector<64x96xf32> -> vector<64x96xf32>
    %32 = vector.extract_strided_slice %31 {offsets = [0, 0], sizes = [64, 8], strides = [1, 1]} : vector<64x96xf32> to vector<64x8xf32>
    %33 = vector.extract_strided_slice %31 {offsets = [0, 8], sizes = [64, 8], strides = [1, 1]} : vector<64x96xf32> to vector<64x8xf32>
    %34 = vector.extract_strided_slice %31 {offsets = [0, 16], sizes = [64, 8], strides = [1, 1]} : vector<64x96xf32> to vector<64x8xf32>
    %35 = vector.extract_strided_slice %31 {offsets = [0, 24], sizes = [64, 8], strides = [1, 1]} : vector<64x96xf32> to vector<64x8xf32>
    %36 = vector.shape_cast %32 : vector<64x8xf32> to vector<1x64x8xf32>
    %37 = vector.shape_cast %33 : vector<64x8xf32> to vector<1x64x8xf32>
    %38 = vector.shape_cast %34 : vector<64x8xf32> to vector<1x64x8xf32>
    %39 = vector.shape_cast %35 : vector<64x8xf32> to vector<1x64x8xf32>
    %40 = tpu.concatenate %36, %37, %38, %39 in 0 : vector<1x64x8xf32>, vector<1x64x8xf32>, vector<1x64x8xf32>, vector<1x64x8xf32> -> vector<4x64x8xf32>
    %41 = vector.extract_strided_slice %31 {offsets = [0, 32], sizes = [64, 8], strides = [1, 1]} : vector<64x96xf32> to vector<64x8xf32>
    %42 = vector.extract_strided_slice %31 {offsets = [0, 40], sizes = [64, 8], strides = [1, 1]} : vector<64x96xf32> to vector<64x8xf32>
    %43 = vector.extract_strided_slice %31 {offsets = [0, 48], sizes = [64, 8], strides = [1, 1]} : vector<64x96xf32> to vector<64x8xf32>
    %44 = vector.extract_strided_slice %31 {offsets = [0, 56], sizes = [64, 8], strides = [1, 1]} : vector<64x96xf32> to vector<64x8xf32>
    %45 = vector.shape_cast %41 : vector<64x8xf32> to vector<1x64x8xf32>
    %46 = vector.shape_cast %42 : vector<64x8xf32> to vector<1x64x8xf32>
    %47 = vector.shape_cast %43 : vector<64x8xf32> to vector<1x64x8xf32>
    %48 = vector.shape_cast %44 : vector<64x8xf32> to vector<1x64x8xf32>
    %49 = tpu.concatenate %45, %46, %47, %48 in 0 : vector<1x64x8xf32>, vector<1x64x8xf32>, vector<1x64x8xf32>, vector<1x64x8xf32> -> vector<4x64x8xf32>
    %50 = vector.extract_strided_slice %31 {offsets = [0, 64], sizes = [64, 8], strides = [1, 1]} : vector<64x96xf32> to vector<64x8xf32>
    %51 = vector.extract_strided_slice %31 {offsets = [0, 72], sizes = [64, 8], strides = [1, 1]} : vector<64x96xf32> to vector<64x8xf32>
    %52 = vector.extract_strided_slice %31 {offsets = [0, 80], sizes = [64, 8], strides = [1, 1]} : vector<64x96xf32> to vector<64x8xf32>
    %53 = vector.extract_strided_slice %31 {offsets = [0, 88], sizes = [64, 8], strides = [1, 1]} : vector<64x96xf32> to vector<64x8xf32>
    %54 = vector.shape_cast %50 : vector<64x8xf32> to vector<1x64x8xf32>
    %55 = vector.shape_cast %51 : vector<64x8xf32> to vector<1x64x8xf32>
    %56 = vector.shape_cast %52 : vector<64x8xf32> to vector<1x64x8xf32>
    %57 = vector.shape_cast %53 : vector<64x8xf32> to vector<1x64x8xf32>
    %58 = tpu.concatenate %54, %55, %56, %57 in 0 : vector<1x64x8xf32>, vector<1x64x8xf32>, vector<1x64x8xf32>, vector<1x64x8xf32> -> vector<4x64x8xf32>
    %59 = arith.truncf %40 : vector<4x64x8xf32> to vector<4x64x8xbf16>
    %60 = arith.truncf %49 : vector<4x64x8xf32> to vector<4x64x8xbf16>
    %cst_17 = arith.constant dense<0.000000e+00> : vector<4x64x64xf32>
    %61 = tpu.matmul %59, %60, %cst_17 {dimension_numbers = #tpu.dot_dimension_numbers<[2], [2], [1], [1], [0, 0, 0, 1, 1, 1], [0], [0]>} : vector<4x64x8xbf16>, vector<4x64x8xbf16>, vector<4x64x64xf32> -> vector<4x64x64xf32>
    %cst_18 = arith.constant 0.176776692 : f32
    %62 = vector.broadcast %cst_18 : f32 to vector<4x64x64xf32>
    %63 = arith.mulf %61, %62 : vector<4x64x64xf32>
    %64 = vector.shape_cast %1 : vector<64x64xf32> to vector<1x64x64xf32>
    %65 = vector.broadcast %64 : vector<1x64x64xf32> to vector<4x64x64xf32>
    %66 = arith.addf %63, %65 : vector<4x64x64xf32>
    %cst_19 = arith.constant dense<0xFF800000> : vector<4x64xf32>
    %67 = vector.multi_reduction <maximumf>, %66, %cst_19 [2] : vector<4x64x64xf32> to vector<4x64xf32>
    %68 = vector.shape_cast %67 : vector<4x64xf32> to vector<4x64x1xf32>
    %69 = vector.broadcast %68 : vector<4x64x1xf32> to vector<4x64x64xf32>
    %70 = arith.subf %66, %69 : vector<4x64x64xf32>
    %71 = math.exp %70 : vector<4x64x64xf32>
    %cst_20 = arith.constant dense<0.000000e+00> : vector<4x64xf32>
    %72 = vector.multi_reduction <add>, %71, %cst_20 [2] : vector<4x64x64xf32> to vector<4x64xf32>
    %73 = vector.shape_cast %72 : vector<4x64xf32> to vector<4x64x1xf32>
    %74 = tpu.reciprocal %73 {approx = true} : vector<4x64x1xf32> -> vector<4x64x1xf32>
    %75 = vector.broadcast %74 : vector<4x64x1xf32> to vector<4x64x64xf32>
    %76 = arith.mulf %71, %75 : vector<4x64x64xf32>
    %77 = arith.truncf %76 : vector<4x64x64xf32> to vector<4x64x64xbf16>
    %78 = arith.truncf %58 : vector<4x64x8xf32> to vector<4x64x8xbf16>
    %cst_21 = arith.constant dense<0.000000e+00> : vector<4x64x8xf32>
    %79 = tpu.matmul %77, %78, %cst_21 {dimension_numbers = #tpu.dot_dimension_numbers<[2], [1], [1], [2], [0, 0, 0, 1, 1, 2], [0], [0]>} : vector<4x64x64xbf16>, vector<4x64x8xbf16>, vector<4x64x8xf32> -> vector<4x64x8xf32>
    %80 = vector.extract_strided_slice %79 {offsets = [0, 0, 0], sizes = [1, 64, 8], strides = [1, 1, 1]} : vector<4x64x8xf32> to vector<1x64x8xf32>
    %81 = vector.shape_cast %80 : vector<1x64x8xf32> to vector<64x8xf32>
    %82 = vector.extract_strided_slice %79 {offsets = [1, 0, 0], sizes = [1, 64, 8], strides = [1, 1, 1]} : vector<4x64x8xf32> to vector<1x64x8xf32>
    %83 = vector.shape_cast %82 : vector<1x64x8xf32> to vector<64x8xf32>
    %84 = vector.extract_strided_slice %79 {offsets = [2, 0, 0], sizes = [1, 64, 8], strides = [1, 1, 1]} : vector<4x64x8xf32> to vector<1x64x8xf32>
    %85 = vector.shape_cast %84 : vector<1x64x8xf32> to vector<64x8xf32>
    %86 = vector.extract_strided_slice %79 {offsets = [3, 0, 0], sizes = [1, 64, 8], strides = [1, 1, 1]} : vector<4x64x8xf32> to vector<1x64x8xf32>
    %87 = vector.shape_cast %86 : vector<1x64x8xf32> to vector<64x8xf32>
    %88 = tpu.concatenate %81, %83, %85, %87 in 1 : vector<64x8xf32>, vector<64x8xf32>, vector<64x8xf32>, vector<64x8xf32> -> vector<64x32xf32>
    %c0_22 = arith.constant 0 : index
    %c0_23 = arith.constant 0 : index
    %c0_24 = arith.constant 0 : index
    %89 = vector.load %arg6[%c0_22, %c0_23, %c0_24] : memref<4x32x32xbf16, #tpu.memory_space<vmem>>, vector<1x32x32xbf16>
    %90 = vector.shape_cast %89 : vector<1x32x32xbf16> to vector<32x32xbf16>
    %91 = arith.truncf %88 : vector<64x32xf32> to vector<64x32xbf16>
    %cst_25 = arith.constant dense<0.000000e+00> : vector<64x32xf32>
    %92 = tpu.matmul %91, %90, %cst_25 {dimension_numbers = #tpu.dot_dimension_numbers<[1], [0], [0], [1], [0, 0, 1, 1], [], []>} : vector<64x32xbf16>, vector<32x32xbf16>, vector<64x32xf32> -> vector<64x32xf32>
    %93 = arith.addf %0, %92 : vector<64x32xf32>
    %c0_26 = arith.constant 0 : index
    %c0_27 = arith.constant 0 : index
    %c0_28 = arith.constant 0 : index
    %94 = vector.load %arg7[%c0_26, %c0_27, %c0_28] : memref<4x1x32xf32, #tpu.memory_space<vmem>>, vector<1x1x32xf32>
    %95 = vector.shape_cast %94 : vector<1x1x32xf32> to vector<1x32xf32>
    %96 = vector.broadcast %95 : vector<1x32xf32> to vector<64x32xf32>
    %97 = arith.addf %93, %96 : vector<64x32xf32>
    %c0_29 = arith.constant 0 : index
    %c0_30 = arith.constant 0 : index
    %c0_31 = arith.constant 0 : index
    %98 = vector.load %arg8[%c0_29, %c0_30, %c0_31] : memref<4x1x32xf32, #tpu.memory_space<vmem>>, vector<1x1x32xf32>
    %99 = vector.shape_cast %98 : vector<1x1x32xf32> to vector<1x32xf32>
    %c0_32 = arith.constant 0 : index
    %c0_33 = arith.constant 0 : index
    %c0_34 = arith.constant 0 : index
    %100 = vector.load %arg9[%c0_32, %c0_33, %c0_34] : memref<4x1x32xf32, #tpu.memory_space<vmem>>, vector<1x1x32xf32>
    %101 = vector.shape_cast %100 : vector<1x1x32xf32> to vector<1x32xf32>
    %cst_35 = arith.constant dense<0.000000e+00> : vector<64xf32>
    %102 = vector.multi_reduction <add>, %97, %cst_35 [1] : vector<64x32xf32> to vector<64xf32>
    %103 = vector.shape_cast %102 : vector<64xf32> to vector<64x1xf32>
    %cst_36 = arith.constant 3.200000e+01 : f32
    %104 = vector.broadcast %cst_36 : f32 to vector<64x1xf32>
    %105 = arith.divf %103, %104 : vector<64x1xf32>
    %106 = vector.broadcast %105 : vector<64x1xf32> to vector<64x32xf32>
    %107 = arith.subf %97, %106 : vector<64x32xf32>
    %108 = arith.mulf %107, %107 : vector<64x32xf32>
    %cst_37 = arith.constant dense<0.000000e+00> : vector<64xf32>
    %109 = vector.multi_reduction <add>, %108, %cst_37 [1] : vector<64x32xf32> to vector<64xf32>
    %110 = vector.shape_cast %109 : vector<64xf32> to vector<64x1xf32>
    %cst_38 = arith.constant 3.200000e+01 : f32
    %111 = vector.broadcast %cst_38 : f32 to vector<64x1xf32>
    %112 = arith.divf %110, %111 : vector<64x1xf32>
    %113 = vector.broadcast %105 : vector<64x1xf32> to vector<64x32xf32>
    %114 = arith.subf %97, %113 : vector<64x32xf32>
    %cst_39 = arith.constant 9.99999974E-6 : f32
    %115 = vector.broadcast %cst_39 : f32 to vector<64x1xf32>
    %116 = arith.addf %112, %115 : vector<64x1xf32>
    %117 = math.rsqrt %116 : vector<64x1xf32>
    %118 = vector.broadcast %117 : vector<64x1xf32> to vector<64x32xf32>
    %119 = arith.mulf %114, %118 : vector<64x32xf32>
    %120 = vector.broadcast %99 : vector<1x32xf32> to vector<64x32xf32>
    %121 = arith.mulf %119, %120 : vector<64x32xf32>
    %122 = vector.broadcast %101 : vector<1x32xf32> to vector<64x32xf32>
    %123 = arith.addf %121, %122 : vector<64x32xf32>
    %c0_40 = arith.constant 0 : index
    %c0_41 = arith.constant 0 : index
    %c0_42 = arith.constant 0 : index
    %124 = vector.load %arg10[%c0_40, %c0_41, %c0_42] : memref<4x32x128xbf16, #tpu.memory_space<vmem>>, vector<1x32x128xbf16>
    %125 = vector.shape_cast %124 : vector<1x32x128xbf16> to vector<32x128xbf16>
    %126 = arith.truncf %123 : vector<64x32xf32> to vector<64x32xbf16>
    %cst_43 = arith.constant dense<0.000000e+00> : vector<64x128xf32>
    %127 = tpu.matmul %126, %125, %cst_43 {dimension_numbers = #tpu.dot_dimension_numbers<[1], [0], [0], [1], [0, 0, 1, 1], [], []>} : vector<64x32xbf16>, vector<32x128xbf16>, vector<64x128xf32> -> vector<64x128xf32>
    %c0_44 = arith.constant 0 : index
    %c0_45 = arith.constant 0 : index
    %c0_46 = arith.constant 0 : index
    %128 = vector.load %arg11[%c0_44, %c0_45, %c0_46] : memref<4x1x128xf32, #tpu.memory_space<vmem>>, vector<1x1x128xf32>
    %129 = vector.shape_cast %128 : vector<1x1x128xf32> to vector<1x128xf32>
    %130 = vector.broadcast %129 : vector<1x128xf32> to vector<64x128xf32>
    %131 = arith.addf %127, %130 : vector<64x128xf32>
    %cst_47 = arith.constant 0.000000e+00 : f32
    %132 = vector.broadcast %cst_47 : f32 to vector<64x128xf32>
    %133 = arith.maximumf %131, %132 : vector<64x128xf32>
    %c0_48 = arith.constant 0 : index
    %c0_49 = arith.constant 0 : index
    %c0_50 = arith.constant 0 : index
    %134 = vector.load %arg12[%c0_48, %c0_49, %c0_50] : memref<4x128x32xbf16, #tpu.memory_space<vmem>>, vector<1x128x32xbf16>
    %135 = vector.shape_cast %134 : vector<1x128x32xbf16> to vector<128x32xbf16>
    %136 = arith.truncf %133 : vector<64x128xf32> to vector<64x128xbf16>
    %cst_51 = arith.constant dense<0.000000e+00> : vector<64x32xf32>
    %137 = tpu.matmul %136, %135, %cst_51 {dimension_numbers = #tpu.dot_dimension_numbers<[1], [0], [0], [1], [0, 0, 1, 1], [], []>} : vector<64x128xbf16>, vector<128x32xbf16>, vector<64x32xf32> -> vector<64x32xf32>
    %138 = arith.addf %97, %137 : vector<64x32xf32>
    %c0_52 = arith.constant 0 : index
    %c0_53 = arith.constant 0 : index
    %c0_54 = arith.constant 0 : index
    %139 = vector.load %arg13[%c0_52, %c0_53, %c0_54] : memref<4x1x32xf32, #tpu.memory_space<vmem>>, vector<1x1x32xf32>
    %140 = vector.shape_cast %139 : vector<1x1x32xf32> to vector<1x32xf32>
    %141 = vector.broadcast %140 : vector<1x32xf32> to vector<64x32xf32>
    %142 = arith.addf %138, %141 : vector<64x32xf32>
    %c1 = arith.constant 1 : index
    %c0_55 = arith.constant 0 : index
    %c0_56 = arith.constant 0 : index
    %143 = vector.load %arg3[%c1, %c0_55, %c0_56] : memref<4x1x32xf32, #tpu.memory_space<vmem>>, vector<1x1x32xf32>
    %144 = vector.shape_cast %143 : vector<1x1x32xf32> to vector<1x32xf32>
    %c1_57 = arith.constant 1 : index
    %c0_58 = arith.constant 0 : index
    %c0_59 = arith.constant 0 : index
    %145 = vector.load %arg4[%c1_57, %c0_58, %c0_59] : memref<4x1x32xf32, #tpu.memory_space<vmem>>, vector<1x1x32xf32>
    %146 = vector.shape_cast %145 : vector<1x1x32xf32> to vector<1x32xf32>
    %cst_60 = arith.constant dense<0.000000e+00> : vector<64xf32>
    %147 = vector.multi_reduction <add>, %142, %cst_60 [1] : vector<64x32xf32> to vector<64xf32>
    %148 = vector.shape_cast %147 : vector<64xf32> to vector<64x1xf32>
    %cst_61 = arith.constant 3.200000e+01 : f32
    %149 = vector.broadcast %cst_61 : f32 to vector<64x1xf32>
    %150 = arith.divf %148, %149 : vector<64x1xf32>
    %151 = vector.broadcast %150 : vector<64x1xf32> to vector<64x32xf32>
    %152 = arith.subf %142, %151 : vector<64x32xf32>
    %153 = arith.mulf %152, %152 : vector<64x32xf32>
    %cst_62 = arith.constant dense<0.000000e+00> : vector<64xf32>
    %154 = vector.multi_reduction <add>, %153, %cst_62 [1] : vector<64x32xf32> to vector<64xf32>
    %155 = vector.shape_cast %154 : vector<64xf32> to vector<64x1xf32>
    %cst_63 = arith.constant 3.200000e+01 : f32
    %156 = vector.broadcast %cst_63 : f32 to vector<64x1xf32>
    %157 = arith.divf %155, %156 : vector<64x1xf32>
    %158 = vector.broadcast %150 : vector<64x1xf32> to vector<64x32xf32>
    %159 = arith.subf %142, %158 : vector<64x32xf32>
    %cst_64 = arith.constant 9.99999974E-6 : f32
    %160 = vector.broadcast %cst_64 : f32 to vector<64x1xf32>
    %161 = arith.addf %157, %160 : vector<64x1xf32>
    %162 = math.rsqrt %161 : vector<64x1xf32>
    %163 = vector.broadcast %162 : vector<64x1xf32> to vector<64x32xf32>
    %164 = arith.mulf %159, %163 : vector<64x32xf32>
    %165 = vector.broadcast %144 : vector<1x32xf32> to vector<64x32xf32>
    %166 = arith.mulf %164, %165 : vector<64x32xf32>
    %167 = vector.broadcast %146 : vector<1x32xf32> to vector<64x32xf32>
    %168 = arith.addf %166, %167 : vector<64x32xf32>
    %c1_65 = arith.constant 1 : index
    %c0_66 = arith.constant 0 : index
    %c0_67 = arith.constant 0 : index
    %169 = vector.load %arg5[%c1_65, %c0_66, %c0_67] : memref<4x32x96xbf16, #tpu.memory_space<vmem>>, vector<1x32x96xbf16>
    %170 = vector.shape_cast %169 : vector<1x32x96xbf16> to vector<32x96xbf16>
    %171 = arith.truncf %168 : vector<64x32xf32> to vector<64x32xbf16>
    %cst_68 = arith.constant dense<0.000000e+00> : vector<64x96xf32>
    %172 = tpu.matmul %171, %170, %cst_68 {dimension_numbers = #tpu.dot_dimension_numbers<[1], [0], [0], [1], [0, 0, 1, 1], [], []>} : vector<64x32xbf16>, vector<32x96xbf16>, vector<64x96xf32> -> vector<64x96xf32>
    %173 = vector.extract_strided_slice %172 {offsets = [0, 0], sizes = [64, 8], strides = [1, 1]} : vector<64x96xf32> to vector<64x8xf32>
    %174 = vector.extract_strided_slice %172 {offsets = [0, 8], sizes = [64, 8], strides = [1, 1]} : vector<64x96xf32> to vector<64x8xf32>
    %175 = vector.extract_strided_slice %172 {offsets = [0, 16], sizes = [64, 8], strides = [1, 1]} : vector<64x96xf32> to vector<64x8xf32>
    %176 = vector.extract_strided_slice %172 {offsets = [0, 24], sizes = [64, 8], strides = [1, 1]} : vector<64x96xf32> to vector<64x8xf32>
    %177 = vector.shape_cast %173 : vector<64x8xf32> to vector<1x64x8xf32>
    %178 = vector.shape_cast %174 : vector<64x8xf32> to vector<1x64x8xf32>
    %179 = vector.shape_cast %175 : vector<64x8xf32> to vector<1x64x8xf32>
    %180 = vector.shape_cast %176 : vector<64x8xf32> to vector<1x64x8xf32>
    %181 = tpu.concatenate %177, %178, %179, %180 in 0 : vector<1x64x8xf32>, vector<1x64x8xf32>, vector<1x64x8xf32>, vector<1x64x8xf32> -> vector<4x64x8xf32>
    %182 = vector.extract_strided_slice %172 {offsets = [0, 32], sizes = [64, 8], strides = [1, 1]} : vector<64x96xf32> to vector<64x8xf32>
    %183 = vector.extract_strided_slice %172 {offsets = [0, 40], sizes = [64, 8], strides = [1, 1]} : vector<64x96xf32> to vector<64x8xf32>
    %184 = vector.extract_strided_slice %172 {offsets = [0, 48], sizes = [64, 8], strides = [1, 1]} : vector<64x96xf32> to vector<64x8xf32>
    %185 = vector.extract_strided_slice %172 {offsets = [0, 56], sizes = [64, 8], strides = [1, 1]} : vector<64x96xf32> to vector<64x8xf32>
    %186 = vector.shape_cast %182 : vector<64x8xf32> to vector<1x64x8xf32>
    %187 = vector.shape_cast %183 : vector<64x8xf32> to vector<1x64x8xf32>
    %188 = vector.shape_cast %184 : vector<64x8xf32> to vector<1x64x8xf32>
    %189 = vector.shape_cast %185 : vector<64x8xf32> to vector<1x64x8xf32>
    %190 = tpu.concatenate %186, %187, %188, %189 in 0 : vector<1x64x8xf32>, vector<1x64x8xf32>, vector<1x64x8xf32>, vector<1x64x8xf32> -> vector<4x64x8xf32>
    %191 = vector.extract_strided_slice %172 {offsets = [0, 64], sizes = [64, 8], strides = [1, 1]} : vector<64x96xf32> to vector<64x8xf32>
    %192 = vector.extract_strided_slice %172 {offsets = [0, 72], sizes = [64, 8], strides = [1, 1]} : vector<64x96xf32> to vector<64x8xf32>
    %193 = vector.extract_strided_slice %172 {offsets = [0, 80], sizes = [64, 8], strides = [1, 1]} : vector<64x96xf32> to vector<64x8xf32>
    %194 = vector.extract_strided_slice %172 {offsets = [0, 88], sizes = [64, 8], strides = [1, 1]} : vector<64x96xf32> to vector<64x8xf32>
    %195 = vector.shape_cast %191 : vector<64x8xf32> to vector<1x64x8xf32>
    %196 = vector.shape_cast %192 : vector<64x8xf32> to vector<1x64x8xf32>
    %197 = vector.shape_cast %193 : vector<64x8xf32> to vector<1x64x8xf32>
    %198 = vector.shape_cast %194 : vector<64x8xf32> to vector<1x64x8xf32>
    %199 = tpu.concatenate %195, %196, %197, %198 in 0 : vector<1x64x8xf32>, vector<1x64x8xf32>, vector<1x64x8xf32>, vector<1x64x8xf32> -> vector<4x64x8xf32>
    %200 = arith.truncf %181 : vector<4x64x8xf32> to vector<4x64x8xbf16>
    %201 = arith.truncf %190 : vector<4x64x8xf32> to vector<4x64x8xbf16>
    %cst_69 = arith.constant dense<0.000000e+00> : vector<4x64x64xf32>
    %202 = tpu.matmul %200, %201, %cst_69 {dimension_numbers = #tpu.dot_dimension_numbers<[2], [2], [1], [1], [0, 0, 0, 1, 1, 1], [0], [0]>} : vector<4x64x8xbf16>, vector<4x64x8xbf16>, vector<4x64x64xf32> -> vector<4x64x64xf32>
    %cst_70 = arith.constant 0.176776692 : f32
    %203 = vector.broadcast %cst_70 : f32 to vector<4x64x64xf32>
    %204 = arith.mulf %202, %203 : vector<4x64x64xf32>
    %205 = vector.shape_cast %1 : vector<64x64xf32> to vector<1x64x64xf32>
    %206 = vector.broadcast %205 : vector<1x64x64xf32> to vector<4x64x64xf32>
    %207 = arith.addf %204, %206 : vector<4x64x64xf32>
    %cst_71 = arith.constant dense<0xFF800000> : vector<4x64xf32>
    %208 = vector.multi_reduction <maximumf>, %207, %cst_71 [2] : vector<4x64x64xf32> to vector<4x64xf32>
    %209 = vector.shape_cast %208 : vector<4x64xf32> to vector<4x64x1xf32>
    %210 = vector.broadcast %209 : vector<4x64x1xf32> to vector<4x64x64xf32>
    %211 = arith.subf %207, %210 : vector<4x64x64xf32>
    %212 = math.exp %211 : vector<4x64x64xf32>
    %cst_72 = arith.constant dense<0.000000e+00> : vector<4x64xf32>
    %213 = vector.multi_reduction <add>, %212, %cst_72 [2] : vector<4x64x64xf32> to vector<4x64xf32>
    %214 = vector.shape_cast %213 : vector<4x64xf32> to vector<4x64x1xf32>
    %215 = tpu.reciprocal %214 {approx = true} : vector<4x64x1xf32> -> vector<4x64x1xf32>
    %216 = vector.broadcast %215 : vector<4x64x1xf32> to vector<4x64x64xf32>
    %217 = arith.mulf %212, %216 : vector<4x64x64xf32>
    %218 = arith.truncf %217 : vector<4x64x64xf32> to vector<4x64x64xbf16>
    %219 = arith.truncf %199 : vector<4x64x8xf32> to vector<4x64x8xbf16>
    %cst_73 = arith.constant dense<0.000000e+00> : vector<4x64x8xf32>
    %220 = tpu.matmul %218, %219, %cst_73 {dimension_numbers = #tpu.dot_dimension_numbers<[2], [1], [1], [2], [0, 0, 0, 1, 1, 2], [0], [0]>} : vector<4x64x64xbf16>, vector<4x64x8xbf16>, vector<4x64x8xf32> -> vector<4x64x8xf32>
    %221 = vector.extract_strided_slice %220 {offsets = [0, 0, 0], sizes = [1, 64, 8], strides = [1, 1, 1]} : vector<4x64x8xf32> to vector<1x64x8xf32>
    %222 = vector.shape_cast %221 : vector<1x64x8xf32> to vector<64x8xf32>
    %223 = vector.extract_strided_slice %220 {offsets = [1, 0, 0], sizes = [1, 64, 8], strides = [1, 1, 1]} : vector<4x64x8xf32> to vector<1x64x8xf32>
    %224 = vector.shape_cast %223 : vector<1x64x8xf32> to vector<64x8xf32>
    %225 = vector.extract_strided_slice %220 {offsets = [2, 0, 0], sizes = [1, 64, 8], strides = [1, 1, 1]} : vector<4x64x8xf32> to vector<1x64x8xf32>
    %226 = vector.shape_cast %225 : vector<1x64x8xf32> to vector<64x8xf32>
    %227 = vector.extract_strided_slice %220 {offsets = [3, 0, 0], sizes = [1, 64, 8], strides = [1, 1, 1]} : vector<4x64x8xf32> to vector<1x64x8xf32>
    %228 = vector.shape_cast %227 : vector<1x64x8xf32> to vector<64x8xf32>
    %229 = tpu.concatenate %222, %224, %226, %228 in 1 : vector<64x8xf32>, vector<64x8xf32>, vector<64x8xf32>, vector<64x8xf32> -> vector<64x32xf32>
    %c1_74 = arith.constant 1 : index
    %c0_75 = arith.constant 0 : index
    %c0_76 = arith.constant 0 : index
    %230 = vector.load %arg6[%c1_74, %c0_75, %c0_76] : memref<4x32x32xbf16, #tpu.memory_space<vmem>>, vector<1x32x32xbf16>
    %231 = vector.shape_cast %230 : vector<1x32x32xbf16> to vector<32x32xbf16>
    %232 = arith.truncf %229 : vector<64x32xf32> to vector<64x32xbf16>
    %cst_77 = arith.constant dense<0.000000e+00> : vector<64x32xf32>
    %233 = tpu.matmul %232, %231, %cst_77 {dimension_numbers = #tpu.dot_dimension_numbers<[1], [0], [0], [1], [0, 0, 1, 1], [], []>} : vector<64x32xbf16>, vector<32x32xbf16>, vector<64x32xf32> -> vector<64x32xf32>
    %234 = arith.addf %142, %233 : vector<64x32xf32>
    %c1_78 = arith.constant 1 : index
    %c0_79 = arith.constant 0 : index
    %c0_80 = arith.constant 0 : index
    %235 = vector.load %arg7[%c1_78, %c0_79, %c0_80] : memref<4x1x32xf32, #tpu.memory_space<vmem>>, vector<1x1x32xf32>
    %236 = vector.shape_cast %235 : vector<1x1x32xf32> to vector<1x32xf32>
    %237 = vector.broadcast %236 : vector<1x32xf32> to vector<64x32xf32>
    %238 = arith.addf %234, %237 : vector<64x32xf32>
    %c1_81 = arith.constant 1 : index
    %c0_82 = arith.constant 0 : index
    %c0_83 = arith.constant 0 : index
    %239 = vector.load %arg8[%c1_81, %c0_82, %c0_83] : memref<4x1x32xf32, #tpu.memory_space<vmem>>, vector<1x1x32xf32>
    %240 = vector.shape_cast %239 : vector<1x1x32xf32> to vector<1x32xf32>
    %c1_84 = arith.constant 1 : index
    %c0_85 = arith.constant 0 : index
    %c0_86 = arith.constant 0 : index
    %241 = vector.load %arg9[%c1_84, %c0_85, %c0_86] : memref<4x1x32xf32, #tpu.memory_space<vmem>>, vector<1x1x32xf32>
    %242 = vector.shape_cast %241 : vector<1x1x32xf32> to vector<1x32xf32>
    %cst_87 = arith.constant dense<0.000000e+00> : vector<64xf32>
    %243 = vector.multi_reduction <add>, %238, %cst_87 [1] : vector<64x32xf32> to vector<64xf32>
    %244 = vector.shape_cast %243 : vector<64xf32> to vector<64x1xf32>
    %cst_88 = arith.constant 3.200000e+01 : f32
    %245 = vector.broadcast %cst_88 : f32 to vector<64x1xf32>
    %246 = arith.divf %244, %245 : vector<64x1xf32>
    %247 = vector.broadcast %246 : vector<64x1xf32> to vector<64x32xf32>
    %248 = arith.subf %238, %247 : vector<64x32xf32>
    %249 = arith.mulf %248, %248 : vector<64x32xf32>
    %cst_89 = arith.constant dense<0.000000e+00> : vector<64xf32>
    %250 = vector.multi_reduction <add>, %249, %cst_89 [1] : vector<64x32xf32> to vector<64xf32>
    %251 = vector.shape_cast %250 : vector<64xf32> to vector<64x1xf32>
    %cst_90 = arith.constant 3.200000e+01 : f32
    %252 = vector.broadcast %cst_90 : f32 to vector<64x1xf32>
    %253 = arith.divf %251, %252 : vector<64x1xf32>
    %254 = vector.broadcast %246 : vector<64x1xf32> to vector<64x32xf32>
    %255 = arith.subf %238, %254 : vector<64x32xf32>
    %cst_91 = arith.constant 9.99999974E-6 : f32
    %256 = vector.broadcast %cst_91 : f32 to vector<64x1xf32>
    %257 = arith.addf %253, %256 : vector<64x1xf32>
    %258 = math.rsqrt %257 : vector<64x1xf32>
    %259 = vector.broadcast %258 : vector<64x1xf32> to vector<64x32xf32>
    %260 = arith.mulf %255, %259 : vector<64x32xf32>
    %261 = vector.broadcast %240 : vector<1x32xf32> to vector<64x32xf32>
    %262 = arith.mulf %260, %261 : vector<64x32xf32>
    %263 = vector.broadcast %242 : vector<1x32xf32> to vector<64x32xf32>
    %264 = arith.addf %262, %263 : vector<64x32xf32>
    %c1_92 = arith.constant 1 : index
    %c0_93 = arith.constant 0 : index
    %c0_94 = arith.constant 0 : index
    %265 = vector.load %arg10[%c1_92, %c0_93, %c0_94] : memref<4x32x128xbf16, #tpu.memory_space<vmem>>, vector<1x32x128xbf16>
    %266 = vector.shape_cast %265 : vector<1x32x128xbf16> to vector<32x128xbf16>
    %267 = arith.truncf %264 : vector<64x32xf32> to vector<64x32xbf16>
    %cst_95 = arith.constant dense<0.000000e+00> : vector<64x128xf32>
    %268 = tpu.matmul %267, %266, %cst_95 {dimension_numbers = #tpu.dot_dimension_numbers<[1], [0], [0], [1], [0, 0, 1, 1], [], []>} : vector<64x32xbf16>, vector<32x128xbf16>, vector<64x128xf32> -> vector<64x128xf32>
    %c1_96 = arith.constant 1 : index
    %c0_97 = arith.constant 0 : index
    %c0_98 = arith.constant 0 : index
    %269 = vector.load %arg11[%c1_96, %c0_97, %c0_98] : memref<4x1x128xf32, #tpu.memory_space<vmem>>, vector<1x1x128xf32>
    %270 = vector.shape_cast %269 : vector<1x1x128xf32> to vector<1x128xf32>
    %271 = vector.broadcast %270 : vector<1x128xf32> to vector<64x128xf32>
    %272 = arith.addf %268, %271 : vector<64x128xf32>
    %cst_99 = arith.constant 0.000000e+00 : f32
    %273 = vector.broadcast %cst_99 : f32 to vector<64x128xf32>
    %274 = arith.maximumf %272, %273 : vector<64x128xf32>
    %c1_100 = arith.constant 1 : index
    %c0_101 = arith.constant 0 : index
    %c0_102 = arith.constant 0 : index
    %275 = vector.load %arg12[%c1_100, %c0_101, %c0_102] : memref<4x128x32xbf16, #tpu.memory_space<vmem>>, vector<1x128x32xbf16>
    %276 = vector.shape_cast %275 : vector<1x128x32xbf16> to vector<128x32xbf16>
    %277 = arith.truncf %274 : vector<64x128xf32> to vector<64x128xbf16>
    %cst_103 = arith.constant dense<0.000000e+00> : vector<64x32xf32>
    %278 = tpu.matmul %277, %276, %cst_103 {dimension_numbers = #tpu.dot_dimension_numbers<[1], [0], [0], [1], [0, 0, 1, 1], [], []>} : vector<64x128xbf16>, vector<128x32xbf16>, vector<64x32xf32> -> vector<64x32xf32>
    %279 = arith.addf %238, %278 : vector<64x32xf32>
    %c1_104 = arith.constant 1 : index
    %c0_105 = arith.constant 0 : index
    %c0_106 = arith.constant 0 : index
    %280 = vector.load %arg13[%c1_104, %c0_105, %c0_106] : memref<4x1x32xf32, #tpu.memory_space<vmem>>, vector<1x1x32xf32>
    %281 = vector.shape_cast %280 : vector<1x1x32xf32> to vector<1x32xf32>
    %282 = vector.broadcast %281 : vector<1x32xf32> to vector<64x32xf32>
    %283 = arith.addf %279, %282 : vector<64x32xf32>
    %c2 = arith.constant 2 : index
    %c0_107 = arith.constant 0 : index
    %c0_108 = arith.constant 0 : index
    %284 = vector.load %arg3[%c2, %c0_107, %c0_108] : memref<4x1x32xf32, #tpu.memory_space<vmem>>, vector<1x1x32xf32>
    %285 = vector.shape_cast %284 : vector<1x1x32xf32> to vector<1x32xf32>
    %c2_109 = arith.constant 2 : index
    %c0_110 = arith.constant 0 : index
    %c0_111 = arith.constant 0 : index
    %286 = vector.load %arg4[%c2_109, %c0_110, %c0_111] : memref<4x1x32xf32, #tpu.memory_space<vmem>>, vector<1x1x32xf32>
    %287 = vector.shape_cast %286 : vector<1x1x32xf32> to vector<1x32xf32>
    %cst_112 = arith.constant dense<0.000000e+00> : vector<64xf32>
    %288 = vector.multi_reduction <add>, %283, %cst_112 [1] : vector<64x32xf32> to vector<64xf32>
    %289 = vector.shape_cast %288 : vector<64xf32> to vector<64x1xf32>
    %cst_113 = arith.constant 3.200000e+01 : f32
    %290 = vector.broadcast %cst_113 : f32 to vector<64x1xf32>
    %291 = arith.divf %289, %290 : vector<64x1xf32>
    %292 = vector.broadcast %291 : vector<64x1xf32> to vector<64x32xf32>
    %293 = arith.subf %283, %292 : vector<64x32xf32>
    %294 = arith.mulf %293, %293 : vector<64x32xf32>
    %cst_114 = arith.constant dense<0.000000e+00> : vector<64xf32>
    %295 = vector.multi_reduction <add>, %294, %cst_114 [1] : vector<64x32xf32> to vector<64xf32>
    %296 = vector.shape_cast %295 : vector<64xf32> to vector<64x1xf32>
    %cst_115 = arith.constant 3.200000e+01 : f32
    %297 = vector.broadcast %cst_115 : f32 to vector<64x1xf32>
    %298 = arith.divf %296, %297 : vector<64x1xf32>
    %299 = vector.broadcast %291 : vector<64x1xf32> to vector<64x32xf32>
    %300 = arith.subf %283, %299 : vector<64x32xf32>
    %cst_116 = arith.constant 9.99999974E-6 : f32
    %301 = vector.broadcast %cst_116 : f32 to vector<64x1xf32>
    %302 = arith.addf %298, %301 : vector<64x1xf32>
    %303 = math.rsqrt %302 : vector<64x1xf32>
    %304 = vector.broadcast %303 : vector<64x1xf32> to vector<64x32xf32>
    %305 = arith.mulf %300, %304 : vector<64x32xf32>
    %306 = vector.broadcast %285 : vector<1x32xf32> to vector<64x32xf32>
    %307 = arith.mulf %305, %306 : vector<64x32xf32>
    %308 = vector.broadcast %287 : vector<1x32xf32> to vector<64x32xf32>
    %309 = arith.addf %307, %308 : vector<64x32xf32>
    %c2_117 = arith.constant 2 : index
    %c0_118 = arith.constant 0 : index
    %c0_119 = arith.constant 0 : index
    %310 = vector.load %arg5[%c2_117, %c0_118, %c0_119] : memref<4x32x96xbf16, #tpu.memory_space<vmem>>, vector<1x32x96xbf16>
    %311 = vector.shape_cast %310 : vector<1x32x96xbf16> to vector<32x96xbf16>
    %312 = arith.truncf %309 : vector<64x32xf32> to vector<64x32xbf16>
    %cst_120 = arith.constant dense<0.000000e+00> : vector<64x96xf32>
    %313 = tpu.matmul %312, %311, %cst_120 {dimension_numbers = #tpu.dot_dimension_numbers<[1], [0], [0], [1], [0, 0, 1, 1], [], []>} : vector<64x32xbf16>, vector<32x96xbf16>, vector<64x96xf32> -> vector<64x96xf32>
    %314 = vector.extract_strided_slice %313 {offsets = [0, 0], sizes = [64, 8], strides = [1, 1]} : vector<64x96xf32> to vector<64x8xf32>
    %315 = vector.extract_strided_slice %313 {offsets = [0, 8], sizes = [64, 8], strides = [1, 1]} : vector<64x96xf32> to vector<64x8xf32>
    %316 = vector.extract_strided_slice %313 {offsets = [0, 16], sizes = [64, 8], strides = [1, 1]} : vector<64x96xf32> to vector<64x8xf32>
    %317 = vector.extract_strided_slice %313 {offsets = [0, 24], sizes = [64, 8], strides = [1, 1]} : vector<64x96xf32> to vector<64x8xf32>
    %318 = vector.shape_cast %314 : vector<64x8xf32> to vector<1x64x8xf32>
    %319 = vector.shape_cast %315 : vector<64x8xf32> to vector<1x64x8xf32>
    %320 = vector.shape_cast %316 : vector<64x8xf32> to vector<1x64x8xf32>
    %321 = vector.shape_cast %317 : vector<64x8xf32> to vector<1x64x8xf32>
    %322 = tpu.concatenate %318, %319, %320, %321 in 0 : vector<1x64x8xf32>, vector<1x64x8xf32>, vector<1x64x8xf32>, vector<1x64x8xf32> -> vector<4x64x8xf32>
    %323 = vector.extract_strided_slice %313 {offsets = [0, 32], sizes = [64, 8], strides = [1, 1]} : vector<64x96xf32> to vector<64x8xf32>
    %324 = vector.extract_strided_slice %313 {offsets = [0, 40], sizes = [64, 8], strides = [1, 1]} : vector<64x96xf32> to vector<64x8xf32>
    %325 = vector.extract_strided_slice %313 {offsets = [0, 48], sizes = [64, 8], strides = [1, 1]} : vector<64x96xf32> to vector<64x8xf32>
    %326 = vector.extract_strided_slice %313 {offsets = [0, 56], sizes = [64, 8], strides = [1, 1]} : vector<64x96xf32> to vector<64x8xf32>
    %327 = vector.shape_cast %323 : vector<64x8xf32> to vector<1x64x8xf32>
    %328 = vector.shape_cast %324 : vector<64x8xf32> to vector<1x64x8xf32>
    %329 = vector.shape_cast %325 : vector<64x8xf32> to vector<1x64x8xf32>
    %330 = vector.shape_cast %326 : vector<64x8xf32> to vector<1x64x8xf32>
    %331 = tpu.concatenate %327, %328, %329, %330 in 0 : vector<1x64x8xf32>, vector<1x64x8xf32>, vector<1x64x8xf32>, vector<1x64x8xf32> -> vector<4x64x8xf32>
    %332 = vector.extract_strided_slice %313 {offsets = [0, 64], sizes = [64, 8], strides = [1, 1]} : vector<64x96xf32> to vector<64x8xf32>
    %333 = vector.extract_strided_slice %313 {offsets = [0, 72], sizes = [64, 8], strides = [1, 1]} : vector<64x96xf32> to vector<64x8xf32>
    %334 = vector.extract_strided_slice %313 {offsets = [0, 80], sizes = [64, 8], strides = [1, 1]} : vector<64x96xf32> to vector<64x8xf32>
    %335 = vector.extract_strided_slice %313 {offsets = [0, 88], sizes = [64, 8], strides = [1, 1]} : vector<64x96xf32> to vector<64x8xf32>
    %336 = vector.shape_cast %332 : vector<64x8xf32> to vector<1x64x8xf32>
    %337 = vector.shape_cast %333 : vector<64x8xf32> to vector<1x64x8xf32>
    %338 = vector.shape_cast %334 : vector<64x8xf32> to vector<1x64x8xf32>
    %339 = vector.shape_cast %335 : vector<64x8xf32> to vector<1x64x8xf32>
    %340 = tpu.concatenate %336, %337, %338, %339 in 0 : vector<1x64x8xf32>, vector<1x64x8xf32>, vector<1x64x8xf32>, vector<1x64x8xf32> -> vector<4x64x8xf32>
    %341 = arith.truncf %322 : vector<4x64x8xf32> to vector<4x64x8xbf16>
    %342 = arith.truncf %331 : vector<4x64x8xf32> to vector<4x64x8xbf16>
    %cst_121 = arith.constant dense<0.000000e+00> : vector<4x64x64xf32>
    %343 = tpu.matmul %341, %342, %cst_121 {dimension_numbers = #tpu.dot_dimension_numbers<[2], [2], [1], [1], [0, 0, 0, 1, 1, 1], [0], [0]>} : vector<4x64x8xbf16>, vector<4x64x8xbf16>, vector<4x64x64xf32> -> vector<4x64x64xf32>
    %cst_122 = arith.constant 0.176776692 : f32
    %344 = vector.broadcast %cst_122 : f32 to vector<4x64x64xf32>
    %345 = arith.mulf %343, %344 : vector<4x64x64xf32>
    %346 = vector.shape_cast %1 : vector<64x64xf32> to vector<1x64x64xf32>
    %347 = vector.broadcast %346 : vector<1x64x64xf32> to vector<4x64x64xf32>
    %348 = arith.addf %345, %347 : vector<4x64x64xf32>
    %cst_123 = arith.constant dense<0xFF800000> : vector<4x64xf32>
    %349 = vector.multi_reduction <maximumf>, %348, %cst_123 [2] : vector<4x64x64xf32> to vector<4x64xf32>
    %350 = vector.shape_cast %349 : vector<4x64xf32> to vector<4x64x1xf32>
    %351 = vector.broadcast %350 : vector<4x64x1xf32> to vector<4x64x64xf32>
    %352 = arith.subf %348, %351 : vector<4x64x64xf32>
    %353 = math.exp %352 : vector<4x64x64xf32>
    %cst_124 = arith.constant dense<0.000000e+00> : vector<4x64xf32>
    %354 = vector.multi_reduction <add>, %353, %cst_124 [2] : vector<4x64x64xf32> to vector<4x64xf32>
    %355 = vector.shape_cast %354 : vector<4x64xf32> to vector<4x64x1xf32>
    %356 = tpu.reciprocal %355 {approx = true} : vector<4x64x1xf32> -> vector<4x64x1xf32>
    %357 = vector.broadcast %356 : vector<4x64x1xf32> to vector<4x64x64xf32>
    %358 = arith.mulf %353, %357 : vector<4x64x64xf32>
    %359 = arith.truncf %358 : vector<4x64x64xf32> to vector<4x64x64xbf16>
    %360 = arith.truncf %340 : vector<4x64x8xf32> to vector<4x64x8xbf16>
    %cst_125 = arith.constant dense<0.000000e+00> : vector<4x64x8xf32>
    %361 = tpu.matmul %359, %360, %cst_125 {dimension_numbers = #tpu.dot_dimension_numbers<[2], [1], [1], [2], [0, 0, 0, 1, 1, 2], [0], [0]>} : vector<4x64x64xbf16>, vector<4x64x8xbf16>, vector<4x64x8xf32> -> vector<4x64x8xf32>
    %362 = vector.extract_strided_slice %361 {offsets = [0, 0, 0], sizes = [1, 64, 8], strides = [1, 1, 1]} : vector<4x64x8xf32> to vector<1x64x8xf32>
    %363 = vector.shape_cast %362 : vector<1x64x8xf32> to vector<64x8xf32>
    %364 = vector.extract_strided_slice %361 {offsets = [1, 0, 0], sizes = [1, 64, 8], strides = [1, 1, 1]} : vector<4x64x8xf32> to vector<1x64x8xf32>
    %365 = vector.shape_cast %364 : vector<1x64x8xf32> to vector<64x8xf32>
    %366 = vector.extract_strided_slice %361 {offsets = [2, 0, 0], sizes = [1, 64, 8], strides = [1, 1, 1]} : vector<4x64x8xf32> to vector<1x64x8xf32>
    %367 = vector.shape_cast %366 : vector<1x64x8xf32> to vector<64x8xf32>
    %368 = vector.extract_strided_slice %361 {offsets = [3, 0, 0], sizes = [1, 64, 8], strides = [1, 1, 1]} : vector<4x64x8xf32> to vector<1x64x8xf32>
    %369 = vector.shape_cast %368 : vector<1x64x8xf32> to vector<64x8xf32>
    %370 = tpu.concatenate %363, %365, %367, %369 in 1 : vector<64x8xf32>, vector<64x8xf32>, vector<64x8xf32>, vector<64x8xf32> -> vector<64x32xf32>
    %c2_126 = arith.constant 2 : index
    %c0_127 = arith.constant 0 : index
    %c0_128 = arith.constant 0 : index
    %371 = vector.load %arg6[%c2_126, %c0_127, %c0_128] : memref<4x32x32xbf16, #tpu.memory_space<vmem>>, vector<1x32x32xbf16>
    %372 = vector.shape_cast %371 : vector<1x32x32xbf16> to vector<32x32xbf16>
    %373 = arith.truncf %370 : vector<64x32xf32> to vector<64x32xbf16>
    %cst_129 = arith.constant dense<0.000000e+00> : vector<64x32xf32>
    %374 = tpu.matmul %373, %372, %cst_129 {dimension_numbers = #tpu.dot_dimension_numbers<[1], [0], [0], [1], [0, 0, 1, 1], [], []>} : vector<64x32xbf16>, vector<32x32xbf16>, vector<64x32xf32> -> vector<64x32xf32>
    %375 = arith.addf %283, %374 : vector<64x32xf32>
    %c2_130 = arith.constant 2 : index
    %c0_131 = arith.constant 0 : index
    %c0_132 = arith.constant 0 : index
    %376 = vector.load %arg7[%c2_130, %c0_131, %c0_132] : memref<4x1x32xf32, #tpu.memory_space<vmem>>, vector<1x1x32xf32>
    %377 = vector.shape_cast %376 : vector<1x1x32xf32> to vector<1x32xf32>
    %378 = vector.broadcast %377 : vector<1x32xf32> to vector<64x32xf32>
    %379 = arith.addf %375, %378 : vector<64x32xf32>
    %c2_133 = arith.constant 2 : index
    %c0_134 = arith.constant 0 : index
    %c0_135 = arith.constant 0 : index
    %380 = vector.load %arg8[%c2_133, %c0_134, %c0_135] : memref<4x1x32xf32, #tpu.memory_space<vmem>>, vector<1x1x32xf32>
    %381 = vector.shape_cast %380 : vector<1x1x32xf32> to vector<1x32xf32>
    %c2_136 = arith.constant 2 : index
    %c0_137 = arith.constant 0 : index
    %c0_138 = arith.constant 0 : index
    %382 = vector.load %arg9[%c2_136, %c0_137, %c0_138] : memref<4x1x32xf32, #tpu.memory_space<vmem>>, vector<1x1x32xf32>
    %383 = vector.shape_cast %382 : vector<1x1x32xf32> to vector<1x32xf32>
    %cst_139 = arith.constant dense<0.000000e+00> : vector<64xf32>
    %384 = vector.multi_reduction <add>, %379, %cst_139 [1] : vector<64x32xf32> to vector<64xf32>
    %385 = vector.shape_cast %384 : vector<64xf32> to vector<64x1xf32>
    %cst_140 = arith.constant 3.200000e+01 : f32
    %386 = vector.broadcast %cst_140 : f32 to vector<64x1xf32>
    %387 = arith.divf %385, %386 : vector<64x1xf32>
    %388 = vector.broadcast %387 : vector<64x1xf32> to vector<64x32xf32>
    %389 = arith.subf %379, %388 : vector<64x32xf32>
    %390 = arith.mulf %389, %389 : vector<64x32xf32>
    %cst_141 = arith.constant dense<0.000000e+00> : vector<64xf32>
    %391 = vector.multi_reduction <add>, %390, %cst_141 [1] : vector<64x32xf32> to vector<64xf32>
    %392 = vector.shape_cast %391 : vector<64xf32> to vector<64x1xf32>
    %cst_142 = arith.constant 3.200000e+01 : f32
    %393 = vector.broadcast %cst_142 : f32 to vector<64x1xf32>
    %394 = arith.divf %392, %393 : vector<64x1xf32>
    %395 = vector.broadcast %387 : vector<64x1xf32> to vector<64x32xf32>
    %396 = arith.subf %379, %395 : vector<64x32xf32>
    %cst_143 = arith.constant 9.99999974E-6 : f32
    %397 = vector.broadcast %cst_143 : f32 to vector<64x1xf32>
    %398 = arith.addf %394, %397 : vector<64x1xf32>
    %399 = math.rsqrt %398 : vector<64x1xf32>
    %400 = vector.broadcast %399 : vector<64x1xf32> to vector<64x32xf32>
    %401 = arith.mulf %396, %400 : vector<64x32xf32>
    %402 = vector.broadcast %381 : vector<1x32xf32> to vector<64x32xf32>
    %403 = arith.mulf %401, %402 : vector<64x32xf32>
    %404 = vector.broadcast %383 : vector<1x32xf32> to vector<64x32xf32>
    %405 = arith.addf %403, %404 : vector<64x32xf32>
    %c2_144 = arith.constant 2 : index
    %c0_145 = arith.constant 0 : index
    %c0_146 = arith.constant 0 : index
    %406 = vector.load %arg10[%c2_144, %c0_145, %c0_146] : memref<4x32x128xbf16, #tpu.memory_space<vmem>>, vector<1x32x128xbf16>
    %407 = vector.shape_cast %406 : vector<1x32x128xbf16> to vector<32x128xbf16>
    %408 = arith.truncf %405 : vector<64x32xf32> to vector<64x32xbf16>
    %cst_147 = arith.constant dense<0.000000e+00> : vector<64x128xf32>
    %409 = tpu.matmul %408, %407, %cst_147 {dimension_numbers = #tpu.dot_dimension_numbers<[1], [0], [0], [1], [0, 0, 1, 1], [], []>} : vector<64x32xbf16>, vector<32x128xbf16>, vector<64x128xf32> -> vector<64x128xf32>
    %c2_148 = arith.constant 2 : index
    %c0_149 = arith.constant 0 : index
    %c0_150 = arith.constant 0 : index
    %410 = vector.load %arg11[%c2_148, %c0_149, %c0_150] : memref<4x1x128xf32, #tpu.memory_space<vmem>>, vector<1x1x128xf32>
    %411 = vector.shape_cast %410 : vector<1x1x128xf32> to vector<1x128xf32>
    %412 = vector.broadcast %411 : vector<1x128xf32> to vector<64x128xf32>
    %413 = arith.addf %409, %412 : vector<64x128xf32>
    %cst_151 = arith.constant 0.000000e+00 : f32
    %414 = vector.broadcast %cst_151 : f32 to vector<64x128xf32>
    %415 = arith.maximumf %413, %414 : vector<64x128xf32>
    %c2_152 = arith.constant 2 : index
    %c0_153 = arith.constant 0 : index
    %c0_154 = arith.constant 0 : index
    %416 = vector.load %arg12[%c2_152, %c0_153, %c0_154] : memref<4x128x32xbf16, #tpu.memory_space<vmem>>, vector<1x128x32xbf16>
    %417 = vector.shape_cast %416 : vector<1x128x32xbf16> to vector<128x32xbf16>
    %418 = arith.truncf %415 : vector<64x128xf32> to vector<64x128xbf16>
    %cst_155 = arith.constant dense<0.000000e+00> : vector<64x32xf32>
    %419 = tpu.matmul %418, %417, %cst_155 {dimension_numbers = #tpu.dot_dimension_numbers<[1], [0], [0], [1], [0, 0, 1, 1], [], []>} : vector<64x128xbf16>, vector<128x32xbf16>, vector<64x32xf32> -> vector<64x32xf32>
    %420 = arith.addf %379, %419 : vector<64x32xf32>
    %c2_156 = arith.constant 2 : index
    %c0_157 = arith.constant 0 : index
    %c0_158 = arith.constant 0 : index
    %421 = vector.load %arg13[%c2_156, %c0_157, %c0_158] : memref<4x1x32xf32, #tpu.memory_space<vmem>>, vector<1x1x32xf32>
    %422 = vector.shape_cast %421 : vector<1x1x32xf32> to vector<1x32xf32>
    %423 = vector.broadcast %422 : vector<1x32xf32> to vector<64x32xf32>
    %424 = arith.addf %420, %423 : vector<64x32xf32>
    %c3 = arith.constant 3 : index
    %c0_159 = arith.constant 0 : index
    %c0_160 = arith.constant 0 : index
    %425 = vector.load %arg3[%c3, %c0_159, %c0_160] : memref<4x1x32xf32, #tpu.memory_space<vmem>>, vector<1x1x32xf32>
    %426 = vector.shape_cast %425 : vector<1x1x32xf32> to vector<1x32xf32>
    %c3_161 = arith.constant 3 : index
    %c0_162 = arith.constant 0 : index
    %c0_163 = arith.constant 0 : index
    %427 = vector.load %arg4[%c3_161, %c0_162, %c0_163] : memref<4x1x32xf32, #tpu.memory_space<vmem>>, vector<1x1x32xf32>
    %428 = vector.shape_cast %427 : vector<1x1x32xf32> to vector<1x32xf32>
    %cst_164 = arith.constant dense<0.000000e+00> : vector<64xf32>
    %429 = vector.multi_reduction <add>, %424, %cst_164 [1] : vector<64x32xf32> to vector<64xf32>
    %430 = vector.shape_cast %429 : vector<64xf32> to vector<64x1xf32>
    %cst_165 = arith.constant 3.200000e+01 : f32
    %431 = vector.broadcast %cst_165 : f32 to vector<64x1xf32>
    %432 = arith.divf %430, %431 : vector<64x1xf32>
    %433 = vector.broadcast %432 : vector<64x1xf32> to vector<64x32xf32>
    %434 = arith.subf %424, %433 : vector<64x32xf32>
    %435 = arith.mulf %434, %434 : vector<64x32xf32>
    %cst_166 = arith.constant dense<0.000000e+00> : vector<64xf32>
    %436 = vector.multi_reduction <add>, %435, %cst_166 [1] : vector<64x32xf32> to vector<64xf32>
    %437 = vector.shape_cast %436 : vector<64xf32> to vector<64x1xf32>
    %cst_167 = arith.constant 3.200000e+01 : f32
    %438 = vector.broadcast %cst_167 : f32 to vector<64x1xf32>
    %439 = arith.divf %437, %438 : vector<64x1xf32>
    %440 = vector.broadcast %432 : vector<64x1xf32> to vector<64x32xf32>
    %441 = arith.subf %424, %440 : vector<64x32xf32>
    %cst_168 = arith.constant 9.99999974E-6 : f32
    %442 = vector.broadcast %cst_168 : f32 to vector<64x1xf32>
    %443 = arith.addf %439, %442 : vector<64x1xf32>
    %444 = math.rsqrt %443 : vector<64x1xf32>
    %445 = vector.broadcast %444 : vector<64x1xf32> to vector<64x32xf32>
    %446 = arith.mulf %441, %445 : vector<64x32xf32>
    %447 = vector.broadcast %426 : vector<1x32xf32> to vector<64x32xf32>
    %448 = arith.mulf %446, %447 : vector<64x32xf32>
    %449 = vector.broadcast %428 : vector<1x32xf32> to vector<64x32xf32>
    %450 = arith.addf %448, %449 : vector<64x32xf32>
    %c3_169 = arith.constant 3 : index
    %c0_170 = arith.constant 0 : index
    %c0_171 = arith.constant 0 : index
    %451 = vector.load %arg5[%c3_169, %c0_170, %c0_171] : memref<4x32x96xbf16, #tpu.memory_space<vmem>>, vector<1x32x96xbf16>
    %452 = vector.shape_cast %451 : vector<1x32x96xbf16> to vector<32x96xbf16>
    %453 = arith.truncf %450 : vector<64x32xf32> to vector<64x32xbf16>
    %cst_172 = arith.constant dense<0.000000e+00> : vector<64x96xf32>
    %454 = tpu.matmul %453, %452, %cst_172 {dimension_numbers = #tpu.dot_dimension_numbers<[1], [0], [0], [1], [0, 0, 1, 1], [], []>} : vector<64x32xbf16>, vector<32x96xbf16>, vector<64x96xf32> -> vector<64x96xf32>
    %455 = vector.extract_strided_slice %454 {offsets = [0, 0], sizes = [64, 8], strides = [1, 1]} : vector<64x96xf32> to vector<64x8xf32>
    %456 = vector.extract_strided_slice %454 {offsets = [0, 8], sizes = [64, 8], strides = [1, 1]} : vector<64x96xf32> to vector<64x8xf32>
    %457 = vector.extract_strided_slice %454 {offsets = [0, 16], sizes = [64, 8], strides = [1, 1]} : vector<64x96xf32> to vector<64x8xf32>
    %458 = vector.extract_strided_slice %454 {offsets = [0, 24], sizes = [64, 8], strides = [1, 1]} : vector<64x96xf32> to vector<64x8xf32>
    %459 = vector.shape_cast %455 : vector<64x8xf32> to vector<1x64x8xf32>
    %460 = vector.shape_cast %456 : vector<64x8xf32> to vector<1x64x8xf32>
    %461 = vector.shape_cast %457 : vector<64x8xf32> to vector<1x64x8xf32>
    %462 = vector.shape_cast %458 : vector<64x8xf32> to vector<1x64x8xf32>
    %463 = tpu.concatenate %459, %460, %461, %462 in 0 : vector<1x64x8xf32>, vector<1x64x8xf32>, vector<1x64x8xf32>, vector<1x64x8xf32> -> vector<4x64x8xf32>
    %464 = vector.extract_strided_slice %454 {offsets = [0, 32], sizes = [64, 8], strides = [1, 1]} : vector<64x96xf32> to vector<64x8xf32>
    %465 = vector.extract_strided_slice %454 {offsets = [0, 40], sizes = [64, 8], strides = [1, 1]} : vector<64x96xf32> to vector<64x8xf32>
    %466 = vector.extract_strided_slice %454 {offsets = [0, 48], sizes = [64, 8], strides = [1, 1]} : vector<64x96xf32> to vector<64x8xf32>
    %467 = vector.extract_strided_slice %454 {offsets = [0, 56], sizes = [64, 8], strides = [1, 1]} : vector<64x96xf32> to vector<64x8xf32>
    %468 = vector.shape_cast %464 : vector<64x8xf32> to vector<1x64x8xf32>
    %469 = vector.shape_cast %465 : vector<64x8xf32> to vector<1x64x8xf32>
    %470 = vector.shape_cast %466 : vector<64x8xf32> to vector<1x64x8xf32>
    %471 = vector.shape_cast %467 : vector<64x8xf32> to vector<1x64x8xf32>
    %472 = tpu.concatenate %468, %469, %470, %471 in 0 : vector<1x64x8xf32>, vector<1x64x8xf32>, vector<1x64x8xf32>, vector<1x64x8xf32> -> vector<4x64x8xf32>
    %473 = vector.extract_strided_slice %454 {offsets = [0, 64], sizes = [64, 8], strides = [1, 1]} : vector<64x96xf32> to vector<64x8xf32>
    %474 = vector.extract_strided_slice %454 {offsets = [0, 72], sizes = [64, 8], strides = [1, 1]} : vector<64x96xf32> to vector<64x8xf32>
    %475 = vector.extract_strided_slice %454 {offsets = [0, 80], sizes = [64, 8], strides = [1, 1]} : vector<64x96xf32> to vector<64x8xf32>
    %476 = vector.extract_strided_slice %454 {offsets = [0, 88], sizes = [64, 8], strides = [1, 1]} : vector<64x96xf32> to vector<64x8xf32>
    %477 = vector.shape_cast %473 : vector<64x8xf32> to vector<1x64x8xf32>
    %478 = vector.shape_cast %474 : vector<64x8xf32> to vector<1x64x8xf32>
    %479 = vector.shape_cast %475 : vector<64x8xf32> to vector<1x64x8xf32>
    %480 = vector.shape_cast %476 : vector<64x8xf32> to vector<1x64x8xf32>
    %481 = tpu.concatenate %477, %478, %479, %480 in 0 : vector<1x64x8xf32>, vector<1x64x8xf32>, vector<1x64x8xf32>, vector<1x64x8xf32> -> vector<4x64x8xf32>
    %482 = arith.truncf %463 : vector<4x64x8xf32> to vector<4x64x8xbf16>
    %483 = arith.truncf %472 : vector<4x64x8xf32> to vector<4x64x8xbf16>
    %cst_173 = arith.constant dense<0.000000e+00> : vector<4x64x64xf32>
    %484 = tpu.matmul %482, %483, %cst_173 {dimension_numbers = #tpu.dot_dimension_numbers<[2], [2], [1], [1], [0, 0, 0, 1, 1, 1], [0], [0]>} : vector<4x64x8xbf16>, vector<4x64x8xbf16>, vector<4x64x64xf32> -> vector<4x64x64xf32>
    %cst_174 = arith.constant 0.176776692 : f32
    %485 = vector.broadcast %cst_174 : f32 to vector<4x64x64xf32>
    %486 = arith.mulf %484, %485 : vector<4x64x64xf32>
    %487 = vector.shape_cast %1 : vector<64x64xf32> to vector<1x64x64xf32>
    %488 = vector.broadcast %487 : vector<1x64x64xf32> to vector<4x64x64xf32>
    %489 = arith.addf %486, %488 : vector<4x64x64xf32>
    %cst_175 = arith.constant dense<0xFF800000> : vector<4x64xf32>
    %490 = vector.multi_reduction <maximumf>, %489, %cst_175 [2] : vector<4x64x64xf32> to vector<4x64xf32>
    %491 = vector.shape_cast %490 : vector<4x64xf32> to vector<4x64x1xf32>
    %492 = vector.broadcast %491 : vector<4x64x1xf32> to vector<4x64x64xf32>
    %493 = arith.subf %489, %492 : vector<4x64x64xf32>
    %494 = math.exp %493 : vector<4x64x64xf32>
    %cst_176 = arith.constant dense<0.000000e+00> : vector<4x64xf32>
    %495 = vector.multi_reduction <add>, %494, %cst_176 [2] : vector<4x64x64xf32> to vector<4x64xf32>
    %496 = vector.shape_cast %495 : vector<4x64xf32> to vector<4x64x1xf32>
    %497 = tpu.reciprocal %496 {approx = true} : vector<4x64x1xf32> -> vector<4x64x1xf32>
    %498 = vector.broadcast %497 : vector<4x64x1xf32> to vector<4x64x64xf32>
    %499 = arith.mulf %494, %498 : vector<4x64x64xf32>
    %500 = arith.truncf %499 : vector<4x64x64xf32> to vector<4x64x64xbf16>
    %501 = arith.truncf %481 : vector<4x64x8xf32> to vector<4x64x8xbf16>
    %cst_177 = arith.constant dense<0.000000e+00> : vector<4x64x8xf32>
    %502 = tpu.matmul %500, %501, %cst_177 {dimension_numbers = #tpu.dot_dimension_numbers<[2], [1], [1], [2], [0, 0, 0, 1, 1, 2], [0], [0]>} : vector<4x64x64xbf16>, vector<4x64x8xbf16>, vector<4x64x8xf32> -> vector<4x64x8xf32>
    %503 = vector.extract_strided_slice %502 {offsets = [0, 0, 0], sizes = [1, 64, 8], strides = [1, 1, 1]} : vector<4x64x8xf32> to vector<1x64x8xf32>
    %504 = vector.shape_cast %503 : vector<1x64x8xf32> to vector<64x8xf32>
    %505 = vector.extract_strided_slice %502 {offsets = [1, 0, 0], sizes = [1, 64, 8], strides = [1, 1, 1]} : vector<4x64x8xf32> to vector<1x64x8xf32>
    %506 = vector.shape_cast %505 : vector<1x64x8xf32> to vector<64x8xf32>
    %507 = vector.extract_strided_slice %502 {offsets = [2, 0, 0], sizes = [1, 64, 8], strides = [1, 1, 1]} : vector<4x64x8xf32> to vector<1x64x8xf32>
    %508 = vector.shape_cast %507 : vector<1x64x8xf32> to vector<64x8xf32>
    %509 = vector.extract_strided_slice %502 {offsets = [3, 0, 0], sizes = [1, 64, 8], strides = [1, 1, 1]} : vector<4x64x8xf32> to vector<1x64x8xf32>
    %510 = vector.shape_cast %509 : vector<1x64x8xf32> to vector<64x8xf32>
    %511 = tpu.concatenate %504, %506, %508, %510 in 1 : vector<64x8xf32>, vector<64x8xf32>, vector<64x8xf32>, vector<64x8xf32> -> vector<64x32xf32>
    %c3_178 = arith.constant 3 : index
    %c0_179 = arith.constant 0 : index
    %c0_180 = arith.constant 0 : index
    %512 = vector.load %arg6[%c3_178, %c0_179, %c0_180] : memref<4x32x32xbf16, #tpu.memory_space<vmem>>, vector<1x32x32xbf16>
    %513 = vector.shape_cast %512 : vector<1x32x32xbf16> to vector<32x32xbf16>
    %514 = arith.truncf %511 : vector<64x32xf32> to vector<64x32xbf16>
    %cst_181 = arith.constant dense<0.000000e+00> : vector<64x32xf32>
    %515 = tpu.matmul %514, %513, %cst_181 {dimension_numbers = #tpu.dot_dimension_numbers<[1], [0], [0], [1], [0, 0, 1, 1], [], []>} : vector<64x32xbf16>, vector<32x32xbf16>, vector<64x32xf32> -> vector<64x32xf32>
    %516 = arith.addf %424, %515 : vector<64x32xf32>
    %c3_182 = arith.constant 3 : index
    %c0_183 = arith.constant 0 : index
    %c0_184 = arith.constant 0 : index
    %517 = vector.load %arg7[%c3_182, %c0_183, %c0_184] : memref<4x1x32xf32, #tpu.memory_space<vmem>>, vector<1x1x32xf32>
    %518 = vector.shape_cast %517 : vector<1x1x32xf32> to vector<1x32xf32>
    %519 = vector.broadcast %518 : vector<1x32xf32> to vector<64x32xf32>
    %520 = arith.addf %516, %519 : vector<64x32xf32>
    %c3_185 = arith.constant 3 : index
    %c0_186 = arith.constant 0 : index
    %c0_187 = arith.constant 0 : index
    %521 = vector.load %arg8[%c3_185, %c0_186, %c0_187] : memref<4x1x32xf32, #tpu.memory_space<vmem>>, vector<1x1x32xf32>
    %522 = vector.shape_cast %521 : vector<1x1x32xf32> to vector<1x32xf32>
    %c3_188 = arith.constant 3 : index
    %c0_189 = arith.constant 0 : index
    %c0_190 = arith.constant 0 : index
    %523 = vector.load %arg9[%c3_188, %c0_189, %c0_190] : memref<4x1x32xf32, #tpu.memory_space<vmem>>, vector<1x1x32xf32>
    %524 = vector.shape_cast %523 : vector<1x1x32xf32> to vector<1x32xf32>
    %cst_191 = arith.constant dense<0.000000e+00> : vector<64xf32>
    %525 = vector.multi_reduction <add>, %520, %cst_191 [1] : vector<64x32xf32> to vector<64xf32>
    %526 = vector.shape_cast %525 : vector<64xf32> to vector<64x1xf32>
    %cst_192 = arith.constant 3.200000e+01 : f32
    %527 = vector.broadcast %cst_192 : f32 to vector<64x1xf32>
    %528 = arith.divf %526, %527 : vector<64x1xf32>
    %529 = vector.broadcast %528 : vector<64x1xf32> to vector<64x32xf32>
    %530 = arith.subf %520, %529 : vector<64x32xf32>
    %531 = arith.mulf %530, %530 : vector<64x32xf32>
    %cst_193 = arith.constant dense<0.000000e+00> : vector<64xf32>
    %532 = vector.multi_reduction <add>, %531, %cst_193 [1] : vector<64x32xf32> to vector<64xf32>
    %533 = vector.shape_cast %532 : vector<64xf32> to vector<64x1xf32>
    %cst_194 = arith.constant 3.200000e+01 : f32
    %534 = vector.broadcast %cst_194 : f32 to vector<64x1xf32>
    %535 = arith.divf %533, %534 : vector<64x1xf32>
    %536 = vector.broadcast %528 : vector<64x1xf32> to vector<64x32xf32>
    %537 = arith.subf %520, %536 : vector<64x32xf32>
    %cst_195 = arith.constant 9.99999974E-6 : f32
    %538 = vector.broadcast %cst_195 : f32 to vector<64x1xf32>
    %539 = arith.addf %535, %538 : vector<64x1xf32>
    %540 = math.rsqrt %539 : vector<64x1xf32>
    %541 = vector.broadcast %540 : vector<64x1xf32> to vector<64x32xf32>
    %542 = arith.mulf %537, %541 : vector<64x32xf32>
    %543 = vector.broadcast %522 : vector<1x32xf32> to vector<64x32xf32>
    %544 = arith.mulf %542, %543 : vector<64x32xf32>
    %545 = vector.broadcast %524 : vector<1x32xf32> to vector<64x32xf32>
    %546 = arith.addf %544, %545 : vector<64x32xf32>
    %c3_196 = arith.constant 3 : index
    %c0_197 = arith.constant 0 : index
    %c0_198 = arith.constant 0 : index
    %547 = vector.load %arg10[%c3_196, %c0_197, %c0_198] : memref<4x32x128xbf16, #tpu.memory_space<vmem>>, vector<1x32x128xbf16>
    %548 = vector.shape_cast %547 : vector<1x32x128xbf16> to vector<32x128xbf16>
    %549 = arith.truncf %546 : vector<64x32xf32> to vector<64x32xbf16>
    %cst_199 = arith.constant dense<0.000000e+00> : vector<64x128xf32>
    %550 = tpu.matmul %549, %548, %cst_199 {dimension_numbers = #tpu.dot_dimension_numbers<[1], [0], [0], [1], [0, 0, 1, 1], [], []>} : vector<64x32xbf16>, vector<32x128xbf16>, vector<64x128xf32> -> vector<64x128xf32>
    %c3_200 = arith.constant 3 : index
    %c0_201 = arith.constant 0 : index
    %c0_202 = arith.constant 0 : index
    %551 = vector.load %arg11[%c3_200, %c0_201, %c0_202] : memref<4x1x128xf32, #tpu.memory_space<vmem>>, vector<1x1x128xf32>
    %552 = vector.shape_cast %551 : vector<1x1x128xf32> to vector<1x128xf32>
    %553 = vector.broadcast %552 : vector<1x128xf32> to vector<64x128xf32>
    %554 = arith.addf %550, %553 : vector<64x128xf32>
    %cst_203 = arith.constant 0.000000e+00 : f32
    %555 = vector.broadcast %cst_203 : f32 to vector<64x128xf32>
    %556 = arith.maximumf %554, %555 : vector<64x128xf32>
    %c3_204 = arith.constant 3 : index
    %c0_205 = arith.constant 0 : index
    %c0_206 = arith.constant 0 : index
    %557 = vector.load %arg12[%c3_204, %c0_205, %c0_206] : memref<4x128x32xbf16, #tpu.memory_space<vmem>>, vector<1x128x32xbf16>
    %558 = vector.shape_cast %557 : vector<1x128x32xbf16> to vector<128x32xbf16>
    %559 = arith.truncf %556 : vector<64x128xf32> to vector<64x128xbf16>
    %cst_207 = arith.constant dense<0.000000e+00> : vector<64x32xf32>
    %560 = tpu.matmul %559, %558, %cst_207 {dimension_numbers = #tpu.dot_dimension_numbers<[1], [0], [0], [1], [0, 0, 1, 1], [], []>} : vector<64x128xbf16>, vector<128x32xbf16>, vector<64x32xf32> -> vector<64x32xf32>
    %561 = arith.addf %520, %560 : vector<64x32xf32>
    %c3_208 = arith.constant 3 : index
    %c0_209 = arith.constant 0 : index
    %c0_210 = arith.constant 0 : index
    %562 = vector.load %arg13[%c3_208, %c0_209, %c0_210] : memref<4x1x32xf32, #tpu.memory_space<vmem>>, vector<1x1x32xf32>
    %563 = vector.shape_cast %562 : vector<1x1x32xf32> to vector<1x32xf32>
    %564 = vector.broadcast %563 : vector<1x32xf32> to vector<64x32xf32>
    %565 = arith.addf %561, %564 : vector<64x32xf32>
    %c0_211 = arith.constant 0 : index
    %c0_212 = arith.constant 0 : index
    %566 = vector.load %arg14[%c0_211, %c0_212] : memref<32x128xbf16, #tpu.memory_space<vmem>>, vector<32x128xbf16>
    %567 = arith.truncf %565 : vector<64x32xf32> to vector<64x32xbf16>
    %cst_213 = arith.constant dense<0.000000e+00> : vector<64x128xf32>
    %568 = tpu.matmul %567, %566, %cst_213 {dimension_numbers = #tpu.dot_dimension_numbers<[1], [0], [0], [1], [0, 0, 1, 1], [], []>} : vector<64x32xbf16>, vector<32x128xbf16>, vector<64x128xf32> -> vector<64x128xf32>
    %c0_214 = arith.constant 0 : index
    %c0_215 = arith.constant 0 : index
    %569 = vector.load %arg15[%c0_214, %c0_215] : memref<1x128xf32, #tpu.memory_space<vmem>>, vector<1x128xf32>
    %570 = vector.broadcast %569 : vector<1x128xf32> to vector<64x128xf32>
    %571 = arith.addf %568, %570 : vector<64x128xf32>
    %c0_216 = arith.constant 0 : index
    %c0_217 = arith.constant 0 : index
    %572 = vector.load %arg16[%c0_216, %c0_217] : memref<64x128xf32, #tpu.memory_space<vmem>>, vector<64x128xf32>
    tpu.vector_store %arg16[%c0_216, %c0_217], %571 {strides = array<i32>} : memref<64x128xf32, #tpu.memory_space<vmem>>, vector<64x128xf32>,
    return
  }
  func.func @transform_0(%arg0: i32) -> (i32, i32) {
    %c0_i32 = arith.constant 0 : i32
    %c0_i32_0 = arith.constant 0 : i32
    %c0_i32_1 = arith.constant 0 : i32
    return %c0_i32, %c0_i32_0 : i32, i32
  }
  func.func @transform_1(%arg0: i32) -> (i32, i32) {
    %c0_i32 = arith.constant 0 : i32
    %c0_i32_0 = arith.constant 0 : i32
    return %arg0, %c0_i32 : i32, i32
  }
  func.func @transform_2(%arg0: i32) -> (i32, i32, i32) {
    %c0_i32 = arith.constant 0 : i32
    %c0_i32_0 = arith.constant 0 : i32
    %c0_i32_1 = arith.constant 0 : i32
    %c0_i32_2 = arith.constant 0 : i32
    return %c0_i32, %c0_i32_0, %c0_i32_1 : i32, i32, i32
  }
  func.func @transform_3(%arg0: i32) -> (i32, i32, i32) {
    %c0_i32 = arith.constant 0 : i32
    %c0_i32_0 = arith.constant 0 : i32
    %c0_i32_1 = arith.constant 0 : i32
    %c0_i32_2 = arith.constant 0 : i32
    return %c0_i32, %c0_i32_0, %c0_i32_1 : i32, i32, i32
  }
  func.func @transform_4(%arg0: i32) -> (i32, i32, i32) {
    %c0_i32 = arith.constant 0 : i32
    %c0_i32_0 = arith.constant 0 : i32
    %c0_i32_1 = arith.constant 0 : i32
    %c0_i32_2 = arith.constant 0 : i32
    return %c0_i32, %c0_i32_0, %c0_i32_1 : i32, i32, i32
  }
  func.func @transform_5(%arg0: i32) -> (i32, i32, i32) {
    %c0_i32 = arith.constant 0 : i32
    %c0_i32_0 = arith.constant 0 : i32
    %c0_i32_1 = arith.constant 0 : i32
    %c0_i32_2 = arith.constant 0 : i32
    return %c0_i32, %c0_i32_0, %c0_i32_1 : i32, i32, i32
  }
  func.func @transform_6(%arg0: i32) -> (i32, i32, i32) {
    %c0_i32 = arith.constant 0 : i32
    %c0_i32_0 = arith.constant 0 : i32
    %c0_i32_1 = arith.constant 0 : i32
    %c0_i32_2 = arith.constant 0 : i32
    return %c0_i32, %c0_i32_0, %c0_i32_1 : i32, i32, i32
  }
  func.func @transform_7(%arg0: i32) -> (i32, i32, i32) {
    %c0_i32 = arith.constant 0 : i32
    %c0_i32_0 = arith.constant 0 : i32
    %c0_i32_1 = arith.constant 0 : i32
    %c0_i32_2 = arith.constant 0 : i32
    return %c0_i32, %c0_i32_0, %c0_i32_1 : i32, i32, i32
  }
  func.func @transform_8(%arg0: i32) -> (i32, i32, i32) {
    %c0_i32 = arith.constant 0 : i32
    %c0_i32_0 = arith.constant 0 : i32
    %c0_i32_1 = arith.constant 0 : i32
    %c0_i32_2 = arith.constant 0 : i32
    return %c0_i32, %c0_i32_0, %c0_i32_1 : i32, i32, i32
  }
  func.func @transform_9(%arg0: i32) -> (i32, i32, i32) {
    %c0_i32 = arith.constant 0 : i32
    %c0_i32_0 = arith.constant 0 : i32
    %c0_i32_1 = arith.constant 0 : i32
    %c0_i32_2 = arith.constant 0 : i32
    return %c0_i32, %c0_i32_0, %c0_i32_1 : i32, i32, i32
  }
  func.func @transform_10(%arg0: i32) -> (i32, i32, i32) {
    %c0_i32 = arith.constant 0 : i32
    %c0_i32_0 = arith.constant 0 : i32
    %c0_i32_1 = arith.constant 0 : i32
    %c0_i32_2 = arith.constant 0 : i32
    return %c0_i32, %c0_i32_0, %c0_i32_1 : i32, i32, i32
  }
  func.func @transform_11(%arg0: i32) -> (i32, i32, i32) {
    %c0_i32 = arith.constant 0 : i32
    %c0_i32_0 = arith.constant 0 : i32
    %c0_i32_1 = arith.constant 0 : i32
    %c0_i32_2 = arith.constant 0 : i32
    return %c0_i32, %c0_i32_0, %c0_i32_1 : i32, i32, i32
  }
  func.func @transform_12(%arg0: i32) -> (i32, i32, i32) {
    %c0_i32 = arith.constant 0 : i32
    %c0_i32_0 = arith.constant 0 : i32
    %c0_i32_1 = arith.constant 0 : i32
    %c0_i32_2 = arith.constant 0 : i32
    return %c0_i32, %c0_i32_0, %c0_i32_1 : i32, i32, i32
  }
  func.func @transform_13(%arg0: i32) -> (i32, i32) {
    %c0_i32 = arith.constant 0 : i32
    %c0_i32_0 = arith.constant 0 : i32
    %c0_i32_1 = arith.constant 0 : i32
    return %c0_i32, %c0_i32_0 : i32, i32
  }
  func.func @transform_14(%arg0: i32) -> (i32, i32) {
    %c0_i32 = arith.constant 0 : i32
    %c0_i32_0 = arith.constant 0 : i32
    %c0_i32_1 = arith.constant 0 : i32
    return %c0_i32, %c0_i32_0 : i32, i32
  }
  func.func @transform_15(%arg0: i32) -> (i32, i32) {
    %c0_i32 = arith.constant 0 : i32
    %c0_i32_0 = arith.constant 0 : i32
    return %arg0, %c0_i32 : i32, i32
  }
}

</mosaic_0001>

<llo_original>
// kernel: tpu_custom_call.1
$region0: #{tpu_custom_call.1}
  #allocation0 [shape = 'u32[]', space=smem, size = 0x4, offset = 0x4, fixed_abs, tag = 'smem constant byte address 0x4 - core index']
  #allocation1 [shape = 'u32[144,128]{1,0:T(1,128)}', space=vmem, size = 0x12000, scoped, tag = 'internal scratch']
  %s0 = inlined_call_operand.vmem [shape: f32[64,64], index: 0, kind: input, shape index: {}]
  %s1 = inlined_call_operand.vmem [shape: f32[64,32], index: 1, kind: input, shape index: {}]
  %s2 = inlined_call_operand.vmem [shape: f32[4,1,32], index: 2, kind: input, shape index: {}]
  %s3 = inlined_call_operand.vmem [shape: f32[4,1,32], index: 3, kind: input, shape index: {}]
  %s4 = inlined_call_operand.vmem [shape: bf16[4,32,96], index: 4, kind: input, shape index: {}]
  %s5 = inlined_call_operand.vmem [shape: bf16[4,32,32], index: 5, kind: input, shape index: {}]
  %s6 = inlined_call_operand.vmem [shape: f32[4,1,32], index: 6, kind: input, shape index: {}]
  %s7 = inlined_call_operand.vmem [shape: f32[4,1,32], index: 7, kind: input, shape index: {}]
  %s8 = inlined_call_operand.vmem [shape: f32[4,1,32], index: 8, kind: input, shape index: {}]
  %s9 = inlined_call_operand.vmem [shape: bf16[4,32,128], index: 9, kind: input, shape index: {}]
  %s10 = inlined_call_operand.vmem [shape: f32[4,1,128], index: 10, kind: input, shape index: {}]
  %s11 = inlined_call_operand.vmem [shape: bf16[4,128,32], index: 11, kind: input, shape index: {}]
  %s12 = inlined_call_operand.vmem [shape: f32[4,1,32], index: 12, kind: input, shape index: {}]
  %s13 = inlined_call_operand.vmem [shape: bf16[32,128], index: 13, kind: input, shape index: {}]
  %s14 = inlined_call_operand.vmem [shape: f32[1,128], index: 14, kind: input, shape index: {}]
  %s15 = inlined_call_operand.hbm [shape: f32[64,128], index: 15, kind: output, shape index: {}]
  %s16 = sld [smem:[#allocation0]]
  $region70: #{tpu_custom_call.1} parent=0
    _
  %s18 = ssub.s32 1, %s16
  %s19 = scalar_select 0, %s18, %s16
  $region1: #{tpu_custom_call.1} parent=0
    #allocation2 [shape = 'u8[32768]{0}', space=vmem, size = 0x8000, scoped, tag = 'output window, operand 0, single buffered']
    #allocation3 [shape = 's32[1]{0}', space=sflag, size = 0x4, scoped, tag = 'scoped memory for tpu_custom_call.1']
    %20 = vsyncpa [#allocation3], 0
    // Predicated region
    $region2: #{tpu_custom_call.1} parent=1 // pred_check
      _
    $region3: #{tpu_custom_call.1} parent=1 // pred_check_branch
      %22 = sbr.rel (0) target = $region5
    $region4: #{tpu_custom_call.1} parent=1 // pred_region
      _
    $region5: #{tpu_custom_call.1} parent=1 // pred_fallthru
      _
    // Predicated region
    $region6: #{tpu_custom_call.1} parent=1 // pred_check
      _
    $region7: #{tpu_custom_call.1} parent=1 // pred_check_branch
      %24 = sbr.rel (0) target = $region9
    $region8: #{tpu_custom_call.1} parent=1 // pred_region
      _
    $region9: #{tpu_custom_call.1} parent=1 // pred_fallthru
      _
    // Predicated region
    $region10: #{tpu_custom_call.1} parent=1 // pred_check
      _
    $region11: #{tpu_custom_call.1} parent=1 // pred_check_branch
      %26 = sbr.rel (0) target = $region13
    $region12: #{tpu_custom_call.1} parent=1 // pred_region
      _
    $region13: #{tpu_custom_call.1} parent=1 // pred_fallthru
      _
    // Predicated region
    $region14: #{tpu_custom_call.1} parent=1 // pred_check
      _
    $region15: #{tpu_custom_call.1} parent=1 // pred_check_branch
      %28 = sbr.rel (0) target = $region17
    $region16: #{tpu_custom_call.1} parent=1 // pred_region
      _
    $region17: #{tpu_custom_call.1} parent=1 // pred_fallthru
      _
    // Predicated region
    $region18: #{tpu_custom_call.1} parent=1 // pred_check
      _
    $region19: #{tpu_custom_call.1} parent=1 // pred_check_branch
      %30 = sbr.rel (0) target = $region21
    $region20: #{tpu_custom_call.1} parent=1 // pred_region
      _
    $region21: #{tpu_custom_call.1} parent=1 // pred_fallthru
      _
    // Predicated region
    $region22: #{tpu_custom_call.1} parent=1 // pred_check
      _
    $region23: #{tpu_custom_call.1} parent=1 // pred_check_branch
      %32 = sbr.rel (0) target = $region25
    $region24: #{tpu_custom_call.1} parent=1 // pred_region
      _
    $region25: #{tpu_custom_call.1} parent=1 // pred_fallthru
      _
    // Predicated region
    $region26: #{tpu_custom_call.1} parent=1 // pred_check
      _
    $region27: #{tpu_custom_call.1} parent=1 // pred_check_branch
      %34 = sbr.rel (0) target = $region29
    $region28: #{tpu_custom_call.1} parent=1 // pred_region
      _
    $region29: #{tpu_custom_call.1} parent=1 // pred_fallthru
      _
    // Predicated region
    $region30: #{tpu_custom_call.1} parent=1 // pred_check
      _
    $region31: #{tpu_custom_call.1} parent=1 // pred_check_branch
      %36 = sbr.rel (0) target = $region33
    $region32: #{tpu_custom_call.1} parent=1 // pred_region
      _
    $region33: #{tpu_custom_call.1} parent=1 // pred_fallthru
      _
    // Predicated region
    $region34: #{tpu_custom_call.1} parent=1 // pred_check
      _
    $region35: #{tpu_custom_call.1} parent=1 // pred_check_branch
      %38 = sbr.rel (0) target = $region37
    $region36: #{tpu_custom_call.1} parent=1 // pred_region
      _
    $region37: #{tpu_custom_call.1} parent=1 // pred_fallthru
      _
    // Predicated region
    $region38: #{tpu_custom_call.1} parent=1 // pred_check
      _
    $region39: #{tpu_custom_call.1} parent=1 // pred_check_branch
      %40 = sbr.rel (0) target = $region41
    $region40: #{tpu_custom_call.1} parent=1 // pred_region
      _
    $region41: #{tpu_custom_call.1} parent=1 // pred_fallthru
      _
    // Predicated region
    $region42: #{tpu_custom_call.1} parent=1 // pred_check
      _
    $region43: #{tpu_custom_call.1} parent=1 // pred_check_branch
      %42 = sbr.rel (0) target = $region45
    $region44: #{tpu_custom_call.1} parent=1 // pred_region
      _
    $region45: #{tpu_custom_call.1} parent=1 // pred_fallthru
      _
    // Predicated region
    $region46: #{tpu_custom_call.1} parent=1 // pred_check
      _
    $region47: #{tpu_custom_call.1} parent=1 // pred_check_branch
      %44 = sbr.rel (0) target = $region49
    $region48: #{tpu_custom_call.1} parent=1 // pred_region
      _
    $region49: #{tpu_custom_call.1} parent=1 // pred_fallthru
      _
    // Predicated region
    $region50: #{tpu_custom_call.1} parent=1 // pred_check
      _
    $region51: #{tpu_custom_call.1} parent=1 // pred_check_branch
      %46 = sbr.rel (0) target = $region53
    $region52: #{tpu_custom_call.1} parent=1 // pred_region
      _
    $region53: #{tpu_custom_call.1} parent=1 // pred_fallthru
      _
    // Predicated region
    $region54: #{tpu_custom_call.1} parent=1 // pred_check
      _
    $region55: #{tpu_custom_call.1} parent=1 // pred_check_branch
      %48 = sbr.rel (0) target = $region57
    $region56: #{tpu_custom_call.1} parent=1 // pred_region
      _
    $region57: #{tpu_custom_call.1} parent=1 // pred_fallthru
      _
    // Predicated region
    $region58: #{tpu_custom_call.1} parent=1 // pred_check
      _
    $region59: #{tpu_custom_call.1} parent=1 // pred_check_branch
      %50 = sbr.rel (0) target = $region61
    $region60: #{tpu_custom_call.1} parent=1 // pred_region
      _
    $region61: #{tpu_custom_call.1} parent=1 // pred_fallthru
      _
    %v52 = vld [vmem:[%s1] sm:$0xff]
    %v53 = vld [vmem:[%s1 + $0x8] sm:$0xff]
    %v54 = vld [vmem:[%s1 + $0x10] sm:$0xff]
    %v55 = vld [vmem:[%s1 + $0x18] sm:$0xff]
    %v56 = vld [vmem:[%s1 + $0x20] sm:$0xff]
    %v57 = vld [vmem:[%s1 + $0x28] sm:$0xff]
    %v58 = vld [vmem:[%s1 + $0x30] sm:$0xff]
    %v59 = vld [vmem:[%s1 + $0x38] sm:$0xff]
    %v60 = vld [vmem:[%s0] sm:$0xff]
    %v61 = vld [vmem:[%s0 + $0x8] sm:$0xff]
    %v62 = vld [vmem:[%s0 + $0x10] sm:$0xff]
    %v63 = vld [vmem:[%s0 + $0x18] sm:$0xff]
    %v64 = vld [vmem:[%s0 + $0x20] sm:$0xff]
    %v65 = vld [vmem:[%s0 + $0x28] sm:$0xff]
    %v66 = vld [vmem:[%s0 + $0x30] sm:$0xff]
    %v67 = vld [vmem:[%s0 + $0x38] sm:$0xff]
    %v68 = vld [vmem:[%s2] sm:$0x1]
    %v69 = vld [vmem:[%s3] sm:$0x1]
    %vm70 = vcmask 261120
    %v71 = vsel %vm70, %v52, 0.0
    %72 = vadd.xlane.f32.xlu0 %v71
    %v73 = vpop.xlane.xlu0 %72
    %v74 = vsel %vm70, %v53, 0.0
    %75 = vadd.xlane.f32.xlu0 %v74
    %v76 = vpop.xlane.xlu0 %75
    %v77 = vsel %vm70, %v54, 0.0
    %78 = vadd.xlane.f32.xlu0 %v77
    %v79 = vpop.xlane.xlu0 %78
    %v80 = vsel %vm70, %v55, 0.0
    %81 = vadd.xlane.f32.xlu0 %v80
    %v82 = vpop.xlane.xlu0 %81
    %v83 = vsel %vm70, %v56, 0.0
    %84 = vadd.xlane.f32.xlu0 %v83
    %v85 = vpop.xlane.xlu0 %84
    %v86 = vsel %vm70, %v57, 0.0
    %87 = vadd.xlane.f32.xlu0 %v86
    %v88 = vpop.xlane.xlu0 %87
    %v89 = vsel %vm70, %v58, 0.0
    %90 = vadd.xlane.f32.xlu0 %v89
    %v91 = vpop.xlane.xlu0 %90
    %v92 = vsel %vm70, %v59, 0.0
    %93 = vadd.xlane.f32.xlu0 %v92
    %v94 = vpop.xlane.xlu0 %93
    %v95 = vrcp.pop 32.0
    %v96 = vmul.f32 %v73, %v95
    %v97 = vmul.f32 %v76, %v95
    %v98 = vmul.f32 %v79, %v95
    %v99 = vmul.f32 %v82, %v95
    %v100 = vmul.f32 %v85, %v95
    %v101 = vmul.f32 %v88, %v95
    %v102 = vmul.f32 %v91, %v95
    %v103 = vmul.f32 %v94, %v95
    %v104 = vsub.f32 %v52, %v96
    %v105 = vsub.f32 %v53, %v97
    %v106 = vsub.f32 %v54, %v98
    %v107 = vsub.f32 %v55, %v99
    %v108 = vsub.f32 %v56, %v100
    %v109 = vsub.f32 %v57, %v101
    %v110 = vsub.f32 %v58, %v102
    %v111 = vsub.f32 %v59, %v103
    %v112 = vmul.f32 %v104, %v104
    %v113 = vmul.f32 %v105, %v105
    %v114 = vmul.f32 %v106, %v106
    %v115 = vmul.f32 %v107, %v107
    %v116 = vmul.f32 %v108, %v108
    %v117 = vmul.f32 %v109, %v109
    %v118 = vmul.f32 %v110, %v110
    %v119 = vmul.f32 %v111, %v111
    %v120 = vsel %vm70, %v112, 0.0
    %121 = vadd.xlane.f32.xlu0 %v120
    %v122 = vpop.xlane.xlu0 %121
    %v123 = vsel %vm70, %v113, 0.0
    %124 = vadd.xlane.f32.xlu0 %v123
    %v125 = vpop.xlane.xlu0 %124
    %v126 = vsel %vm70, %v114, 0.0
    %127 = vadd.xlane.f32.xlu0 %v126
    %v128 = vpop.xlane.xlu0 %127
    %v129 = vsel %vm70, %v115, 0.0
    %130 = vadd.xlane.f32.xlu0 %v129
    %v131 = vpop.xlane.xlu0 %130
    %v132 = vsel %vm70, %v116, 0.0
    %133 = vadd.xlane.f32.xlu0 %v132
    %v134 = vpop.xlane.xlu0 %133
    %v135 = vsel %vm70, %v117, 0.0
    %136 = vadd.xlane.f32.xlu0 %v135
    %v137 = vpop.xlane.xlu0 %136
    %v138 = vsel %vm70, %v118, 0.0
    %139 = vadd.xlane.f32.xlu0 %v138
    %v140 = vpop.xlane.xlu0 %139
    %v141 = vsel %vm70, %v119, 0.0
    %142 = vadd.xlane.f32.xlu0 %v141
    %v143 = vpop.xlane.xlu0 %142
    %v144 = vmul.f32 %v122, %v95
    %v145 = vmul.f32 %v125, %v95
    %v146 = vmul.f32 %v128, %v95
    %v147 = vmul.f32 %v131, %v95
    %v148 = vmul.f32 %v134, %v95
    %v149 = vmul.f32 %v137, %v95
    %v150 = vmul.f32 %v140, %v95
    %v151 = vmul.f32 %v143, %v95
    %v152 = vadd.f32 %v144, 1e-05
    %v153 = vadd.f32 %v145, 1e-05
    %v154 = vadd.f32 %v146, 1e-05
    %v155 = vadd.f32 %v147, 1e-05
    %v156 = vadd.f32 %v148, 1e-05
    %v157 = vadd.f32 %v149, 1e-05
    %v158 = vadd.f32 %v150, 1e-05
    %v159 = vadd.f32 %v151, 1e-05
    %v160 = vrsqrt.pop %v152
    %v161 = vrsqrt.pop %v153
    %v162 = vrsqrt.pop %v154
    %v163 = vrsqrt.pop %v155
    %v164 = vrsqrt.pop %v156
    %v165 = vrsqrt.pop %v157
    %v166 = vrsqrt.pop %v158
    %v167 = vrsqrt.pop %v159
    %v168 = vmul.f32 %v104, %v160
    %v169 = vmul.f32 %v105, %v161
    %v170 = vmul.f32 %v106, %v162
    %v171 = vmul.f32 %v107, %v163
    %v172 = vmul.f32 %v108, %v164
    %v173 = vmul.f32 %v109, %v165
    %v174 = vmul.f32 %v110, %v166
    %v175 = vmul.f32 %v111, %v167
    %v177 = vlaneseq
    %v178 = vshrl.u32 %v177, 7
    %v179 = vsub.s32 0, %v178
    %v180 = vrot.slane %v68, %v179
    %v182 = vmul.f32 %v168, %v180
    %v183 = vmul.f32 %v169, %v180
    %v184 = vmul.f32 %v170, %v180
    %v185 = vmul.f32 %v171, %v180
    %v186 = vmul.f32 %v172, %v180
    %v187 = vmul.f32 %v173, %v180
    %v188 = vmul.f32 %v174, %v180
    %v189 = vmul.f32 %v175, %v180
    %v191 = vlaneseq
    %v192 = vshrl.u32 %v191, 7
    %v193 = vsub.s32 0, %v192
    %v194 = vrot.slane %v69, %v193
    %v196 = vadd.f32 %v182, %v194
    %v197 = vadd.f32 %v183, %v194
    %v198 = vadd.f32 %v184, %v194
    %v199 = vadd.f32 %v185, %v194
    %v200 = vadd.f32 %v186, %v194
    %v201 = vadd.f32 %v187, %v194
    %v202 = vadd.f32 %v188, %v194
    %v203 = vadd.f32 %v189, %v194
    %v204 = vld [vmem:[%s4] sm:$0xf]
    %v205 = vld [vmem:[%s4 + $0x4] sm:$0xf]
    %v206 = vld [vmem:[%s4 + $0x8] sm:$0xf]
    %v207 = vld [vmem:[%s4 + $0xc] sm:$0xf]
    %v208 = vpack.c.bf16 %v197, %v196
    %v209 = vpack.c.bf16 %v199, %v198
    %v210 = vpack.c.bf16 %v201, %v200
    %v211 = vpack.c.bf16 %v203, %v202
    %v216 = vunpack.c.l.b16 %v204
    %v217 = vunpack.c.l.b16 %v205
    %v218 = vunpack.c.l.b16 %v206
    %v219 = vunpack.c.l.b16 %v207
    %v220 = vpack.c.b16 %v217, %v216
    %v221 = vpack.c.b16 %v219, %v218
    %v225 = vsel %vm70, %v208, 0
    %v228 = vsel %vm70, %v209, 0
    %v231 = vsel %vm70, %v210, 0
    %v234 = vsel %vm70, %v211, 0
    %236 = vmatprep.subr.bf16.mxu0 0
    %237 = vmatpush1.bf16.msra.mxu0 %v220
    %238 = vmatprep.subr.bf16.mxu0 0
    %239 = vmatpush1.bf16.msra.mxu0 %v221
    %240 = vmatprep.subr.bf16.mxu0 0
    %241 = vmatpush1.bf16.msra.mxu0 0
    %242 = vmatprep.subr.bf16.mxu0 0
    %243 = vmatpush1.bf16.msra.mxu0 0
    %244 = vmatprep.subr.bf16.mxu0 0
    %245 = vmatpush1.bf16.msra.mxu0 0
    %246 = vmatprep.subr.bf16.mxu0 0
    %247 = vmatpush1.bf16.msra.mxu0 0
    %248 = vmatprep.subr.bf16.mxu0 0
    %249 = vmatpush1.bf16.msra.mxu0 0
    %250 = vmatprep.subr.bf16.mxu0 0
    %251 = vmatpush1.bf16.msra.mxu0 0
    %252 = vmatprep.subr.bf16.mxu0 0
    %253 = vmatpush1.bf16.msra.mxu0 0
    %254 = vmatprep.subr.bf16.mxu0 0
    %255 = vmatpush1.bf16.msra.mxu0 0
    %256 = vmatprep.subr.bf16.mxu0 0
    %257 = vmatpush1.bf16.msra.mxu0 0
    %258 = vmatprep.subr.bf16.mxu0 0
    %259 = vmatpush1.bf16.msra.mxu0 0
    %260 = vmatprep.subr.bf16.mxu0 0
    %261 = vmatpush1.bf16.msra.mxu0 0
    %262 = vmatprep.subr.bf16.mxu0 0
    %263 = vmatpush1.bf16.msra.mxu0 0
    %264 = vmatprep.subr.bf16.mxu0 0
    %265 = vmatpush1.bf16.msra.mxu0 0
    %266 = vmatprep.subr.bf16.mxu0 0
    %267 = vmatpush1.bf16.msra.mxu0 0
    %268 = vmatprep.mubr.bf16.mxu0 0
    %269 = vmatmul.mubr.bf16.gmra.mrb[0].mxu0 %v225
    %v270 = vpop.f32.mrb[0].mxu0
    %v271 = vadd.f32 0.0, %v270
    %v272 = vpop.f32.mrb[0].mxu0
    %v273 = vpop.f32.mrb[0].mxu0
    %v274 = vadd.f32 0.0, %v273
    %v275 = vpop.f32.mrb[0].mxu0
    %276 = vmatprep.mubr.bf16.mxu0 0
    %277 = vmatmul.mubr.bf16.gmra.mrb[0].mxu0 %v228
    %v278 = vpop.f32.mrb[0].mxu0
    %v279 = vadd.f32 0.0, %v278
    %v280 = vpop.f32.mrb[0].mxu0
    %v281 = vpop.f32.mrb[0].mxu0
    %v282 = vadd.f32 0.0, %v281
    %v283 = vpop.f32.mrb[0].mxu0
    %284 = vmatprep.mubr.bf16.mxu0 0
    %285 = vmatmul.mubr.bf16.gmra.mrb[0].mxu0 %v231
    %v286 = vpop.f32.mrb[0].mxu0
    %v287 = vadd.f32 0.0, %v286
    %v288 = vpop.f32.mrb[0].mxu0
    %v289 = vpop.f32.mrb[0].mxu0
    %v290 = vadd.f32 0.0, %v289
    %v291 = vpop.f32.mrb[0].mxu0
    %292 = vmatprep.mubr.bf16.mxu0 0
    %293 = vmatmul.mubr.bf16.gmra.mrb[0].mxu0 %v234
    %v294 = vpop.f32.mrb[0].mxu0
    %v295 = vadd.f32 0.0, %v294
    %v296 = vpop.f32.mrb[0].mxu0
    %v297 = vpop.f32.mrb[0].mxu0
    %v298 = vadd.f32 0.0, %v297
    %v299 = vpop.f32.mrb[0].mxu0
    %300 = vdwg.mxu0
    %309 = vrot.lane.b32.xlu0 %v271, 120
    %v310 = vpop.permute.xlu0 %309
    %311 = vrot.lane.b32.xlu0 %v274, 120
    %v312 = vpop.permute.xlu0 %311
    %313 = vrot.lane.b32.xlu0 %v279, 120
    %v314 = vpop.permute.xlu0 %313
    %315 = vrot.lane.b32.xlu0 %v282, 120
    %v316 = vpop.permute.xlu0 %315
    %317 = vrot.lane.b32.xlu0 %v287, 120
    %v318 = vpop.permute.xlu0 %317
    %319 = vrot.lane.b32.xlu0 %v290, 120
    %v320 = vpop.permute.xlu0 %319
    %321 = vrot.lane.b32.xlu0 %v295, 120
    %v322 = vpop.permute.xlu0 %321
    %323 = vrot.lane.b32.xlu0 %v298, 120
    %v324 = vpop.permute.xlu0 %323
    %333 = vrot.lane.b32.xlu0 %v271, 112
    %v334 = vpop.permute.xlu0 %333
    %335 = vrot.lane.b32.xlu0 %v274, 112
    %v336 = vpop.permute.xlu0 %335
    %337 = vrot.lane.b32.xlu0 %v279, 112
    %v338 = vpop.permute.xlu0 %337
    %339 = vrot.lane.b32.xlu0 %v282, 112
    %v340 = vpop.permute.xlu0 %339
    %341 = vrot.lane.b32.xlu0 %v287, 112
    %v342 = vpop.permute.xlu0 %341
    %343 = vrot.lane.b32.xlu0 %v290, 112
    %v344 = vpop.permute.xlu0 %343
    %345 = vrot.lane.b32.xlu0 %v295, 112
    %v346 = vpop.permute.xlu0 %345
    %347 = vrot.lane.b32.xlu0 %v298, 112
    %v348 = vpop.permute.xlu0 %347
    %357 = vrot.lane.b32.xlu0 %v271, 104
    %v358 = vpop.permute.xlu0 %357
    %359 = vrot.lane.b32.xlu0 %v274, 104
    %v360 = vpop.permute.xlu0 %359
    %361 = vrot.lane.b32.xlu0 %v279, 104
    %v362 = vpop.permute.xlu0 %361
    %363 = vrot.lane.b32.xlu0 %v282, 104
    %v364 = vpop.permute.xlu0 %363
    %365 = vrot.lane.b32.xlu0 %v287, 104
    %v366 = vpop.permute.xlu0 %365
    %367 = vrot.lane.b32.xlu0 %v290, 104
    %v368 = vpop.permute.xlu0 %367
    %369 = vrot.lane.b32.xlu0 %v295, 104
    %v370 = vpop.permute.xlu0 %369
    %371 = vrot.lane.b32.xlu0 %v298, 104
    %v372 = vpop.permute.xlu0 %371
    %v381 = vpack.c.bf16 %v274, %v271
    %v382 = vpack.c.bf16 %v282, %v279
    %v383 = vpack.c.bf16 %v290, %v287
    %v384 = vpack.c.bf16 %v298, %v295
    %v385 = vpack.c.bf16 %v312, %v310
    %v386 = vpack.c.bf16 %v316, %v314
    %v387 = vpack.c.bf16 %v320, %v318
    %v388 = vpack.c.bf16 %v324, %v322
    %v389 = vpack.c.bf16 %v336, %v334
    %v390 = vpack.c.bf16 %v340, %v338
    %v391 = vpack.c.bf16 %v344, %v342
    %v392 = vpack.c.bf16 %v348, %v346
    %v393 = vpack.c.bf16 %v360, %v358
    %v394 = vpack.c.bf16 %v364, %v362
    %v395 = vpack.c.bf16 %v368, %v366
    %v396 = vpack.c.bf16 %v372, %v370
    %401 = vrot.lane.b32.xlu0 %v381, 96
    %v402 = vpop.permute.xlu0 %401
    %403 = vrot.lane.b32.xlu0 %v382, 96
    %v404 = vpop.permute.xlu0 %403
    %405 = vrot.lane.b32.xlu0 %v383, 96
    %v406 = vpop.permute.xlu0 %405
    %407 = vrot.lane.b32.xlu0 %v384, 96
    %v408 = vpop.permute.xlu0 %407
    %vm409 = vcmask 64512
    %v411 = vsel %vm409, %v381, 0
    %v414 = vsel %vm409, %v382, 0
    %v417 = vsel %vm409, %v383, 0
    %v420 = vsel %vm409, %v384, 0
    %v423 = vsel %vm409, %v402, 0
    %v426 = vsel %vm409, %v404, 0
    %v429 = vsel %vm409, %v406, 0
    %v432 = vsel %vm409, %v408, 0
    %434 = vmatprep.subr.bf16.mxu0 0
    %435 = vmatpush1.bf16.xpose.msra.mxu0 %v423
    %436 = vmatprep.subr.bf16.mxu0 0
    %437 = vmatpush1.bf16.xpose.msra.mxu0 %v426
    %438 = vmatprep.subr.bf16.mxu0 0
    %439 = vmatpush1.bf16.xpose.msra.mxu0 %v429
    %440 = vmatprep.subr.bf16.mxu0 0
    %441 = vmatpush1.bf16.xpose.msra.mxu0 %v432
    %442 = vmatprep.subr.bf16.mxu0 0
    %443 = vmatpush1.bf16.xpose.msra.mxu0 0
    %444 = vmatprep.subr.bf16.mxu0 0
    %445 = vmatpush1.bf16.xpose.msra.mxu0 0
    %446 = vmatprep.subr.bf16.mxu0 0
    %447 = vmatpush1.bf16.xpose.msra.mxu0 0
    %448 = vmatprep.subr.bf16.mxu0 0
    %449 = vmatpush1.bf16.xpose.msra.mxu0 0
    %450 = vmatprep.subr.bf16.mxu0 0
    %451 = vmatpush1.bf16.xpose.msra.mxu0 0
    %452 = vmatprep.subr.bf16.mxu0 0
    %453 = vmatpush1.bf16.xpose.msra.mxu0 0
    %454 = vmatprep.subr.bf16.mxu0 0
    %455 = vmatpush1.bf16.xpose.msra.mxu0 0
    %456 = vmatprep.subr.bf16.mxu0 0
    %457 = vmatpush1.bf16.xpose.msra.mxu0 0
    %458 = vmatprep.subr.bf16.mxu0 0
    %459 = vmatpush1.bf16.xpose.msra.mxu0 0
    %460 = vmatprep.subr.bf16.mxu0 0
    %461 = vmatpush1.bf16.xpose.msra.mxu0 0
    %462 = vmatprep.subr.bf16.mxu0 0
    %463 = vmatpush1.bf16.xpose.msra.mxu0 0
    %464 = vmatprep.subr.bf16.mxu0 0
    %465 = vmatpush1.bf16.xpose.msra.mxu0 0
    %466 = vmatprep.mubr.bf16.mxu0 0
    %467 = vmatmul.mubr.bf16.gmra.mrb[0].mxu0 %v411
    %v468 = vpop.f32.mrb[0].mxu0
    %v469 = vadd.f32 0.0, %v468
    %v470 = vpop.f32.mrb[0].mxu0
    %v471 = vpop.f32.mrb[0].mxu0
    %v472 = vadd.f32 0.0, %v471
    %v473 = vpop.f32.mrb[0].mxu0
    %474 = vmatprep.mubr.bf16.mxu0 0
    %475 = vmatmul.mubr.bf16.gmra.mrb[0].mxu0 %v414
    %v476 = vpop.f32.mrb[0].mxu0
    %v477 = vadd.f32 0.0, %v476
    %v478 = vpop.f32.mrb[0].mxu0
    %v479 = vpop.f32.mrb[0].mxu0
    %v480 = vadd.f32 0.0, %v479
    %v481 = vpop.f32.mrb[0].mxu0
    %482 = vmatprep.mubr.bf16.mxu0 0
    %483 = vmatmul.mubr.bf16.gmra.mrb[0].mxu0 %v417
    %v484 = vpop.f32.mrb[0].mxu0
    %v485 = vadd.f32 0.0, %v484
    %v486 = vpop.f32.mrb[0].mxu0
    %v487 = vpop.f32.mrb[0].mxu0
    %v488 = vadd.f32 0.0, %v487
    %v489 = vpop.f32.mrb[0].mxu0
    %490 = vmatprep.mubr.bf16.mxu0 0
    %491 = vmatmul.mubr.bf16.gmra.mrb[0].mxu0 %v420
    %v492 = vpop.f32.mrb[0].mxu0
    %v493 = vadd.f32 0.0, %v492
    %v494 = vpop.f32.mrb[0].mxu0
    %v495 = vpop.f32.mrb[0].mxu0
    %v496 = vadd.f32 0.0, %v495
    %v497 = vpop.f32.mrb[0].mxu0
    %498 = vdwg.mxu0
    %503 = vrot.lane.b32.xlu0 %v385, 96
    %v504 = vpop.permute.xlu0 %503
    %505 = vrot.lane.b32.xlu0 %v386, 96
    %v506 = vpop.permute.xlu0 %505
    %507 = vrot.lane.b32.xlu0 %v387, 96
    %v508 = vpop.permute.xlu0 %507
    %509 = vrot.lane.b32.xlu0 %v388, 96
    %v510 = vpop.permute.xlu0 %509
    %v512 = vsel %vm409, %v385, 0
    %v515 = vsel %vm409, %v386, 0
    %v518 = vsel %vm409, %v387, 0
    %v521 = vsel %vm409, %v388, 0
    %v524 = vsel %vm409, %v504, 0
    %v527 = vsel %vm409, %v506, 0
    %v530 = vsel %vm409, %v508, 0
    %v533 = vsel %vm409, %v510, 0
    %535 = vmatprep.subr.bf16.mxu0 0
    %536 = vmatpush1.bf16.xpose.msra.mxu0 %v524
    %537 = vmatprep.subr.bf16.mxu0 0
    %538 = vmatpush1.bf16.xpose.msra.mxu0 %v527
    %539 = vmatprep.subr.bf16.mxu0 0
    %540 = vmatpush1.bf16.xpose.msra.mxu0 %v530
    %541 = vmatprep.subr.bf16.mxu0 0
    %542 = vmatpush1.bf16.xpose.msra.mxu0 %v533
    %543 = vmatprep.subr.bf16.mxu0 0
    %544 = vmatpush1.bf16.xpose.msra.mxu0 0
    %545 = vmatprep.subr.bf16.mxu0 0
    %546 = vmatpush1.bf16.xpose.msra.mxu0 0
    %547 = vmatprep.subr.bf16.mxu0 0
    %548 = vmatpush1.bf16.xpose.msra.mxu0 0
    %549 = vmatprep.subr.bf16.mxu0 0
    %550 = vmatpush1.bf16.xpose.msra.mxu0 0
    %551 = vmatprep.subr.bf16.mxu0 0
    %552 = vmatpush1.bf16.xpose.msra.mxu0 0
    %553 = vmatprep.subr.bf16.mxu0 0
    %554 = vmatpush1.bf16.xpose.msra.mxu0 0
    %555 = vmatprep.subr.bf16.mxu0 0
    %556 = vmatpush1.bf16.xpose.msra.mxu0 0
    %557 = vmatprep.subr.bf16.mxu0 0
    %558 = vmatpush1.bf16.xpose.msra.mxu0 0
    %559 = vmatprep.subr.bf16.mxu0 0
    %560 = vmatpush1.bf16.xpose.msra.mxu0 0
    %561 = vmatprep.subr.bf16.mxu0 0
    %562 = vmatpush1.bf16.xpose.msra.mxu0 0
    %563 = vmatprep.subr.bf16.mxu0 0
    %564 = vmatpush1.bf16.xpose.msra.mxu0 0
    %565 = vmatprep.subr.bf16.mxu0 0
    %566 = vmatpush1.bf16.xpose.msra.mxu0 0
    %567 = vmatprep.mubr.bf16.mxu0 0
    %568 = vmatmul.mubr.bf16.gmra.mrb[0].mxu0 %v512
    %v569 = vpop.f32.mrb[0].mxu0
    %v570 = vadd.f32 0.0, %v569
    %v571 = vpop.f32.mrb[0].mxu0
    %v572 = vpop.f32.mrb[0].mxu0
    %v573 = vadd.f32 0.0, %v572
    %v574 = vpop.f32.mrb[0].mxu0
    %575 = vmatprep.mubr.bf16.mxu0 0
    %576 = vmatmul.mubr.bf16.gmra.mrb[0].mxu0 %v515
    %v577 = vpop.f32.mrb[0].mxu0
    %v578 = vadd.f32 0.0, %v577
    %v579 = vpop.f32.mrb[0].mxu0
    %v580 = vpop.f32.mrb[0].mxu0
    %v581 = vadd.f32 0.0, %v580
    %v582 = vpop.f32.mrb[0].mxu0
    %583 = vmatprep.mubr.bf16.mxu0 0
    %584 = vmatmul.mubr.bf16.gmra.mrb[0].mxu0 %v518
    %v585 = vpop.f32.mrb[0].mxu0
    %v586 = vadd.f32 0.0, %v585
    %v587 = vpop.f32.mrb[0].mxu0
    %v588 = vpop.f32.mrb[0].mxu0
    %v589 = vadd.f32 0.0, %v588
    %v590 = vpop.f32.mrb[0].mxu0
    %591 = vmatprep.mubr.bf16.mxu0 0
    %592 = vmatmul.mubr.bf16.gmra.mrb[0].mxu0 %v521
    %v593 = vpop.f32.mrb[0].mxu0
    %v594 = vadd.f32 0.0, %v593
    %v595 = vpop.f32.mrb[0].mxu0
    %v596 = vpop.f32.mrb[0].mxu0
    %v597 = vadd.f32 0.0, %v596
    %v598 = vpop.f32.mrb[0].mxu0
    %599 = vdwg.mxu0
    %604 = vrot.lane.b32.xlu0 %v389, 96
    %v605 = vpop.permute.xlu0 %604
    %606 = vrot.lane.b32.xlu0 %v390, 96
    %v607 = vpop.permute.xlu0 %606
    %608 = vrot.lane.b32.xlu0 %v391, 96
    %v609 = vpop.permute.xlu0 %608
    %610 = vrot.lane.b32.xlu0 %v392, 96
    %v611 = vpop.permute.xlu0 %610
    %v613 = vsel %vm409, %v389, 0
    %v616 = vsel %vm409, %v390, 0
    %v619 = vsel %vm409, %v391, 0
    %v622 = vsel %vm409, %v392, 0
    %v625 = vsel %vm409, %v605, 0
    %v628 = vsel %vm409, %v607, 0
    %v631 = vsel %vm409, %v609, 0
    %v634 = vsel %vm409, %v611, 0
    %636 = vmatprep.subr.bf16.mxu0 0
    %637 = vmatpush1.bf16.xpose.msra.mxu0 %v625
    %638 = vmatprep.subr.bf16.mxu0 0
    %639 = vmatpush1.bf16.xpose.msra.mxu0 %v628
    %640 = vmatprep.subr.bf16.mxu0 0
    %641 = vmatpush1.bf16.xpose.msra.mxu0 %v631
    %642 = vmatprep.subr.bf16.mxu0 0
    %643 = vmatpush1.bf16.xpose.msra.mxu0 %v634
    %644 = vmatprep.subr.bf16.mxu0 0
    %645 = vmatpush1.bf16.xpose.msra.mxu0 0
    %646 = vmatprep.subr.bf16.mxu0 0
    %647 = vmatpush1.bf16.xpose.msra.mxu0 0
    %648 = vmatprep.subr.bf16.mxu0 0
    %649 = vmatpush1.bf16.xpose.msra.mxu0 0
    %650 = vmatprep.subr.bf16.mxu0 0
    %651 = vmatpush1.bf16.xpose.msra.mxu0 0
    %652 = vmatprep.subr.bf16.mxu0 0
    %653 = vmatpush1.bf16.xpose.msra.mxu0 0
    %654 = vmatprep.subr.bf16.mxu0 0
    %655 = vmatpush1.bf16.xpose.msra.mxu0 0
    %656 = vmatprep.subr.bf16.mxu0 0
    %657 = vmatpush1.bf16.xpose.msra.mxu0 0
    %658 = vmatprep.subr.bf16.mxu0 0
    %659 = vmatpush1.bf16.xpose.msra.mxu0 0
    %660 = vmatprep.subr.bf16.mxu0 0
    %661 = vmatpush1.bf16.xpose.msra.mxu0 0
    %662 = vmatprep.subr.bf16.mxu0 0
    %663 = vmatpush1.bf16.xpose.msra.mxu0 0
    %664 = vmatprep.subr.bf16.mxu0 0
    %665 = vmatpush1.bf16.xpose.msra.mxu0 0
    %666 = vmatprep.subr.bf16.mxu0 0
    %667 = vmatpush1.bf16.xpose.msra.mxu0 0
    %668 = vmatprep.mubr.bf16.mxu0 0
    %669 = vmatmul.mubr.bf16.gmra.mrb[0].mxu0 %v613
    %v670 = vpop.f32.mrb[0].mxu0
    %v671 = vadd.f32 0.0, %v670
    %v672 = vpop.f32.mrb[0].mxu0
    %v673 = vpop.f32.mrb[0].mxu0
    %v674 = vadd.f32 0.0, %v673
    %v675 = vpop.f32.mrb[0].mxu0
    %676 = vmatprep.mubr.bf16.mxu0 0
    %677 = vmatmul.mubr.bf16.gmra.mrb[0].mxu0 %v616
    %v678 = vpop.f32.mrb[0].mxu0
    %v679 = vadd.f32 0.0, %v678
    %v680 = vpop.f32.mrb[0].mxu0
    %v681 = vpop.f32.mrb[0].mxu0
    %v682 = vadd.f32 0.0, %v681
    %v683 = vpop.f32.mrb[0].mxu0
    %684 = vmatprep.mubr.bf16.mxu0 0
    %685 = vmatmul.mubr.bf16.gmra.mrb[0].mxu0 %v619
    %v686 = vpop.f32.mrb[0].mxu0
    %v687 = vadd.f32 0.0, %v686
    %v688 = vpop.f32.mrb[0].mxu0
    %v689 = vpop.f32.mrb[0].mxu0
    %v690 = vadd.f32 0.0, %v689
    %v691 = vpop.f32.mrb[0].mxu0
    %692 = vmatprep.mubr.bf16.mxu0 0
    %693 = vmatmul.mubr.bf16.gmra.mrb[0].mxu0 %v622
    %v694 = vpop.f32.mrb[0].mxu0
    %v695 = vadd.f32 0.0, %v694
    %v696 = vpop.f32.mrb[0].mxu0
    %v697 = vpop.f32.mrb[0].mxu0
    %v698 = vadd.f32 0.0, %v697
    %v699 = vpop.f32.mrb[0].mxu0
    %700 = vdwg.mxu0
    %705 = vrot.lane.b32.xlu0 %v393, 96
    %v706 = vpop.permute.xlu0 %705
    %707 = vrot.lane.b32.xlu0 %v394, 96
    %v708 = vpop.permute.xlu0 %707
    %709 = vrot.lane.b32.xlu0 %v395, 96
    %v710 = vpop.permute.xlu0 %709
    %711 = vrot.lane.b32.xlu0 %v396, 96
    %v712 = vpop.permute.xlu0 %711
    %v714 = vsel %vm409, %v393, 0
    %v717 = vsel %vm409, %v394, 0
    %v720 = vsel %vm409, %v395, 0
    %v723 = vsel %vm409, %v396, 0
    %v726 = vsel %vm409, %v706, 0
    %v729 = vsel %vm409, %v708, 0
    %v732 = vsel %vm409, %v710, 0
    %v735 = vsel %vm409, %v712, 0
    %737 = vmatprep.subr.bf16.mxu0 0
    %738 = vmatpush1.bf16.xpose.msra.mxu0 %v726
    %739 = vmatprep.subr.bf16.mxu0 0
    %740 = vmatpush1.bf16.xpose.msra.mxu0 %v729
    %741 = vmatprep.subr.bf16.mxu0 0
    %742 = vmatpush1.bf16.xpose.msra.mxu0 %v732
    %743 = vmatprep.subr.bf16.mxu0 0
    %744 = vmatpush1.bf16.xpose.msra.mxu0 %v735
    %745 = vmatprep.subr.bf16.mxu0 0
    %746 = vmatpush1.bf16.xpose.msra.mxu0 0
    %747 = vmatprep.subr.bf16.mxu0 0
    %748 = vmatpush1.bf16.xpose.msra.mxu0 0
    %749 = vmatprep.subr.bf16.mxu0 0
    %750 = vmatpush1.bf16.xpose.msra.mxu0 0
    %751 = vmatprep.subr.bf16.mxu0 0
    %752 = vmatpush1.bf16.xpose.msra.mxu0 0
    %753 = vmatprep.subr.bf16.mxu0 0
    %754 = vmatpush1.bf16.xpose.msra.mxu0 0
    %755 = vmatprep.subr.bf16.mxu0 0
    %756 = vmatpush1.bf16.xpose.msra.mxu0 0
    %757 = vmatprep.subr.bf16.mxu0 0
    %758 = vmatpush1.bf16.xpose.msra.mxu0 0
    %759 = vmatprep.subr.bf16.mxu0 0
    %760 = vmatpush1.bf16.xpose.msra.mxu0 0
    %761 = vmatprep.subr.bf16.mxu0 0
    %762 = vmatpush1.bf16.xpose.msra.mxu0 0
    %763 = vmatprep.subr.bf16.mxu0 0
    %764 = vmatpush1.bf16.xpose.msra.mxu0 0
    %765 = vmatprep.subr.bf16.mxu0 0
    %766 = vmatpush1.bf16.xpose.msra.mxu0 0
    %767 = vmatprep.subr.bf16.mxu0 0
    %768 = vmatpush1.bf16.xpose.msra.mxu0 0
    %769 = vmatprep.mubr.bf16.mxu0 0
    %770 = vmatmul.mubr.bf16.gmra.mrb[0].mxu0 %v714
    %v771 = vpop.f32.mrb[0].mxu0
    %v772 = vadd.f32 0.0, %v771
    %v773 = vpop.f32.mrb[0].mxu0
    %v774 = vpop.f32.mrb[0].mxu0
    %v775 = vadd.f32 0.0, %v774
    %v776 = vpop.f32.mrb[0].mxu0
    %777 = vmatprep.mubr.bf16.mxu0 0
    %778 = vmatmul.mubr.bf16.gmra.mrb[0].mxu0 %v717
    %v779 = vpop.f32.mrb[0].mxu0
    %v780 = vadd.f32 0.0, %v779
    %v781 = vpop.f32.mrb[0].mxu0
    %v782 = vpop.f32.mrb[0].mxu0
    %v783 = vadd.f32 0.0, %v782
    %v784 = vpop.f32.mrb[0].mxu0
    %785 = vmatprep.mubr.bf16.mxu0 0
    %786 = vmatmul.mubr.bf16.gmra.mrb[0].mxu0 %v720
    %v787 = vpop.f32.mrb[0].mxu0
    %v788 = vadd.f32 0.0, %v787
    %v789 = vpop.f32.mrb[0].mxu0
    %v790 = vpop.f32.mrb[0].mxu0
    %v791 = vadd.f32 0.0, %v790
    %v792 = vpop.f32.mrb[0].mxu0
    %793 = vmatprep.mubr.bf16.mxu0 0
    %794 = vmatmul.mubr.bf16.gmra.mrb[0].mxu0 %v723
    %v795 = vpop.f32.mrb[0].mxu0
    %v796 = vadd.f32 0.0, %v795
    %v797 = vpop.f32.mrb[0].mxu0
    %v798 = vpop.f32.mrb[0].mxu0
    %v799 = vadd.f32 0.0, %v798
    %v800 = vpop.f32.mrb[0].mxu0
    %801 = vdwg.mxu0
    %v802 = vmul.f32 %v469, 0.17677669
    %v803 = vmul.f32 %v472, 0.17677669
    %v804 = vmul.f32 %v477, 0.17677669
    %v805 = vmul.f32 %v480, 0.17677669
    %v806 = vmul.f32 %v485, 0.17677669
    %v807 = vmul.f32 %v488, 0.17677669
    %v808 = vmul.f32 %v493, 0.17677669
    %v809 = vmul.f32 %v496, 0.17677669
    %v810 = vmul.f32 %v570, 0.17677669
    %v811 = vmul.f32 %v573, 0.17677669
    %v812 = vmul.f32 %v578, 0.17677669
    %v813 = vmul.f32 %v581, 0.17677669
    %v814 = vmul.f32 %v586, 0.17677669
    %v815 = vmul.f32 %v589, 0.17677669
    %v816 = vmul.f32 %v594, 0.17677669
    %v817 = vmul.f32 %v597, 0.17677669
    %v818 = vmul.f32 %v671, 0.17677669
    %v819 = vmul.f32 %v674, 0.17677669
    %v820 = vmul.f32 %v679, 0.17677669
    %v821 = vmul.f32 %v682, 0.17677669
    %v822 = vmul.f32 %v687, 0.17677669
    %v823 = vmul.f32 %v690, 0.17677669
    %v824 = vmul.f32 %v695, 0.17677669
    %v825 = vmul.f32 %v698, 0.17677669
    %v826 = vmul.f32 %v772, 0.17677669
    %v827 = vmul.f32 %v775, 0.17677669
    %v828 = vmul.f32 %v780, 0.17677669
    %v829 = vmul.f32 %v783, 0.17677669
    %v830 = vmul.f32 %v788, 0.17677669
    %v831 = vmul.f32 %v791, 0.17677669
    %v832 = vmul.f32 %v796, 0.17677669
    %v833 = vmul.f32 %v799, 0.17677669
    %v834 = vadd.f32 %v802, %v60
    %v835 = vadd.f32 %v803, %v61
    %v836 = vadd.f32 %v804, %v62
    %v837 = vadd.f32 %v805, %v63
    %v838 = vadd.f32 %v806, %v64
    %v839 = vadd.f32 %v807, %v65
    %v840 = vadd.f32 %v808, %v66
    %v841 = vadd.f32 %v809, %v67
    %v842 = vadd.f32 %v810, %v60
    %v843 = vadd.f32 %v811, %v61
    %v844 = vadd.f32 %v812, %v62
    %v845 = vadd.f32 %v813, %v63
    %v846 = vadd.f32 %v814, %v64
    %v847 = vadd.f32 %v815, %v65
    %v848 = vadd.f32 %v816, %v66
    %v849 = vadd.f32 %v817, %v67
    %v850 = vadd.f32 %v818, %v60
    %v851 = vadd.f32 %v819, %v61
    %v852 = vadd.f32 %v820, %v62
    %v853 = vadd.f32 %v821, %v63
    %v854 = vadd.f32 %v822, %v64
    %v855 = vadd.f32 %v823, %v65
    %v856 = vadd.f32 %v824, %v66
    %v857 = vadd.f32 %v825, %v67
    %v858 = vadd.f32 %v826, %v60
    %v859 = vadd.f32 %v827, %v61
    %v860 = vadd.f32 %v828, %v62
    %v861 = vadd.f32 %v829, %v63
    %v862 = vadd.f32 %v830, %v64
    %v863 = vadd.f32 %v831, %v65
    %v864 = vadd.f32 %v832, %v66
    %v865 = vadd.f32 %v833, %v67
    %vm866 = vcmask 523264
    %v867 = vsel %vm866, %v834, -inf
    %868 = vmax.xlane.f32.xlu0 %v867
    %v869 = vpop.xlane.xlu0 %868
    %v870 = vsel %vm866, %v835, -inf
    %871 = vmax.xlane.f32.xlu0 %v870
    %v872 = vpop.xlane.xlu0 %871
    %v873 = vsel %vm866, %v836, -inf
    %874 = vmax.xlane.f32.xlu0 %v873
    %v875 = vpop.xlane.xlu0 %874
    %v876 = vsel %vm866, %v837, -inf
    %877 = vmax.xlane.f32.xlu0 %v876
    %v878 = vpop.xlane.xlu0 %877
    %v879 = vsel %vm866, %v838, -inf
    %880 = vmax.xlane.f32.xlu0 %v879
    %v881 = vpop.xlane.xlu0 %880
    %v882 = vsel %vm866, %v839, -inf
    %883 = vmax.xlane.f32.xlu0 %v882
    %v884 = vpop.xlane.xlu0 %883
    %v885 = vsel %vm866, %v840, -inf
    %886 = vmax.xlane.f32.xlu0 %v885
    %v887 = vpop.xlane.xlu0 %886
    %v888 = vsel %vm866, %v841, -inf
    %889 = vmax.xlane.f32.xlu0 %v888
    %v890 = vpop.xlane.xlu0 %889
    %v891 = vsel %vm866, %v842, -inf
    %892 = vmax.xlane.f32.xlu0 %v891
    %v893 = vpop.xlane.xlu0 %892
    %v894 = vsel %vm866, %v843, -inf
    %895 = vmax.xlane.f32.xlu0 %v894
    %v896 = vpop.xlane.xlu0 %895
    %v897 = vsel %vm866, %v844, -inf
    %898 = vmax.xlane.f32.xlu0 %v897
    %v899 = vpop.xlane.xlu0 %898
    %v900 = vsel %vm866, %v845, -inf
    %901 = vmax.xlane.f32.xlu0 %v900
    %v902 = vpop.xlane.xlu0 %901
    %v903 = vsel %vm866, %v846, -inf
    %904 = vmax.xlane.f32.xlu0 %v903
    %v905 = vpop.xlane.xlu0 %904
    %v906 = vsel %vm866, %v847, -inf
    %907 = vmax.xlane.f32.xlu0 %v906
    %v908 = vpop.xlane.xlu0 %907
    %v909 = vsel %vm866, %v848, -inf
    %910 = vmax.xlane.f32.xlu0 %v909
    %v911 = vpop.xlane.xlu0 %910
    %v912 = vsel %vm866, %v849, -inf
    %913 = vmax.xlane.f32.xlu0 %v912
    %v914 = vpop.xlane.xlu0 %913
    %v915 = vsel %vm866, %v850, -inf
    %916 = vmax.xlane.f32.xlu0 %v915
    %v917 = vpop.xlane.xlu0 %916
    %v918 = vsel %vm866, %v851, -inf
    %919 = vmax.xlane.f32.xlu0 %v918
    %v920 = vpop.xlane.xlu0 %919
    %v921 = vsel %vm866, %v852, -inf
    %922 = vmax.xlane.f32.xlu0 %v921
    %v923 = vpop.xlane.xlu0 %922
    %v924 = vsel %vm866, %v853, -inf
    %925 = vmax.xlane.f32.xlu0 %v924
    %v926 = vpop.xlane.xlu0 %925
    %v927 = vsel %vm866, %v854, -inf
    %928 = vmax.xlane.f32.xlu0 %v927
    %v929 = vpop.xlane.xlu0 %928
    %v930 = vsel %vm866, %v855, -inf
    %931 = vmax.xlane.f32.xlu0 %v930
    %v932 = vpop.xlane.xlu0 %931
    %v933 = vsel %vm866, %v856, -inf
    %934 = vmax.xlane.f32.xlu0 %v933
    %v935 = vpop.xlane.xlu0 %934
    %v936 = vsel %vm866, %v857, -inf
    %937 = vmax.xlane.f32.xlu0 %v936
    %v938 = vpop.xlane.xlu0 %937
    %v939 = vsel %vm866, %v858, -inf
    %940 = vmax.xlane.f32.xlu0 %v939
    %v941 = vpop.xlane.xlu0 %940
    %v942 = vsel %vm866, %v859, -inf
    %943 = vmax.xlane.f32.xlu0 %v942
    %v944 = vpop.xlane.xlu0 %943
    %v945 = vsel %vm866, %v860, -inf
    %946 = vmax.xlane.f32.xlu0 %v945
    %v947 = vpop.xlane.xlu0 %946
    %v948 = vsel %vm866, %v861, -inf
    %949 = vmax.xlane.f32.xlu0 %v948
    %v950 = vpop.xlane.xlu0 %949
    %v951 = vsel %vm866, %v862, -inf
    %952 = vmax.xlane.f32.xlu0 %v951
    %v953 = vpop.xlane.xlu0 %952
    %v954 = vsel %vm866, %v863, -inf
    %955 = vmax.xlane.f32.xlu0 %v954
    %v956 = vpop.xlane.xlu0 %955
    %v957 = vsel %vm866, %v864, -inf
    %958 = vmax.xlane.f32.xlu0 %v957
    %v959 = vpop.xlane.xlu0 %958
    %v960 = vsel %vm866, %v865, -inf
    %961 = vmax.xlane.f32.xlu0 %v960
    %v962 = vpop.xlane.xlu0 %961
    %v963 = vsub.f32 %v834, %v869
    %v964 = vsub.f32 %v835, %v872
    %v965 = vsub.f32 %v836, %v875
    %v966 = vsub.f32 %v837, %v878
    %v967 = vsub.f32 %v838, %v881
    %v968 = vsub.f32 %v839, %v884
    %v969 = vsub.f32 %v840, %v887
    %v970 = vsub.f32 %v841, %v890
    %v971 = vsub.f32 %v842, %v893
    %v972 = vsub.f32 %v843, %v896
    %v973 = vsub.f32 %v844, %v899
    %v974 = vsub.f32 %v845, %v902
    %v975 = vsub.f32 %v846, %v905
    %v976 = vsub.f32 %v847, %v908
    %v977 = vsub.f32 %v848, %v911
    %v978 = vsub.f32 %v849, %v914
    %v979 = vsub.f32 %v850, %v917
    %v980 = vsub.f32 %v851, %v920
    %v981 = vsub.f32 %v852, %v923
    %v982 = vsub.f32 %v853, %v926
    %v983 = vsub.f32 %v854, %v929
    %v984 = vsub.f32 %v855, %v932
    %v985 = vsub.f32 %v856, %v935
    %v986 = vsub.f32 %v857, %v938
    %v987 = vsub.f32 %v858, %v941
    %v988 = vsub.f32 %v859, %v944
    %v989 = vsub.f32 %v860, %v947
    %v990 = vsub.f32 %v861, %v950
    %v991 = vsub.f32 %v862, %v953
    %v992 = vsub.f32 %v863, %v956
    %v993 = vsub.f32 %v864, %v959
    %v994 = vsub.f32 %v865, %v962
    %v995 = vmul.f32 %v963, 1.442695
    %v996 = vpow.pop %v995
    %v997 = vmul.f32 %v964, 1.442695
    %v998 = vpow.pop %v997
    %v999 = vmul.f32 %v965, 1.442695
    %v1000 = vpow.pop %v999
    %v1001 = vmul.f32 %v966, 1.442695
    %v1002 = vpow.pop %v1001
    %v1003 = vmul.f32 %v967, 1.442695
    %v1004 = vpow.pop %v1003
    %v1005 = vmul.f32 %v968, 1.442695
    %v1006 = vpow.pop %v1005
    %v1007 = vmul.f32 %v969, 1.442695
    %v1008 = vpow.pop %v1007
    %v1009 = vmul.f32 %v970, 1.442695
    %v1010 = vpow.pop %v1009
    %v1011 = vmul.f32 %v971, 1.442695
    %v1012 = vpow.pop %v1011
    %v1013 = vmul.f32 %v972, 1.442695
    %v1014 = vpow.pop %v1013
    %v1015 = vmul.f32 %v973, 1.442695
    %v1016 = vpow.pop %v1015
    %v1017 = vmul.f32 %v974, 1.442695
    %v1018 = vpow.pop %v1017
    %v1019 = vmul.f32 %v975, 1.442695
    %v1020 = vpow.pop %v1019
    %v1021 = vmul.f32 %v976, 1.442695
    %v1022 = vpow.pop %v1021
    %v1023 = vmul.f32 %v977, 1.442695
    %v1024 = vpow.pop %v1023
    %v1025 = vmul.f32 %v978, 1.442695
    %v1026 = vpow.pop %v1025
    %v1027 = vmul.f32 %v979, 1.442695
    %v1028 = vpow.pop %v1027
    %v1029 = vmul.f32 %v980, 1.442695
    %v1030 = vpow.pop %v1029
    %v1031 = vmul.f32 %v981, 1.442695
    %v1032 = vpow.pop %v1031
    %v1033 = vmul.f32 %v982, 1.442695
    %v1034 = vpow.pop %v1033
    %v1035 = vmul.f32 %v983, 1.442695
    %v1036 = vpow.pop %v1035
    %v1037 = vmul.f32 %v984, 1.442695
    %v1038 = vpow.pop %v1037
    %v1039 = vmul.f32 %v985, 1.442695
    %v1040 = vpow.pop %v1039
    %v1041 = vmul.f32 %v986, 1.442695
    %v1042 = vpow.pop %v1041
    %v1043 = vmul.f32 %v987, 1.442695
    %v1044 = vpow.pop %v1043
    %v1045 = vmul.f32 %v988, 1.442695
    %v1046 = vpow.pop %v1045
    %v1047 = vmul.f32 %v989, 1.442695
    %v1048 = vpow.pop %v1047
    %v1049 = vmul.f32 %v990, 1.442695
    %v1050 = vpow.pop %v1049
    %v1051 = vmul.f32 %v991, 1.442695
    %v1052 = vpow.pop %v1051
    %v1053 = vmul.f32 %v992, 1.442695
    %v1054 = vpow.pop %v1053
    %v1055 = vmul.f32 %v993, 1.442695
    %v1056 = vpow.pop %v1055
    %v1057 = vmul.f32 %v994, 1.442695
    %v1058 = vpow.pop %v1057
    %v1059 = vsel %vm866, %v996, 0.0
    %1060 = vadd.xlane.f32.xlu0 %v1059
    %v1061 = vpop.xlane.xlu0 %1060
    %v1062 = vsel %vm866, %v998, 0.0
    %1063 = vadd.xlane.f32.xlu0 %v1062
    %v1064 = vpop.xlane.xlu0 %1063
    %v1065 = vsel %vm866, %v1000, 0.0
    %1066 = vadd.xlane.f32.xlu0 %v1065
    %v1067 = vpop.xlane.xlu0 %1066
    %v1068 = vsel %vm866, %v1002, 0.0
    %1069 = vadd.xlane.f32.xlu0 %v1068
    %v1070 = vpop.xlane.xlu0 %1069
    %v1071 = vsel %vm866, %v1004, 0.0
    %1072 = vadd.xlane.f32.xlu0 %v1071
    %v1073 = vpop.xlane.xlu0 %1072
    %v1074 = vsel %vm866, %v1006, 0.0
    %1075 = vadd.xlane.f32.xlu0 %v1074
    %v1076 = vpop.xlane.xlu0 %1075
    %v1077 = vsel %vm866, %v1008, 0.0
    %1078 = vadd.xlane.f32.xlu0 %v1077
    %v1079 = vpop.xlane.xlu0 %1078
    %v1080 = vsel %vm866, %v1010, 0.0
    %1081 = vadd.xlane.f32.xlu0 %v1080
    %v1082 = vpop.xlane.xlu0 %1081
    %v1083 = vsel %vm866, %v1012, 0.0
    %1084 = vadd.xlane.f32.xlu0 %v1083
    %v1085 = vpop.xlane.xlu0 %1084
    %v1086 = vsel %vm866, %v1014, 0.0
    %1087 = vadd.xlane.f32.xlu0 %v1086
    %v1088 = vpop.xlane.xlu0 %1087
    %v1089 = vsel %vm866, %v1016, 0.0
    %1090 = vadd.xlane.f32.xlu0 %v1089
    %v1091 = vpop.xlane.xlu0 %1090
    %v1092 = vsel %vm866, %v1018, 0.0
    %1093 = vadd.xlane.f32.xlu0 %v1092
    %v1094 = vpop.xlane.xlu0 %1093
    %v1095 = vsel %vm866, %v1020, 0.0
    %1096 = vadd.xlane.f32.xlu0 %v1095
    %v1097 = vpop.xlane.xlu0 %1096
    %v1098 = vsel %vm866, %v1022, 0.0
    %1099 = vadd.xlane.f32.xlu0 %v1098
    %v1100 = vpop.xlane.xlu0 %1099
    %v1101 = vsel %vm866, %v1024, 0.0
    %1102 = vadd.xlane.f32.xlu0 %v1101
    %v1103 = vpop.xlane.xlu0 %1102
    %v1104 = vsel %vm866, %v1026, 0.0
    %1105 = vadd.xlane.f32.xlu0 %v1104
    %v1106 = vpop.xlane.xlu0 %1105
    %v1107 = vsel %vm866, %v1028, 0.0
    %1108 = vadd.xlane.f32.xlu0 %v1107
    %v1109 = vpop.xlane.xlu0 %1108
    %v1110 = vsel %vm866, %v1030, 0.0
    %1111 = vadd.xlane.f32.xlu0 %v1110
    %v1112 = vpop.xlane.xlu0 %1111
    %v1113 = vsel %vm866, %v1032, 0.0
    %1114 = vadd.xlane.f32.xlu0 %v1113
    %v1115 = vpop.xlane.xlu0 %1114
    %v1116 = vsel %vm866, %v1034, 0.0
    %1117 = vadd.xlane.f32.xlu0 %v1116
    %v1118 = vpop.xlane.xlu0 %1117
    %v1119 = vsel %vm866, %v1036, 0.0
    %1120 = vadd.xlane.f32.xlu0 %v1119
    %v1121 = vpop.xlane.xlu0 %1120
    %v1122 = vsel %vm866, %v1038, 0.0
    %1123 = vadd.xlane.f32.xlu0 %v1122
    %v1124 = vpop.xlane.xlu0 %1123
    %v1125 = vsel %vm866, %v1040, 0.0
    %1126 = vadd.xlane.f32.xlu0 %v1125
    %v1127 = vpop.xlane.xlu0 %1126
    %v1128 = vsel %vm866, %v1042, 0.0
    %1129 = vadd.xlane.f32.xlu0 %v1128
    %v1130 = vpop.xlane.xlu0 %1129
    %v1131 = vsel %vm866, %v1044, 0.0
    %1132 = vadd.xlane.f32.xlu0 %v1131
    %v1133 = vpop.xlane.xlu0 %1132
    %v1134 = vsel %vm866, %v1046, 0.0
    %1135 = vadd.xlane.f32.xlu0 %v1134
    %v1136 = vpop.xlane.xlu0 %1135
    %v1137 = vsel %vm866, %v1048, 0.0
    %1138 = vadd.xlane.f32.xlu0 %v1137
    %v1139 = vpop.xlane.xlu0 %1138
    %v1140 = vsel %vm866, %v1050, 0.0
    %1141 = vadd.xlane.f32.xlu0 %v1140
    %v1142 = vpop.xlane.xlu0 %1141
    %v1143 = vsel %vm866, %v1052, 0.0
    %1144 = vadd.xlane.f32.xlu0 %v1143
    %v1145 = vpop.xlane.xlu0 %1144
    %v1146 = vsel %vm866, %v1054, 0.0
    %1147 = vadd.xlane.f32.xlu0 %v1146
    %v1148 = vpop.xlane.xlu0 %1147
    %v1149 = vsel %vm866, %v1056, 0.0
    %1150 = vadd.xlane.f32.xlu0 %v1149
    %v1151 = vpop.xlane.xlu0 %1150
    %v1152 = vsel %vm866, %v1058, 0.0
    %1153 = vadd.xlane.f32.xlu0 %v1152
    %v1154 = vpop.xlane.xlu0 %1153
    %v1155 = vrcp.pop %v1061
    %v1156 = vrcp.pop %v1064
    %v1157 = vrcp.pop %v1067
    %v1158 = vrcp.pop %v1070
    %v1159 = vrcp.pop %v1073
    %v1160 = vrcp.pop %v1076
    %v1161 = vrcp.pop %v1079
    %v1162 = vrcp.pop %v1082
    %v1163 = vrcp.pop %v1085
    %v1164 = vrcp.pop %v1088
    %v1165 = vrcp.pop %v1091
    %v1166 = vrcp.pop %v1094
    %v1167 = vrcp.pop %v1097
    %v1168 = vrcp.pop %v1100
    %v1169 = vrcp.pop %v1103
    %v1170 = vrcp.pop %v1106
    %v1171 = vrcp.pop %v1109
    %v1172 = vrcp.pop %v1112
    %v1173 = vrcp.pop %v1115
    %v1174 = vrcp.pop %v1118
    %v1175 = vrcp.pop %v1121
    %v1176 = vrcp.pop %v1124
    %v1177 = vrcp.pop %v1127
    %v1178 = vrcp.pop %v1130
    %v1179 = vrcp.pop %v1133
    %v1180 = vrcp.pop %v1136
    %v1181 = vrcp.pop %v1139
    %v1182 = vrcp.pop %v1142
    %v1183 = vrcp.pop %v1145
    %v1184 = vrcp.pop %v1148
    %v1185 = vrcp.pop %v1151
    %v1186 = vrcp.pop %v1154
    %v1187 = vmul.f32 %v996, %v1155
    %v1188 = vmul.f32 %v998, %v1156
    %v1189 = vmul.f32 %v1000, %v1157
    %v1190 = vmul.f32 %v1002, %v1158
    %v1191 = vmul.f32 %v1004, %v1159
    %v1192 = vmul.f32 %v1006, %v1160
    %v1193 = vmul.f32 %v1008, %v1161
    %v1194 = vmul.f32 %v1010, %v1162
    %v1195 = vmul.f32 %v1012, %v1163
    %v1196 = vmul.f32 %v1014, %v1164
    %v1197 = vmul.f32 %v1016, %v1165
    %v1198 = vmul.f32 %v1018, %v1166
    %v1199 = vmul.f32 %v1020, %v1167
    %v1200 = vmul.f32 %v1022, %v1168
    %v1201 = vmul.f32 %v1024, %v1169
    %v1202 = vmul.f32 %v1026, %v1170
    %v1203 = vmul.f32 %v1028, %v1171
    %v1204 = vmul.f32 %v1030, %v1172
    %v1205 = vmul.f32 %v1032, %v1173
    %v1206 = vmul.f32 %v1034, %v1174
    %v1207 = vmul.f32 %v1036, %v1175
    %v1208 = vmul.f32 %v1038, %v1176
    %v1209 = vmul.f32 %v1040, %v1177
    %v1210 = vmul.f32 %v1042, %v1178
    %v1211 = vmul.f32 %v1044, %v1179
    %v1212 = vmul.f32 %v1046, %v1180
    %v1213 = vmul.f32 %v1048, %v1181
    %v1214 = vmul.f32 %v1050, %v1182
    %v1215 = vmul.f32 %v1052, %v1183
    %v1216 = vmul.f32 %v1054, %v1184
    %v1217 = vmul.f32 %v1056, %v1185
    %v1218 = vmul.f32 %v1058, %v1186
    %v1219 = vpack.c.bf16 %v1188, %v1187
    %v1220 = vpack.c.bf16 %v1190, %v1189
    %v1221 = vpack.c.bf16 %v1192, %v1191
    %v1222 = vpack.c.bf16 %v1194, %v1193
    %v1223 = vpack.c.bf16 %v1196, %v1195
    %v1224 = vpack.c.bf16 %v1198, %v1197
    %v1225 = vpack.c.bf16 %v1200, %v1199
    %v1226 = vpack.c.bf16 %v1202, %v1201
    %v1227 = vpack.c.bf16 %v1204, %v1203
    %v1228 = vpack.c.bf16 %v1206, %v1205
    %v1229 = vpack.c.bf16 %v1208, %v1207
    %v1230 = vpack.c.bf16 %v1210, %v1209
    %v1231 = vpack.c.bf16 %v1212, %v1211
    %v1232 = vpack.c.bf16 %v1214, %v1213
    %v1233 = vpack.c.bf16 %v1216, %v1215
    %v1234 = vpack.c.bf16 %v1218, %v1217
    %1235 = vrot.lane.b32.xlu0 %v381, 64
    %v1236 = vpop.permute.xlu0 %1235
    %1237 = vrot.lane.b32.xlu0 %v382, 64
    %v1238 = vpop.permute.xlu0 %1237
    %1239 = vrot.lane.b32.xlu0 %v383, 64
    %v1240 = vpop.permute.xlu0 %1239
    %1241 = vrot.lane.b32.xlu0 %v384, 64
    %v1242 = vpop.permute.xlu0 %1241
    %v1248 = vsel %vm866, %v1219, 0
    %v1251 = vsel %vm866, %v1220, 0
    %v1254 = vsel %vm866, %v1221, 0
    %v1257 = vsel %vm866, %v1222, 0
    %1259 = vmatprep.subr.bf16.mxu0 0
    %1260 = vmatpush1.bf16.msra.mxu0 %v1236
    %1261 = vmatprep.subr.bf16.mxu0 0
    %1262 = vmatpush1.bf16.msra.mxu0 %v1238
    %1263 = vmatprep.subr.bf16.mxu0 0
    %1264 = vmatpush1.bf16.msra.mxu0 %v1240
    %1265 = vmatprep.subr.bf16.mxu0 0
    %1266 = vmatpush1.bf16.msra.mxu0 %v1242
    %1267 = vmatprep.subr.bf16.mxu0 0
    %1268 = vmatpush1.bf16.msra.mxu0 0
    %1269 = vmatprep.subr.bf16.mxu0 0
    %1270 = vmatpush1.bf16.msra.mxu0 0
    %1271 = vmatprep.subr.bf16.mxu0 0
    %1272 = vmatpush1.bf16.msra.mxu0 0
    %1273 = vmatprep.subr.bf16.mxu0 0
    %1274 = vmatpush1.bf16.msra.mxu0 0
    %1275 = vmatprep.subr.bf16.mxu0 0
    %1276 = vmatpush1.bf16.msra.mxu0 0
    %1277 = vmatprep.subr.bf16.mxu0 0
    %1278 = vmatpush1.bf16.msra.mxu0 0
    %1279 = vmatprep.subr.bf16.mxu0 0
    %1280 = vmatpush1.bf16.msra.mxu0 0
    %1281 = vmatprep.subr.bf16.mxu0 0
    %1282 = vmatpush1.bf16.msra.mxu0 0
    %1283 = vmatprep.subr.bf16.mxu0 0
    %1284 = vmatpush1.bf16.msra.mxu0 0
    %1285 = vmatprep.subr.bf16.mxu0 0
    %1286 = vmatpush1.bf16.msra.mxu0 0
    %1287 = vmatprep.subr.bf16.mxu0 0
    %1288 = vmatpush1.bf16.msra.mxu0 0
    %1289 = vmatprep.subr.bf16.mxu0 0
    %1290 = vmatpush1.bf16.msra.mxu0 0
    %1291 = vmatprep.mubr.bf16.mxu0 0
    %1292 = vmatmul.mubr.bf16.gmra.mrb[0].mxu0 %v1248
    %v1293 = vpop.f32.mrb[0].mxu0
    %v1294 = vadd.f32 0.0, %v1293
    %v1295 = vpop.f32.mrb[0].mxu0
    %v1296 = vpop.f32.mrb[0].mxu0
    %v1297 = vadd.f32 0.0, %v1296
    %v1298 = vpop.f32.mrb[0].mxu0
    %1299 = vmatprep.mubr.bf16.mxu0 0
    %1300 = vmatmul.mubr.bf16.gmra.mrb[0].mxu0 %v1251
    %v1301 = vpop.f32.mrb[0].mxu0
    %v1302 = vadd.f32 0.0, %v1301
    %v1303 = vpop.f32.mrb[0].mxu0
    %v1304 = vpop.f32.mrb[0].mxu0
    %v1305 = vadd.f32 0.0, %v1304
    %v1306 = vpop.f32.mrb[0].mxu0
    %1307 = vmatprep.mubr.bf16.mxu0 0
    %1308 = vmatmul.mubr.bf16.gmra.mrb[0].mxu0 %v1254
    %v1309 = vpop.f32.mrb[0].mxu0
    %v1310 = vadd.f32 0.0, %v1309
    %v1311 = vpop.f32.mrb[0].mxu0
    %v1312 = vpop.f32.mrb[0].mxu0
    %v1313 = vadd.f32 0.0, %v1312
    %v1314 = vpop.f32.mrb[0].mxu0
    %1315 = vmatprep.mubr.bf16.mxu0 0
    %1316 = vmatmul.mubr.bf16.gmra.mrb[0].mxu0 %v1257
    %v1317 = vpop.f32.mrb[0].mxu0
    %v1318 = vadd.f32 0.0, %v1317
    %v1319 = vpop.f32.mrb[0].mxu0
    %v1320 = vpop.f32.mrb[0].mxu0
    %v1321 = vadd.f32 0.0, %v1320
    %v1322 = vpop.f32.mrb[0].mxu0
    %1323 = vdwg.mxu0
    %1324 = vrot.lane.b32.xlu0 %v385, 64
    %v1325 = vpop.permute.xlu0 %1324
    %1326 = vrot.lane.b32.xlu0 %v386, 64
    %v1327 = vpop.permute.xlu0 %1326
    %1328 = vrot.lane.b32.xlu0 %v387, 64
    %v1329 = vpop.permute.xlu0 %1328
    %1330 = vrot.lane.b32.xlu0 %v388, 64
    %v1331 = vpop.permute.xlu0 %1330
    %v1337 = vsel %vm866, %v1223, 0
    %v1340 = vsel %vm866, %v1224, 0
    %v1343 = vsel %vm866, %v1225, 0
    %v1346 = vsel %vm866, %v1226, 0
    %1348 = vmatprep.subr.bf16.mxu0 0
    %1349 = vmatpush1.bf16.msra.mxu0 %v1325
    %1350 = vmatprep.subr.bf16.mxu0 0
    %1351 = vmatpush1.bf16.msra.mxu0 %v1327
    %1352 = vmatprep.subr.bf16.mxu0 0
    %1353 = vmatpush1.bf16.msra.mxu0 %v1329
    %1354 = vmatprep.subr.bf16.mxu0 0
    %1355 = vmatpush1.bf16.msra.mxu0 %v1331
    %1356 = vmatprep.subr.bf16.mxu0 0
    %1357 = vmatpush1.bf16.msra.mxu0 0
    %1358 = vmatprep.subr.bf16.mxu0 0
    %1359 = vmatpush1.bf16.msra.mxu0 0
    %1360 = vmatprep.subr.bf16.mxu0 0
    %1361 = vmatpush1.bf16.msra.mxu0 0
    %1362 = vmatprep.subr.bf16.mxu0 0
    %1363 = vmatpush1.bf16.msra.mxu0 0
    %1364 = vmatprep.subr.bf16.mxu0 0
    %1365 = vmatpush1.bf16.msra.mxu0 0
    %1366 = vmatprep.subr.bf16.mxu0 0
    %1367 = vmatpush1.bf16.msra.mxu0 0
    %1368 = vmatprep.subr.bf16.mxu0 0
    %1369 = vmatpush1.bf16.msra.mxu0 0
    %1370 = vmatprep.subr.bf16.mxu0 0
    %1371 = vmatpush1.bf16.msra.mxu0 0
    %1372 = vmatprep.subr.bf16.mxu0 0
    %1373 = vmatpush1.bf16.msra.mxu0 0
    %1374 = vmatprep.subr.bf16.mxu0 0
    %1375 = vmatpush1.bf16.msra.mxu0 0
    %1376 = vmatprep.subr.bf16.mxu0 0
    %1377 = vmatpush1.bf16.msra.mxu0 0
    %1378 = vmatprep.subr.bf16.mxu0 0
    %1379 = vmatpush1.bf16.msra.mxu0 0
    %1380 = vmatprep.mubr.bf16.mxu0 0
    %1381 = vmatmul.mubr.bf16.gmra.mrb[0].mxu0 %v1337
    %v1382 = vpop.f32.mrb[0].mxu0
    %v1383 = vadd.f32 0.0, %v1382
    %v1384 = vpop.f32.mrb[0].mxu0
    %v1385 = vpop.f32.mrb[0].mxu0
    %v1386 = vadd.f32 0.0, %v1385
    %v1387 = vpop.f32.mrb[0].mxu0
    %1388 = vmatprep.mubr.bf16.mxu0 0
    %1389 = vmatmul.mubr.bf16.gmra.mrb[0].mxu0 %v1340
    %v1390 = vpop.f32.mrb[0].mxu0
    %v1391 = vadd.f32 0.0, %v1390
    %v1392 = vpop.f32.mrb[0].mxu0
    %v1393 = vpop.f32.mrb[0].mxu0
    %v1394 = vadd.f32 0.0, %v1393
    %v1395 = vpop.f32.mrb[0].mxu0
    %1396 = vmatprep.mubr.bf16.mxu0 0
    %1397 = vmatmul.mubr.bf16.gmra.mrb[0].mxu0 %v1343
    %v1398 = vpop.f32.mrb[0].mxu0
    %v1399 = vadd.f32 0.0, %v1398
    %v1400 = vpop.f32.mrb[0].mxu0
    %v1401 = vpop.f32.mrb[0].mxu0
    %v1402 = vadd.f32 0.0, %v1401
    %v1403 = vpop.f32.mrb[0].mxu0
    %1404 = vmatprep.mubr.bf16.mxu0 0
    %1405 = vmatmul.mubr.bf16.gmra.mrb[0].mxu0 %v1346
    %v1406 = vpop.f32.mrb[0].mxu0
    %v1407 = vadd.f32 0.0, %v1406
    %v1408 = vpop.f32.mrb[0].mxu0
    %v1409 = vpop.f32.mrb[0].mxu0
    %v1410 = vadd.f32 0.0, %v1409
    %v1411 = vpop.f32.mrb[0].mxu0
    %1412 = vdwg.mxu0
    %1413 = vrot.lane.b32.xlu0 %v389, 64
    %v1414 = vpop.permute.xlu0 %1413
    %1415 = vrot.lane.b32.xlu0 %v390, 64
    %v1416 = vpop.permute.xlu0 %1415
    %1417 = vrot.lane.b32.xlu0 %v391, 64
    %v1418 = vpop.permute.xlu0 %1417
    %1419 = vrot.lane.b32.xlu0 %v392, 64
    %v1420 = vpop.permute.xlu0 %1419
    %v1426 = vsel %vm866, %v1227, 0
    %v1429 = vsel %vm866, %v1228, 0
    %v1432 = vsel %vm866, %v1229, 0
    %v1435 = vsel %vm866, %v1230, 0
    %1437 = vmatprep.subr.bf16.mxu0 0
    %1438 = vmatpush1.bf16.msra.mxu0 %v1414
    %1439 = vmatprep.subr.bf16.mxu0 0
    %1440 = vmatpush1.bf16.msra.mxu0 %v1416
    %1441 = vmatprep.subr.bf16.mxu0 0
    %1442 = vmatpush1.bf16.msra.mxu0 %v1418
    %1443 = vmatprep.subr.bf16.mxu0 0
    %1444 = vmatpush1.bf16.msra.mxu0 %v1420
    %1445 = vmatprep.subr.bf16.mxu0 0
    %1446 = vmatpush1.bf16.msra.mxu0 0
    %1447 = vmatprep.subr.bf16.mxu0 0
    %1448 = vmatpush1.bf16.msra.mxu0 0
    %1449 = vmatprep.subr.bf16.mxu0 0
    %1450 = vmatpush1.bf16.msra.mxu0 0
    %1451 = vmatprep.subr.bf16.mxu0 0
    %1452 = vmatpush1.bf16.msra.mxu0 0
    %1453 = vmatprep.subr.bf16.mxu0 0
    %1454 = vmatpush1.bf16.msra.mxu0 0
    %1455 = vmatprep.subr.bf16.mxu0 0
    %1456 = vmatpush1.bf16.msra.mxu0 0
    %1457 = vmatprep.subr.bf16.mxu0 0
    %1458 = vmatpush1.bf16.msra.mxu0 0
    %1459 = vmatprep.subr.bf16.mxu0 0
    %1460 = vmatpush1.bf16.msra.mxu0 0
    %1461 = vmatprep.subr.bf16.mxu0 0
    %1462 = vmatpush1.bf16.msra.mxu0 0
    %1463 = vmatprep.subr.bf16.mxu0 0
    %1464 = vmatpush1.bf16.msra.mxu0 0
    %1465 = vmatprep.subr.bf16.mxu0 0
    %1466 = vmatpush1.bf16.msra.mxu0 0
    %1467 = vmatprep.subr.bf16.mxu0 0
    %1468 = vmatpush1.bf16.msra.mxu0 0
    %1469 = vmatprep.mubr.bf16.mxu0 0
    %1470 = vmatmul.mubr.bf16.gmra.mrb[0].mxu0 %v1426
    %v1471 = vpop.f32.mrb[0].mxu0
    %v1472 = vadd.f32 0.0, %v1471
    %v1473 = vpop.f32.mrb[0].mxu0
    %v1474 = vpop.f32.mrb[0].mxu0
    %v1475 = vadd.f32 0.0, %v1474
    %v1476 = vpop.f32.mrb[0].mxu0
    %1477 = vmatprep.mubr.bf16.mxu0 0
    %1478 = vmatmul.mubr.bf16.gmra.mrb[0].mxu0 %v1429
    %v1479 = vpop.f32.mrb[0].mxu0
    %v1480 = vadd.f32 0.0, %v1479
    %v1481 = vpop.f32.mrb[0].mxu0
    %v1482 = vpop.f32.mrb[0].mxu0
    %v1483 = vadd.f32 0.0, %v1482
    %v1484 = vpop.f32.mrb[0].mxu0
    %1485 = vmatprep.mubr.bf16.mxu0 0
    %1486 = vmatmul.mubr.bf16.gmra.mrb[0].mxu0 %v1432
    %v1487 = vpop.f32.mrb[0].mxu0
    %v1488 = vadd.f32 0.0, %v1487
    %v1489 = vpop.f32.mrb[0].mxu0
    %v1490 = vpop.f32.mrb[0].mxu0
    %v1491 = vadd.f32 0.0, %v1490
    %v1492 = vpop.f32.mrb[0].mxu0
    %1493 = vmatprep.mubr.bf16.mxu0 0
    %1494 = vmatmul.mubr.bf16.gmra.mrb[0].mxu0 %v1435
    %v1495 = vpop.f32.mrb[0].mxu0
    %v1496 = vadd.f32 0.0, %v1495
    %v1497 = vpop.f32.mrb[0].mxu0
    %v1498 = vpop.f32.mrb[0].mxu0
    %v1499 = vadd.f32 0.0, %v1498
    %v1500 = vpop.f32.mrb[0].mxu0
    %1501 = vdwg.mxu0
    %1502 = vrot.lane.b32.xlu0 %v393, 64
    %v1503 = vpop.permute.xlu0 %1502
    %1504 = vrot.lane.b32.xlu0 %v394, 64
    %v1505 = vpop.permute.xlu0 %1504
    %1506 = vrot.lane.b32.xlu0 %v395, 64
    %v1507 = vpop.permute.xlu0 %1506
    %1508 = vrot.lane.b32.xlu0 %v396, 64
    %v1509 = vpop.permute.xlu0 %1508
    %v1515 = vsel %vm866, %v1231, 0
    %v1518 = vsel %vm866, %v1232, 0
    %v1521 = vsel %vm866, %v1233, 0
    %v1524 = vsel %vm866, %v1234, 0
    %1526 = vmatprep.subr.bf16.mxu0 0
    %1527 = vmatpush1.bf16.msra.mxu0 %v1503
    %1528 = vmatprep.subr.bf16.mxu0 0
    %1529 = vmatpush1.bf16.msra.mxu0 %v1505
    %1530 = vmatprep.subr.bf16.mxu0 0
    %1531 = vmatpush1.bf16.msra.mxu0 %v1507
    %1532 = vmatprep.subr.bf16.mxu0 0
    %1533 = vmatpush1.bf16.msra.mxu0 %v1509
    %1534 = vmatprep.subr.bf16.mxu0 0
    %1535 = vmatpush1.bf16.msra.mxu0 0
    %1536 = vmatprep.subr.bf16.mxu0 0
    %1537 = vmatpush1.bf16.msra.mxu0 0
    %1538 = vmatprep.subr.bf16.mxu0 0
    %1539 = vmatpush1.bf16.msra.mxu0 0
    %1540 = vmatprep.subr.bf16.mxu0 0
    %1541 = vmatpush1.bf16.msra.mxu0 0
    %1542 = vmatprep.subr.bf16.mxu0 0
    %1543 = vmatpush1.bf16.msra.mxu0 0
    %1544 = vmatprep.subr.bf16.mxu0 0
    %1545 = vmatpush1.bf16.msra.mxu0 0
    %1546 = vmatprep.subr.bf16.mxu0 0
    %1547 = vmatpush1.bf16.msra.mxu0 0
    %1548 = vmatprep.subr.bf16.mxu0 0
    %1549 = vmatpush1.bf16.msra.mxu0 0
    %1550 = vmatprep.subr.bf16.mxu0 0
    %1551 = vmatpush1.bf16.msra.mxu0 0
    %1552 = vmatprep.subr.bf16.mxu0 0
    %1553 = vmatpush1.bf16.msra.mxu0 0
    %1554 = vmatprep.subr.bf16.mxu0 0
    %1555 = vmatpush1.bf16.msra.mxu0 0
    %1556 = vmatprep.subr.bf16.mxu0 0
    %1557 = vmatpush1.bf16.msra.mxu0 0
    %1558 = vmatprep.mubr.bf16.mxu0 0
    %1559 = vmatmul.mubr.bf16.gmra.mrb[0].mxu0 %v1515
    %v1560 = vpop.f32.mrb[0].mxu0
    %v1561 = vadd.f32 0.0, %v1560
    %v1562 = vpop.f32.mrb[0].mxu0
    %v1563 = vpop.f32.mrb[0].mxu0
    %v1564 = vadd.f32 0.0, %v1563
    %v1565 = vpop.f32.mrb[0].mxu0
    %1566 = vmatprep.mubr.bf16.mxu0 0
    %1567 = vmatmul.mubr.bf16.gmra.mrb[0].mxu0 %v1518
    %v1568 = vpop.f32.mrb[0].mxu0
    %v1569 = vadd.f32 0.0, %v1568
    %v1570 = vpop.f32.mrb[0].mxu0
    %v1571 = vpop.f32.mrb[0].mxu0
    %v1572 = vadd.f32 0.0, %v1571
    %v1573 = vpop.f32.mrb[0].mxu0
    %1574 = vmatprep.mubr.bf16.mxu0 0
    %1575 = vmatmul.mubr.bf16.gmra.mrb[0].mxu0 %v1521
    %v1576 = vpop.f32.mrb[0].mxu0
    %v1577 = vadd.f32 0.0, %v1576
    %v1578 = vpop.f32.mrb[0].mxu0
    %v1579 = vpop.f32.mrb[0].mxu0
    %v1580 = vadd.f32 0.0, %v1579
    %v1581 = vpop.f32.mrb[0].mxu0
    %1582 = vmatprep.mubr.bf16.mxu0 0
    %1583 = vmatmul.mubr.bf16.gmra.mrb[0].mxu0 %v1524
    %v1584 = vpop.f32.mrb[0].mxu0
    %v1585 = vadd.f32 0.0, %v1584
    %v1586 = vpop.f32.mrb[0].mxu0
    %v1587 = vpop.f32.mrb[0].mxu0
    %v1588 = vadd.f32 0.0, %v1587
    %v1589 = vpop.f32.mrb[0].mxu0
    %1590 = vdwg.mxu0
    %1599 = vrot.lane.b32.xlu0 %v1383, 8
    %v1600 = vpop.permute.xlu0 %1599
    %1601 = vrot.lane.b32.xlu0 %v1386, 8
    %v1602 = vpop.permute.xlu0 %1601
    %1603 = vrot.lane.b32.xlu0 %v1391, 8
    %v1604 = vpop.permute.xlu0 %1603
    %1605 = vrot.lane.b32.xlu0 %v1394, 8
    %v1606 = vpop.permute.xlu0 %1605
    %1607 = vrot.lane.b32.xlu0 %v1399, 8
    %v1608 = vpop.permute.xlu0 %1607
    %1609 = vrot.lane.b32.xlu0 %v1402, 8
    %v1610 = vpop.permute.xlu0 %1609
    %1611 = vrot.lane.b32.xlu0 %v1407, 8
    %v1612 = vpop.permute.xlu0 %1611
    %1613 = vrot.lane.b32.xlu0 %v1410, 8
    %v1614 = vpop.permute.xlu0 %1613
    %1631 = vrot.lane.b32.xlu0 %v1472, 16
    %v1632 = vpop.permute.xlu0 %1631
    %1633 = vrot.lane.b32.xlu0 %v1475, 16
    %v1634 = vpop.permute.xlu0 %1633
    %1635 = vrot.lane.b32.xlu0 %v1480, 16
    %v1636 = vpop.permute.xlu0 %1635
    %1637 = vrot.lane.b32.xlu0 %v1483, 16
    %v1638 = vpop.permute.xlu0 %1637
    %1639 = vrot.lane.b32.xlu0 %v1488, 16
    %v1640 = vpop.permute.xlu0 %1639
    %1641 = vrot.lane.b32.xlu0 %v1491, 16
    %v1642 = vpop.permute.xlu0 %1641
    %1643 = vrot.lane.b32.xlu0 %v1496, 16
    %v1644 = vpop.permute.xlu0 %1643
    %1645 = vrot.lane.b32.xlu0 %v1499, 16
    %v1646 = vpop.permute.xlu0 %1645
    %1663 = vrot.lane.b32.xlu0 %v1561, 24
    %v1664 = vpop.permute.xlu0 %1663
    %1665 = vrot.lane.b32.xlu0 %v1564, 24
    %v1666 = vpop.permute.xlu0 %1665
    %1667 = vrot.lane.b32.xlu0 %v1569, 24
    %v1668 = vpop.permute.xlu0 %1667
    %1669 = vrot.lane.b32.xlu0 %v1572, 24
    %v1670 = vpop.permute.xlu0 %1669
    %1671 = vrot.lane.b32.xlu0 %v1577, 24
    %v1672 = vpop.permute.xlu0 %1671
    %1673 = vrot.lane.b32.xlu0 %v1580, 24
    %v1674 = vpop.permute.xlu0 %1673
    %1675 = vrot.lane.b32.xlu0 %v1585, 24
    %v1676 = vpop.permute.xlu0 %1675
    %1677 = vrot.lane.b32.xlu0 %v1588, 24
    %v1678 = vpop.permute.xlu0 %1677
    %v1687 = vsel %vm409, %v1294, %v1600
    %v1688 = vsel %vm409, %v1297, %v1602
    %v1689 = vsel %vm409, %v1302, %v1604
    %v1690 = vsel %vm409, %v1305, %v1606
    %v1691 = vsel %vm409, %v1310, %v1608
    %v1692 = vsel %vm409, %v1313, %v1610
    %v1693 = vsel %vm409, %v1318, %v1612
    %v1694 = vsel %vm409, %v1321, %v1614
    %vm1695 = vcmask 130048
    %v1696 = vsel %vm1695, %v1687, %v1632
    %v1697 = vsel %vm1695, %v1688, %v1634
    %v1698 = vsel %vm1695, %v1689, %v1636
    %v1699 = vsel %vm1695, %v1690, %v1638
    %v1700 = vsel %vm1695, %v1691, %v1640
    %v1701 = vsel %vm1695, %v1692, %v1642
    %v1702 = vsel %vm1695, %v1693, %v1644
    %v1703 = vsel %vm1695, %v1694, %v1646
    %vm1704 = vcmask 195584
    %v1705 = vsel %vm1704, %v1696, %v1664
    %v1706 = vsel %vm1704, %v1697, %v1666
    %v1707 = vsel %vm1704, %v1698, %v1668
    %v1708 = vsel %vm1704, %v1699, %v1670
    %v1709 = vsel %vm1704, %v1700, %v1672
    %v1710 = vsel %vm1704, %v1701, %v1674
    %v1711 = vsel %vm1704, %v1702, %v1676
    %v1712 = vsel %vm1704, %v1703, %v1678
    %v1713 = vld [vmem:[%s5] sm:$0xf]
    %v1714 = vld [vmem:[%s5 + $0x4] sm:$0xf]
    %v1715 = vld [vmem:[%s5 + $0x8] sm:$0xf]
    %v1716 = vld [vmem:[%s5 + $0xc] sm:$0xf]
    %v1717 = vpack.c.bf16 %v1706, %v1705
    %v1718 = vpack.c.bf16 %v1708, %v1707
    %v1719 = vpack.c.bf16 %v1710, %v1709
    %v1720 = vpack.c.bf16 %v1712, %v1711
    %v1725 = vunpack.c.l.b16 %v1713
    %v1726 = vunpack.c.l.b16 %v1714
    %v1727 = vunpack.c.l.b16 %v1715
    %v1728 = vunpack.c.l.b16 %v1716
    %v1729 = vpack.c.b16 %v1726, %v1725
    %v1730 = vpack.c.b16 %v1728, %v1727
    %v1734 = vsel %vm70, %v1717, 0
    %v1737 = vsel %vm70, %v1718, 0
    %v1740 = vsel %vm70, %v1719, 0
    %v1743 = vsel %vm70, %v1720, 0
    %1745 = vmatprep.subr.bf16.mxu0 0
    %1746 = vmatpush1.bf16.msra.mxu0 %v1729
    %1747 = vmatprep.subr.bf16.mxu0 0
    %1748 = vmatpush1.bf16.msra.mxu0 %v1730
    %1749 = vmatprep.subr.bf16.mxu0 0
    %1750 = vmatpush1.bf16.msra.mxu0 0
    %1751 = vmatprep.subr.bf16.mxu0 0
    %1752 = vmatpush1.bf16.msra.mxu0 0
    %1753 = vmatprep.subr.bf16.mxu0 0
    %1754 = vmatpush1.bf16.msra.mxu0 0
    %1755 = vmatprep.subr.bf16.mxu0 0
    %1756 = vmatpush1.bf16.msra.mxu0 0
    %1757 = vmatprep.subr.bf16.mxu0 0
    %1758 = vmatpush1.bf16.msra.mxu0 0
    %1759 = vmatprep.subr.bf16.mxu0 0
    %1760 = vmatpush1.bf16.msra.mxu0 0
    %1761 = vmatprep.subr.bf16.mxu0 0
    %1762 = vmatpush1.bf16.msra.mxu0 0
    %1763 = vmatprep.subr.bf16.mxu0 0
    %1764 = vmatpush1.bf16.msra.mxu0 0
    %1765 = vmatprep.subr.bf16.mxu0 0
    %1766 = vmatpush1.bf16.msra.mxu0 0
    %1767 = vmatprep.subr.bf16.mxu0 0
    %1768 = vmatpush1.bf16.msra.mxu0 0
    %1769 = vmatprep.subr.bf16.mxu0 0
    %1770 = vmatpush1.bf16.msra.mxu0 0
    %1771 = vmatprep.subr.bf16.mxu0 0
    %1772 = vmatpush1.bf16.msra.mxu0 0
    %1773 = vmatprep.subr.bf16.mxu0 0
    %1774 = vmatpush1.bf16.msra.mxu0 0
    %1775 = vmatprep.subr.bf16.mxu0 0
    %1776 = vmatpush1.bf16.msra.mxu0 0
    %1777 = vmatprep.mubr.bf16.mxu0 0
    %1778 = vmatmul.mubr.bf16.gmra.mrb[0].mxu0 %v1734
    %v1779 = vpop.f32.mrb[0].mxu0
    %v1780 = vadd.f32 0.0, %v1779
    %v1781 = vpop.f32.mrb[0].mxu0
    %v1782 = vpop.f32.mrb[0].mxu0
    %v1783 = vadd.f32 0.0, %v1782
    %v1784 = vpop.f32.mrb[0].mxu0
    %1785 = vmatprep.mubr.bf16.mxu0 0
    %1786 = vmatmul.mubr.bf16.gmra.mrb[0].mxu0 %v1737
    %v1787 = vpop.f32.mrb[0].mxu0
    %v1788 = vadd.f32 0.0, %v1787
    %v1789 = vpop.f32.mrb[0].mxu0
    %v1790 = vpop.f32.mrb[0].mxu0
    %v1791 = vadd.f32 0.0, %v1790
    %v1792 = vpop.f32.mrb[0].mxu0
    %1793 = vmatprep.mubr.bf16.mxu0 0
    %1794 = vmatmul.mubr.bf16.gmra.mrb[0].mxu0 %v1740
    %v1795 = vpop.f32.mrb[0].mxu0
    %v1796 = vadd.f32 0.0, %v1795
    %v1797 = vpop.f32.mrb[0].mxu0
    %v1798 = vpop.f32.mrb[0].mxu0
    %v1799 = vadd.f32 0.0, %v1798
    %v1800 = vpop.f32.mrb[0].mxu0
    %1801 = vmatprep.mubr.bf16.mxu0 0
    %1802 = vmatmul.mubr.bf16.gmra.mrb[0].mxu0 %v1743
    %v1803 = vpop.f32.mrb[0].mxu0
    %v1804 = vadd.f32 0.0, %v1803
    %v1805 = vpop.f32.mrb[0].mxu0
    %v1806 = vpop.f32.mrb[0].mxu0
    %v1807 = vadd.f32 0.0, %v1806
    %v1808 = vpop.f32.mrb[0].mxu0
    %1809 = vdwg.mxu0
    %v1810 = vadd.f32 %v52, %v1780
    %v1811 = vadd.f32 %v53, %v1783
    %v1812 = vadd.f32 %v54, %v1788
    %v1813 = vadd.f32 %v55, %v1791
    %v1814 = vadd.f32 %v56, %v1796
    %v1815 = vadd.f32 %v57, %v1799
    %v1816 = vadd.f32 %v58, %v1804
    %v1817 = vadd.f32 %v59, %v1807
    %v1818 = vld [vmem:[%s6] sm:$0x1]
    %v1820 = vlaneseq
    %v1821 = vshrl.u32 %v1820, 7
    %v1822 = vsub.s32 0, %v1821
    %v1823 = vrot.slane %v1818, %v1822
    %v1825 = vadd.f32 %v1810, %v1823
    %v1826 = vadd.f32 %v1811, %v1823
    %v1827 = vadd.f32 %v1812, %v1823
    %v1828 = vadd.f32 %v1813, %v1823
    %v1829 = vadd.f32 %v1814, %v1823
    %v1830 = vadd.f32 %v1815, %v1823
    %v1831 = vadd.f32 %v1816, %v1823
    %v1832 = vadd.f32 %v1817, %v1823
    %v1833 = vld [vmem:[%s7] sm:$0x1]
    %v1834 = vld [vmem:[%s8] sm:$0x1]
    %v1835 = vsel %vm70, %v1825, 0.0
    %1836 = vadd.xlane.f32.xlu0 %v1835
    %v1837 = vpop.xlane.xlu0 %1836
    %v1838 = vsel %vm70, %v1826, 0.0
    %1839 = vadd.xlane.f32.xlu0 %v1838
    %v1840 = vpop.xlane.xlu0 %1839
    %v1841 = vsel %vm70, %v1827, 0.0
    %1842 = vadd.xlane.f32.xlu0 %v1841
    %v1843 = vpop.xlane.xlu0 %1842
    %v1844 = vsel %vm70, %v1828, 0.0
    %1845 = vadd.xlane.f32.xlu0 %v1844
    %v1846 = vpop.xlane.xlu0 %1845
    %v1847 = vsel %vm70, %v1829, 0.0
    %1848 = vadd.xlane.f32.xlu0 %v1847
    %v1849 = vpop.xlane.xlu0 %1848
    %v1850 = vsel %vm70, %v1830, 0.0
    %1851 = vadd.xlane.f32.xlu0 %v1850
    %v1852 = vpop.xlane.xlu0 %1851
    %v1853 = vsel %vm70, %v1831, 0.0
    %1854 = vadd.xlane.f32.xlu0 %v1853
    %v1855 = vpop.xlane.xlu0 %1854
    %v1856 = vsel %vm70, %v1832, 0.0
    %1857 = vadd.xlane.f32.xlu0 %v1856
    %v1858 = vpop.xlane.xlu0 %1857
    %v1859 = vmul.f32 %v1837, %v95
    %v1860 = vmul.f32 %v1840, %v95
    %v1861 = vmul.f32 %v1843, %v95
    %v1862 = vmul.f32 %v1846, %v95
    %v1863 = vmul.f32 %v1849, %v95
    %v1864 = vmul.f32 %v1852, %v95
    %v1865 = vmul.f32 %v1855, %v95
    %v1866 = vmul.f32 %v1858, %v95
    %v1867 = vsub.f32 %v1825, %v1859
    %v1868 = vsub.f32 %v1826, %v1860
    %v1869 = vsub.f32 %v1827, %v1861
    %v1870 = vsub.f32 %v1828, %v1862
    %v1871 = vsub.f32 %v1829, %v1863
    %v1872 = vsub.f32 %v1830, %v1864
    %v1873 = vsub.f32 %v1831, %v1865
    %v1874 = vsub.f32 %v1832, %v1866
    %v1875 = vmul.f32 %v1867, %v1867
    %v1876 = vmul.f32 %v1868, %v1868
    %v1877 = vmul.f32 %v1869, %v1869
    %v1878 = vmul.f32 %v1870, %v1870
    %v1879 = vmul.f32 %v1871, %v1871
    %v1880 = vmul.f32 %v1872, %v1872
    %v1881 = vmul.f32 %v1873, %v1873
    %v1882 = vmul.f32 %v1874, %v1874
    %v1883 = vsel %vm70, %v1875, 0.0
    %1884 = vadd.xlane.f32.xlu0 %v1883
    %v1885 = vpop.xlane.xlu0 %1884
    %v1886 = vsel %vm70, %v1876, 0.0
    %1887 = vadd.xlane.f32.xlu0 %v1886
    %v1888 = vpop.xlane.xlu0 %1887
    %v1889 = vsel %vm70, %v1877, 0.0
    %1890 = vadd.xlane.f32.xlu0 %v1889
    %v1891 = vpop.xlane.xlu0 %1890
    %v1892 = vsel %vm70, %v1878, 0.0
    %1893 = vadd.xlane.f32.xlu0 %v1892
    %v1894 = vpop.xlane.xlu0 %1893
    %v1895 = vsel %vm70, %v1879, 0.0
    %1896 = vadd.xlane.f32.xlu0 %v1895
    %v1897 = vpop.xlane.xlu0 %1896
    %v1898 = vsel %vm70, %v1880, 0.0
    %1899 = vadd.xlane.f32.xlu0 %v1898
    %v1900 = vpop.xlane.xlu0 %1899
    %v1901 = vsel %vm70, %v1881, 0.0
    %1902 = vadd.xlane.f32.xlu0 %v1901
    %v1903 = vpop.xlane.xlu0 %1902
    %v1904 = vsel %vm70, %v1882, 0.0
    %1905 = vadd.xlane.f32.xlu0 %v1904
    %v1906 = vpop.xlane.xlu0 %1905
    %v1907 = vmul.f32 %v1885, %v95
    %v1908 = vmul.f32 %v1888, %v95
    %v1909 = vmul.f32 %v1891, %v95
    %v1910 = vmul.f32 %v1894, %v95
    %v1911 = vmul.f32 %v1897, %v95
    %v1912 = vmul.f32 %v1900, %v95
    %v1913 = vmul.f32 %v1903, %v95
    %v1914 = vmul.f32 %v1906, %v95
    %v1915 = vadd.f32 %v1907, 1e-05
    %v1916 = vadd.f32 %v1908, 1e-05
    %v1917 = vadd.f32 %v1909, 1e-05
    %v1918 = vadd.f32 %v1910, 1e-05
    %v1919 = vadd.f32 %v1911, 1e-05
    %v1920 = vadd.f32 %v1912, 1e-05
    %v1921 = vadd.f32 %v1913, 1e-05
    %v1922 = vadd.f32 %v1914, 1e-05
    %v1923 = vrsqrt.pop %v1915
    %v1924 = vrsqrt.pop %v1916
    %v1925 = vrsqrt.pop %v1917
    %v1926 = vrsqrt.pop %v1918
    %v1927 = vrsqrt.pop %v1919
    %v1928 = vrsqrt.pop %v1920
    %v1929 = vrsqrt.pop %v1921
    %v1930 = vrsqrt.pop %v1922
    %v1931 = vmul.f32 %v1867, %v1923
    %v1932 = vmul.f32 %v1868, %v1924
    %v1933 = vmul.f32 %v1869, %v1925
    %v1934 = vmul.f32 %v1870, %v1926
    %v1935 = vmul.f32 %v1871, %v1927
    %v1936 = vmul.f32 %v1872, %v1928
    %v1937 = vmul.f32 %v1873, %v1929
    %v1938 = vmul.f32 %v1874, %v1930
    %v1940 = vlaneseq
    %v1941 = vshrl.u32 %v1940, 7
    %v1942 = vsub.s32 0, %v1941
    %v1943 = vrot.slane %v1833, %v1942
    %v1945 = vmul.f32 %v1931, %v1943
    %v1946 = vmul.f32 %v1932, %v1943
    %v1947 = vmul.f32 %v1933, %v1943
    %v1948 = vmul.f32 %v1934, %v1943
    %v1949 = vmul.f32 %v1935, %v1943
    %v1950 = vmul.f32 %v1936, %v1943
    %v1951 = vmul.f32 %v1937, %v1943
    %v1952 = vmul.f32 %v1938, %v1943
    %v1954 = vlaneseq
    %v1955 = vshrl.u32 %v1954, 7
    %v1956 = vsub.s32 0, %v1955
    %v1957 = vrot.slane %v1834, %v1956
    %v1959 = vadd.f32 %v1945, %v1957
    %v1960 = vadd.f32 %v1946, %v1957
    %v1961 = vadd.f32 %v1947, %v1957
    %v1962 = vadd.f32 %v1948, %v1957
    %v1963 = vadd.f32 %v1949, %v1957
    %v1964 = vadd.f32 %v1950, %v1957
    %v1965 = vadd.f32 %v1951, %v1957
    %v1966 = vadd.f32 %v1952, %v1957
    %v1967 = vld [vmem:[%s9] sm:$0xf]
    %v1968 = vld [vmem:[%s9 + $0x4] sm:$0xf]
    %v1969 = vld [vmem:[%s9 + $0x8] sm:$0xf]
    %v1970 = vld [vmem:[%s9 + $0xc] sm:$0xf]
    %v1971 = vpack.c.bf16 %v1960, %v1959
    %v1972 = vpack.c.bf16 %v1962, %v1961
    %v1973 = vpack.c.bf16 %v1964, %v1963
    %v1974 = vpack.c.bf16 %v1966, %v1965
    %v1975 = vld [vmem:[%s10] sm:$0x1]
    %v1977 = vlaneseq
    %v1978 = vshrl.u32 %v1977, 7
    %v1979 = vsub.s32 0, %v1978
    %v1980 = vrot.slane %v1975, %v1979
    %v1986 = vunpack.c.l.b16 %v1967
    %v1987 = vunpack.c.l.b16 %v1968
    %v1988 = vunpack.c.l.b16 %v1969
    %v1989 = vunpack.c.l.b16 %v1970
    %v1990 = vpack.c.b16 %v1987, %v1986
    %v1991 = vpack.c.b16 %v1989, %v1988
    %v1995 = vsel %vm70, %v1971, 0
    %v1998 = vsel %vm70, %v1972, 0
    %v2001 = vsel %vm70, %v1973, 0
    %v2004 = vsel %vm70, %v1974, 0
    %2006 = vmatprep.subr.bf16.mxu0 0
    %2007 = vmatpush1.bf16.msra.mxu0 %v1990
    %2008 = vmatprep.subr.bf16.mxu0 0
    %2009 = vmatpush1.bf16.msra.mxu0 %v1991
    %2010 = vmatprep.subr.bf16.mxu0 0
    %2011 = vmatpush1.bf16.msra.mxu0 0
    %2012 = vmatprep.subr.bf16.mxu0 0
    %2013 = vmatpush1.bf16.msra.mxu0 0
    %2014 = vmatprep.subr.bf16.mxu0 0
    %2015 = vmatpush1.bf16.msra.mxu0 0
    %2016 = vmatprep.subr.bf16.mxu0 0
    %2017 = vmatpush1.bf16.msra.mxu0 0
    %2018 = vmatprep.subr.bf16.mxu0 0
    %2019 = vmatpush1.bf16.msra.mxu0 0
    %2020 = vmatprep.subr.bf16.mxu0 0
    %2021 = vmatpush1.bf16.msra.mxu0 0
    %2022 = vmatprep.subr.bf16.mxu0 0
    %2023 = vmatpush1.bf16.msra.mxu0 0
    %2024 = vmatprep.subr.bf16.mxu0 0
    %2025 = vmatpush1.bf16.msra.mxu0 0
    %2026 = vmatprep.subr.bf16.mxu0 0
    %2027 = vmatpush1.bf16.msra.mxu0 0
    %2028 = vmatprep.subr.bf16.mxu0 0
    %2029 = vmatpush1.bf16.msra.mxu0 0
    %2030 = vmatprep.subr.bf16.mxu0 0
    %2031 = vmatpush1.bf16.msra.mxu0 0
    %2032 = vmatprep.subr.bf16.mxu0 0
    %2033 = vmatpush1.bf16.msra.mxu0 0
    %2034 = vmatprep.subr.bf16.mxu0 0
    %2035 = vmatpush1.bf16.msra.mxu0 0
    %2036 = vmatprep.subr.bf16.mxu0 0
    %2037 = vmatpush1.bf16.msra.mxu0 0
    %2038 = vmatprep.mubr.bf16.mxu0 0
    %2039 = vmatmul.mubr.bf16.gmra.mrb[0].mxu0 %v1995
    %v2040 = vpop.f32.mrb[0].mxu0
    %v2041 = vadd.f32 %v1980, %v2040
    %v2042 = vpop.f32.mrb[0].mxu0
    %v2043 = vpop.f32.mrb[0].mxu0
    %v2044 = vadd.f32 %v1980, %v2043
    %v2045 = vpop.f32.mrb[0].mxu0
    %2046 = vmatprep.mubr.bf16.mxu0 0
    %2047 = vmatmul.mubr.bf16.gmra.mrb[0].mxu0 %v1998
    %v2048 = vpop.f32.mrb[0].mxu0
    %v2049 = vadd.f32 %v1980, %v2048
    %v2050 = vpop.f32.mrb[0].mxu0
    %v2051 = vpop.f32.mrb[0].mxu0
    %v2052 = vadd.f32 %v1980, %v2051
    %v2053 = vpop.f32.mrb[0].mxu0
    %2054 = vmatprep.mubr.bf16.mxu0 0
    %2055 = vmatmul.mubr.bf16.gmra.mrb[0].mxu0 %v2001
    %v2056 = vpop.f32.mrb[0].mxu0
    %v2057 = vadd.f32 %v1980, %v2056
    %v2058 = vpop.f32.mrb[0].mxu0
    %v2059 = vpop.f32.mrb[0].mxu0
    %v2060 = vadd.f32 %v1980, %v2059
    %v2061 = vpop.f32.mrb[0].mxu0
    %2062 = vmatprep.mubr.bf16.mxu0 0
    %2063 = vmatmul.mubr.bf16.gmra.mrb[0].mxu0 %v2004
    %v2064 = vpop.f32.mrb[0].mxu0
    %v2065 = vadd.f32 %v1980, %v2064
    %v2066 = vpop.f32.mrb[0].mxu0
    %v2067 = vpop.f32.mrb[0].mxu0
    %v2068 = vadd.f32 %v1980, %v2067
    %v2069 = vpop.f32.mrb[0].mxu0
    %2070 = vdwg.mxu0
    %v2071 = vmax.f32 %v2041, 0.0
    %v2072 = vmax.f32 %v2044, 0.0
    %v2073 = vmax.f32 %v2049, 0.0
    %v2074 = vmax.f32 %v2052, 0.0
    %v2075 = vmax.f32 %v2057, 0.0
    %v2076 = vmax.f32 %v2060, 0.0
    %v2077 = vmax.f32 %v2065, 0.0
    %v2078 = vmax.f32 %v2068, 0.0
    %v2079 = vld [vmem:[%s11] sm:$0xf]
    %v2080 = vld [vmem:[%s11 + $0x4] sm:$0xf]
    %v2081 = vld [vmem:[%s11 + $0x8] sm:$0xf]
    %v2082 = vld [vmem:[%s11 + $0xc] sm:$0xf]
    %v2083 = vld [vmem:[%s11 + $0x10] sm:$0xf]
    %v2084 = vld [vmem:[%s11 + $0x14] sm:$0xf]
    %v2085 = vld [vmem:[%s11 + $0x18] sm:$0xf]
    %v2086 = vld [vmem:[%s11 + $0x1c] sm:$0xf]
    %v2087 = vld [vmem:[%s11 + $0x20] sm:$0xf]
    %v2088 = vld [vmem:[%s11 + $0x24] sm:$0xf]
    %v2089 = vld [vmem:[%s11 + $0x28] sm:$0xf]
    %v2090 = vld [vmem:[%s11 + $0x2c] sm:$0xf]
    %v2091 = vld [vmem:[%s11 + $0x30] sm:$0xf]
    %v2092 = vld [vmem:[%s11 + $0x34] sm:$0xf]
    %v2093 = vld [vmem:[%s11 + $0x38] sm:$0xf]
    %v2094 = vld [vmem:[%s11 + $0x3c] sm:$0xf]
    %v2095 = vpack.c.bf16 %v2072, %v2071
    %v2096 = vpack.c.bf16 %v2074, %v2073
    %v2097 = vpack.c.bf16 %v2076, %v2075
    %v2098 = vpack.c.bf16 %v2078, %v2077
    %v2115 = vunpack.c.l.b16 %v2079
    %v2116 = vunpack.c.l.b16 %v2080
    %v2117 = vunpack.c.l.b16 %v2081
    %v2118 = vunpack.c.l.b16 %v2082
    %v2119 = vunpack.c.l.b16 %v2083
    %v2120 = vunpack.c.l.b16 %v2084
    %v2121 = vunpack.c.l.b16 %v2085
    %v2122 = vunpack.c.l.b16 %v2086
    %v2123 = vunpack.c.l.b16 %v2087
    %v2124 = vunpack.c.l.b16 %v2088
    %v2125 = vunpack.c.l.b16 %v2089
    %v2126 = vunpack.c.l.b16 %v2090
    %v2127 = vunpack.c.l.b16 %v2091
    %v2128 = vunpack.c.l.b16 %v2092
    %v2129 = vunpack.c.l.b16 %v2093
    %v2130 = vunpack.c.l.b16 %v2094
    %v2131 = vpack.c.b16 %v2116, %v2115
    %v2132 = vpack.c.b16 %v2118, %v2117
    %v2133 = vpack.c.b16 %v2120, %v2119
    %v2134 = vpack.c.b16 %v2122, %v2121
    %v2135 = vpack.c.b16 %v2124, %v2123
    %v2136 = vpack.c.b16 %v2126, %v2125
    %v2137 = vpack.c.b16 %v2128, %v2127
    %v2138 = vpack.c.b16 %v2130, %v2129
    %2147 = vmatprep.subr.bf16.mxu0 0
    %2148 = vmatpush1.bf16.msra.mxu0 %v2131
    %2149 = vmatprep.subr.bf16.mxu0 0
    %2150 = vmatpush1.bf16.msra.mxu0 %v2132
    %2151 = vmatprep.subr.bf16.mxu0 0
    %2152 = vmatpush1.bf16.msra.mxu0 %v2133
    %2153 = vmatprep.subr.bf16.mxu0 0
    %2154 = vmatpush1.bf16.msra.mxu0 %v2134
    %2155 = vmatprep.subr.bf16.mxu0 0
    %2156 = vmatpush1.bf16.msra.mxu0 %v2135
    %2157 = vmatprep.subr.bf16.mxu0 0
    %2158 = vmatpush1.bf16.msra.mxu0 %v2136
    %2159 = vmatprep.subr.bf16.mxu0 0
    %2160 = vmatpush1.bf16.msra.mxu0 %v2137
    %2161 = vmatprep.subr.bf16.mxu0 0
    %2162 = vmatpush1.bf16.msra.mxu0 %v2138
    %2163 = vmatprep.subr.bf16.mxu0 0
    %2164 = vmatpush1.bf16.msra.mxu0 0
    %2165 = vmatprep.subr.bf16.mxu0 0
    %2166 = vmatpush1.bf16.msra.mxu0 0
    %2167 = vmatprep.subr.bf16.mxu0 0
    %2168 = vmatpush1.bf16.msra.mxu0 0
    %2169 = vmatprep.subr.bf16.mxu0 0
    %2170 = vmatpush1.bf16.msra.mxu0 0
    %2171 = vmatprep.subr.bf16.mxu0 0
    %2172 = vmatpush1.bf16.msra.mxu0 0
    %2173 = vmatprep.subr.bf16.mxu0 0
    %2174 = vmatpush1.bf16.msra.mxu0 0
    %2175 = vmatprep.subr.bf16.mxu0 0
    %2176 = vmatpush1.bf16.msra.mxu0 0
    %2177 = vmatprep.subr.bf16.mxu0 0
    %2178 = vmatpush1.bf16.msra.mxu0 0
    %2179 = vmatprep.mubr.bf16.mxu0 0
    %2180 = vmatmul.mubr.bf16.gmra.mrb[0].mxu0 %v2095
    %v2181 = vpop.f32.mrb[0].mxu0
    %v2182 = vadd.f32 0.0, %v2181
    %v2183 = vpop.f32.mrb[0].mxu0
    %v2184 = vpop.f32.mrb[0].mxu0
    %v2185 = vadd.f32 0.0, %v2184
    %v2186 = vpop.f32.mrb[0].mxu0
    %2187 = vmatprep.mubr.bf16.mxu0 0
    %2188 = vmatmul.mubr.bf16.gmra.mrb[0].mxu0 %v2096
    %v2189 = vpop.f32.mrb[0].mxu0
    %v2190 = vadd.f32 0.0, %v2189
    %v2191 = vpop.f32.mrb[0].mxu0
    %v2192 = vpop.f32.mrb[0].mxu0
    %v2193 = vadd.f32 0.0, %v2192
    %v2194 = vpop.f32.mrb[0].mxu0
    %2195 = vmatprep.mubr.bf16.mxu0 0
    %2196 = vmatmul.mubr.bf16.gmra.mrb[0].mxu0 %v2097
    %v2197 = vpop.f32.mrb[0].mxu0
    %v2198 = vadd.f32 0.0, %v2197
    %v2199 = vpop.f32.mrb[0].mxu0
    %v2200 = vpop.f32.mrb[0].mxu0
    %v2201 = vadd.f32 0.0, %v2200
    %v2202 = vpop.f32.mrb[0].mxu0
    %2203 = vmatprep.mubr.bf16.mxu0 0
    %2204 = vmatmul.mubr.bf16.gmra.mrb[0].mxu0 %v2098
    %v2205 = vpop.f32.mrb[0].mxu0
    %v2206 = vadd.f32 0.0, %v2205
    %v2207 = vpop.f32.mrb[0].mxu0
    %v2208 = vpop.f32.mrb[0].mxu0
    %v2209 = vadd.f32 0.0, %v2208
    %v2210 = vpop.f32.mrb[0].mxu0
    %2211 = vdwg.mxu0
    %v2212 = vadd.f32 %v1825, %v2182
    %v2213 = vadd.f32 %v1826, %v2185
    %v2214 = vadd.f32 %v1827, %v2190
    %v2215 = vadd.f32 %v1828, %v2193
    %v2216 = vadd.f32 %v1829, %v2198
    %v2217 = vadd.f32 %v1830, %v2201
    %v2218 = vadd.f32 %v1831, %v2206
    %v2219 = vadd.f32 %v1832, %v2209
    %v2220 = vld [vmem:[%s12] sm:$0x1]
    %v2222 = vlaneseq
    %v2223 = vshrl.u32 %v2222, 7
    %v2224 = vsub.s32 0, %v2223
    %v2225 = vrot.slane %v2220, %v2224
    %v2227 = vadd.f32 %v2212, %v2225
    %v2228 = vadd.f32 %v2213, %v2225
    %v2229 = vadd.f32 %v2214, %v2225
    %v2230 = vadd.f32 %v2215, %v2225
    %v2231 = vadd.f32 %v2216, %v2225
    %v2232 = vadd.f32 %v2217, %v2225
    %v2233 = vadd.f32 %v2218, %v2225
    %v2234 = vadd.f32 %v2219, %v2225
    %s2235 = scalar_lea.vmem %s2, 1
    %v2236 = vld [vmem:[%s2235] sm:$0x1]
    %s2237 = scalar_lea.vmem %s3, 1
    %v2238 = vld [vmem:[%s2237] sm:$0x1]
    %v2239 = vsel %vm70, %v2227, 0.0
    %2240 = vadd.xlane.f32.xlu0 %v2239
    %v2241 = vpop.xlane.xlu0 %2240
    %v2242 = vsel %vm70, %v2228, 0.0
    %2243 = vadd.xlane.f32.xlu0 %v2242
    %v2244 = vpop.xlane.xlu0 %2243
    %v2245 = vsel %vm70, %v2229, 0.0
    %2246 = vadd.xlane.f32.xlu0 %v2245
    %v2247 = vpop.xlane.xlu0 %2246
    %v2248 = vsel %vm70, %v2230, 0.0
    %2249 = vadd.xlane.f32.xlu0 %v2248
    %v2250 = vpop.xlane.xlu0 %2249
    %v2251 = vsel %vm70, %v2231, 0.0
    %2252 = vadd.xlane.f32.xlu0 %v2251
    %v2253 = vpop.xlane.xlu0 %2252
    %v2254 = vsel %vm70, %v2232, 0.0
    %2255 = vadd.xlane.f32.xlu0 %v2254
    %v2256 = vpop.xlane.xlu0 %2255
    %v2257 = vsel %vm70, %v2233, 0.0
    %2258 = vadd.xlane.f32.xlu0 %v2257
    %v2259 = vpop.xlane.xlu0 %2258
    %v2260 = vsel %vm70, %v2234, 0.0
    %2261 = vadd.xlane.f32.xlu0 %v2260
    %v2262 = vpop.xlane.xlu0 %2261
    %v2263 = vmul.f32 %v2241, %v95
    %v2264 = vmul.f32 %v2244, %v95
    %v2265 = vmul.f32 %v2247, %v95
    %v2266 = vmul.f32 %v2250, %v95
    %v2267 = vmul.f32 %v2253, %v95
    %v2268 = vmul.f32 %v2256, %v95
    %v2269 = vmul.f32 %v2259, %v95
    %v2270 = vmul.f32 %v2262, %v95
    %v2271 = vsub.f32 %v2227, %v2263
    %v2272 = vsub.f32 %v2228, %v2264
    %v2273 = vsub.f32 %v2229, %v2265
    %v2274 = vsub.f32 %v2230, %v2266
    %v2275 = vsub.f32 %v2231, %v2267
    %v2276 = vsub.f32 %v2232, %v2268
    %v2277 = vsub.f32 %v2233, %v2269
    %v2278 = vsub.f32 %v2234, %v2270
    %v2279 = vmul.f32 %v2271, %v2271
    %v2280 = vmul.f32 %v2272, %v2272
    %v2281 = vmul.f32 %v2273, %v2273
    %v2282 = vmul.f32 %v2274, %v2274
    %v2283 = vmul.f32 %v2275, %v2275
    %v2284 = vmul.f32 %v2276, %v2276
    %v2285 = vmul.f32 %v2277, %v2277
    %v2286 = vmul.f32 %v2278, %v2278
    %v2287 = vsel %vm70, %v2279, 0.0
    %2288 = vadd.xlane.f32.xlu0 %v2287
    %v2289 = vpop.xlane.xlu0 %2288
    %v2290 = vsel %vm70, %v2280, 0.0
    %2291 = vadd.xlane.f32.xlu0 %v2290
    %v2292 = vpop.xlane.xlu0 %2291
    %v2293 = vsel %vm70, %v2281, 0.0
    %2294 = vadd.xlane.f32.xlu0 %v2293
    %v2295 = vpop.xlane.xlu0 %2294
    %v2296 = vsel %vm70, %v2282, 0.0
    %2297 = vadd.xlane.f32.xlu0 %v2296
    %v2298 = vpop.xlane.xlu0 %2297
    %v2299 = vsel %vm70, %v2283, 0.0
    %2300 = vadd.xlane.f32.xlu0 %v2299
    %v2301 = vpop.xlane.xlu0 %2300
    %v2302 = vsel %vm70, %v2284, 0.0
    %2303 = vadd.xlane.f32.xlu0 %v2302
    %v2304 = vpop.xlane.xlu0 %2303
    %v2305 = vsel %vm70, %v2285, 0.0
    %2306 = vadd.xlane.f32.xlu0 %v2305
    %v2307 = vpop.xlane.xlu0 %2306
    %v2308 = vsel %vm70, %v2286, 0.0
    %2309 = vadd.xlane.f32.xlu0 %v2308
    %v2310 = vpop.xlane.xlu0 %2309
    %v2311 = vmul.f32 %v2289, %v95
    %v2312 = vmul.f32 %v2292, %v95
    %v2313 = vmul.f32 %v2295, %v95
    %v2314 = vmul.f32 %v2298, %v95
    %v2315 = vmul.f32 %v2301, %v95
    %v2316 = vmul.f32 %v2304, %v95
    %v2317 = vmul.f32 %v2307, %v95
    %v2318 = vmul.f32 %v2310, %v95
    %v2319 = vadd.f32 %v2311, 1e-05
    %v2320 = vadd.f32 %v2312, 1e-05
    %v2321 = vadd.f32 %v2313, 1e-05
    %v2322 = vadd.f32 %v2314, 1e-05
    %v2323 = vadd.f32 %v2315, 1e-05
    %v2324 = vadd.f32 %v2316, 1e-05
    %v2325 = vadd.f32 %v2317, 1e-05
    %v2326 = vadd.f32 %v2318, 1e-05
    %v2327 = vrsqrt.pop %v2319
    %v2328 = vrsqrt.pop %v2320
    %v2329 = vrsqrt.pop %v2321
    %v2330 = vrsqrt.pop %v2322
    %v2331 = vrsqrt.pop %v2323
    %v2332 = vrsqrt.pop %v2324
    %v2333 = vrsqrt.pop %v2325
    %v2334 = vrsqrt.pop %v2326
    %v2335 = vmul.f32 %v2271, %v2327
    %v2336 = vmul.f32 %v2272, %v2328
    %v2337 = vmul.f32 %v2273, %v2329
    %v2338 = vmul.f32 %v2274, %v2330
    %v2339 = vmul.f32 %v2275, %v2331
    %v2340 = vmul.f32 %v2276, %v2332
    %v2341 = vmul.f32 %v2277, %v2333
    %v2342 = vmul.f32 %v2278, %v2334
    %v2344 = vlaneseq
    %v2345 = vshrl.u32 %v2344, 7
    %v2346 = vsub.s32 0, %v2345
    %v2347 = vrot.slane %v2236, %v2346
    %v2349 = vmul.f32 %v2335, %v2347
    %v2350 = vmul.f32 %v2336, %v2347
    %v2351 = vmul.f32 %v2337, %v2347
    %v2352 = vmul.f32 %v2338, %v2347
    %v2353 = vmul.f32 %v2339, %v2347
    %v2354 = vmul.f32 %v2340, %v2347
    %v2355 = vmul.f32 %v2341, %v2347
    %v2356 = vmul.f32 %v2342, %v2347
    %v2358 = vlaneseq
    %v2359 = vshrl.u32 %v2358, 7
    %v2360 = vsub.s32 0, %v2359
    %v2361 = vrot.slane %v2238, %v2360
    %v2363 = vadd.f32 %v2349, %v2361
    %v2364 = vadd.f32 %v2350, %v2361
    %v2365 = vadd.f32 %v2351, %v2361
    %v2366 = vadd.f32 %v2352, %v2361
    %v2367 = vadd.f32 %v2353, %v2361
    %v2368 = vadd.f32 %v2354, %v2361
    %v2369 = vadd.f32 %v2355, %v2361
    %v2370 = vadd.f32 %v2356, %v2361
    %s2371 = scalar_lea.vmem %s4, 16
    %v2372 = vld [vmem:[%s2371] sm:$0xf]
    %v2373 = vld [vmem:[%s2371 + $0x4] sm:$0xf]
    %v2374 = vld [vmem:[%s2371 + $0x8] sm:$0xf]
    %v2375 = vld [vmem:[%s2371 + $0xc] sm:$0xf]
    %v2376 = vpack.c.bf16 %v2364, %v2363
    %v2377 = vpack.c.bf16 %v2366, %v2365
    %v2378 = vpack.c.bf16 %v2368, %v2367
    %v2379 = vpack.c.bf16 %v2370, %v2369
    %v2384 = vunpack.c.l.b16 %v2372
    %v2385 = vunpack.c.l.b16 %v2373
    %v2386 = vunpack.c.l.b16 %v2374
    %v2387 = vunpack.c.l.b16 %v2375
    %v2388 = vpack.c.b16 %v2385, %v2384
    %v2389 = vpack.c.b16 %v2387, %v2386
    %v2393 = vsel %vm70, %v2376, 0
    %v2396 = vsel %vm70, %v2377, 0
    %v2399 = vsel %vm70, %v2378, 0
    %v2402 = vsel %vm70, %v2379, 0
    %2404 = vmatprep.subr.bf16.mxu0 0
    %2405 = vmatpush1.bf16.msra.mxu0 %v2388
    %2406 = vmatprep.subr.bf16.mxu0 0
    %2407 = vmatpush1.bf16.msra.mxu0 %v2389
    %2408 = vmatprep.subr.bf16.mxu0 0
    %2409 = vmatpush1.bf16.msra.mxu0 0
    %2410 = vmatprep.subr.bf16.mxu0 0
    %2411 = vmatpush1.bf16.msra.mxu0 0
    %2412 = vmatprep.subr.bf16.mxu0 0
    %2413 = vmatpush1.bf16.msra.mxu0 0
    %2414 = vmatprep.subr.bf16.mxu0 0
    %2415 = vmatpush1.bf16.msra.mxu0 0
    %2416 = vmatprep.subr.bf16.mxu0 0
    %2417 = vmatpush1.bf16.msra.mxu0 0
    %2418 = vmatprep.subr.bf16.mxu0 0
    %2419 = vmatpush1.bf16.msra.mxu0 0
    %2420 = vmatprep.subr.bf16.mxu0 0
    %2421 = vmatpush1.bf16.msra.mxu0 0
    %2422 = vmatprep.subr.bf16.mxu0 0
    %2423 = vmatpush1.bf16.msra.mxu0 0
    %2424 = vmatprep.subr.bf16.mxu0 0
    %2425 = vmatpush1.bf16.msra.mxu0 0
    %2426 = vmatprep.subr.bf16.mxu0 0
    %2427 = vmatpush1.bf16.msra.mxu0 0
    %2428 = vmatprep.subr.bf16.mxu0 0
    %2429 = vmatpush1.bf16.msra.mxu0 0
    %2430 = vmatprep.subr.bf16.mxu0 0
    %2431 = vmatpush1.bf16.msra.mxu0 0
    %2432 = vmatprep.subr.bf16.mxu0 0
    %2433 = vmatpush1.bf16.msra.mxu0 0
    %2434 = vmatprep.subr.bf16.mxu0 0
    %2435 = vmatpush1.bf16.msra.mxu0 0
    %2436 = vmatprep.mubr.bf16.mxu0 0
    %2437 = vmatmul.mubr.bf16.gmra.mrb[0].mxu0 %v2393
    %v2438 = vpop.f32.mrb[0].mxu0
    %v2439 = vadd.f32 0.0, %v2438
    %v2440 = vpop.f32.mrb[0].mxu0
    %v2441 = vpop.f32.mrb[0].mxu0
    %v2442 = vadd.f32 0.0, %v2441
    %v2443 = vpop.f32.mrb[0].mxu0
    %2444 = vmatprep.mubr.bf16.mxu0 0
    %2445 = vmatmul.mubr.bf16.gmra.mrb[0].mxu0 %v2396
    %v2446 = vpop.f32.mrb[0].mxu0
    %v2447 = vadd.f32 0.0, %v2446
    %v2448 = vpop.f32.mrb[0].mxu0
    %v2449 = vpop.f32.mrb[0].mxu0
    %v2450 = vadd.f32 0.0, %v2449
    %v2451 = vpop.f32.mrb[0].mxu0
    %2452 = vmatprep.mubr.bf16.mxu0 0
    %2453 = vmatmul.mubr.bf16.gmra.mrb[0].mxu0 %v2399
    %v2454 = vpop.f32.mrb[0].mxu0
    %v2455 = vadd.f32 0.0, %v2454
    %v2456 = vpop.f32.mrb[0].mxu0
    %v2457 = vpop.f32.mrb[0].mxu0
    %v2458 = vadd.f32 0.0, %v2457
    %v2459 = vpop.f32.mrb[0].mxu0
    %2460 = vmatprep.mubr.bf16.mxu0 0
    %2461 = vmatmul.mubr.bf16.gmra.mrb[0].mxu0 %v2402
    %v2462 = vpop.f32.mrb[0].mxu0
    %v2463 = vadd.f32 0.0, %v2462
    %v2464 = vpop.f32.mrb[0].mxu0
    %v2465 = vpop.f32.mrb[0].mxu0
    %v2466 = vadd.f32 0.0, %v2465
    %v2467 = vpop.f32.mrb[0].mxu0
    %2468 = vdwg.mxu0
    %2477 = vrot.lane.b32.xlu0 %v2439, 120
    %v2478 = vpop.permute.xlu0 %2477
    %2479 = vrot.lane.b32.xlu0 %v2442, 120
    %v2480 = vpop.permute.xlu0 %2479
    %2481 = vrot.lane.b32.xlu0 %v2447, 120
    %v2482 = vpop.permute.xlu0 %2481
    %2483 = vrot.lane.b32.xlu0 %v2450, 120
    %v2484 = vpop.permute.xlu0 %2483
    %2485 = vrot.lane.b32.xlu0 %v2455, 120
    %v2486 = vpop.permute.xlu0 %2485
    %2487 = vrot.lane.b32.xlu0 %v2458, 120
    %v2488 = vpop.permute.xlu0 %2487
    %2489 = vrot.lane.b32.xlu0 %v2463, 120
    %v2490 = vpop.permute.xlu0 %2489
    %2491 = vrot.lane.b32.xlu0 %v2466, 120
    %v2492 = vpop.permute.xlu0 %2491
    %2501 = vrot.lane.b32.xlu0 %v2439, 112
    %v2502 = vpop.permute.xlu0 %2501
    %2503 = vrot.lane.b32.xlu0 %v2442, 112
    %v2504 = vpop.permute.xlu0 %2503
    %2505 = vrot.lane.b32.xlu0 %v2447, 112
    %v2506 = vpop.permute.xlu0 %2505
    %2507 = vrot.lane.b32.xlu0 %v2450, 112
    %v2508 = vpop.permute.xlu0 %2507
    %2509 = vrot.lane.b32.xlu0 %v2455, 112
    %v2510 = vpop.permute.xlu0 %2509
    %2511 = vrot.lane.b32.xlu0 %v2458, 112
    %v2512 = vpop.permute.xlu0 %2511
    %2513 = vrot.lane.b32.xlu0 %v2463, 112
    %v2514 = vpop.permute.xlu0 %2513
    %2515 = vrot.lane.b32.xlu0 %v2466, 112
    %v2516 = vpop.permute.xlu0 %2515
    %2525 = vrot.lane.b32.xlu0 %v2439, 104
    %v2526 = vpop.permute.xlu0 %2525
    %2527 = vrot.lane.b32.xlu0 %v2442, 104
    %v2528 = vpop.permute.xlu0 %2527
    %2529 = vrot.lane.b32.xlu0 %v2447, 104
    %v2530 = vpop.permute.xlu0 %2529
    %2531 = vrot.lane.b32.xlu0 %v2450, 104
    %v2532 = vpop.permute.xlu0 %2531
    %2533 = vrot.lane.b32.xlu0 %v2455, 104
    %v2534 = vpop.permute.xlu0 %2533
    %2535 = vrot.lane.b32.xlu0 %v2458, 104
    %v2536 = vpop.permute.xlu0 %2535
    %2537 = vrot.lane.b32.xlu0 %v2463, 104
    %v2538 = vpop.permute.xlu0 %2537
    %2539 = vrot.lane.b32.xlu0 %v2466, 104
    %v2540 = vpop.permute.xlu0 %2539
    %v2549 = vpack.c.bf16 %v2442, %v2439
    %v2550 = vpack.c.bf16 %v2450, %v2447
    %v2551 = vpack.c.bf16 %v2458, %v2455
    %v2552 = vpack.c.bf16 %v2466, %v2463
    %v2553 = vpack.c.bf16 %v2480, %v2478
    %v2554 = vpack.c.bf16 %v2484, %v2482
    %v2555 = vpack.c.bf16 %v2488, %v2486
    %v2556 = vpack.c.bf16 %v2492, %v2490
    %v2557 = vpack.c.bf16 %v2504, %v2502
    %v2558 = vpack.c.bf16 %v2508, %v2506
    %v2559 = vpack.c.bf16 %v2512, %v2510
    %v2560 = vpack.c.bf16 %v2516, %v2514
    %v2561 = vpack.c.bf16 %v2528, %v2526
    %v2562 = vpack.c.bf16 %v2532, %v2530
    %v2563 = vpack.c.bf16 %v2536, %v2534
    %v2564 = vpack.c.bf16 %v2540, %v2538
    %2569 = vrot.lane.b32.xlu0 %v2549, 96
    %v2570 = vpop.permute.xlu0 %2569
    %2571 = vrot.lane.b32.xlu0 %v2550, 96
    %v2572 = vpop.permute.xlu0 %2571
    %2573 = vrot.lane.b32.xlu0 %v2551, 96
    %v2574 = vpop.permute.xlu0 %2573
    %2575 = vrot.lane.b32.xlu0 %v2552, 96
    %v2576 = vpop.permute.xlu0 %2575
    %v2578 = vsel %vm409, %v2549, 0
    %v2581 = vsel %vm409, %v2550, 0
    %v2584 = vsel %vm409, %v2551, 0
    %v2587 = vsel %vm409, %v2552, 0
    %v2590 = vsel %vm409, %v2570, 0
    %v2593 = vsel %vm409, %v2572, 0
    %v2596 = vsel %vm409, %v2574, 0
    %v2599 = vsel %vm409, %v2576, 0
    %2601 = vmatprep.subr.bf16.mxu0 0
    %2602 = vmatpush1.bf16.xpose.msra.mxu0 %v2590
    %2603 = vmatprep.subr.bf16.mxu0 0
    %2604 = vmatpush1.bf16.xpose.msra.mxu0 %v2593
    %2605 = vmatprep.subr.bf16.mxu0 0
    %2606 = vmatpush1.bf16.xpose.msra.mxu0 %v2596
    %2607 = vmatprep.subr.bf16.mxu0 0
    %2608 = vmatpush1.bf16.xpose.msra.mxu0 %v2599
    %2609 = vmatprep.subr.bf16.mxu0 0
    %2610 = vmatpush1.bf16.xpose.msra.mxu0 0
    %2611 = vmatprep.subr.bf16.mxu0 0
    %2612 = vmatpush1.bf16.xpose.msra.mxu0 0
    %2613 = vmatprep.subr.bf16.mxu0 0
    %2614 = vmatpush1.bf16.xpose.msra.mxu0 0
    %2615 = vmatprep.subr.bf16.mxu0 0
    %2616 = vmatpush1.bf16.xpose.msra.mxu0 0
    %2617 = vmatprep.subr.bf16.mxu0 0
    %2618 = vmatpush1.bf16.xpose.msra.mxu0 0
    %2619 = vmatprep.subr.bf16.mxu0 0
    %2620 = vmatpush1.bf16.xpose.msra.mxu0 0
    %2621 = vmatprep.subr.bf16.mxu0 0
    %2622 = vmatpush1.bf16.xpose.msra.mxu0 0
    %2623 = vmatprep.subr.bf16.mxu0 0
    %2624 = vmatpush1.bf16.xpose.msra.mxu0 0
    %2625 = vmatprep.subr.bf16.mxu0 0
    %2626 = vmatpush1.bf16.xpose.msra.mxu0 0
    %2627 = vmatprep.subr.bf16.mxu0 0
    %2628 = vmatpush1.bf16.xpose.msra.mxu0 0
    %2629 = vmatprep.subr.bf16.mxu0 0
    %2630 = vmatpush1.bf16.xpose.msra.mxu0 0
    %2631 = vmatprep.subr.bf16.mxu0 0
    %2632 = vmatpush1.bf16.xpose.msra.mxu0 0
    %2633 = vmatprep.mubr.bf16.mxu0 0
    %2634 = vmatmul.mubr.bf16.gmra.mrb[0].mxu0 %v2578
    %v2635 = vpop.f32.mrb[0].mxu0
    %v2636 = vadd.f32 0.0, %v2635
    %v2637 = vpop.f32.mrb[0].mxu0
    %v2638 = vpop.f32.mrb[0].mxu0
    %v2639 = vadd.f32 0.0, %v2638
    %v2640 = vpop.f32.mrb[0].mxu0
    %2641 = vmatprep.mubr.bf16.mxu0 0
    %2642 = vmatmul.mubr.bf16.gmra.mrb[0].mxu0 %v2581
    %v2643 = vpop.f32.mrb[0].mxu0
    %v2644 = vadd.f32 0.0, %v2643
    %v2645 = vpop.f32.mrb[0].mxu0
    %v2646 = vpop.f32.mrb[0].mxu0
    %v2647 = vadd.f32 0.0, %v2646
    %v2648 = vpop.f32.mrb[0].mxu0
    %2649 = vmatprep.mubr.bf16.mxu0 0
    %2650 = vmatmul.mubr.bf16.gmra.mrb[0].mxu0 %v2584
    %v2651 = vpop.f32.mrb[0].mxu0
    %v2652 = vadd.f32 0.0, %v2651
    %v2653 = vpop.f32.mrb[0].mxu0
    %v2654 = vpop.f32.mrb[0].mxu0
    %v2655 = vadd.f32 0.0, %v2654
    %v2656 = vpop.f32.mrb[0].mxu0
    %2657 = vmatprep.mubr.bf16.mxu0 0
    %2658 = vmatmul.mubr.bf16.gmra.mrb[0].mxu0 %v2587
    %v2659 = vpop.f32.mrb[0].mxu0
    %v2660 = vadd.f32 0.0, %v2659
    %v2661 = vpop.f32.mrb[0].mxu0
    %v2662 = vpop.f32.mrb[0].mxu0
    %v2663 = vadd.f32 0.0, %v2662
    %v2664 = vpop.f32.mrb[0].mxu0
    %2665 = vdwg.mxu0
    %2670 = vrot.lane.b32.xlu0 %v2553, 96
    %v2671 = vpop.permute.xlu0 %2670
    %2672 = vrot.lane.b32.xlu0 %v2554, 96
    %v2673 = vpop.permute.xlu0 %2672
    %2674 = vrot.lane.b32.xlu0 %v2555, 96
    %v2675 = vpop.permute.xlu0 %2674
    %2676 = vrot.lane.b32.xlu0 %v2556, 96
    %v2677 = vpop.permute.xlu0 %2676
    %v2679 = vsel %vm409, %v2553, 0
    %v2682 = vsel %vm409, %v2554, 0
    %v2685 = vsel %vm409, %v2555, 0
    %v2688 = vsel %vm409, %v2556, 0
    %v2691 = vsel %vm409, %v2671, 0
    %v2694 = vsel %vm409, %v2673, 0
    %v2697 = vsel %vm409, %v2675, 0
    %v2700 = vsel %vm409, %v2677, 0
    %2702 = vmatprep.subr.bf16.mxu0 0
    %2703 = vmatpush1.bf16.xpose.msra.mxu0 %v2691
    %2704 = vmatprep.subr.bf16.mxu0 0
    %2705 = vmatpush1.bf16.xpose.msra.mxu0 %v2694
    %2706 = vmatprep.subr.bf16.mxu0 0
    %2707 = vmatpush1.bf16.xpose.msra.mxu0 %v2697
    %2708 = vmatprep.subr.bf16.mxu0 0
    %2709 = vmatpush1.bf16.xpose.msra.mxu0 %v2700
    %2710 = vmatprep.subr.bf16.mxu0 0
    %2711 = vmatpush1.bf16.xpose.msra.mxu0 0
    %2712 = vmatprep.subr.bf16.mxu0 0
    %2713 = vmatpush1.bf16.xpose.msra.mxu0 0
    %2714 = vmatprep.subr.bf16.mxu0 0
    %2715 = vmatpush1.bf16.xpose.msra.mxu0 0
    %2716 = vmatprep.subr.bf16.mxu0 0
    %2717 = vmatpush1.bf16.xpose.msra.mxu0 0
    %2718 = vmatprep.subr.bf16.mxu0 0
    %2719 = vmatpush1.bf16.xpose.msra.mxu0 0
    %2720 = vmatprep.subr.bf16.mxu0 0
    %2721 = vmatpush1.bf16.xpose.msra.mxu0 0
    %2722 = vmatprep.subr.bf16.mxu0 0
    %2723 = vmatpush1.bf16.xpose.msra.mxu0 0
    %2724 = vmatprep.subr.bf16.mxu0 0
    %2725 = vmatpush1.bf16.xpose.msra.mxu0 0
    %2726 = vmatprep.subr.bf16.mxu0 0
    %2727 = vmatpush1.bf16.xpose.msra.mxu0 0
    %2728 = vmatprep.subr.bf16.mxu0 0
    %2729 = vmatpush1.bf16.xpose.msra.mxu0 0
    %2730 = vmatprep.subr.bf16.mxu0 0
    %2731 = vmatpush1.bf16.xpose.msra.mxu0 0
    %2732 = vmatprep.subr.bf16.mxu0 0
    %2733 = vmatpush1.bf16.xpose.msra.mxu0 0
    %2734 = vmatprep.mubr.bf16.mxu0 0
    %2735 = vmatmul.mubr.bf16.gmra.mrb[0].mxu0 %v2679
    %v2736 = vpop.f32.mrb[0].mxu0
    %v2737 = vadd.f32 0.0, %v2736
    %v2738 = vpop.f32.mrb[0].mxu0
    %v2739 = vpop.f32.mrb[0].mxu0
    %v2740 = vadd.f32 0.0, %v2739
    %v2741 = vpop.f32.mrb[0].mxu0
    %2742 = vmatprep.mubr.bf16.mxu0 0
    %2743 = vmatmul.mubr.bf16.gmra.mrb[0].mxu0 %v2682
    %v2744 = vpop.f32.mrb[0].mxu0
    %v2745 = vadd.f32 0.0, %v2744
    %v2746 = vpop.f32.mrb[0].mxu0
    %v2747 = vpop.f32.mrb[0].mxu0
    %v2748 = vadd.f32 0.0, %v2747
    %v2749 = vpop.f32.mrb[0].mxu0
    %2750 = vmatprep.mubr.bf16.mxu0 0
    %2751 = vmatmul.mubr.bf16.gmra.mrb[0].mxu0 %v2685
    %v2752 = vpop.f32.mrb[0].mxu0
    %v2753 = vadd.f32 0.0, %v2752
    %v2754 = vpop.f32.mrb[0].mxu0
    %v2755 = vpop.f32.mrb[0].mxu0
    %v2756 = vadd.f32 0.0, %v2755
    %v2757 = vpop.f32.mrb[0].mxu0
    %2758 = vmatprep.mubr.bf16.mxu0 0
    %2759 = vmatmul.mubr.bf16.gmra.mrb[0].mxu0 %v2688
    %v2760 = vpop.f32.mrb[0].mxu0
    %v2761 = vadd.f32 0.0, %v2760
    %v2762 = vpop.f32.mrb[0].mxu0
    %v2763 = vpop.f32.mrb[0].mxu0
    %v2764 = vadd.f32 0.0, %v2763
    %v2765 = vpop.f32.mrb[0].mxu0
    %2766 = vdwg.mxu0
    %2771 = vrot.lane.b32.xlu0 %v2557, 96
    %v2772 = vpop.permute.xlu0 %2771
    %2773 = vrot.lane.b32.xlu0 %v2558, 96
    %v2774 = vpop.permute.xlu0 %2773
    %2775 = vrot.lane.b32.xlu0 %v2559, 96
    %v2776 = vpop.permute.xlu0 %2775
    %2777 = vrot.lane.b32.xlu0 %v2560, 96
    %v2778 = vpop.permute.xlu0 %2777
    %v2780 = vsel %vm409, %v2557, 0
    %v2783 = vsel %vm409, %v2558, 0
    %v2786 = vsel %vm409, %v2559, 0
    %v2789 = vsel %vm409, %v2560, 0
    %v2792 = vsel %vm409, %v2772, 0
    %v2795 = vsel %vm409, %v2774, 0
    %v2798 = vsel %vm409, %v2776, 0
    %v2801 = vsel %vm409, %v2778, 0
    %2803 = vmatprep.subr.bf16.mxu0 0
    %2804 = vmatpush1.bf16.xpose.msra.mxu0 %v2792
    %2805 = vmatprep.subr.bf16.mxu0 0
    %2806 = vmatpush1.bf16.xpose.msra.mxu0 %v2795
    %2807 = vmatprep.subr.bf16.mxu0 0
    %2808 = vmatpush1.bf16.xpose.msra.mxu0 %v2798
    %2809 = vmatprep.subr.bf16.mxu0 0
    %2810 = vmatpush1.bf16.xpose.msra.mxu0 %v2801
    %2811 = vmatprep.subr.bf16.mxu0 0
    %2812 = vmatpush1.bf16.xpose.msra.mxu0 0
    %2813 = vmatprep.subr.bf16.mxu0 0
    %2814 = vmatpush1.bf16.xpose.msra.mxu0 0
    %2815 = vmatprep.subr.bf16.mxu0 0
    %2816 = vmatpush1.bf16.xpose.msra.mxu0 0
    %2817 = vmatprep.subr.bf16.mxu0 0
    %2818 = vmatpush1.bf16.xpose.msra.mxu0 0
    %2819 = vmatprep.subr.bf16.mxu0 0
    %2820 = vmatpush1.bf16.xpose.msra.mxu0 0
    %2821 = vmatprep.subr.bf16.mxu0 0
    %2822 = vmatpush1.bf16.xpose.msra.mxu0 0
    %2823 = vmatprep.subr.bf16.mxu0 0
    %2824 = vmatpush1.bf16.xpose.msra.mxu0 0
    %2825 = vmatprep.subr.bf16.mxu0 0
    %2826 = vmatpush1.bf16.xpose.msra.mxu0 0
    %2827 = vmatprep.subr.bf16.mxu0 0
    %2828 = vmatpush1.bf16.xpose.msra.mxu0 0
    %2829 = vmatprep.subr.bf16.mxu0 0
    %2830 = vmatpush1.bf16.xpose.msra.mxu0 0
    %2831 = vmatprep.subr.bf16.mxu0 0
    %2832 = vmatpush1.bf16.xpose.msra.mxu0 0
    %2833 = vmatprep.subr.bf16.mxu0 0
    %2834 = vmatpush1.bf16.xpose.msra.mxu0 0
    %2835 = vmatprep.mubr.bf16.mxu0 0
    %2836 = vmatmul.mubr.bf16.gmra.mrb[0].mxu0 %v2780
    %v2837 = vpop.f32.mrb[0].mxu0
    %v2838 = vadd.f32 0.0, %v2837
    %v2839 = vpop.f32.mrb[0].mxu0
    %v2840 = vpop.f32.mrb[0].mxu0
    %v2841 = vadd.f32 0.0, %v2840
    %v2842 = vpop.f32.mrb[0].mxu0
    %2843 = vmatprep.mubr.bf16.mxu0 0
    %2844 = vmatmul.mubr.bf16.gmra.mrb[0].mxu0 %v2783
    %v2845 = vpop.f32.mrb[0].mxu0
    %v2846 = vadd.f32 0.0, %v2845
    %v2847 = vpop.f32.mrb[0].mxu0
    %v2848 = vpop.f32.mrb[0].mxu0
    %v2849 = vadd.f32 0.0, %v2848
    %v2850 = vpop.f32.mrb[0].mxu0
    %2851 = vmatprep.mubr.bf16.mxu0 0
    %2852 = vmatmul.mubr.bf16.gmra.mrb[0].mxu0 %v2786
    %v2853 = vpop.f32.mrb[0].mxu0
    %v2854 = vadd.f32 0.0, %v2853
    %v2855 = vpop.f32.mrb[0].mxu0
    %v2856 = vpop.f32.mrb[0].mxu0
    %v2857 = vadd.f32 0.0, %v2856
    %v2858 = vpop.f32.mrb[0].mxu0
    %2859 = vmatprep.mubr.bf16.mxu0 0
    %2860 = vmatmul.mubr.bf16.gmra.mrb[0].mxu0 %v2789
    %v2861 = vpop.f32.mrb[0].mxu0
    %v2862 = vadd.f32 0.0, %v2861
    %v2863 = vpop.f32.mrb[0].mxu0
    %v2864 = vpop.f32.mrb[0].mxu0
    %v2865 = vadd.f32 0.0, %v2864
    %v2866 = vpop.f32.mrb[0].mxu0
    %2867 = vdwg.mxu0
    %2872 = vrot.lane.b32.xlu0 %v2561, 96
    %v2873 = vpop.permute.xlu0 %2872
    %2874 = vrot.lane.b32.xlu0 %v2562, 96
    %v2875 = vpop.permute.xlu0 %2874
    %2876 = vrot.lane.b32.xlu0 %v2563, 96
    %v2877 = vpop.permute.xlu0 %2876
    %2878 = vrot.lane.b32.xlu0 %v2564, 96
    %v2879 = vpop.permute.xlu0 %2878
    %v2881 = vsel %vm409, %v2561, 0
    %v2884 = vsel %vm409, %v2562, 0
    %v2887 = vsel %vm409, %v2563, 0
    %v2890 = vsel %vm409, %v2564, 0
    %v2893 = vsel %vm409, %v2873, 0
    %v2896 = vsel %vm409, %v2875, 0
    %v2899 = vsel %vm409, %v2877, 0
    %v2902 = vsel %vm409, %v2879, 0
    %2904 = vmatprep.subr.bf16.mxu0 0
    %2905 = vmatpush1.bf16.xpose.msra.mxu0 %v2893
    %2906 = vmatprep.subr.bf16.mxu0 0
    %2907 = vmatpush1.bf16.xpose.msra.mxu0 %v2896
    %2908 = vmatprep.subr.bf16.mxu0 0
    %2909 = vmatpush1.bf16.xpose.msra.mxu0 %v2899
    %2910 = vmatprep.subr.bf16.mxu0 0
    %2911 = vmatpush1.bf16.xpose.msra.mxu0 %v2902
    %2912 = vmatprep.subr.bf16.mxu0 0
    %2913 = vmatpush1.bf16.xpose.msra.mxu0 0
    %2914 = vmatprep.subr.bf16.mxu0 0
    %2915 = vmatpush1.bf16.xpose.msra.mxu0 0
    %2916 = vmatprep.subr.bf16.mxu0 0
    %2917 = vmatpush1.bf16.xpose.msra.mxu0 0
    %2918 = vmatprep.subr.bf16.mxu0 0
    %2919 = vmatpush1.bf16.xpose.msra.mxu0 0
    %2920 = vmatprep.subr.bf16.mxu0 0
    %2921 = vmatpush1.bf16.xpose.msra.mxu0 0
    %2922 = vmatprep.subr.bf16.mxu0 0
    %2923 = vmatpush1.bf16.xpose.msra.mxu0 0
    %2924 = vmatprep.subr.bf16.mxu0 0
    %2925 = vmatpush1.bf16.xpose.msra.mxu0 0
    %2926 = vmatprep.subr.bf16.mxu0 0
    %2927 = vmatpush1.bf16.xpose.msra.mxu0 0
    %2928 = vmatprep.subr.bf16.mxu0 0
    %2929 = vmatpush1.bf16.xpose.msra.mxu0 0
    %2930 = vmatprep.subr.bf16.mxu0 0
    %2931 = vmatpush1.bf16.xpose.msra.mxu0 0
    %2932 = vmatprep.subr.bf16.mxu0 0
    %2933 = vmatpush1.bf16.xpose.msra.mxu0 0
    %2934 = vmatprep.subr.bf16.mxu0 0
    %2935 = vmatpush1.bf16.xpose.msra.mxu0 0
    %2936 = vmatprep.mubr.bf16.mxu0 0
    %2937 = vmatmul.mubr.bf16.gmra.mrb[0].mxu0 %v2881
    %v2938 = vpop.f32.mrb[0].mxu0
    %v2939 = vadd.f32 0.0, %v2938
    %v2940 = vpop.f32.mrb[0].mxu0
    %v2941 = vpop.f32.mrb[0].mxu0
    %v2942 = vadd.f32 0.0, %v2941
    %v2943 = vpop.f32.mrb[0].mxu0
    %2944 = vmatprep.mubr.bf16.mxu0 0
    %2945 = vmatmul.mubr.bf16.gmra.mrb[0].mxu0 %v2884
    %v2946 = vpop.f32.mrb[0].mxu0
    %v2947 = vadd.f32 0.0, %v2946
    %v2948 = vpop.f32.mrb[0].mxu0
    %v2949 = vpop.f32.mrb[0].mxu0
    %v2950 = vadd.f32 0.0, %v2949
    %v2951 = vpop.f32.mrb[0].mxu0
    %2952 = vmatprep.mubr.bf16.mxu0 0
    %2953 = vmatmul.mubr.bf16.gmra.mrb[0].mxu0 %v2887
    %v2954 = vpop.f32.mrb[0].mxu0
    %v2955 = vadd.f32 0.0, %v2954
    %v2956 = vpop.f32.mrb[0].mxu0
    %v2957 = vpop.f32.mrb[0].mxu0
    %v2958 = vadd.f32 0.0, %v2957
    %v2959 = vpop.f32.mrb[0].mxu0
    %2960 = vmatprep.mubr.bf16.mxu0 0
    %2961 = vmatmul.mubr.bf16.gmra.mrb[0].mxu0 %v2890
    %v2962 = vpop.f32.mrb[0].mxu0
    %v2963 = vadd.f32 0.0, %v2962
    %v2964 = vpop.f32.mrb[0].mxu0
    %v2965 = vpop.f32.mrb[0].mxu0
    %v2966 = vadd.f32 0.0, %v2965
    %v2967 = vpop.f32.mrb[0].mxu0
    %2968 = vdwg.mxu0
    %v2969 = vmul.f32 %v2636, 0.17677669
    %v2970 = vmul.f32 %v2639, 0.17677669
    %v2971 = vmul.f32 %v2644, 0.17677669
    %v2972 = vmul.f32 %v2647, 0.17677669
    %v2973 = vmul.f32 %v2652, 0.17677669
    %v2974 = vmul.f32 %v2655, 0.17677669
    %v2975 = vmul.f32 %v2660, 0.17677669
    %v2976 = vmul.f32 %v2663, 0.17677669
    %v2977 = vmul.f32 %v2737, 0.17677669
    %v2978 = vmul.f32 %v2740, 0.17677669
    %v2979 = vmul.f32 %v2745, 0.17677669
    %v2980 = vmul.f32 %v2748, 0.17677669
    %v2981 = vmul.f32 %v2753, 0.17677669
    %v2982 = vmul.f32 %v2756, 0.17677669
    %v2983 = vmul.f32 %v2761, 0.17677669
    %v2984 = vmul.f32 %v2764, 0.17677669
    %v2985 = vmul.f32 %v2838, 0.17677669
    %v2986 = vmul.f32 %v2841, 0.17677669
    %v2987 = vmul.f32 %v2846, 0.17677669
    %v2988 = vmul.f32 %v2849, 0.17677669
    %v2989 = vmul.f32 %v2854, 0.17677669
    %v2990 = vmul.f32 %v2857, 0.17677669
    %v2991 = vmul.f32 %v2862, 0.17677669
    %v2992 = vmul.f32 %v2865, 0.17677669
    %v2993 = vmul.f32 %v2939, 0.17677669
    %v2994 = vmul.f32 %v2942, 0.17677669
    %v2995 = vmul.f32 %v2947, 0.17677669
    %v2996 = vmul.f32 %v2950, 0.17677669
    %v2997 = vmul.f32 %v2955, 0.17677669
    %v2998 = vmul.f32 %v2958, 0.17677669
    %v2999 = vmul.f32 %v2963, 0.17677669
    %v3000 = vmul.f32 %v2966, 0.17677669
    %v3001 = vadd.f32 %v2969, %v60
    %v3002 = vadd.f32 %v2970, %v61
    %v3003 = vadd.f32 %v2971, %v62
    %v3004 = vadd.f32 %v2972, %v63
    %v3005 = vadd.f32 %v2973, %v64
    %v3006 = vadd.f32 %v2974, %v65
    %v3007 = vadd.f32 %v2975, %v66
    %v3008 = vadd.f32 %v2976, %v67
    %v3009 = vadd.f32 %v2977, %v60
    %v3010 = vadd.f32 %v2978, %v61
    %v3011 = vadd.f32 %v2979, %v62
    %v3012 = vadd.f32 %v2980, %v63
    %v3013 = vadd.f32 %v2981, %v64
    %v3014 = vadd.f32 %v2982, %v65
    %v3015 = vadd.f32 %v2983, %v66
    %v3016 = vadd.f32 %v2984, %v67
    %v3017 = vadd.f32 %v2985, %v60
    %v3018 = vadd.f32 %v2986, %v61
    %v3019 = vadd.f32 %v2987, %v62
    %v3020 = vadd.f32 %v2988, %v63
    %v3021 = vadd.f32 %v2989, %v64
    %v3022 = vadd.f32 %v2990, %v65
    %v3023 = vadd.f32 %v2991, %v66
    %v3024 = vadd.f32 %v2992, %v67
    %v3025 = vadd.f32 %v2993, %v60
    %v3026 = vadd.f32 %v2994, %v61
    %v3027 = vadd.f32 %v2995, %v62
    %v3028 = vadd.f32 %v2996, %v63
    %v3029 = vadd.f32 %v2997, %v64
    %v3030 = vadd.f32 %v2998, %v65
    %v3031 = vadd.f32 %v2999, %v66
    %v3032 = vadd.f32 %v3000, %v67
    %v3033 = vsel %vm866, %v3001, -inf
    %3034 = vmax.xlane.f32.xlu0 %v3033
    %v3035 = vpop.xlane.xlu0 %3034
    %v3036 = vsel %vm866, %v3002, -inf
    %3037 = vmax.xlane.f32.xlu0 %v3036
    %v3038 = vpop.xlane.xlu0 %3037
    %v3039 = vsel %vm866, %v3003, -inf
    %3040 = vmax.xlane.f32.xlu0 %v3039
    %v3041 = vpop.xlane.xlu0 %3040
    %v3042 = vsel %vm866, %v3004, -inf
    %3043 = vmax.xlane.f32.xlu0 %v3042
    %v3044 = vpop.xlane.xlu0 %3043
    %v3045 = vsel %vm866, %v3005, -inf
    %3046 = vmax.xlane.f32.xlu0 %v3045
    %v3047 = vpop.xlane.xlu0 %3046
    %v3048 = vsel %vm866, %v3006, -inf
    %3049 = vmax.xlane.f32.xlu0 %v3048
    %v3050 = vpop.xlane.xlu0 %3049
    %v3051 = vsel %vm866, %v3007, -inf
    %3052 = vmax.xlane.f32.xlu0 %v3051
    %v3053 = vpop.xlane.xlu0 %3052
    %v3054 = vsel %vm866, %v3008, -inf
    %3055 = vmax.xlane.f32.xlu0 %v3054
    %v3056 = vpop.xlane.xlu0 %3055
    %v3057 = vsel %vm866, %v3009, -inf
    %3058 = vmax.xlane.f32.xlu0 %v3057
    %v3059 = vpop.xlane.xlu0 %3058
    %v3060 = vsel %vm866, %v3010, -inf
    %3061 = vmax.xlane.f32.xlu0 %v3060
    %v3062 = vpop.xlane.xlu0 %3061
    %v3063 = vsel %vm866, %v3011, -inf
    %3064 = vmax.xlane.f32.xlu0 %v3063
    %v3065 = vpop.xlane.xlu0 %3064
    %v3066 = vsel %vm866, %v3012, -inf
    %3067 = vmax.xlane.f32.xlu0 %v3066
    %v3068 = vpop.xlane.xlu0 %3067
    %v3069 = vsel %vm866, %v3013, -inf
    %3070 = vmax.xlane.f32.xlu0 %v3069
    %v3071 = vpop.xlane.xlu0 %3070
    %v3072 = vsel %vm866, %v3014, -inf
    %3073 = vmax.xlane.f32.xlu0 %v3072
    %v3074 = vpop.xlane.xlu0 %3073
    %v3075 = vsel %vm866, %v3015, -inf
    %3076 = vmax.xlane.f32.xlu0 %v3075
    %v3077 = vpop.xlane.xlu0 %3076
    %v3078 = vsel %vm866, %v3016, -inf
    %3079 = vmax.xlane.f32.xlu0 %v3078
    %v3080 = vpop.xlane.xlu0 %3079
    %v3081 = vsel %vm866, %v3017, -inf
    %3082 = vmax.xlane.f32.xlu0 %v3081
    %v3083 = vpop.xlane.xlu0 %3082
    %v3084 = vsel %vm866, %v3018, -inf
    %3085 = vmax.xlane.f32.xlu0 %v3084
    %v3086 = vpop.xlane.xlu0 %3085
    %v3087 = vsel %vm866, %v3019, -inf
    %3088 = vmax.xlane.f32.xlu0 %v3087
    %v3089 = vpop.xlane.xlu0 %3088
    %v3090 = vsel %vm866, %v3020, -inf
    %3091 = vmax.xlane.f32.xlu0 %v3090
    %v3092 = vpop.xlane.xlu0 %3091
    %v3093 = vsel %vm866, %v3021, -inf
    %3094 = vmax.xlane.f32.xlu0 %v3093
    %v3095 = vpop.xlane.xlu0 %3094
    %v3096 = vsel %vm866, %v3022, -inf
    %3097 = vmax.xlane.f32.xlu0 %v3096
    %v3098 = vpop.xlane.xlu0 %3097
    %v3099 = vsel %vm866, %v3023, -inf
    %3100 = vmax.xlane.f32.xlu0 %v3099
    %v3101 = vpop.xlane.xlu0 %3100
    %v3102 = vsel %vm866, %v3024, -inf
    %3103 = vmax.xlane.f32.xlu0 %v3102
    %v3104 = vpop.xlane.xlu0 %3103
    %v3105 = vsel %vm866, %v3025, -inf
    %3106 = vmax.xlane.f32.xlu0 %v3105
    %v3107 = vpop.xlane.xlu0 %3106
    %v3108 = vsel %vm866, %v3026, -inf
    %3109 = vmax.xlane.f32.xlu0 %v3108
    %v3110 = vpop.xlane.xlu0 %3109
    %v3111 = vsel %vm866, %v3027, -inf
    %3112 = vmax.xlane.f32.xlu0 %v3111
    %v3113 = vpop.xlane.xlu0 %3112
    %v3114 = vsel %vm866, %v3028, -inf
    %3115 = vmax.xlane.f32.xlu0 %v3114
    %v3116 = vpop.xlane.xlu0 %3115
    %v3117 = vsel %vm866, %v3029, -inf
    %3118 = vmax.xlane.f32.xlu0 %v3117
    %v3119 = vpop.xlane.xlu0 %3118
    %v3120 = vsel %vm866, %v3030, -inf
    %3121 = vmax.xlane.f32.xlu0 %v3120
    %v3122 = vpop.xlane.xlu0 %3121
    %v3123 = vsel %vm866, %v3031, -inf
    %3124 = vmax.xlane.f32.xlu0 %v3123
    %v3125 = vpop.xlane.xlu0 %3124
    %v3126 = vsel %vm866, %v3032, -inf
    %3127 = vmax.xlane.f32.xlu0 %v3126
    %v3128 = vpop.xlane.xlu0 %3127
    %v3129 = vsub.f32 %v3001, %v3035
    %v3130 = vsub.f32 %v3002, %v3038
    %v3131 = vsub.f32 %v3003, %v3041
    %v3132 = vsub.f32 %v3004, %v3044
    %v3133 = vsub.f32 %v3005, %v3047
    %v3134 = vsub.f32 %v3006, %v3050
    %v3135 = vsub.f32 %v3007, %v3053
    %v3136 = vsub.f32 %v3008, %v3056
    %v3137 = vsub.f32 %v3009, %v3059
    %v3138 = vsub.f32 %v3010, %v3062
    %v3139 = vsub.f32 %v3011, %v3065
    %v3140 = vsub.f32 %v3012, %v3068
    %v3141 = vsub.f32 %v3013, %v3071
    %v3142 = vsub.f32 %v3014, %v3074
    %v3143 = vsub.f32 %v3015, %v3077
    %v3144 = vsub.f32 %v3016, %v3080
    %v3145 = vsub.f32 %v3017, %v3083
    %v3146 = vsub.f32 %v3018, %v3086
    %v3147 = vsub.f32 %v3019, %v3089
    %v3148 = vsub.f32 %v3020, %v3092
    %v3149 = vsub.f32 %v3021, %v3095
    %v3150 = vsub.f32 %v3022, %v3098
    %v3151 = vsub.f32 %v3023, %v3101
    %v3152 = vsub.f32 %v3024, %v3104
    %v3153 = vsub.f32 %v3025, %v3107
    %v3154 = vsub.f32 %v3026, %v3110
    %v3155 = vsub.f32 %v3027, %v3113
    %v3156 = vsub.f32 %v3028, %v3116
    %v3157 = vsub.f32 %v3029, %v3119
    %v3158 = vsub.f32 %v3030, %v3122
    %v3159 = vsub.f32 %v3031, %v3125
    %v3160 = vsub.f32 %v3032, %v3128
    %v3161 = vmul.f32 %v3129, 1.442695
    %v3162 = vpow.pop %v3161
    %v3163 = vmul.f32 %v3130, 1.442695
    %v3164 = vpow.pop %v3163
    %v3165 = vmul.f32 %v3131, 1.442695
    %v3166 = vpow.pop %v3165
    %v3167 = vmul.f32 %v3132, 1.442695
    %v3168 = vpow.pop %v3167
    %v3169 = vmul.f32 %v3133, 1.442695
    %v3170 = vpow.pop %v3169
    %v3171 = vmul.f32 %v3134, 1.442695
    %v3172 = vpow.pop %v3171
    %v3173 = vmul.f32 %v3135, 1.442695
    %v3174 = vpow.pop %v3173
    %v3175 = vmul.f32 %v3136, 1.442695
    %v3176 = vpow.pop %v3175
    %v3177 = vmul.f32 %v3137, 1.442695
    %v3178 = vpow.pop %v3177
    %v3179 = vmul.f32 %v3138, 1.442695
    %v3180 = vpow.pop %v3179
    %v3181 = vmul.f32 %v3139, 1.442695
    %v3182 = vpow.pop %v3181
    %v3183 = vmul.f32 %v3140, 1.442695
    %v3184 = vpow.pop %v3183
    %v3185 = vmul.f32 %v3141, 1.442695
    %v3186 = vpow.pop %v3185
    %v3187 = vmul.f32 %v3142, 1.442695
    %v3188 = vpow.pop %v3187
    %v3189 = vmul.f32 %v3143, 1.442695
    %v3190 = vpow.pop %v3189
    %v3191 = vmul.f32 %v3144, 1.442695
    %v3192 = vpow.pop %v3191
    %v3193 = vmul.f32 %v3145, 1.442695
    %v3194 = vpow.pop %v3193
    %v3195 = vmul.f32 %v3146, 1.442695
    %v3196 = vpow.pop %v3195
    %v3197 = vmul.f32 %v3147, 1.442695
    %v3198 = vpow.pop %v3197
    %v3199 = vmul.f32 %v3148, 1.442695
    %v3200 = vpow.pop %v3199
    %v3201 = vmul.f32 %v3149, 1.442695
    %v3202 = vpow.pop %v3201
    %v3203 = vmul.f32 %v3150, 1.442695
    %v3204 = vpow.pop %v3203
    %v3205 = vmul.f32 %v3151, 1.442695
    %v3206 = vpow.pop %v3205
    %v3207 = vmul.f32 %v3152, 1.442695
    %v3208 = vpow.pop %v3207
    %v3209 = vmul.f32 %v3153, 1.442695
    %v3210 = vpow.pop %v3209
    %v3211 = vmul.f32 %v3154, 1.442695
    %v3212 = vpow.pop %v3211
    %v3213 = vmul.f32 %v3155, 1.442695
    %v3214 = vpow.pop %v3213
    %v3215 = vmul.f32 %v3156, 1.442695
    %v3216 = vpow.pop %v3215
    %v3217 = vmul.f32 %v3157, 1.442695
    %v3218 = vpow.pop %v3217
    %v3219 = vmul.f32 %v3158, 1.442695
    %v3220 = vpow.pop %v3219
    %v3221 = vmul.f32 %v3159, 1.442695
    %v3222 = vpow.pop %v3221
    %v3223 = vmul.f32 %v3160, 1.442695
    %v3224 = vpow.pop %v3223
    %v3225 = vsel %vm866, %v3162, 0.0
    %3226 = vadd.xlane.f32.xlu0 %v3225
    %v3227 = vpop.xlane.xlu0 %3226
    %v3228 = vsel %vm866, %v3164, 0.0
    %3229 = vadd.xlane.f32.xlu0 %v3228
    %v3230 = vpop.xlane.xlu0 %3229
    %v3231 = vsel %vm866, %v3166, 0.0
    %3232 = vadd.xlane.f32.xlu0 %v3231
    %v3233 = vpop.xlane.xlu0 %3232
    %v3234 = vsel %vm866, %v3168, 0.0
    %3235 = vadd.xlane.f32.xlu0 %v3234
    %v3236 = vpop.xlane.xlu0 %3235
    %v3237 = vsel %vm866, %v3170, 0.0
    %3238 = vadd.xlane.f32.xlu0 %v3237
    %v3239 = vpop.xlane.xlu0 %3238
    %v3240 = vsel %vm866, %v3172, 0.0
    %3241 = vadd.xlane.f32.xlu0 %v3240
    %v3242 = vpop.xlane.xlu0 %3241
    %v3243 = vsel %vm866, %v3174, 0.0
    %3244 = vadd.xlane.f32.xlu0 %v3243
    %v3245 = vpop.xlane.xlu0 %3244
    %v3246 = vsel %vm866, %v3176, 0.0
    %3247 = vadd.xlane.f32.xlu0 %v3246
    %v3248 = vpop.xlane.xlu0 %3247
    %v3249 = vsel %vm866, %v3178, 0.0
    %3250 = vadd.xlane.f32.xlu0 %v3249
    %v3251 = vpop.xlane.xlu0 %3250
    %v3252 = vsel %vm866, %v3180, 0.0
    %3253 = vadd.xlane.f32.xlu0 %v3252
    %v3254 = vpop.xlane.xlu0 %3253
    %v3255 = vsel %vm866, %v3182, 0.0
    %3256 = vadd.xlane.f32.xlu0 %v3255
    %v3257 = vpop.xlane.xlu0 %3256
    %v3258 = vsel %vm866, %v3184, 0.0
    %3259 = vadd.xlane.f32.xlu0 %v3258
    %v3260 = vpop.xlane.xlu0 %3259
    %v3261 = vsel %vm866, %v3186, 0.0
    %3262 = vadd.xlane.f32.xlu0 %v3261
    %v3263 = vpop.xlane.xlu0 %3262
    %v3264 = vsel %vm866, %v3188, 0.0
    %3265 = vadd.xlane.f32.xlu0 %v3264
    %v3266 = vpop.xlane.xlu0 %3265
    %v3267 = vsel %vm866, %v3190, 0.0
    %3268 = vadd.xlane.f32.xlu0 %v3267
    %v3269 = vpop.xlane.xlu0 %3268
    %v3270 = vsel %vm866, %v3192, 0.0
    %3271 = vadd.xlane.f32.xlu0 %v3270
    %v3272 = vpop.xlane.xlu0 %3271
    %v3273 = vsel %vm866, %v3194, 0.0
    %3274 = vadd.xlane.f32.xlu0 %v3273
    %v3275 = vpop.xlane.xlu0 %3274
    %v3276 = vsel %vm866, %v3196, 0.0
    %3277 = vadd.xlane.f32.xlu0 %v3276
    %v3278 = vpop.xlane.xlu0 %3277
    %v3279 = vsel %vm866, %v3198, 0.0
    %3280 = vadd.xlane.f32.xlu0 %v3279
    %v3281 = vpop.xlane.xlu0 %3280
    %v3282 = vsel %vm866, %v3200, 0.0
    %3283 = vadd.xlane.f32.xlu0 %v3282
    %v3284 = vpop.xlane.xlu0 %3283
    %v3285 = vsel %vm866, %v3202, 0.0
    %3286 = vadd.xlane.f32.xlu0 %v3285
    %v3287 = vpop.xlane.xlu0 %3286
    %v3288 = vsel %vm866, %v3204, 0.0
    %3289 = vadd.xlane.f32.xlu0 %v3288
    %v3290 = vpop.xlane.xlu0 %3289
    %v3291 = vsel %vm866, %v3206, 0.0
    %3292 = vadd.xlane.f32.xlu0 %v3291
    %v3293 = vpop.xlane.xlu0 %3292
    %v3294 = vsel %vm866, %v3208, 0.0
    %3295 = vadd.xlane.f32.xlu0 %v3294
    %v3296 = vpop.xlane.xlu0 %3295
    %v3297 = vsel %vm866, %v3210, 0.0
    %3298 = vadd.xlane.f32.xlu0 %v3297
    %v3299 = vpop.xlane.xlu0 %3298
    %v3300 = vsel %vm866, %v3212, 0.0
    %3301 = vadd.xlane.f32.xlu0 %v3300
    %v3302 = vpop.xlane.xlu0 %3301
    %v3303 = vsel %vm866, %v3214, 0.0
    %3304 = vadd.xlane.f32.xlu0 %v3303
    %v3305 = vpop.xlane.xlu0 %3304
    %v3306 = vsel %vm866, %v3216, 0.0
    %3307 = vadd.xlane.f32.xlu0 %v3306
    %v3308 = vpop.xlane.xlu0 %3307
    %v3309 = vsel %vm866, %v3218, 0.0
    %3310 = vadd.xlane.f32.xlu0 %v3309
    %v3311 = vpop.xlane.xlu0 %3310
    %v3312 = vsel %vm866, %v3220, 0.0
    %3313 = vadd.xlane.f32.xlu0 %v3312
    %v3314 = vpop.xlane.xlu0 %3313
    %v3315 = vsel %vm866, %v3222, 0.0
    %3316 = vadd.xlane.f32.xlu0 %v3315
    %v3317 = vpop.xlane.xlu0 %3316
    %v3318 = vsel %vm866, %v3224, 0.0
    %3319 = vadd.xlane.f32.xlu0 %v3318
    %v3320 = vpop.xlane.xlu0 %3319
    %v3321 = vrcp.pop %v3227
    %v3322 = vrcp.pop %v3230
    %v3323 = vrcp.pop %v3233
    %v3324 = vrcp.pop %v3236
    %v3325 = vrcp.pop %v3239
    %v3326 = vrcp.pop %v3242
    %v3327 = vrcp.pop %v3245
    %v3328 = vrcp.pop %v3248
    %v3329 = vrcp.pop %v3251
    %v3330 = vrcp.pop %v3254
    %v3331 = vrcp.pop %v3257
    %v3332 = vrcp.pop %v3260
    %v3333 = vrcp.pop %v3263
    %v3334 = vrcp.pop %v3266
    %v3335 = vrcp.pop %v3269
    %v3336 = vrcp.pop %v3272
    %v3337 = vrcp.pop %v3275
    %v3338 = vrcp.pop %v3278
    %v3339 = vrcp.pop %v3281
    %v3340 = vrcp.pop %v3284
    %v3341 = vrcp.pop %v3287
    %v3342 = vrcp.pop %v3290
    %v3343 = vrcp.pop %v3293
    %v3344 = vrcp.pop %v3296
    %v3345 = vrcp.pop %v3299
    %v3346 = vrcp.pop %v3302
    %v3347 = vrcp.pop %v3305
    %v3348 = vrcp.pop %v3308
    %v3349 = vrcp.pop %v3311
    %v3350 = vrcp.pop %v3314
    %v3351 = vrcp.pop %v3317
    %v3352 = vrcp.pop %v3320
    %v3353 = vmul.f32 %v3162, %v3321
    %v3354 = vmul.f32 %v3164, %v3322
    %v3355 = vmul.f32 %v3166, %v3323
    %v3356 = vmul.f32 %v3168, %v3324
    %v3357 = vmul.f32 %v3170, %v3325
    %v3358 = vmul.f32 %v3172, %v3326
    %v3359 = vmul.f32 %v3174, %v3327
    %v3360 = vmul.f32 %v3176, %v3328
    %v3361 = vmul.f32 %v3178, %v3329
    %v3362 = vmul.f32 %v3180, %v3330
    %v3363 = vmul.f32 %v3182, %v3331
    %v3364 = vmul.f32 %v3184, %v3332
    %v3365 = vmul.f32 %v3186, %v3333
    %v3366 = vmul.f32 %v3188, %v3334
    %v3367 = vmul.f32 %v3190, %v3335
    %v3368 = vmul.f32 %v3192, %v3336
    %v3369 = vmul.f32 %v3194, %v3337
    %v3370 = vmul.f32 %v3196, %v3338
    %v3371 = vmul.f32 %v3198, %v3339
    %v3372 = vmul.f32 %v3200, %v3340
    %v3373 = vmul.f32 %v3202, %v3341
    %v3374 = vmul.f32 %v3204, %v3342
    %v3375 = vmul.f32 %v3206, %v3343
    %v3376 = vmul.f32 %v3208, %v3344
    %v3377 = vmul.f32 %v3210, %v3345
    %v3378 = vmul.f32 %v3212, %v3346
    %v3379 = vmul.f32 %v3214, %v3347
    %v3380 = vmul.f32 %v3216, %v3348
    %v3381 = vmul.f32 %v3218, %v3349
    %v3382 = vmul.f32 %v3220, %v3350
    %v3383 = vmul.f32 %v3222, %v3351
    %v3384 = vmul.f32 %v3224, %v3352
    %v3385 = vpack.c.bf16 %v3354, %v3353
    %v3386 = vpack.c.bf16 %v3356, %v3355
    %v3387 = vpack.c.bf16 %v3358, %v3357
    %v3388 = vpack.c.bf16 %v3360, %v3359
    %v3389 = vpack.c.bf16 %v3362, %v3361
    %v3390 = vpack.c.bf16 %v3364, %v3363
    %v3391 = vpack.c.bf16 %v3366, %v3365
    %v3392 = vpack.c.bf16 %v3368, %v3367
    %v3393 = vpack.c.bf16 %v3370, %v3369
    %v3394 = vpack.c.bf16 %v3372, %v3371
    %v3395 = vpack.c.bf16 %v3374, %v3373
    %v3396 = vpack.c.bf16 %v3376, %v3375
    %v3397 = vpack.c.bf16 %v3378, %v3377
    %v3398 = vpack.c.bf16 %v3380, %v3379
    %v3399 = vpack.c.bf16 %v3382, %v3381
    %v3400 = vpack.c.bf16 %v3384, %v3383
    %3401 = vrot.lane.b32.xlu0 %v2549, 64
    %v3402 = vpop.permute.xlu0 %3401
    %3403 = vrot.lane.b32.xlu0 %v2550, 64
    %v3404 = vpop.permute.xlu0 %3403
    %3405 = vrot.lane.b32.xlu0 %v2551, 64
    %v3406 = vpop.permute.xlu0 %3405
    %3407 = vrot.lane.b32.xlu0 %v2552, 64
    %v3408 = vpop.permute.xlu0 %3407
    %v3414 = vsel %vm866, %v3385, 0
    %v3417 = vsel %vm866, %v3386, 0
    %v3420 = vsel %vm866, %v3387, 0
    %v3423 = vsel %vm866, %v3388, 0
    %3425 = vmatprep.subr.bf16.mxu0 0
    %3426 = vmatpush1.bf16.msra.mxu0 %v3402
    %3427 = vmatprep.subr.bf16.mxu0 0
    %3428 = vmatpush1.bf16.msra.mxu0 %v3404
    %3429 = vmatprep.subr.bf16.mxu0 0
    %3430 = vmatpush1.bf16.msra.mxu0 %v3406
    %3431 = vmatprep.subr.bf16.mxu0 0
    %3432 = vmatpush1.bf16.msra.mxu0 %v3408
    %3433 = vmatprep.subr.bf16.mxu0 0
    %3434 = vmatpush1.bf16.msra.mxu0 0
    %3435 = vmatprep.subr.bf16.mxu0 0
    %3436 = vmatpush1.bf16.msra.mxu0 0
    %3437 = vmatprep.subr.bf16.mxu0 0
    %3438 = vmatpush1.bf16.msra.mxu0 0
    %3439 = vmatprep.subr.bf16.mxu0 0
    %3440 = vmatpush1.bf16.msra.mxu0 0
    %3441 = vmatprep.subr.bf16.mxu0 0
    %3442 = vmatpush1.bf16.msra.mxu0 0
    %3443 = vmatprep.subr.bf16.mxu0 0
    %3444 = vmatpush1.bf16.msra.mxu0 0
    %3445 = vmatprep.subr.bf16.mxu0 0
    %3446 = vmatpush1.bf16.msra.mxu0 0
    %3447 = vmatprep.subr.bf16.mxu0 0
    %3448 = vmatpush1.bf16.msra.mxu0 0
    %3449 = vmatprep.subr.bf16.mxu0 0
    %3450 = vmatpush1.bf16.msra.mxu0 0
    %3451 = vmatprep.subr.bf16.mxu0 0
    %3452 = vmatpush1.bf16.msra.mxu0 0
    %3453 = vmatprep.subr.bf16.mxu0 0
    %3454 = vmatpush1.bf16.msra.mxu0 0
    %3455 = vmatprep.subr.bf16.mxu0 0
    %3456 = vmatpush1.bf16.msra.mxu0 0
    %3457 = vmatprep.mubr.bf16.mxu0 0
    %3458 = vmatmul.mubr.bf16.gmra.mrb[0].mxu0 %v3414
    %v3459 = vpop.f32.mrb[0].mxu0
    %v3460 = vadd.f32 0.0, %v3459
    %v3461 = vpop.f32.mrb[0].mxu0
    %v3462 = vpop.f32.mrb[0].mxu0
    %v3463 = vadd.f32 0.0, %v3462
    %v3464 = vpop.f32.mrb[0].mxu0
    %3465 = vmatprep.mubr.bf16.mxu0 0
    %3466 = vmatmul.mubr.bf16.gmra.mrb[0].mxu0 %v3417
    %v3467 = vpop.f32.mrb[0].mxu0
    %v3468 = vadd.f32 0.0, %v3467
    %v3469 = vpop.f32.mrb[0].mxu0
    %v3470 = vpop.f32.mrb[0].mxu0
    %v3471 = vadd.f32 0.0, %v3470
    %v3472 = vpop.f32.mrb[0].mxu0
    %3473 = vmatprep.mubr.bf16.mxu0 0
    %3474 = vmatmul.mubr.bf16.gmra.mrb[0].mxu0 %v3420
    %v3475 = vpop.f32.mrb[0].mxu0
    %v3476 = vadd.f32 0.0, %v3475
    %v3477 = vpop.f32.mrb[0].mxu0
    %v3478 = vpop.f32.mrb[0].mxu0
    %v3479 = vadd.f32 0.0, %v3478
    %v3480 = vpop.f32.mrb[0].mxu0
    %3481 = vmatprep.mubr.bf16.mxu0 0
    %3482 = vmatmul.mubr.bf16.gmra.mrb[0].mxu0 %v3423
    %v3483 = vpop.f32.mrb[0].mxu0
    %v3484 = vadd.f32 0.0, %v3483
    %v3485 = vpop.f32.mrb[0].mxu0
    %v3486 = vpop.f32.mrb[0].mxu0
    %v3487 = vadd.f32 0.0, %v3486
    %v3488 = vpop.f32.mrb[0].mxu0
    %3489 = vdwg.mxu0
    %3490 = vrot.lane.b32.xlu0 %v2553, 64
    %v3491 = vpop.permute.xlu0 %3490
    %3492 = vrot.lane.b32.xlu0 %v2554, 64
    %v3493 = vpop.permute.xlu0 %3492
    %3494 = vrot.lane.b32.xlu0 %v2555, 64
    %v3495 = vpop.permute.xlu0 %3494
    %3496 = vrot.lane.b32.xlu0 %v2556, 64
    %v3497 = vpop.permute.xlu0 %3496
    %v3503 = vsel %vm866, %v3389, 0
    %v3506 = vsel %vm866, %v3390, 0
    %v3509 = vsel %vm866, %v3391, 0
    %v3512 = vsel %vm866, %v3392, 0
    %3514 = vmatprep.subr.bf16.mxu0 0
    %3515 = vmatpush1.bf16.msra.mxu0 %v3491
    %3516 = vmatprep.subr.bf16.mxu0 0
    %3517 = vmatpush1.bf16.msra.mxu0 %v3493
    %3518 = vmatprep.subr.bf16.mxu0 0
    %3519 = vmatpush1.bf16.msra.mxu0 %v3495
    %3520 = vmatprep.subr.bf16.mxu0 0
    %3521 = vmatpush1.bf16.msra.mxu0 %v3497
    %3522 = vmatprep.subr.bf16.mxu0 0
    %3523 = vmatpush1.bf16.msra.mxu0 0
    %3524 = vmatprep.subr.bf16.mxu0 0
    %3525 = vmatpush1.bf16.msra.mxu0 0
    %3526 = vmatprep.subr.bf16.mxu0 0
    %3527 = vmatpush1.bf16.msra.mxu0 0
    %3528 = vmatprep.subr.bf16.mxu0 0
    %3529 = vmatpush1.bf16.msra.mxu0 0
    %3530 = vmatprep.subr.bf16.mxu0 0
    %3531 = vmatpush1.bf16.msra.mxu0 0
    %3532 = vmatprep.subr.bf16.mxu0 0
    %3533 = vmatpush1.bf16.msra.mxu0 0
    %3534 = vmatprep.subr.bf16.mxu0 0
    %3535 = vmatpush1.bf16.msra.mxu0 0
    %3536 = vmatprep.subr.bf16.mxu0 0
    %3537 = vmatpush1.bf16.msra.mxu0 0
    %3538 = vmatprep.subr.bf16.mxu0 0
    %3539 = vmatpush1.bf16.msra.mxu0 0
    %3540 = vmatprep.subr.bf16.mxu0 0
    %3541 = vmatpush1.bf16.msra.mxu0 0
    %3542 = vmatprep.subr.bf16.mxu0 0
    %3543 = vmatpush1.bf16.msra.mxu0 0
    %3544 = vmatprep.subr.bf16.mxu0 0
    %3545 = vmatpush1.bf16.msra.mxu0 0
    %3546 = vmatprep.mubr.bf16.mxu0 0
    %3547 = vmatmul.mubr.bf16.gmra.mrb[0].mxu0 %v3503
    %v3548 = vpop.f32.mrb[0].mxu0
    %v3549 = vadd.f32 0.0, %v3548
    %v3550 = vpop.f32.mrb[0].mxu0
    %v3551 = vpop.f32.mrb[0].mxu0
    %v3552 = vadd.f32 0.0, %v3551
    %v3553 = vpop.f32.mrb[0].mxu0
    %3554 = vmatprep.mubr.bf16.mxu0 0
    %3555 = vmatmul.mubr.bf16.gmra.mrb[0].mxu0 %v3506
    %v3556 = vpop.f32.mrb[0].mxu0
    %v3557 = vadd.f32 0.0, %v3556
    %v3558 = vpop.f32.mrb[0].mxu0
    %v3559 = vpop.f32.mrb[0].mxu0
    %v3560 = vadd.f32 0.0, %v3559
    %v3561 = vpop.f32.mrb[0].mxu0
    %3562 = vmatprep.mubr.bf16.mxu0 0
    %3563 = vmatmul.mubr.bf16.gmra.mrb[0].mxu0 %v3509
    %v3564 = vpop.f32.mrb[0].mxu0
    %v3565 = vadd.f32 0.0, %v3564
    %v3566 = vpop.f32.mrb[0].mxu0
    %v3567 = vpop.f32.mrb[0].mxu0
    %v3568 = vadd.f32 0.0, %v3567
    %v3569 = vpop.f32.mrb[0].mxu0
    %3570 = vmatprep.mubr.bf16.mxu0 0
    %3571 = vmatmul.mubr.bf16.gmra.mrb[0].mxu0 %v3512
    %v3572 = vpop.f32.mrb[0].mxu0
    %v3573 = vadd.f32 0.0, %v3572
    %v3574 = vpop.f32.mrb[0].mxu0
    %v3575 = vpop.f32.mrb[0].mxu0
    %v3576 = vadd.f32 0.0, %v3575
    %v3577 = vpop.f32.mrb[0].mxu0
    %3578 = vdwg.mxu0
    %3579 = vrot.lane.b32.xlu0 %v2557, 64
    %v3580 = vpop.permute.xlu0 %3579
    %3581 = vrot.lane.b32.xlu0 %v2558, 64
    %v3582 = vpop.permute.xlu0 %3581
    %3583 = vrot.lane.b32.xlu0 %v2559, 64
    %v3584 = vpop.permute.xlu0 %3583
    %3585 = vrot.lane.b32.xlu0 %v2560, 64
    %v3586 = vpop.permute.xlu0 %3585
    %v3592 = vsel %vm866, %v3393, 0
    %v3595 = vsel %vm866, %v3394, 0
    %v3598 = vsel %vm866, %v3395, 0
    %v3601 = vsel %vm866, %v3396, 0
    %3603 = vmatprep.subr.bf16.mxu0 0
    %3604 = vmatpush1.bf16.msra.mxu0 %v3580
    %3605 = vmatprep.subr.bf16.mxu0 0
    %3606 = vmatpush1.bf16.msra.mxu0 %v3582
    %3607 = vmatprep.subr.bf16.mxu0 0
    %3608 = vmatpush1.bf16.msra.mxu0 %v3584
    %3609 = vmatprep.subr.bf16.mxu0 0
    %3610 = vmatpush1.bf16.msra.mxu0 %v3586
    %3611 = vmatprep.subr.bf16.mxu0 0
    %3612 = vmatpush1.bf16.msra.mxu0 0
    %3613 = vmatprep.subr.bf16.mxu0 0
    %3614 = vmatpush1.bf16.msra.mxu0 0
    %3615 = vmatprep.subr.bf16.mxu0 0
    %3616 = vmatpush1.bf16.msra.mxu0 0
    %3617 = vmatprep.subr.bf16.mxu0 0
    %3618 = vmatpush1.bf16.msra.mxu0 0
    %3619 = vmatprep.subr.bf16.mxu0 0
    %3620 = vmatpush1.bf16.msra.mxu0 0
    %3621 = vmatprep.subr.bf16.mxu0 0
    %3622 = vmatpush1.bf16.msra.mxu0 0
    %3623 = vmatprep.subr.bf16.mxu0 0
    %3624 = vmatpush1.bf16.msra.mxu0 0
    %3625 = vmatprep.subr.bf16.mxu0 0
    %3626 = vmatpush1.bf16.msra.mxu0 0
    %3627 = vmatprep.subr.bf16.mxu0 0
    %3628 = vmatpush1.bf16.msra.mxu0 0
    %3629 = vmatprep.subr.bf16.mxu0 0
    %3630 = vmatpush1.bf16.msra.mxu0 0
    %3631 = vmatprep.subr.bf16.mxu0 0
    %3632 = vmatpush1.bf16.msra.mxu0 0
    %3633 = vmatprep.subr.bf16.mxu0 0
    %3634 = vmatpush1.bf16.msra.mxu0 0
    %3635 = vmatprep.mubr.bf16.mxu0 0
    %3636 = vmatmul.mubr.bf16.gmra.mrb[0].mxu0 %v3592
    %v3637 = vpop.f32.mrb[0].mxu0
    %v3638 = vadd.f32 0.0, %v3637
    %v3639 = vpop.f32.mrb[0].mxu0
    %v3640 = vpop.f32.mrb[0].mxu0
    %v3641 = vadd.f32 0.0, %v3640
    %v3642 = vpop.f32.mrb[0].mxu0
    %3643 = vmatprep.mubr.bf16.mxu0 0
    %3644 = vmatmul.mubr.bf16.gmra.mrb[0].mxu0 %v3595
    %v3645 = vpop.f32.mrb[0].mxu0
    %v3646 = vadd.f32 0.0, %v3645
    %v3647 = vpop.f32.mrb[0].mxu0
    %v3648 = vpop.f32.mrb[0].mxu0
    %v3649 = vadd.f32 0.0, %v3648
    %v3650 = vpop.f32.mrb[0].mxu0
    %3651 = vmatprep.mubr.bf16.mxu0 0
    %3652 = vmatmul.mubr.bf16.gmra.mrb[0].mxu0 %v3598
    %v3653 = vpop.f32.mrb[0].mxu0
    %v3654 = vadd.f32 0.0, %v3653
    %v3655 = vpop.f32.mrb[0].mxu0
    %v3656 = vpop.f32.mrb[0].mxu0
    %v3657 = vadd.f32 0.0, %v3656
    %v3658 = vpop.f32.mrb[0].mxu0
    %3659 = vmatprep.mubr.bf16.mxu0 0
    %3660 = vmatmul.mubr.bf16.gmra.mrb[0].mxu0 %v3601
    %v3661 = vpop.f32.mrb[0].mxu0
    %v3662 = vadd.f32 0.0, %v3661
    %v3663 = vpop.f32.mrb[0].mxu0
    %v3664 = vpop.f32.mrb[0].mxu0
    %v3665 = vadd.f32 0.0, %v3664
    %v3666 = vpop.f32.mrb[0].mxu0
    %3667 = vdwg.mxu0
    %3668 = vrot.lane.b32.xlu0 %v2561, 64
    %v3669 = vpop.permute.xlu0 %3668
    %3670 = vrot.lane.b32.xlu0 %v2562, 64
    %v3671 = vpop.permute.xlu0 %3670
    %3672 = vrot.lane.b32.xlu0 %v2563, 64
    %v3673 = vpop.permute.xlu0 %3672
    %3674 = vrot.lane.b32.xlu0 %v2564, 64
    %v3675 = vpop.permute.xlu0 %3674
    %v3681 = vsel %vm866, %v3397, 0
    %v3684 = vsel %vm866, %v3398, 0
    %v3687 = vsel %vm866, %v3399, 0
    %v3690 = vsel %vm866, %v3400, 0
    %3692 = vmatprep.subr.bf16.mxu0 0
    %3693 = vmatpush1.bf16.msra.mxu0 %v3669
    %3694 = vmatprep.subr.bf16.mxu0 0
    %3695 = vmatpush1.bf16.msra.mxu0 %v3671
    %3696 = vmatprep.subr.bf16.mxu0 0
    %3697 = vmatpush1.bf16.msra.mxu0 %v3673
    %3698 = vmatprep.subr.bf16.mxu0 0
    %3699 = vmatpush1.bf16.msra.mxu0 %v3675
    %3700 = vmatprep.subr.bf16.mxu0 0
    %3701 = vmatpush1.bf16.msra.mxu0 0
    %3702 = vmatprep.subr.bf16.mxu0 0
    %3703 = vmatpush1.bf16.msra.mxu0 0
    %3704 = vmatprep.subr.bf16.mxu0 0
    %3705 = vmatpush1.bf16.msra.mxu0 0
    %3706 = vmatprep.subr.bf16.mxu0 0
    %3707 = vmatpush1.bf16.msra.mxu0 0
    %3708 = vmatprep.subr.bf16.mxu0 0
    %3709 = vmatpush1.bf16.msra.mxu0 0
    %3710 = vmatprep.subr.bf16.mxu0 0
    %3711 = vmatpush1.bf16.msra.mxu0 0
    %3712 = vmatprep.subr.bf16.mxu0 0
    %3713 = vmatpush1.bf16.msra.mxu0 0
    %3714 = vmatprep.subr.bf16.mxu0 0
    %3715 = vmatpush1.bf16.msra.mxu0 0
    %3716 = vmatprep.subr.bf16.mxu0 0
    %3717 = vmatpush1.bf16.msra.mxu0 0
    %3718 = vmatprep.subr.bf16.mxu0 0
    %3719 = vmatpush1.bf16.msra.mxu0 0
    %3720 = vmatprep.subr.bf16.mxu0 0
    %3721 = vmatpush1.bf16.msra.mxu0 0
    %3722 = vmatprep.subr.bf16.mxu0 0
    %3723 = vmatpush1.bf16.msra.mxu0 0
    %3724 = vmatprep.mubr.bf16.mxu0 0
    %3725 = vmatmul.mubr.bf16.gmra.mrb[0].mxu0 %v3681
    %v3726 = vpop.f32.mrb[0].mxu0
    %v3727 = vadd.f32 0.0, %v3726
    %v3728 = vpop.f32.mrb[0].mxu0
    %v3729 = vpop.f32.mrb[0].mxu0
    %v3730 = vadd.f32 0.0, %v3729
    %v3731 = vpop.f32.mrb[0].mxu0
    %3732 = vmatprep.mubr.bf16.mxu0 0
    %3733 = vmatmul.mubr.bf16.gmra.mrb[0].mxu0 %v3684
    %v3734 = vpop.f32.mrb[0].mxu0
    %v3735 = vadd.f32 0.0, %v3734
    %v3736 = vpop.f32.mrb[0].mxu0
    %v3737 = vpop.f32.mrb[0].mxu0
    %v3738 = vadd.f32 0.0, %v3737
    %v3739 = vpop.f32.mrb[0].mxu0
    %3740 = vmatprep.mubr.bf16.mxu0 0
    %3741 = vmatmul.mubr.bf16.gmra.mrb[0].mxu0 %v3687
    %v3742 = vpop.f32.mrb[0].mxu0
    %v3743 = vadd.f32 0.0, %v3742
    %v3744 = vpop.f32.mrb[0].mxu0
    %v3745 = vpop.f32.mrb[0].mxu0
    %v3746 = vadd.f32 0.0, %v3745
    %v3747 = vpop.f32.mrb[0].mxu0
    %3748 = vmatprep.mubr.bf16.mxu0 0
    %3749 = vmatmul.mubr.bf16.gmra.mrb[0].mxu0 %v3690
    %v3750 = vpop.f32.mrb[0].mxu0
    %v3751 = vadd.f32 0.0, %v3750
    %v3752 = vpop.f32.mrb[0].mxu0
    %v3753 = vpop.f32.mrb[0].mxu0
    %v3754 = vadd.f32 0.0, %v3753
    %v3755 = vpop.f32.mrb[0].mxu0
    %3756 = vdwg.mxu0
    %3765 = vrot.lane.b32.xlu0 %v3549, 8
    %v3766 = vpop.permute.xlu0 %3765
    %3767 = vrot.lane.b32.xlu0 %v3552, 8
    %v3768 = vpop.permute.xlu0 %3767
    %3769 = vrot.lane.b32.xlu0 %v3557, 8
    %v3770 = vpop.permute.xlu0 %3769
    %3771 = vrot.lane.b32.xlu0 %v3560, 8
    %v3772 = vpop.permute.xlu0 %3771
    %3773 = vrot.lane.b32.xlu0 %v3565, 8
    %v3774 = vpop.permute.xlu0 %3773
    %3775 = vrot.lane.b32.xlu0 %v3568, 8
    %v3776 = vpop.permute.xlu0 %3775
    %3777 = vrot.lane.b32.xlu0 %v3573, 8
    %v3778 = vpop.permute.xlu0 %3777
    %3779 = vrot.lane.b32.xlu0 %v3576, 8
    %v3780 = vpop.permute.xlu0 %3779
    %3797 = vrot.lane.b32.xlu0 %v3638, 16
    %v3798 = vpop.permute.xlu0 %3797
    %3799 = vrot.lane.b32.xlu0 %v3641, 16
    %v3800 = vpop.permute.xlu0 %3799
    %3801 = vrot.lane.b32.xlu0 %v3646, 16
    %v3802 = vpop.permute.xlu0 %3801
    %3803 = vrot.lane.b32.xlu0 %v3649, 16
    %v3804 = vpop.permute.xlu0 %3803
    %3805 = vrot.lane.b32.xlu0 %v3654, 16
    %v3806 = vpop.permute.xlu0 %3805
    %3807 = vrot.lane.b32.xlu0 %v3657, 16
    %v3808 = vpop.permute.xlu0 %3807
    %3809 = vrot.lane.b32.xlu0 %v3662, 16
    %v3810 = vpop.permute.xlu0 %3809
    %3811 = vrot.lane.b32.xlu0 %v3665, 16
    %v3812 = vpop.permute.xlu0 %3811
    %3829 = vrot.lane.b32.xlu0 %v3727, 24
    %v3830 = vpop.permute.xlu0 %3829
    %3831 = vrot.lane.b32.xlu0 %v3730, 24
    %v3832 = vpop.permute.xlu0 %3831
    %3833 = vrot.lane.b32.xlu0 %v3735, 24
    %v3834 = vpop.permute.xlu0 %3833
    %3835 = vrot.lane.b32.xlu0 %v3738, 24
    %v3836 = vpop.permute.xlu0 %3835
    %3837 = vrot.lane.b32.xlu0 %v3743, 24
    %v3838 = vpop.permute.xlu0 %3837
    %3839 = vrot.lane.b32.xlu0 %v3746, 24
    %v3840 = vpop.permute.xlu0 %3839
    %3841 = vrot.lane.b32.xlu0 %v3751, 24
    %v3842 = vpop.permute.xlu0 %3841
    %3843 = vrot.lane.b32.xlu0 %v3754, 24
    %v3844 = vpop.permute.xlu0 %3843
    %v3853 = vsel %vm409, %v3460, %v3766
    %v3854 = vsel %vm409, %v3463, %v3768
    %v3855 = vsel %vm409, %v3468, %v3770
    %v3856 = vsel %vm409, %v3471, %v3772
    %v3857 = vsel %vm409, %v3476, %v3774
    %v3858 = vsel %vm409, %v3479, %v3776
    %v3859 = vsel %vm409, %v3484, %v3778
    %v3860 = vsel %vm409, %v3487, %v3780
    %v3861 = vsel %vm1695, %v3853, %v3798
    %v3862 = vsel %vm1695, %v3854, %v3800
    %v3863 = vsel %vm1695, %v3855, %v3802
    %v3864 = vsel %vm1695, %v3856, %v3804
    %v3865 = vsel %vm1695, %v3857, %v3806
    %v3866 = vsel %vm1695, %v3858, %v3808
    %v3867 = vsel %vm1695, %v3859, %v3810
    %v3868 = vsel %vm1695, %v3860, %v3812
    %v3869 = vsel %vm1704, %v3861, %v3830
    %v3870 = vsel %vm1704, %v3862, %v3832
    %v3871 = vsel %vm1704, %v3863, %v3834
    %v3872 = vsel %vm1704, %v3864, %v3836
    %v3873 = vsel %vm1704, %v3865, %v3838
    %v3874 = vsel %vm1704, %v3866, %v3840
    %v3875 = vsel %vm1704, %v3867, %v3842
    %v3876 = vsel %vm1704, %v3868, %v3844
    %s3877 = scalar_lea.vmem %s5, 16
    %v3878 = vld [vmem:[%s3877] sm:$0xf]
    %v3879 = vld [vmem:[%s3877 + $0x4] sm:$0xf]
    %v3880 = vld [vmem:[%s3877 + $0x8] sm:$0xf]
    %v3881 = vld [vmem:[%s3877 + $0xc] sm:$0xf]
    %v3882 = vpack.c.bf16 %v3870, %v3869
    %v3883 = vpack.c.bf16 %v3872, %v3871
    %v3884 = vpack.c.bf16 %v3874, %v3873
    %v3885 = vpack.c.bf16 %v3876, %v3875
    %v3890 = vunpack.c.l.b16 %v3878
    %v3891 = vunpack.c.l.b16 %v3879
    %v3892 = vunpack.c.l.b16 %v3880
    %v3893 = vunpack.c.l.b16 %v3881
    %v3894 = vpack.c.b16 %v3891, %v3890
    %v3895 = vpack.c.b16 %v3893, %v3892
    %v3899 = vsel %vm70, %v3882, 0
    %v3902 = vsel %vm70, %v3883, 0
    %v3905 = vsel %vm70, %v3884, 0
    %v3908 = vsel %vm70, %v3885, 0
    %3910 = vmatprep.subr.bf16.mxu0 0
    %3911 = vmatpush1.bf16.msra.mxu0 %v3894
    %3912 = vmatprep.subr.bf16.mxu0 0
    %3913 = vmatpush1.bf16.msra.mxu0 %v3895
    %3914 = vmatprep.subr.bf16.mxu0 0
    %3915 = vmatpush1.bf16.msra.mxu0 0
    %3916 = vmatprep.subr.bf16.mxu0 0
    %3917 = vmatpush1.bf16.msra.mxu0 0
    %3918 = vmatprep.subr.bf16.mxu0 0
    %3919 = vmatpush1.bf16.msra.mxu0 0
    %3920 = vmatprep.subr.bf16.mxu0 0
    %3921 = vmatpush1.bf16.msra.mxu0 0
    %3922 = vmatprep.subr.bf16.mxu0 0
    %3923 = vmatpush1.bf16.msra.mxu0 0
    %3924 = vmatprep.subr.bf16.mxu0 0
    %3925 = vmatpush1.bf16.msra.mxu0 0
    %3926 = vmatprep.subr.bf16.mxu0 0
    %3927 = vmatpush1.bf16.msra.mxu0 0
    %3928 = vmatprep.subr.bf16.mxu0 0
    %3929 = vmatpush1.bf16.msra.mxu0 0
    %3930 = vmatprep.subr.bf16.mxu0 0
    %3931 = vmatpush1.bf16.msra.mxu0 0
    %3932 = vmatprep.subr.bf16.mxu0 0
    %3933 = vmatpush1.bf16.msra.mxu0 0
    %3934 = vmatprep.subr.bf16.mxu0 0
    %3935 = vmatpush1.bf16.msra.mxu0 0
    %3936 = vmatprep.subr.bf16.mxu0 0
    %3937 = vmatpush1.bf16.msra.mxu0 0
    %3938 = vmatprep.subr.bf16.mxu0 0
    %3939 = vmatpush1.bf16.msra.mxu0 0
    %3940 = vmatprep.subr.bf16.mxu0 0
    %3941 = vmatpush1.bf16.msra.mxu0 0
    %3942 = vmatprep.mubr.bf16.mxu0 0
    %3943 = vmatmul.mubr.bf16.gmra.mrb[0].mxu0 %v3899
    %v3944 = vpop.f32.mrb[0].mxu0
    %v3945 = vadd.f32 0.0, %v3944
    %v3946 = vpop.f32.mrb[0].mxu0
    %v3947 = vpop.f32.mrb[0].mxu0
    %v3948 = vadd.f32 0.0, %v3947
    %v3949 = vpop.f32.mrb[0].mxu0
    %3950 = vmatprep.mubr.bf16.mxu0 0
    %3951 = vmatmul.mubr.bf16.gmra.mrb[0].mxu0 %v3902
    %v3952 = vpop.f32.mrb[0].mxu0
    %v3953 = vadd.f32 0.0, %v3952
    %v3954 = vpop.f32.mrb[0].mxu0
    %v3955 = vpop.f32.mrb[0].mxu0
    %v3956 = vadd.f32 0.0, %v3955
    %v3957 = vpop.f32.mrb[0].mxu0
    %3958 = vmatprep.mubr.bf16.mxu0 0
    %3959 = vmatmul.mubr.bf16.gmra.mrb[0].mxu0 %v3905
    %v3960 = vpop.f32.mrb[0].mxu0
    %v3961 = vadd.f32 0.0, %v3960
    %v3962 = vpop.f32.mrb[0].mxu0
    %v3963 = vpop.f32.mrb[0].mxu0
    %v3964 = vadd.f32 0.0, %v3963
    %v3965 = vpop.f32.mrb[0].mxu0
    %3966 = vmatprep.mubr.bf16.mxu0 0
    %3967 = vmatmul.mubr.bf16.gmra.mrb[0].mxu0 %v3908
    %v3968 = vpop.f32.mrb[0].mxu0
    %v3969 = vadd.f32 0.0, %v3968
    %v3970 = vpop.f32.mrb[0].mxu0
    %v3971 = vpop.f32.mrb[0].mxu0
    %v3972 = vadd.f32 0.0, %v3971
    %v3973 = vpop.f32.mrb[0].mxu0
    %3974 = vdwg.mxu0
    %v3975 = vadd.f32 %v2227, %v3945
    %v3976 = vadd.f32 %v2228, %v3948
    %v3977 = vadd.f32 %v2229, %v3953
    %v3978 = vadd.f32 %v2230, %v3956
    %v3979 = vadd.f32 %v2231, %v3961
    %v3980 = vadd.f32 %v2232, %v3964
    %v3981 = vadd.f32 %v2233, %v3969
    %v3982 = vadd.f32 %v2234, %v3972
    %s3983 = scalar_lea.vmem %s6, 1
    %v3984 = vld [vmem:[%s3983] sm:$0x1]
    %v3986 = vlaneseq
    %v3987 = vshrl.u32 %v3986, 7
    %v3988 = vsub.s32 0, %v3987
    %v3989 = vrot.slane %v3984, %v3988
    %v3991 = vadd.f32 %v3975, %v3989
    %v3992 = vadd.f32 %v3976, %v3989
    %v3993 = vadd.f32 %v3977, %v3989
    %v3994 = vadd.f32 %v3978, %v3989
    %v3995 = vadd.f32 %v3979, %v3989
    %v3996 = vadd.f32 %v3980, %v3989
    %v3997 = vadd.f32 %v3981, %v3989
    %v3998 = vadd.f32 %v3982, %v3989
    %s3999 = scalar_lea.vmem %s7, 1
    %v4000 = vld [vmem:[%s3999] sm:$0x1]
    %s4001 = scalar_lea.vmem %s8, 1
    %v4002 = vld [vmem:[%s4001] sm:$0x1]
    %v4003 = vsel %vm70, %v3991, 0.0
    %4004 = vadd.xlane.f32.xlu0 %v4003
    %v4005 = vpop.xlane.xlu0 %4004
    %v4006 = vsel %vm70, %v3992, 0.0
    %4007 = vadd.xlane.f32.xlu0 %v4006
    %v4008 = vpop.xlane.xlu0 %4007
    %v4009 = vsel %vm70, %v3993, 0.0
    %4010 = vadd.xlane.f32.xlu0 %v4009
    %v4011 = vpop.xlane.xlu0 %4010
    %v4012 = vsel %vm70, %v3994, 0.0
    %4013 = vadd.xlane.f32.xlu0 %v4012
    %v4014 = vpop.xlane.xlu0 %4013
    %v4015 = vsel %vm70, %v3995, 0.0
    %4016 = vadd.xlane.f32.xlu0 %v4015
    %v4017 = vpop.xlane.xlu0 %4016
    %v4018 = vsel %vm70, %v3996, 0.0
    %4019 = vadd.xlane.f32.xlu0 %v4018
    %v4020 = vpop.xlane.xlu0 %4019
    %v4021 = vsel %vm70, %v3997, 0.0
    %4022 = vadd.xlane.f32.xlu0 %v4021
    %v4023 = vpop.xlane.xlu0 %4022
    %v4024 = vsel %vm70, %v3998, 0.0
    %4025 = vadd.xlane.f32.xlu0 %v4024
    %v4026 = vpop.xlane.xlu0 %4025
    %v4027 = vmul.f32 %v4005, %v95
    %v4028 = vmul.f32 %v4008, %v95
    %v4029 = vmul.f32 %v4011, %v95
    %v4030 = vmul.f32 %v4014, %v95
    %v4031 = vmul.f32 %v4017, %v95
    %v4032 = vmul.f32 %v4020, %v95
    %v4033 = vmul.f32 %v4023, %v95
    %v4034 = vmul.f32 %v4026, %v95
    %v4035 = vsub.f32 %v3991, %v4027
    %v4036 = vsub.f32 %v3992, %v4028
    %v4037 = vsub.f32 %v3993, %v4029
    %v4038 = vsub.f32 %v3994, %v4030
    %v4039 = vsub.f32 %v3995, %v4031
    %v4040 = vsub.f32 %v3996, %v4032
    %v4041 = vsub.f32 %v3997, %v4033
    %v4042 = vsub.f32 %v3998, %v4034
    %v4043 = vmul.f32 %v4035, %v4035
    %v4044 = vmul.f32 %v4036, %v4036
    %v4045 = vmul.f32 %v4037, %v4037
    %v4046 = vmul.f32 %v4038, %v4038
    %v4047 = vmul.f32 %v4039, %v4039
    %v4048 = vmul.f32 %v4040, %v4040
    %v4049 = vmul.f32 %v4041, %v4041
    %v4050 = vmul.f32 %v4042, %v4042
    %v4051 = vsel %vm70, %v4043, 0.0
    %4052 = vadd.xlane.f32.xlu0 %v4051
    %v4053 = vpop.xlane.xlu0 %4052
    %v4054 = vsel %vm70, %v4044, 0.0
    %4055 = vadd.xlane.f32.xlu0 %v4054
    %v4056 = vpop.xlane.xlu0 %4055
    %v4057 = vsel %vm70, %v4045, 0.0
    %4058 = vadd.xlane.f32.xlu0 %v4057
    %v4059 = vpop.xlane.xlu0 %4058
    %v4060 = vsel %vm70, %v4046, 0.0
    %4061 = vadd.xlane.f32.xlu0 %v4060
    %v4062 = vpop.xlane.xlu0 %4061
    %v4063 = vsel %vm70, %v4047, 0.0
    %4064 = vadd.xlane.f32.xlu0 %v4063
    %v4065 = vpop.xlane.xlu0 %4064
    %v4066 = vsel %vm70, %v4048, 0.0
    %4067 = vadd.xlane.f32.xlu0 %v4066
    %v4068 = vpop.xlane.xlu0 %4067
    %v4069 = vsel %vm70, %v4049, 0.0
    %4070 = vadd.xlane.f32.xlu0 %v4069
    %v4071 = vpop.xlane.xlu0 %4070
    %v4072 = vsel %vm70, %v4050, 0.0
    %4073 = vadd.xlane.f32.xlu0 %v4072
    %v4074 = vpop.xlane.xlu0 %4073
    %v4075 = vmul.f32 %v4053, %v95
    %v4076 = vmul.f32 %v4056, %v95
    %v4077 = vmul.f32 %v4059, %v95
    %v4078 = vmul.f32 %v4062, %v95
    %v4079 = vmul.f32 %v4065, %v95
    %v4080 = vmul.f32 %v4068, %v95
    %v4081 = vmul.f32 %v4071, %v95
    %v4082 = vmul.f32 %v4074, %v95
    %v4083 = vadd.f32 %v4075, 1e-05
    %v4084 = vadd.f32 %v4076, 1e-05
    %v4085 = vadd.f32 %v4077, 1e-05
    %v4086 = vadd.f32 %v4078, 1e-05
    %v4087 = vadd.f32 %v4079, 1e-05
    %v4088 = vadd.f32 %v4080, 1e-05
    %v4089 = vadd.f32 %v4081, 1e-05
    %v4090 = vadd.f32 %v4082, 1e-05
    %v4091 = vrsqrt.pop %v4083
    %v4092 = vrsqrt.pop %v4084
    %v4093 = vrsqrt.pop %v4085
    %v4094 = vrsqrt.pop %v4086
    %v4095 = vrsqrt.pop %v4087
    %v4096 = vrsqrt.pop %v4088
    %v4097 = vrsqrt.pop %v4089
    %v4098 = vrsqrt.pop %v4090
    %v4099 = vmul.f32 %v4035, %v4091
    %v4100 = vmul.f32 %v4036, %v4092
    %v4101 = vmul.f32 %v4037, %v4093
    %v4102 = vmul.f32 %v4038, %v4094
    %v4103 = vmul.f32 %v4039, %v4095
    %v4104 = vmul.f32 %v4040, %v4096
    %v4105 = vmul.f32 %v4041, %v4097
    %v4106 = vmul.f32 %v4042, %v4098
    %v4108 = vlaneseq
    %v4109 = vshrl.u32 %v4108, 7
    %v4110 = vsub.s32 0, %v4109
    %v4111 = vrot.slane %v4000, %v4110
    %v4113 = vmul.f32 %v4099, %v4111
    %v4114 = vmul.f32 %v4100, %v4111
    %v4115 = vmul.f32 %v4101, %v4111
    %v4116 = vmul.f32 %v4102, %v4111
    %v4117 = vmul.f32 %v4103, %v4111
    %v4118 = vmul.f32 %v4104, %v4111
    %v4119 = vmul.f32 %v4105, %v4111
    %v4120 = vmul.f32 %v4106, %v4111
    %v4122 = vlaneseq
    %v4123 = vshrl.u32 %v4122, 7
    %v4124 = vsub.s32 0, %v4123
    %v4125 = vrot.slane %v4002, %v4124
    %v4127 = vadd.f32 %v4113, %v4125
    %v4128 = vadd.f32 %v4114, %v4125
    %v4129 = vadd.f32 %v4115, %v4125
    %v4130 = vadd.f32 %v4116, %v4125
    %v4131 = vadd.f32 %v4117, %v4125
    %v4132 = vadd.f32 %v4118, %v4125
    %v4133 = vadd.f32 %v4119, %v4125
    %v4134 = vadd.f32 %v4120, %v4125
    %s4135 = scalar_lea.vmem %s9, 16
    %v4136 = vld [vmem:[%s4135] sm:$0xf]
    %v4137 = vld [vmem:[%s4135 + $0x4] sm:$0xf]
    %v4138 = vld [vmem:[%s4135 + $0x8] sm:$0xf]
    %v4139 = vld [vmem:[%s4135 + $0xc] sm:$0xf]
    %v4140 = vpack.c.bf16 %v4128, %v4127
    %v4141 = vpack.c.bf16 %v4130, %v4129
    %v4142 = vpack.c.bf16 %v4132, %v4131
    %v4143 = vpack.c.bf16 %v4134, %v4133
    %s4144 = scalar_lea.vmem %s10, 1
    %v4145 = vld [vmem:[%s4144] sm:$0x1]
    %v4147 = vlaneseq
    %v4148 = vshrl.u32 %v4147, 7
    %v4149 = vsub.s32 0, %v4148
    %v4150 = vrot.slane %v4145, %v4149
    %v4156 = vunpack.c.l.b16 %v4136
    %v4157 = vunpack.c.l.b16 %v4137
    %v4158 = vunpack.c.l.b16 %v4138
    %v4159 = vunpack.c.l.b16 %v4139
    %v4160 = vpack.c.b16 %v4157, %v4156
    %v4161 = vpack.c.b16 %v4159, %v4158
    %v4165 = vsel %vm70, %v4140, 0
    %v4168 = vsel %vm70, %v4141, 0
    %v4171 = vsel %vm70, %v4142, 0
    %v4174 = vsel %vm70, %v4143, 0
    %4176 = vmatprep.subr.bf16.mxu0 0
    %4177 = vmatpush1.bf16.msra.mxu0 %v4160
    %4178 = vmatprep.subr.bf16.mxu0 0
    %4179 = vmatpush1.bf16.msra.mxu0 %v4161
    %4180 = vmatprep.subr.bf16.mxu0 0
    %4181 = vmatpush1.bf16.msra.mxu0 0
    %4182 = vmatprep.subr.bf16.mxu0 0
    %4183 = vmatpush1.bf16.msra.mxu0 0
    %4184 = vmatprep.subr.bf16.mxu0 0
    %4185 = vmatpush1.bf16.msra.mxu0 0
    %4186 = vmatprep.subr.bf16.mxu0 0
    %4187 = vmatpush1.bf16.msra.mxu0 0
    %4188 = vmatprep.subr.bf16.mxu0 0
    %4189 = vmatpush1.bf16.msra.mxu0 0
    %4190 = vmatprep.subr.bf16.mxu0 0
    %4191 = vmatpush1.bf16.msra.mxu0 0
    %4192 = vmatprep.subr.bf16.mxu0 0
    %4193 = vmatpush1.bf16.msra.mxu0 0
    %4194 = vmatprep.subr.bf16.mxu0 0
    %4195 = vmatpush1.bf16.msra.mxu0 0
    %4196 = vmatprep.subr.bf16.mxu0 0
    %4197 = vmatpush1.bf16.msra.mxu0 0
    %4198 = vmatprep.subr.bf16.mxu0 0
    %4199 = vmatpush1.bf16.msra.mxu0 0
    %4200 = vmatprep.subr.bf16.mxu0 0
    %4201 = vmatpush1.bf16.msra.mxu0 0
    %4202 = vmatprep.subr.bf16.mxu0 0
    %4203 = vmatpush1.bf16.msra.mxu0 0
    %4204 = vmatprep.subr.bf16.mxu0 0
    %4205 = vmatpush1.bf16.msra.mxu0 0
    %4206 = vmatprep.subr.bf16.mxu0 0
    %4207 = vmatpush1.bf16.msra.mxu0 0
    %4208 = vmatprep.mubr.bf16.mxu0 0
    %4209 = vmatmul.mubr.bf16.gmra.mrb[0].mxu0 %v4165
    %v4210 = vpop.f32.mrb[0].mxu0
    %v4211 = vadd.f32 %v4150, %v4210
    %v4212 = vpop.f32.mrb[0].mxu0
    %v4213 = vpop.f32.mrb[0].mxu0
    %v4214 = vadd.f32 %v4150, %v4213
    %v4215 = vpop.f32.mrb[0].mxu0
    %4216 = vmatprep.mubr.bf16.mxu0 0
    %4217 = vmatmul.mubr.bf16.gmra.mrb[0].mxu0 %v4168
    %v4218 = vpop.f32.mrb[0].mxu0
    %v4219 = vadd.f32 %v4150, %v4218
    %v4220 = vpop.f32.mrb[0].mxu0
    %v4221 = vpop.f32.mrb[0].mxu0
    %v4222 = vadd.f32 %v4150, %v4221
    %v4223 = vpop.f32.mrb[0].mxu0
    %4224 = vmatprep.mubr.bf16.mxu0 0
    %4225 = vmatmul.mubr.bf16.gmra.mrb[0].mxu0 %v4171
    %v4226 = vpop.f32.mrb[0].mxu0
    %v4227 = vadd.f32 %v4150, %v4226
    %v4228 = vpop.f32.mrb[0].mxu0
    %v4229 = vpop.f32.mrb[0].mxu0
    %v4230 = vadd.f32 %v4150, %v4229
    %v4231 = vpop.f32.mrb[0].mxu0
    %4232 = vmatprep.mubr.bf16.mxu0 0
    %4233 = vmatmul.mubr.bf16.gmra.mrb[0].mxu0 %v4174
    %v4234 = vpop.f32.mrb[0].mxu0
    %v4235 = vadd.f32 %v4150, %v4234
    %v4236 = vpop.f32.mrb[0].mxu0
    %v4237 = vpop.f32.mrb[0].mxu0
    %v4238 = vadd.f32 %v4150, %v4237
    %v4239 = vpop.f32.mrb[0].mxu0
    %4240 = vdwg.mxu0
    %v4241 = vmax.f32 %v4211, 0.0
    %v4242 = vmax.f32 %v4214, 0.0
    %v4243 = vmax.f32 %v4219, 0.0
    %v4244 = vmax.f32 %v4222, 0.0
    %v4245 = vmax.f32 %v4227, 0.0
    %v4246 = vmax.f32 %v4230, 0.0
    %v4247 = vmax.f32 %v4235, 0.0
    %v4248 = vmax.f32 %v4238, 0.0
    %s4249 = scalar_lea.vmem %s11, 64
    %v4250 = vld [vmem:[%s4249] sm:$0xf]
    %v4251 = vld [vmem:[%s4249 + $0x4] sm:$0xf]
    %v4252 = vld [vmem:[%s4249 + $0x8] sm:$0xf]
    %v4253 = vld [vmem:[%s4249 + $0xc] sm:$0xf]
    %v4254 = vld [vmem:[%s4249 + $0x10] sm:$0xf]
    %v4255 = vld [vmem:[%s4249 + $0x14] sm:$0xf]
    %v4256 = vld [vmem:[%s4249 + $0x18] sm:$0xf]
    %v4257 = vld [vmem:[%s4249 + $0x1c] sm:$0xf]
    %v4258 = vld [vmem:[%s4249 + $0x20] sm:$0xf]
    %v4259 = vld [vmem:[%s4249 + $0x24] sm:$0xf]
    %v4260 = vld [vmem:[%s4249 + $0x28] sm:$0xf]
    %v4261 = vld [vmem:[%s4249 + $0x2c] sm:$0xf]
    %v4262 = vld [vmem:[%s4249 + $0x30] sm:$0xf]
    %v4263 = vld [vmem:[%s4249 + $0x34] sm:$0xf]
    %v4264 = vld [vmem:[%s4249 + $0x38] sm:$0xf]
    %v4265 = vld [vmem:[%s4249 + $0x3c] sm:$0xf]
    %v4266 = vpack.c.bf16 %v4242, %v4241
    %v4267 = vpack.c.bf16 %v4244, %v4243
    %v4268 = vpack.c.bf16 %v4246, %v4245
    %v4269 = vpack.c.bf16 %v4248, %v4247
    %v4286 = vunpack.c.l.b16 %v4250
    %v4287 = vunpack.c.l.b16 %v4251
    %v4288 = vunpack.c.l.b16 %v4252
    %v4289 = vunpack.c.l.b16 %v4253
    %v4290 = vunpack.c.l.b16 %v4254
    %v4291 = vunpack.c.l.b16 %v4255
    %v4292 = vunpack.c.l.b16 %v4256
    %v4293 = vunpack.c.l.b16 %v4257
    %v4294 = vunpack.c.l.b16 %v4258
    %v4295 = vunpack.c.l.b16 %v4259
    %v4296 = vunpack.c.l.b16 %v4260
    %v4297 = vunpack.c.l.b16 %v4261
    %v4298 = vunpack.c.l.b16 %v4262
    %v4299 = vunpack.c.l.b16 %v4263
    %v4300 = vunpack.c.l.b16 %v4264
    %v4301 = vunpack.c.l.b16 %v4265
    %v4302 = vpack.c.b16 %v4287, %v4286
    %v4303 = vpack.c.b16 %v4289, %v4288
    %v4304 = vpack.c.b16 %v4291, %v4290
    %v4305 = vpack.c.b16 %v4293, %v4292
    %v4306 = vpack.c.b16 %v4295, %v4294
    %v4307 = vpack.c.b16 %v4297, %v4296
    %v4308 = vpack.c.b16 %v4299, %v4298
    %v4309 = vpack.c.b16 %v4301, %v4300
    %4318 = vmatprep.subr.bf16.mxu0 0
    %4319 = vmatpush1.bf16.msra.mxu0 %v4302
    %4320 = vmatprep.subr.bf16.mxu0 0
    %4321 = vmatpush1.bf16.msra.mxu0 %v4303
    %4322 = vmatprep.subr.bf16.mxu0 0
    %4323 = vmatpush1.bf16.msra.mxu0 %v4304
    %4324 = vmatprep.subr.bf16.mxu0 0
    %4325 = vmatpush1.bf16.msra.mxu0 %v4305
    %4326 = vmatprep.subr.bf16.mxu0 0
    %4327 = vmatpush1.bf16.msra.mxu0 %v4306
    %4328 = vmatprep.subr.bf16.mxu0 0
    %4329 = vmatpush1.bf16.msra.mxu0 %v4307
    %4330 = vmatprep.subr.bf16.mxu0 0
    %4331 = vmatpush1.bf16.msra.mxu0 %v4308
    %4332 = vmatprep.subr.bf16.mxu0 0
    %4333 = vmatpush1.bf16.msra.mxu0 %v4309
    %4334 = vmatprep.subr.bf16.mxu0 0
    %4335 = vmatpush1.bf16.msra.mxu0 0
    %4336 = vmatprep.subr.bf16.mxu0 0
    %4337 = vmatpush1.bf16.msra.mxu0 0
    %4338 = vmatprep.subr.bf16.mxu0 0
    %4339 = vmatpush1.bf16.msra.mxu0 0
    %4340 = vmatprep.subr.bf16.mxu0 0
    %4341 = vmatpush1.bf16.msra.mxu0 0
    %4342 = vmatprep.subr.bf16.mxu0 0
    %4343 = vmatpush1.bf16.msra.mxu0 0
    %4344 = vmatprep.subr.bf16.mxu0 0
    %4345 = vmatpush1.bf16.msra.mxu0 0
    %4346 = vmatprep.subr.bf16.mxu0 0
    %4347 = vmatpush1.bf16.msra.mxu0 0
    %4348 = vmatprep.subr.bf16.mxu0 0
    %4349 = vmatpush1.bf16.msra.mxu0 0
    %4350 = vmatprep.mubr.bf16.mxu0 0
    %4351 = vmatmul.mubr.bf16.gmra.mrb[0].mxu0 %v4266
    %v4352 = vpop.f32.mrb[0].mxu0
    %v4353 = vadd.f32 0.0, %v4352
    %v4354 = vpop.f32.mrb[0].mxu0
    %v4355 = vpop.f32.mrb[0].mxu0
    %v4356 = vadd.f32 0.0, %v4355
    %v4357 = vpop.f32.mrb[0].mxu0
    %4358 = vmatprep.mubr.bf16.mxu0 0
    %4359 = vmatmul.mubr.bf16.gmra.mrb[0].mxu0 %v4267
    %v4360 = vpop.f32.mrb[0].mxu0
    %v4361 = vadd.f32 0.0, %v4360
    %v4362 = vpop.f32.mrb[0].mxu0
    %v4363 = vpop.f32.mrb[0].mxu0
    %v4364 = vadd.f32 0.0, %v4363
    %v4365 = vpop.f32.mrb[0].mxu0
    %4366 = vmatprep.mubr.bf16.mxu0 0
    %4367 = vmatmul.mubr.bf16.gmra.mrb[0].mxu0 %v4268
    %v4368 = vpop.f32.mrb[0].mxu0
    %v4369 = vadd.f32 0.0, %v4368
    %v4370 = vpop.f32.mrb[0].mxu0
    %v4371 = vpop.f32.mrb[0].mxu0
    %v4372 = vadd.f32 0.0, %v4371
    %v4373 = vpop.f32.mrb[0].mxu0
    %4374 = vmatprep.mubr.bf16.mxu0 0
    %4375 = vmatmul.mubr.bf16.gmra.mrb[0].mxu0 %v4269
    %v4376 = vpop.f32.mrb[0].mxu0
    %v4377 = vadd.f32 0.0, %v4376
    %v4378 = vpop.f32.mrb[0].mxu0
    %v4379 = vpop.f32.mrb[0].mxu0
    %v4380 = vadd.f32 0.0, %v4379
    %v4381 = vpop.f32.mrb[0].mxu0
    %4382 = vdwg.mxu0
    %v4383 = vadd.f32 %v3991, %v4353
    %v4384 = vadd.f32 %v3992, %v4356
    %v4385 = vadd.f32 %v3993, %v4361
    %v4386 = vadd.f32 %v3994, %v4364
    %v4387 = vadd.f32 %v3995, %v4369
    %v4388 = vadd.f32 %v3996, %v4372
    %v4389 = vadd.f32 %v3997, %v4377
    %v4390 = vadd.f32 %v3998, %v4380
    %s4391 = scalar_lea.vmem %s12, 1
    %v4392 = vld [vmem:[%s4391] sm:$0x1]
    %v4394 = vlaneseq
    %v4395 = vshrl.u32 %v4394, 7
    %v4396 = vsub.s32 0, %v4395
    %v4397 = vrot.slane %v4392, %v4396
    %v4399 = vadd.f32 %v4383, %v4397
    %v4400 = vadd.f32 %v4384, %v4397
    %v4401 = vadd.f32 %v4385, %v4397
    %v4402 = vadd.f32 %v4386, %v4397
    %v4403 = vadd.f32 %v4387, %v4397
    %v4404 = vadd.f32 %v4388, %v4397
    %v4405 = vadd.f32 %v4389, %v4397
    %v4406 = vadd.f32 %v4390, %v4397
    %s4407 = scalar_lea.vmem %s2, 2
    %v4408 = vld [vmem:[%s4407] sm:$0x1]
    %s4409 = scalar_lea.vmem %s3, 2
    %v4410 = vld [vmem:[%s4409] sm:$0x1]
    %v4411 = vsel %vm70, %v4399, 0.0
    %4412 = vadd.xlane.f32.xlu0 %v4411
    %v4413 = vpop.xlane.xlu0 %4412
    %v4414 = vsel %vm70, %v4400, 0.0
    %4415 = vadd.xlane.f32.xlu0 %v4414
    %v4416 = vpop.xlane.xlu0 %4415
    %v4417 = vsel %vm70, %v4401, 0.0
    %4418 = vadd.xlane.f32.xlu0 %v4417
    %v4419 = vpop.xlane.xlu0 %4418
    %v4420 = vsel %vm70, %v4402, 0.0
    %4421 = vadd.xlane.f32.xlu0 %v4420
    %v4422 = vpop.xlane.xlu0 %4421
    %v4423 = vsel %vm70, %v4403, 0.0
    %4424 = vadd.xlane.f32.xlu0 %v4423
    %v4425 = vpop.xlane.xlu0 %4424
    %v4426 = vsel %vm70, %v4404, 0.0
    %4427 = vadd.xlane.f32.xlu0 %v4426
    %v4428 = vpop.xlane.xlu0 %4427
    %v4429 = vsel %vm70, %v4405, 0.0
    %4430 = vadd.xlane.f32.xlu0 %v4429
    %v4431 = vpop.xlane.xlu0 %4430
    %v4432 = vsel %vm70, %v4406, 0.0
    %4433 = vadd.xlane.f32.xlu0 %v4432
    %v4434 = vpop.xlane.xlu0 %4433
    %v4435 = vmul.f32 %v4413, %v95
    %v4436 = vmul.f32 %v4416, %v95
    %v4437 = vmul.f32 %v4419, %v95
    %v4438 = vmul.f32 %v4422, %v95
    %v4439 = vmul.f32 %v4425, %v95
    %v4440 = vmul.f32 %v4428, %v95
    %v4441 = vmul.f32 %v4431, %v95
    %v4442 = vmul.f32 %v4434, %v95
    %v4443 = vsub.f32 %v4399, %v4435
    %v4444 = vsub.f32 %v4400, %v4436
    %v4445 = vsub.f32 %v4401, %v4437
    %v4446 = vsub.f32 %v4402, %v4438
    %v4447 = vsub.f32 %v4403, %v4439
    %v4448 = vsub.f32 %v4404, %v4440
    %v4449 = vsub.f32 %v4405, %v4441
    %v4450 = vsub.f32 %v4406, %v4442
    %v4451 = vmul.f32 %v4443, %v4443
    %v4452 = vmul.f32 %v4444, %v4444
    %v4453 = vmul.f32 %v4445, %v4445
    %v4454 = vmul.f32 %v4446, %v4446
    %v4455 = vmul.f32 %v4447, %v4447
    %v4456 = vmul.f32 %v4448, %v4448
    %v4457 = vmul.f32 %v4449, %v4449
    %v4458 = vmul.f32 %v4450, %v4450
    %v4459 = vsel %vm70, %v4451, 0.0
    %4460 = vadd.xlane.f32.xlu0 %v4459
    %v4461 = vpop.xlane.xlu0 %4460
    %v4462 = vsel %vm70, %v4452, 0.0
    %4463 = vadd.xlane.f32.xlu0 %v4462
    %v4464 = vpop.xlane.xlu0 %4463
    %v4465 = vsel %vm70, %v4453, 0.0
    %4466 = vadd.xlane.f32.xlu0 %v4465
    %v4467 = vpop.xlane.xlu0 %4466
    %v4468 = vsel %vm70, %v4454, 0.0
    %4469 = vadd.xlane.f32.xlu0 %v4468
    %v4470 = vpop.xlane.xlu0 %4469
    %v4471 = vsel %vm70, %v4455, 0.0
    %4472 = vadd.xlane.f32.xlu0 %v4471
    %v4473 = vpop.xlane.xlu0 %4472
    %v4474 = vsel %vm70, %v4456, 0.0
    %4475 = vadd.xlane.f32.xlu0 %v4474
    %v4476 = vpop.xlane.xlu0 %4475
    %v4477 = vsel %vm70, %v4457, 0.0
    %4478 = vadd.xlane.f32.xlu0 %v4477
    %v4479 = vpop.xlane.xlu0 %4478
    %v4480 = vsel %vm70, %v4458, 0.0
    %4481 = vadd.xlane.f32.xlu0 %v4480
    %v4482 = vpop.xlane.xlu0 %4481
    %v4483 = vmul.f32 %v4461, %v95
    %v4484 = vmul.f32 %v4464, %v95
    %v4485 = vmul.f32 %v4467, %v95
    %v4486 = vmul.f32 %v4470, %v95
    %v4487 = vmul.f32 %v4473, %v95
    %v4488 = vmul.f32 %v4476, %v95
    %v4489 = vmul.f32 %v4479, %v95
    %v4490 = vmul.f32 %v4482, %v95
    %v4491 = vadd.f32 %v4483, 1e-05
    %v4492 = vadd.f32 %v4484, 1e-05
    %v4493 = vadd.f32 %v4485, 1e-05
    %v4494 = vadd.f32 %v4486, 1e-05
    %v4495 = vadd.f32 %v4487, 1e-05
    %v4496 = vadd.f32 %v4488, 1e-05
    %v4497 = vadd.f32 %v4489, 1e-05
    %v4498 = vadd.f32 %v4490, 1e-05
    %v4499 = vrsqrt.pop %v4491
    %v4500 = vrsqrt.pop %v4492
    %v4501 = vrsqrt.pop %v4493
    %v4502 = vrsqrt.pop %v4494
    %v4503 = vrsqrt.pop %v4495
    %v4504 = vrsqrt.pop %v4496
    %v4505 = vrsqrt.pop %v4497
    %v4506 = vrsqrt.pop %v4498
    %v4507 = vmul.f32 %v4443, %v4499
    %v4508 = vmul.f32 %v4444, %v4500
    %v4509 = vmul.f32 %v4445, %v4501
    %v4510 = vmul.f32 %v4446, %v4502
    %v4511 = vmul.f32 %v4447, %v4503
    %v4512 = vmul.f32 %v4448, %v4504
    %v4513 = vmul.f32 %v4449, %v4505
    %v4514 = vmul.f32 %v4450, %v4506
    %v4516 = vlaneseq
    %v4517 = vshrl.u32 %v4516, 7
    %v4518 = vsub.s32 0, %v4517
    %v4519 = vrot.slane %v4408, %v4518
    %v4521 = vmul.f32 %v4507, %v4519
    %v4522 = vmul.f32 %v4508, %v4519
    %v4523 = vmul.f32 %v4509, %v4519
    %v4524 = vmul.f32 %v4510, %v4519
    %v4525 = vmul.f32 %v4511, %v4519
    %v4526 = vmul.f32 %v4512, %v4519
    %v4527 = vmul.f32 %v4513, %v4519
    %v4528 = vmul.f32 %v4514, %v4519
    %v4530 = vlaneseq
    %v4531 = vshrl.u32 %v4530, 7
    %v4532 = vsub.s32 0, %v4531
    %v4533 = vrot.slane %v4410, %v4532
    %v4535 = vadd.f32 %v4521, %v4533
    %v4536 = vadd.f32 %v4522, %v4533
    %v4537 = vadd.f32 %v4523, %v4533
    %v4538 = vadd.f32 %v4524, %v4533
    %v4539 = vadd.f32 %v4525, %v4533
    %v4540 = vadd.f32 %v4526, %v4533
    %v4541 = vadd.f32 %v4527, %v4533
    %v4542 = vadd.f32 %v4528, %v4533
    %s4543 = scalar_lea.vmem %s4, 32
    %v4544 = vld [vmem:[%s4543] sm:$0xf]
    %v4545 = vld [vmem:[%s4543 + $0x4] sm:$0xf]
    %v4546 = vld [vmem:[%s4543 + $0x8] sm:$0xf]
    %v4547 = vld [vmem:[%s4543 + $0xc] sm:$0xf]
    %v4548 = vpack.c.bf16 %v4536, %v4535
    %v4549 = vpack.c.bf16 %v4538, %v4537
    %v4550 = vpack.c.bf16 %v4540, %v4539
    %v4551 = vpack.c.bf16 %v4542, %v4541
    %v4556 = vunpack.c.l.b16 %v4544
    %v4557 = vunpack.c.l.b16 %v4545
    %v4558 = vunpack.c.l.b16 %v4546
    %v4559 = vunpack.c.l.b16 %v4547
    %v4560 = vpack.c.b16 %v4557, %v4556
    %v4561 = vpack.c.b16 %v4559, %v4558
    %v4565 = vsel %vm70, %v4548, 0
    %v4568 = vsel %vm70, %v4549, 0
    %v4571 = vsel %vm70, %v4550, 0
    %v4574 = vsel %vm70, %v4551, 0
    %4576 = vmatprep.subr.bf16.mxu0 0
    %4577 = vmatpush1.bf16.msra.mxu0 %v4560
    %4578 = vmatprep.subr.bf16.mxu0 0
    %4579 = vmatpush1.bf16.msra.mxu0 %v4561
    %4580 = vmatprep.subr.bf16.mxu0 0
    %4581 = vmatpush1.bf16.msra.mxu0 0
    %4582 = vmatprep.subr.bf16.mxu0 0
    %4583 = vmatpush1.bf16.msra.mxu0 0
    %4584 = vmatprep.subr.bf16.mxu0 0
    %4585 = vmatpush1.bf16.msra.mxu0 0
    %4586 = vmatprep.subr.bf16.mxu0 0
    %4587 = vmatpush1.bf16.msra.mxu0 0
    %4588 = vmatprep.subr.bf16.mxu0 0
    %4589 = vmatpush1.bf16.msra.mxu0 0
    %4590 = vmatprep.subr.bf16.mxu0 0
    %4591 = vmatpush1.bf16.msra.mxu0 0
    %4592 = vmatprep.subr.bf16.mxu0 0
    %4593 = vmatpush1.bf16.msra.mxu0 0
    %4594 = vmatprep.subr.bf16.mxu0 0
    %4595 = vmatpush1.bf16.msra.mxu0 0
    %4596 = vmatprep.subr.bf16.mxu0 0
    %4597 = vmatpush1.bf16.msra.mxu0 0
    %4598 = vmatprep.subr.bf16.mxu0 0
    %4599 = vmatpush1.bf16.msra.mxu0 0
    %4600 = vmatprep.subr.bf16.mxu0 0
    %4601 = vmatpush1.bf16.msra.mxu0 0
    %4602 = vmatprep.subr.bf16.mxu0 0
    %4603 = vmatpush1.bf16.msra.mxu0 0
    %4604 = vmatprep.subr.bf16.mxu0 0
    %4605 = vmatpush1.bf16.msra.mxu0 0
    %4606 = vmatprep.subr.bf16.mxu0 0
    %4607 = vmatpush1.bf16.msra.mxu0 0
    %4608 = vmatprep.mubr.bf16.mxu0 0
    %4609 = vmatmul.mubr.bf16.gmra.mrb[0].mxu0 %v4565
    %v4610 = vpop.f32.mrb[0].mxu0
    %v4611 = vadd.f32 0.0, %v4610
    %v4612 = vpop.f32.mrb[0].mxu0
    %v4613 = vpop.f32.mrb[0].mxu0
    %v4614 = vadd.f32 0.0, %v4613
    %v4615 = vpop.f32.mrb[0].mxu0
    %4616 = vmatprep.mubr.bf16.mxu0 0
    %4617 = vmatmul.mubr.bf16.gmra.mrb[0].mxu0 %v4568
    %v4618 = vpop.f32.mrb[0].mxu0
    %v4619 = vadd.f32 0.0, %v4618
    %v4620 = vpop.f32.mrb[0].mxu0
    %v4621 = vpop.f32.mrb[0].mxu0
    %v4622 = vadd.f32 0.0, %v4621
    %v4623 = vpop.f32.mrb[0].mxu0
    %4624 = vmatprep.mubr.bf16.mxu0 0
    %4625 = vmatmul.mubr.bf16.gmra.mrb[0].mxu0 %v4571
    %v4626 = vpop.f32.mrb[0].mxu0
    %v4627 = vadd.f32 0.0, %v4626
    %v4628 = vpop.f32.mrb[0].mxu0
    %v4629 = vpop.f32.mrb[0].mxu0
    %v4630 = vadd.f32 0.0, %v4629
    %v4631 = vpop.f32.mrb[0].mxu0
    %4632 = vmatprep.mubr.bf16.mxu0 0
    %4633 = vmatmul.mubr.bf16.gmra.mrb[0].mxu0 %v4574
    %v4634 = vpop.f32.mrb[0].mxu0
    %v4635 = vadd.f32 0.0, %v4634
    %v4636 = vpop.f32.mrb[0].mxu0
    %v4637 = vpop.f32.mrb[0].mxu0
    %v4638 = vadd.f32 0.0, %v4637
    %v4639 = vpop.f32.mrb[0].mxu0
    %4640 = vdwg.mxu0
    %4649 = vrot.lane.b32.xlu0 %v4611, 120
    %v4650 = vpop.permute.xlu0 %4649
    %4651 = vrot.lane.b32.xlu0 %v4614, 120
    %v4652 = vpop.permute.xlu0 %4651
    %4653 = vrot.lane.b32.xlu0 %v4619, 120
    %v4654 = vpop.permute.xlu0 %4653
    %4655 = vrot.lane.b32.xlu0 %v4622, 120
    %v4656 = vpop.permute.xlu0 %4655
    %4657 = vrot.lane.b32.xlu0 %v4627, 120
    %v4658 = vpop.permute.xlu0 %4657
    %4659 = vrot.lane.b32.xlu0 %v4630, 120
    %v4660 = vpop.permute.xlu0 %4659
    %4661 = vrot.lane.b32.xlu0 %v4635, 120
    %v4662 = vpop.permute.xlu0 %4661
    %4663 = vrot.lane.b32.xlu0 %v4638, 120
    %v4664 = vpop.permute.xlu0 %4663
    %4673 = vrot.lane.b32.xlu0 %v4611, 112
    %v4674 = vpop.permute.xlu0 %4673
    %4675 = vrot.lane.b32.xlu0 %v4614, 112
    %v4676 = vpop.permute.xlu0 %4675
    %4677 = vrot.lane.b32.xlu0 %v4619, 112
    %v4678 = vpop.permute.xlu0 %4677
    %4679 = vrot.lane.b32.xlu0 %v4622, 112
    %v4680 = vpop.permute.xlu0 %4679
    %4681 = vrot.lane.b32.xlu0 %v4627, 112
    %v4682 = vpop.permute.xlu0 %4681
    %4683 = vrot.lane.b32.xlu0 %v4630, 112
    %v4684 = vpop.permute.xlu0 %4683
    %4685 = vrot.lane.b32.xlu0 %v4635, 112
    %v4686 = vpop.permute.xlu0 %4685
    %4687 = vrot.lane.b32.xlu0 %v4638, 112
    %v4688 = vpop.permute.xlu0 %4687
    %4697 = vrot.lane.b32.xlu0 %v4611, 104
    %v4698 = vpop.permute.xlu0 %4697
    %4699 = vrot.lane.b32.xlu0 %v4614, 104
    %v4700 = vpop.permute.xlu0 %4699
    %4701 = vrot.lane.b32.xlu0 %v4619, 104
    %v4702 = vpop.permute.xlu0 %4701
    %4703 = vrot.lane.b32.xlu0 %v4622, 104
    %v4704 = vpop.permute.xlu0 %4703
    %4705 = vrot.lane.b32.xlu0 %v4627, 104
    %v4706 = vpop.permute.xlu0 %4705
    %4707 = vrot.lane.b32.xlu0 %v4630, 104
    %v4708 = vpop.permute.xlu0 %4707
    %4709 = vrot.lane.b32.xlu0 %v4635, 104
    %v4710 = vpop.permute.xlu0 %4709
    %4711 = vrot.lane.b32.xlu0 %v4638, 104
    %v4712 = vpop.permute.xlu0 %4711
    %v4721 = vpack.c.bf16 %v4614, %v4611
    %v4722 = vpack.c.bf16 %v4622, %v4619
    %v4723 = vpack.c.bf16 %v4630, %v4627
    %v4724 = vpack.c.bf16 %v4638, %v4635
    %v4725 = vpack.c.bf16 %v4652, %v4650
    %v4726 = vpack.c.bf16 %v4656, %v4654
    %v4727 = vpack.c.bf16 %v4660, %v4658
    %v4728 = vpack.c.bf16 %v4664, %v4662
    %v4729 = vpack.c.bf16 %v4676, %v4674
    %v4730 = vpack.c.bf16 %v4680, %v4678
    %v4731 = vpack.c.bf16 %v4684, %v4682
    %v4732 = vpack.c.bf16 %v4688, %v4686
    %v4733 = vpack.c.bf16 %v4700, %v4698
    %v4734 = vpack.c.bf16 %v4704, %v4702
    %v4735 = vpack.c.bf16 %v4708, %v4706
    %v4736 = vpack.c.bf16 %v4712, %v4710
    %4741 = vrot.lane.b32.xlu0 %v4721, 96
    %v4742 = vpop.permute.xlu0 %4741
    %4743 = vrot.lane.b32.xlu0 %v4722, 96
    %v4744 = vpop.permute.xlu0 %4743
    %4745 = vrot.lane.b32.xlu0 %v4723, 96
    %v4746 = vpop.permute.xlu0 %4745
    %4747 = vrot.lane.b32.xlu0 %v4724, 96
    %v4748 = vpop.permute.xlu0 %4747
    %v4750 = vsel %vm409, %v4721, 0
    %v4753 = vsel %vm409, %v4722, 0
    %v4756 = vsel %vm409, %v4723, 0
    %v4759 = vsel %vm409, %v4724, 0
    %v4762 = vsel %vm409, %v4742, 0
    %v4765 = vsel %vm409, %v4744, 0
    %v4768 = vsel %vm409, %v4746, 0
    %v4771 = vsel %vm409, %v4748, 0
    %4773 = vmatprep.subr.bf16.mxu0 0
    %4774 = vmatpush1.bf16.xpose.msra.mxu0 %v4762
    %4775 = vmatprep.subr.bf16.mxu0 0
    %4776 = vmatpush1.bf16.xpose.msra.mxu0 %v4765
    %4777 = vmatprep.subr.bf16.mxu0 0
    %4778 = vmatpush1.bf16.xpose.msra.mxu0 %v4768
    %4779 = vmatprep.subr.bf16.mxu0 0
    %4780 = vmatpush1.bf16.xpose.msra.mxu0 %v4771
    %4781 = vmatprep.subr.bf16.mxu0 0
    %4782 = vmatpush1.bf16.xpose.msra.mxu0 0
    %4783 = vmatprep.subr.bf16.mxu0 0
    %4784 = vmatpush1.bf16.xpose.msra.mxu0 0
    %4785 = vmatprep.subr.bf16.mxu0 0
    %4786 = vmatpush1.bf16.xpose.msra.mxu0 0
    %4787 = vmatprep.subr.bf16.mxu0 0
    %4788 = vmatpush1.bf16.xpose.msra.mxu0 0
    %4789 = vmatprep.subr.bf16.mxu0 0
    %4790 = vmatpush1.bf16.xpose.msra.mxu0 0
    %4791 = vmatprep.subr.bf16.mxu0 0
    %4792 = vmatpush1.bf16.xpose.msra.mxu0 0
    %4793 = vmatprep.subr.bf16.mxu0 0
    %4794 = vmatpush1.bf16.xpose.msra.mxu0 0
    %4795 = vmatprep.subr.bf16.mxu0 0
    %4796 = vmatpush1.bf16.xpose.msra.mxu0 0
    %4797 = vmatprep.subr.bf16.mxu0 0
    %4798 = vmatpush1.bf16.xpose.msra.mxu0 0
    %4799 = vmatprep.subr.bf16.mxu0 0
    %4800 = vmatpush1.bf16.xpose.msra.mxu0 0
    %4801 = vmatprep.subr.bf16.mxu0 0
    %4802 = vmatpush1.bf16.xpose.msra.mxu0 0
    %4803 = vmatprep.subr.bf16.mxu0 0
    %4804 = vmatpush1.bf16.xpose.msra.mxu0 0
    %4805 = vmatprep.mubr.bf16.mxu0 0
    %4806 = vmatmul.mubr.bf16.gmra.mrb[0].mxu0 %v4750
    %v4807 = vpop.f32.mrb[0].mxu0
    %v4808 = vadd.f32 0.0, %v4807
    %v4809 = vpop.f32.mrb[0].mxu0
    %v4810 = vpop.f32.mrb[0].mxu0
    %v4811 = vadd.f32 0.0, %v4810
    %v4812 = vpop.f32.mrb[0].mxu0
    %4813 = vmatprep.mubr.bf16.mxu0 0
    %4814 = vmatmul.mubr.bf16.gmra.mrb[0].mxu0 %v4753
    %v4815 = vpop.f32.mrb[0].mxu0
    %v4816 = vadd.f32 0.0, %v4815
    %v4817 = vpop.f32.mrb[0].mxu0
    %v4818 = vpop.f32.mrb[0].mxu0
    %v4819 = vadd.f32 0.0, %v4818
    %v4820 = vpop.f32.mrb[0].mxu0
    %4821 = vmatprep.mubr.bf16.mxu0 0
    %4822 = vmatmul.mubr.bf16.gmra.mrb[0].mxu0 %v4756
    %v4823 = vpop.f32.mrb[0].mxu0
    %v4824 = vadd.f32 0.0, %v4823
    %v4825 = vpop.f32.mrb[0].mxu0
    %v4826 = vpop.f32.mrb[0].mxu0
    %v4827 = vadd.f32 0.0, %v4826
    %v4828 = vpop.f32.mrb[0].mxu0
    %4829 = vmatprep.mubr.bf16.mxu0 0
    %4830 = vmatmul.mubr.bf16.gmra.mrb[0].mxu0 %v4759
    %v4831 = vpop.f32.mrb[0].mxu0
    %v4832 = vadd.f32 0.0, %v4831
    %v4833 = vpop.f32.mrb[0].mxu0
    %v4834 = vpop.f32.mrb[0].mxu0
    %v4835 = vadd.f32 0.0, %v4834
    %v4836 = vpop.f32.mrb[0].mxu0
    %4837 = vdwg.mxu0
    %4842 = vrot.lane.b32.xlu0 %v4725, 96
    %v4843 = vpop.permute.xlu0 %4842
    %4844 = vrot.lane.b32.xlu0 %v4726, 96
    %v4845 = vpop.permute.xlu0 %4844
    %4846 = vrot.lane.b32.xlu0 %v4727, 96
    %v4847 = vpop.permute.xlu0 %4846
    %4848 = vrot.lane.b32.xlu0 %v4728, 96
    %v4849 = vpop.permute.xlu0 %4848
    %v4851 = vsel %vm409, %v4725, 0
    %v4854 = vsel %vm409, %v4726, 0
    %v4857 = vsel %vm409, %v4727, 0
    %v4860 = vsel %vm409, %v4728, 0
    %v4863 = vsel %vm409, %v4843, 0
    %v4866 = vsel %vm409, %v4845, 0
    %v4869 = vsel %vm409, %v4847, 0
    %v4872 = vsel %vm409, %v4849, 0
    %4874 = vmatprep.subr.bf16.mxu0 0
    %4875 = vmatpush1.bf16.xpose.msra.mxu0 %v4863
    %4876 = vmatprep.subr.bf16.mxu0 0
    %4877 = vmatpush1.bf16.xpose.msra.mxu0 %v4866
    %4878 = vmatprep.subr.bf16.mxu0 0
    %4879 = vmatpush1.bf16.xpose.msra.mxu0 %v4869
    %4880 = vmatprep.subr.bf16.mxu0 0
    %4881 = vmatpush1.bf16.xpose.msra.mxu0 %v4872
    %4882 = vmatprep.subr.bf16.mxu0 0
    %4883 = vmatpush1.bf16.xpose.msra.mxu0 0
    %4884 = vmatprep.subr.bf16.mxu0 0
    %4885 = vmatpush1.bf16.xpose.msra.mxu0 0
    %4886 = vmatprep.subr.bf16.mxu0 0
    %4887 = vmatpush1.bf16.xpose.msra.mxu0 0
    %4888 = vmatprep.subr.bf16.mxu0 0
    %4889 = vmatpush1.bf16.xpose.msra.mxu0 0
    %4890 = vmatprep.subr.bf16.mxu0 0
    %4891 = vmatpush1.bf16.xpose.msra.mxu0 0
    %4892 = vmatprep.subr.bf16.mxu0 0
    %4893 = vmatpush1.bf16.xpose.msra.mxu0 0
    %4894 = vmatprep.subr.bf16.mxu0 0
    %4895 = vmatpush1.bf16.xpose.msra.mxu0 0
    %4896 = vmatprep.subr.bf16.mxu0 0
    %4897 = vmatpush1.bf16.xpose.msra.mxu0 0
    %4898 = vmatprep.subr.bf16.mxu0 0
    %4899 = vmatpush1.bf16.xpose.msra.mxu0 0
    %4900 = vmatprep.subr.bf16.mxu0 0
    %4901 = vmatpush1.bf16.xpose.msra.mxu0 0
    %4902 = vmatprep.subr.bf16.mxu0 0
    %4903 = vmatpush1.bf16.xpose.msra.mxu0 0
    %4904 = vmatprep.subr.bf16.mxu0 0
    %4905 = vmatpush1.bf16.xpose.msra.mxu0 0
    %4906 = vmatprep.mubr.bf16.mxu0 0
    %4907 = vmatmul.mubr.bf16.gmra.mrb[0].mxu0 %v4851
    %v4908 = vpop.f32.mrb[0].mxu0
    %v4909 = vadd.f32 0.0, %v4908
    %v4910 = vpop.f32.mrb[0].mxu0
    %v4911 = vpop.f32.mrb[0].mxu0
    %v4912 = vadd.f32 0.0, %v4911
    %v4913 = vpop.f32.mrb[0].mxu0
    %4914 = vmatprep.mubr.bf16.mxu0 0
    %4915 = vmatmul.mubr.bf16.gmra.mrb[0].mxu0 %v4854
    %v4916 = vpop.f32.mrb[0].mxu0
    %v4917 = vadd.f32 0.0, %v4916
    %v4918 = vpop.f32.mrb[0].mxu0
    %v4919 = vpop.f32.mrb[0].mxu0
    %v4920 = vadd.f32 0.0, %v4919
    %v4921 = vpop.f32.mrb[0].mxu0
    %4922 = vmatprep.mubr.bf16.mxu0 0
    %4923 = vmatmul.mubr.bf16.gmra.mrb[0].mxu0 %v4857
    %v4924 = vpop.f32.mrb[0].mxu0
    %v4925 = vadd.f32 0.0, %v4924
    %v4926 = vpop.f32.mrb[0].mxu0
    %v4927 = vpop.f32.mrb[0].mxu0
    %v4928 = vadd.f32 0.0, %v4927
    %v4929 = vpop.f32.mrb[0].mxu0
    %4930 = vmatprep.mubr.bf16.mxu0 0
    %4931 = vmatmul.mubr.bf16.gmra.mrb[0].mxu0 %v4860
    %v4932 = vpop.f32.mrb[0].mxu0
    %v4933 = vadd.f32 0.0, %v4932
    %v4934 = vpop.f32.mrb[0].mxu0
    %v4935 = vpop.f32.mrb[0].mxu0
    %v4936 = vadd.f32 0.0, %v4935
    %v4937 = vpop.f32.mrb[0].mxu0
    %4938 = vdwg.mxu0
    %4943 = vrot.lane.b32.xlu0 %v4729, 96
    %v4944 = vpop.permute.xlu0 %4943
    %4945 = vrot.lane.b32.xlu0 %v4730, 96
    %v4946 = vpop.permute.xlu0 %4945
    %4947 = vrot.lane.b32.xlu0 %v4731, 96
    %v4948 = vpop.permute.xlu0 %4947
    %4949 = vrot.lane.b32.xlu0 %v4732, 96
    %v4950 = vpop.permute.xlu0 %4949
    %v4952 = vsel %vm409, %v4729, 0
    %v4955 = vsel %vm409, %v4730, 0
    %v4958 = vsel %vm409, %v4731, 0
    %v4961 = vsel %vm409, %v4732, 0
    %v4964 = vsel %vm409, %v4944, 0
    %v4967 = vsel %vm409, %v4946, 0
    %v4970 = vsel %vm409, %v4948, 0
    %v4973 = vsel %vm409, %v4950, 0
    %4975 = vmatprep.subr.bf16.mxu0 0
    %4976 = vmatpush1.bf16.xpose.msra.mxu0 %v4964
    %4977 = vmatprep.subr.bf16.mxu0 0
    %4978 = vmatpush1.bf16.xpose.msra.mxu0 %v4967
    %4979 = vmatprep.subr.bf16.mxu0 0
    %4980 = vmatpush1.bf16.xpose.msra.mxu0 %v4970
    %4981 = vmatprep.subr.bf16.mxu0 0
    %4982 = vmatpush1.bf16.xpose.msra.mxu0 %v4973
    %4983 = vmatprep.subr.bf16.mxu0 0
    %4984 = vmatpush1.bf16.xpose.msra.mxu0 0
    %4985 = vmatprep.subr.bf16.mxu0 0
    %4986 = vmatpush1.bf16.xpose.msra.mxu0 0
    %4987 = vmatprep.subr.bf16.mxu0 0
    %4988 = vmatpush1.bf16.xpose.msra.mxu0 0
    %4989 = vmatprep.subr.bf16.mxu0 0
    %4990 = vmatpush1.bf16.xpose.msra.mxu0 0
    %4991 = vmatprep.subr.bf16.mxu0 0
    %4992 = vmatpush1.bf16.xpose.msra.mxu0 0
    %4993 = vmatprep.subr.bf16.mxu0 0
    %4994 = vmatpush1.bf16.xpose.msra.mxu0 0
    %4995 = vmatprep.subr.bf16.mxu0 0
    %4996 = vmatpush1.bf16.xpose.msra.mxu0 0
    %4997 = vmatprep.subr.bf16.mxu0 0
    %4998 = vmatpush1.bf16.xpose.msra.mxu0 0
    %4999 = vmatprep.subr.bf16.mxu0 0
    %5000 = vmatpush1.bf16.xpose.msra.mxu0 0
    %5001 = vmatprep.subr.bf16.mxu0 0
    %5002 = vmatpush1.bf16.xpose.msra.mxu0 0
    %5003 = vmatprep.subr.bf16.mxu0 0
    %5004 = vmatpush1.bf16.xpose.msra.mxu0 0
    %5005 = vmatprep.subr.bf16.mxu0 0
    %5006 = vmatpush1.bf16.xpose.msra.mxu0 0
    %5007 = vmatprep.mubr.bf16.mxu0 0
    %5008 = vmatmul.mubr.bf16.gmra.mrb[0].mxu0 %v4952
    %v5009 = vpop.f32.mrb[0].mxu0
    %v5010 = vadd.f32 0.0, %v5009
    %v5011 = vpop.f32.mrb[0].mxu0
    %v5012 = vpop.f32.mrb[0].mxu0
    %v5013 = vadd.f32 0.0, %v5012
    %v5014 = vpop.f32.mrb[0].mxu0
    %5015 = vmatprep.mubr.bf16.mxu0 0
    %5016 = vmatmul.mubr.bf16.gmra.mrb[0].mxu0 %v4955
    %v5017 = vpop.f32.mrb[0].mxu0
    %v5018 = vadd.f32 0.0, %v5017
    %v5019 = vpop.f32.mrb[0].mxu0
    %v5020 = vpop.f32.mrb[0].mxu0
    %v5021 = vadd.f32 0.0, %v5020
    %v5022 = vpop.f32.mrb[0].mxu0
    %5023 = vmatprep.mubr.bf16.mxu0 0
    %5024 = vmatmul.mubr.bf16.gmra.mrb[0].mxu0 %v4958
    %v5025 = vpop.f32.mrb[0].mxu0
    %v5026 = vadd.f32 0.0, %v5025
    %v5027 = vpop.f32.mrb[0].mxu0
    %v5028 = vpop.f32.mrb[0].mxu0
    %v5029 = vadd.f32 0.0, %v5028
    %v5030 = vpop.f32.mrb[0].mxu0
    %5031 = vmatprep.mubr.bf16.mxu0 0
    %5032 = vmatmul.mubr.bf16.gmra.mrb[0].mxu0 %v4961
    %v5033 = vpop.f32.mrb[0].mxu0
    %v5034 = vadd.f32 0.0, %v5033
    %v5035 = vpop.f32.mrb[0].mxu0
    %v5036 = vpop.f32.mrb[0].mxu0
    %v5037 = vadd.f32 0.0, %v5036
    %v5038 = vpop.f32.mrb[0].mxu0
    %5039 = vdwg.mxu0
    %5044 = vrot.lane.b32.xlu0 %v4733, 96
    %v5045 = vpop.permute.xlu0 %5044
    %5046 = vrot.lane.b32.xlu0 %v4734, 96
    %v5047 = vpop.permute.xlu0 %5046
    %5048 = vrot.lane.b32.xlu0 %v4735, 96
    %v5049 = vpop.permute.xlu0 %5048
    %5050 = vrot.lane.b32.xlu0 %v4736, 96
    %v5051 = vpop.permute.xlu0 %5050
    %v5053 = vsel %vm409, %v4733, 0
    %v5056 = vsel %vm409, %v4734, 0
    %v5059 = vsel %vm409, %v4735, 0
    %v5062 = vsel %vm409, %v4736, 0
    %v5065 = vsel %vm409, %v5045, 0
    %v5068 = vsel %vm409, %v5047, 0
    %v5071 = vsel %vm409, %v5049, 0
    %v5074 = vsel %vm409, %v5051, 0
    %5076 = vmatprep.subr.bf16.mxu0 0
    %5077 = vmatpush1.bf16.xpose.msra.mxu0 %v5065
    %5078 = vmatprep.subr.bf16.mxu0 0
    %5079 = vmatpush1.bf16.xpose.msra.mxu0 %v5068
    %5080 = vmatprep.subr.bf16.mxu0 0
    %5081 = vmatpush1.bf16.xpose.msra.mxu0 %v5071
    %5082 = vmatprep.subr.bf16.mxu0 0
    %5083 = vmatpush1.bf16.xpose.msra.mxu0 %v5074
    %5084 = vmatprep.subr.bf16.mxu0 0
    %5085 = vmatpush1.bf16.xpose.msra.mxu0 0
    %5086 = vmatprep.subr.bf16.mxu0 0
    %5087 = vmatpush1.bf16.xpose.msra.mxu0 0
    %5088 = vmatprep.subr.bf16.mxu0 0
    %5089 = vmatpush1.bf16.xpose.msra.mxu0 0
    %5090 = vmatprep.subr.bf16.mxu0 0
    %5091 = vmatpush1.bf16.xpose.msra.mxu0 0
    %5092 = vmatprep.subr.bf16.mxu0 0
    %5093 = vmatpush1.bf16.xpose.msra.mxu0 0
    %5094 = vmatprep.subr.bf16.mxu0 0
    %5095 = vmatpush1.bf16.xpose.msra.mxu0 0
    %5096 = vmatprep.subr.bf16.mxu0 0
    %5097 = vmatpush1.bf16.xpose.msra.mxu0 0
    %5098 = vmatprep.subr.bf16.mxu0 0
    %5099 = vmatpush1.bf16.xpose.msra.mxu0 0
    %5100 = vmatprep.subr.bf16.mxu0 0
    %5101 = vmatpush1.bf16.xpose.msra.mxu0 0
    %5102 = vmatprep.subr.bf16.mxu0 0
    %5103 = vmatpush1.bf16.xpose.msra.mxu0 0
    %5104 = vmatprep.subr.bf16.mxu0 0
    %5105 = vmatpush1.bf16.xpose.msra.mxu0 0
    %5106 = vmatprep.subr.bf16.mxu0 0
    %5107 = vmatpush1.bf16.xpose.msra.mxu0 0
    %5108 = vmatprep.mubr.bf16.mxu0 0
    %5109 = vmatmul.mubr.bf16.gmra.mrb[0].mxu0 %v5053
    %v5110 = vpop.f32.mrb[0].mxu0
    %v5111 = vadd.f32 0.0, %v5110
    %v5112 = vpop.f32.mrb[0].mxu0
    %v5113 = vpop.f32.mrb[0].mxu0
    %v5114 = vadd.f32 0.0, %v5113
    %v5115 = vpop.f32.mrb[0].mxu0
    %5116 = vmatprep.mubr.bf16.mxu0 0
    %5117 = vmatmul.mubr.bf16.gmra.mrb[0].mxu0 %v5056
    %v5118 = vpop.f32.mrb[0].mxu0
    %v5119 = vadd.f32 0.0, %v5118
    %v5120 = vpop.f32.mrb[0].mxu0
    %v5121 = vpop.f32.mrb[0].mxu0
    %v5122 = vadd.f32 0.0, %v5121
    %v5123 = vpop.f32.mrb[0].mxu0
    %5124 = vmatprep.mubr.bf16.mxu0 0
    %5125 = vmatmul.mubr.bf16.gmra.mrb[0].mxu0 %v5059
    %v5126 = vpop.f32.mrb[0].mxu0
    %v5127 = vadd.f32 0.0, %v5126
    %v5128 = vpop.f32.mrb[0].mxu0
    %v5129 = vpop.f32.mrb[0].mxu0
    %v5130 = vadd.f32 0.0, %v5129
    %v5131 = vpop.f32.mrb[0].mxu0
    %5132 = vmatprep.mubr.bf16.mxu0 0
    %5133 = vmatmul.mubr.bf16.gmra.mrb[0].mxu0 %v5062
    %v5134 = vpop.f32.mrb[0].mxu0
    %v5135 = vadd.f32 0.0, %v5134
    %v5136 = vpop.f32.mrb[0].mxu0
    %v5137 = vpop.f32.mrb[0].mxu0
    %v5138 = vadd.f32 0.0, %v5137
    %v5139 = vpop.f32.mrb[0].mxu0
    %5140 = vdwg.mxu0
    %v5141 = vmul.f32 %v4808, 0.17677669
    %v5142 = vmul.f32 %v4811, 0.17677669
    %v5143 = vmul.f32 %v4816, 0.17677669
    %v5144 = vmul.f32 %v4819, 0.17677669
    %v5145 = vmul.f32 %v4824, 0.17677669
    %v5146 = vmul.f32 %v4827, 0.17677669
    %v5147 = vmul.f32 %v4832, 0.17677669
    %v5148 = vmul.f32 %v4835, 0.17677669
    %v5149 = vmul.f32 %v4909, 0.17677669
    %v5150 = vmul.f32 %v4912, 0.17677669
    %v5151 = vmul.f32 %v4917, 0.17677669
    %v5152 = vmul.f32 %v4920, 0.17677669
    %v5153 = vmul.f32 %v4925, 0.17677669
    %v5154 = vmul.f32 %v4928, 0.17677669
    %v5155 = vmul.f32 %v4933, 0.17677669
    %v5156 = vmul.f32 %v4936, 0.17677669
    %v5157 = vmul.f32 %v5010, 0.17677669
    %v5158 = vmul.f32 %v5013, 0.17677669
    %v5159 = vmul.f32 %v5018, 0.17677669
    %v5160 = vmul.f32 %v5021, 0.17677669
    %v5161 = vmul.f32 %v5026, 0.17677669
    %v5162 = vmul.f32 %v5029, 0.17677669
    %v5163 = vmul.f32 %v5034, 0.17677669
    %v5164 = vmul.f32 %v5037, 0.17677669
    %v5165 = vmul.f32 %v5111, 0.17677669
    %v5166 = vmul.f32 %v5114, 0.17677669
    %v5167 = vmul.f32 %v5119, 0.17677669
    %v5168 = vmul.f32 %v5122, 0.17677669
    %v5169 = vmul.f32 %v5127, 0.17677669
    %v5170 = vmul.f32 %v5130, 0.17677669
    %v5171 = vmul.f32 %v5135, 0.17677669
    %v5172 = vmul.f32 %v5138, 0.17677669
    %v5173 = vadd.f32 %v5141, %v60
    %v5174 = vadd.f32 %v5142, %v61
    %v5175 = vadd.f32 %v5143, %v62
    %v5176 = vadd.f32 %v5144, %v63
    %v5177 = vadd.f32 %v5145, %v64
    %v5178 = vadd.f32 %v5146, %v65
    %v5179 = vadd.f32 %v5147, %v66
    %v5180 = vadd.f32 %v5148, %v67
    %v5181 = vadd.f32 %v5149, %v60
    %v5182 = vadd.f32 %v5150, %v61
    %v5183 = vadd.f32 %v5151, %v62
    %v5184 = vadd.f32 %v5152, %v63
    %v5185 = vadd.f32 %v5153, %v64
    %v5186 = vadd.f32 %v5154, %v65
    %v5187 = vadd.f32 %v5155, %v66
    %v5188 = vadd.f32 %v5156, %v67
    %v5189 = vadd.f32 %v5157, %v60
    %v5190 = vadd.f32 %v5158, %v61
    %v5191 = vadd.f32 %v5159, %v62
    %v5192 = vadd.f32 %v5160, %v63
    %v5193 = vadd.f32 %v5161, %v64
    %v5194 = vadd.f32 %v5162, %v65
    %v5195 = vadd.f32 %v5163, %v66
    %v5196 = vadd.f32 %v5164, %v67
    %v5197 = vadd.f32 %v5165, %v60
    %v5198 = vadd.f32 %v5166, %v61
    %v5199 = vadd.f32 %v5167, %v62
    %v5200 = vadd.f32 %v5168, %v63
    %v5201 = vadd.f32 %v5169, %v64
    %v5202 = vadd.f32 %v5170, %v65
    %v5203 = vadd.f32 %v5171, %v66
    %v5204 = vadd.f32 %v5172, %v67
    %v5205 = vsel %vm866, %v5173, -inf
    %5206 = vmax.xlane.f32.xlu0 %v5205
    %v5207 = vpop.xlane.xlu0 %5206
    %v5208 = vsel %vm866, %v5174, -inf
    %5209 = vmax.xlane.f32.xlu0 %v5208
    %v5210 = vpop.xlane.xlu0 %5209
    %v5211 = vsel %vm866, %v5175, -inf
    %5212 = vmax.xlane.f32.xlu0 %v5211
    %v5213 = vpop.xlane.xlu0 %5212
    %v5214 = vsel %vm866, %v5176, -inf
    %5215 = vmax.xlane.f32.xlu0 %v5214
    %v5216 = vpop.xlane.xlu0 %5215
    %v5217 = vsel %vm866, %v5177, -inf
    %5218 = vmax.xlane.f32.xlu0 %v5217
    %v5219 = vpop.xlane.xlu0 %5218
    %v5220 = vsel %vm866, %v5178, -inf
    %5221 = vmax.xlane.f32.xlu0 %v5220
    %v5222 = vpop.xlane.xlu0 %5221
    %v5223 = vsel %vm866, %v5179, -inf
    %5224 = vmax.xlane.f32.xlu0 %v5223
    %v5225 = vpop.xlane.xlu0 %5224
    %v5226 = vsel %vm866, %v5180, -inf
    %5227 = vmax.xlane.f32.xlu0 %v5226
    %v5228 = vpop.xlane.xlu0 %5227
    %v5229 = vsel %vm866, %v5181, -inf
    %5230 = vmax.xlane.f32.xlu0 %v5229
    %v5231 = vpop.xlane.xlu0 %5230
    %v5232 = vsel %vm866, %v5182, -inf
    %5233 = vmax.xlane.f32.xlu0 %v5232
    %v5234 = vpop.xlane.xlu0 %5233
    %v5235 = vsel %vm866, %v5183, -inf
    %5236 = vmax.xlane.f32.xlu0 %v5235
    %v5237 = vpop.xlane.xlu0 %5236
    %v5238 = vsel %vm866, %v5184, -inf
    %5239 = vmax.xlane.f32.xlu0 %v5238
    %v5240 = vpop.xlane.xlu0 %5239
    %v5241 = vsel %vm866, %v5185, -inf
    %5242 = vmax.xlane.f32.xlu0 %v5241
    %v5243 = vpop.xlane.xlu0 %5242
    %v5244 = vsel %vm866, %v5186, -inf
    %5245 = vmax.xlane.f32.xlu0 %v5244
    %v5246 = vpop.xlane.xlu0 %5245
    %v5247 = vsel %vm866, %v5187, -inf
    %5248 = vmax.xlane.f32.xlu0 %v5247
    %v5249 = vpop.xlane.xlu0 %5248
    %v5250 = vsel %vm866, %v5188, -inf
    %5251 = vmax.xlane.f32.xlu0 %v5250
    %v5252 = vpop.xlane.xlu0 %5251
    %v5253 = vsel %vm866, %v5189, -inf
    %5254 = vmax.xlane.f32.xlu0 %v5253
    %v5255 = vpop.xlane.xlu0 %5254
    %v5256 = vsel %vm866, %v5190, -inf
    %5257 = vmax.xlane.f32.xlu0 %v5256
    %v5258 = vpop.xlane.xlu0 %5257
    %v5259 = vsel %vm866, %v5191, -inf
    %5260 = vmax.xlane.f32.xlu0 %v5259
    %v5261 = vpop.xlane.xlu0 %5260
    %v5262 = vsel %vm866, %v5192, -inf
    %5263 = vmax.xlane.f32.xlu0 %v5262
    %v5264 = vpop.xlane.xlu0 %5263
    %v5265 = vsel %vm866, %v5193, -inf
    %5266 = vmax.xlane.f32.xlu0 %v5265
    %v5267 = vpop.xlane.xlu0 %5266
    %v5268 = vsel %vm866, %v5194, -inf
    %5269 = vmax.xlane.f32.xlu0 %v5268
    %v5270 = vpop.xlane.xlu0 %5269
    %v5271 = vsel %vm866, %v5195, -inf
    %5272 = vmax.xlane.f32.xlu0 %v5271
    %v5273 = vpop.xlane.xlu0 %5272
    %v5274 = vsel %vm866, %v5196, -inf
    %5275 = vmax.xlane.f32.xlu0 %v5274
    %v5276 = vpop.xlane.xlu0 %5275
    %v5277 = vsel %vm866, %v5197, -inf
    %5278 = vmax.xlane.f32.xlu0 %v5277
    %v5279 = vpop.xlane.xlu0 %5278
    %v5280 = vsel %vm866, %v5198, -inf
    %5281 = vmax.xlane.f32.xlu0 %v5280
    %v5282 = vpop.xlane.xlu0 %5281
    %v5283 = vsel %vm866, %v5199, -inf
    %5284 = vmax.xlane.f32.xlu0 %v5283
    %v5285 = vpop.xlane.xlu0 %5284
    %v5286 = vsel %vm866, %v5200, -inf
    %5287 = vmax.xlane.f32.xlu0 %v5286
    %v5288 = vpop.xlane.xlu0 %5287
    %v5289 = vsel %vm866, %v5201, -inf
    %5290 = vmax.xlane.f32.xlu0 %v5289
    %v5291 = vpop.xlane.xlu0 %5290
    %v5292 = vsel %vm866, %v5202, -inf
    %5293 = vmax.xlane.f32.xlu0 %v5292
    %v5294 = vpop.xlane.xlu0 %5293
    %v5295 = vsel %vm866, %v5203, -inf
    %5296 = vmax.xlane.f32.xlu0 %v5295
    %v5297 = vpop.xlane.xlu0 %5296
    %v5298 = vsel %vm866, %v5204, -inf
    %5299 = vmax.xlane.f32.xlu0 %v5298
    %v5300 = vpop.xlane.xlu0 %5299
    %v5301 = vsub.f32 %v5173, %v5207
    %v5302 = vsub.f32 %v5174, %v5210
    %v5303 = vsub.f32 %v5175, %v5213
    %v5304 = vsub.f32 %v5176, %v5216
    %v5305 = vsub.f32 %v5177, %v5219
    %v5306 = vsub.f32 %v5178, %v5222
    %v5307 = vsub.f32 %v5179, %v5225
    %v5308 = vsub.f32 %v5180, %v5228
    %v5309 = vsub.f32 %v5181, %v5231
    %v5310 = vsub.f32 %v5182, %v5234
    %v5311 = vsub.f32 %v5183, %v5237
    %v5312 = vsub.f32 %v5184, %v5240
    %v5313 = vsub.f32 %v5185, %v5243
    %v5314 = vsub.f32 %v5186, %v5246
    %v5315 = vsub.f32 %v5187, %v5249
    %v5316 = vsub.f32 %v5188, %v5252
    %v5317 = vsub.f32 %v5189, %v5255
    %v5318 = vsub.f32 %v5190, %v5258
    %v5319 = vsub.f32 %v5191, %v5261
    %v5320 = vsub.f32 %v5192, %v5264
    %v5321 = vsub.f32 %v5193, %v5267
    %v5322 = vsub.f32 %v5194, %v5270
    %v5323 = vsub.f32 %v5195, %v5273
    %v5324 = vsub.f32 %v5196, %v5276
    %v5325 = vsub.f32 %v5197, %v5279
    %v5326 = vsub.f32 %v5198, %v5282
    %v5327 = vsub.f32 %v5199, %v5285
    %v5328 = vsub.f32 %v5200, %v5288
    %v5329 = vsub.f32 %v5201, %v5291
    %v5330 = vsub.f32 %v5202, %v5294
    %v5331 = vsub.f32 %v5203, %v5297
    %v5332 = vsub.f32 %v5204, %v5300
    %v5333 = vmul.f32 %v5301, 1.442695
    %v5334 = vpow.pop %v5333
    %v5335 = vmul.f32 %v5302, 1.442695
    %v5336 = vpow.pop %v5335
    %v5337 = vmul.f32 %v5303, 1.442695
    %v5338 = vpow.pop %v5337
    %v5339 = vmul.f32 %v5304, 1.442695
    %v5340 = vpow.pop %v5339
    %v5341 = vmul.f32 %v5305, 1.442695
    %v5342 = vpow.pop %v5341
    %v5343 = vmul.f32 %v5306, 1.442695
    %v5344 = vpow.pop %v5343
    %v5345 = vmul.f32 %v5307, 1.442695
    %v5346 = vpow.pop %v5345
    %v5347 = vmul.f32 %v5308, 1.442695
    %v5348 = vpow.pop %v5347
    %v5349 = vmul.f32 %v5309, 1.442695
    %v5350 = vpow.pop %v5349
    %v5351 = vmul.f32 %v5310, 1.442695
    %v5352 = vpow.pop %v5351
    %v5353 = vmul.f32 %v5311, 1.442695
    %v5354 = vpow.pop %v5353
    %v5355 = vmul.f32 %v5312, 1.442695
    %v5356 = vpow.pop %v5355
    %v5357 = vmul.f32 %v5313, 1.442695
    %v5358 = vpow.pop %v5357
    %v5359 = vmul.f32 %v5314, 1.442695
    %v5360 = vpow.pop %v5359
    %v5361 = vmul.f32 %v5315, 1.442695
    %v5362 = vpow.pop %v5361
    %v5363 = vmul.f32 %v5316, 1.442695
    %v5364 = vpow.pop %v5363
    %v5365 = vmul.f32 %v5317, 1.442695
    %v5366 = vpow.pop %v5365
    %v5367 = vmul.f32 %v5318, 1.442695
    %v5368 = vpow.pop %v5367
    %v5369 = vmul.f32 %v5319, 1.442695
    %v5370 = vpow.pop %v5369
    %v5371 = vmul.f32 %v5320, 1.442695
    %v5372 = vpow.pop %v5371
    %v5373 = vmul.f32 %v5321, 1.442695
    %v5374 = vpow.pop %v5373
    %v5375 = vmul.f32 %v5322, 1.442695
    %v5376 = vpow.pop %v5375
    %v5377 = vmul.f32 %v5323, 1.442695
    %v5378 = vpow.pop %v5377
    %v5379 = vmul.f32 %v5324, 1.442695
    %v5380 = vpow.pop %v5379
    %v5381 = vmul.f32 %v5325, 1.442695
    %v5382 = vpow.pop %v5381
    %v5383 = vmul.f32 %v5326, 1.442695
    %v5384 = vpow.pop %v5383
    %v5385 = vmul.f32 %v5327, 1.442695
    %v5386 = vpow.pop %v5385
    %v5387 = vmul.f32 %v5328, 1.442695
    %v5388 = vpow.pop %v5387
    %v5389 = vmul.f32 %v5329, 1.442695
    %v5390 = vpow.pop %v5389
    %v5391 = vmul.f32 %v5330, 1.442695
    %v5392 = vpow.pop %v5391
    %v5393 = vmul.f32 %v5331, 1.442695
    %v5394 = vpow.pop %v5393
    %v5395 = vmul.f32 %v5332, 1.442695
    %v5396 = vpow.pop %v5395
    %v5397 = vsel %vm866, %v5334, 0.0
    %5398 = vadd.xlane.f32.xlu0 %v5397
    %v5399 = vpop.xlane.xlu0 %5398
    %v5400 = vsel %vm866, %v5336, 0.0
    %5401 = vadd.xlane.f32.xlu0 %v5400
    %v5402 = vpop.xlane.xlu0 %5401
    %v5403 = vsel %vm866, %v5338, 0.0
    %5404 = vadd.xlane.f32.xlu0 %v5403
    %v5405 = vpop.xlane.xlu0 %5404
    %v5406 = vsel %vm866, %v5340, 0.0
    %5407 = vadd.xlane.f32.xlu0 %v5406
    %v5408 = vpop.xlane.xlu0 %5407
    %v5409 = vsel %vm866, %v5342, 0.0
    %5410 = vadd.xlane.f32.xlu0 %v5409
    %v5411 = vpop.xlane.xlu0 %5410
    %v5412 = vsel %vm866, %v5344, 0.0
    %5413 = vadd.xlane.f32.xlu0 %v5412
    %v5414 = vpop.xlane.xlu0 %5413
    %v5415 = vsel %vm866, %v5346, 0.0
    %5416 = vadd.xlane.f32.xlu0 %v5415
    %v5417 = vpop.xlane.xlu0 %5416
    %v5418 = vsel %vm866, %v5348, 0.0
    %5419 = vadd.xlane.f32.xlu0 %v5418
    %v5420 = vpop.xlane.xlu0 %5419
    %v5421 = vsel %vm866, %v5350, 0.0
    %5422 = vadd.xlane.f32.xlu0 %v5421
    %v5423 = vpop.xlane.xlu0 %5422
    %v5424 = vsel %vm866, %v5352, 0.0
    %5425 = vadd.xlane.f32.xlu0 %v5424
    %v5426 = vpop.xlane.xlu0 %5425
    %v5427 = vsel %vm866, %v5354, 0.0
    %5428 = vadd.xlane.f32.xlu0 %v5427
    %v5429 = vpop.xlane.xlu0 %5428
    %v5430 = vsel %vm866, %v5356, 0.0
    %5431 = vadd.xlane.f32.xlu0 %v5430
    %v5432 = vpop.xlane.xlu0 %5431
    %v5433 = vsel %vm866, %v5358, 0.0
    %5434 = vadd.xlane.f32.xlu0 %v5433
    %v5435 = vpop.xlane.xlu0 %5434
    %v5436 = vsel %vm866, %v5360, 0.0
    %5437 = vadd.xlane.f32.xlu0 %v5436
    %v5438 = vpop.xlane.xlu0 %5437
    %v5439 = vsel %vm866, %v5362, 0.0
    %5440 = vadd.xlane.f32.xlu0 %v5439
    %v5441 = vpop.xlane.xlu0 %5440
    %v5442 = vsel %vm866, %v5364, 0.0
    %5443 = vadd.xlane.f32.xlu0 %v5442
    %v5444 = vpop.xlane.xlu0 %5443
    %v5445 = vsel %vm866, %v5366, 0.0
    %5446 = vadd.xlane.f32.xlu0 %v5445
    %v5447 = vpop.xlane.xlu0 %5446
    %v5448 = vsel %vm866, %v5368, 0.0
    %5449 = vadd.xlane.f32.xlu0 %v5448
    %v5450 = vpop.xlane.xlu0 %5449
    %v5451 = vsel %vm866, %v5370, 0.0
    %5452 = vadd.xlane.f32.xlu0 %v5451
    %v5453 = vpop.xlane.xlu0 %5452
    %v5454 = vsel %vm866, %v5372, 0.0
    %5455 = vadd.xlane.f32.xlu0 %v5454
    %v5456 = vpop.xlane.xlu0 %5455
    %v5457 = vsel %vm866, %v5374, 0.0
    %5458 = vadd.xlane.f32.xlu0 %v5457
    %v5459 = vpop.xlane.xlu0 %5458
    %v5460 = vsel %vm866, %v5376, 0.0
    %5461 = vadd.xlane.f32.xlu0 %v5460
    %v5462 = vpop.xlane.xlu0 %5461
    %v5463 = vsel %vm866, %v5378, 0.0
    %5464 = vadd.xlane.f32.xlu0 %v5463
    %v5465 = vpop.xlane.xlu0 %5464
    %v5466 = vsel %vm866, %v5380, 0.0
    %5467 = vadd.xlane.f32.xlu0 %v5466
    %v5468 = vpop.xlane.xlu0 %5467
    %v5469 = vsel %vm866, %v5382, 0.0
    %5470 = vadd.xlane.f32.xlu0 %v5469
    %v5471 = vpop.xlane.xlu0 %5470
    %v5472 = vsel %vm866, %v5384, 0.0
    %5473 = vadd.xlane.f32.xlu0 %v5472
    %v5474 = vpop.xlane.xlu0 %5473
    %v5475 = vsel %vm866, %v5386, 0.0
    %5476 = vadd.xlane.f32.xlu0 %v5475
    %v5477 = vpop.xlane.xlu0 %5476
    %v5478 = vsel %vm866, %v5388, 0.0
    %5479 = vadd.xlane.f32.xlu0 %v5478
    %v5480 = vpop.xlane.xlu0 %5479
    %v5481 = vsel %vm866, %v5390, 0.0
    %5482 = vadd.xlane.f32.xlu0 %v5481
    %v5483 = vpop.xlane.xlu0 %5482
    %v5484 = vsel %vm866, %v5392, 0.0
    %5485 = vadd.xlane.f32.xlu0 %v5484
    %v5486 = vpop.xlane.xlu0 %5485
    %v5487 = vsel %vm866, %v5394, 0.0
    %5488 = vadd.xlane.f32.xlu0 %v5487
    %v5489 = vpop.xlane.xlu0 %5488
    %v5490 = vsel %vm866, %v5396, 0.0
    %5491 = vadd.xlane.f32.xlu0 %v5490
    %v5492 = vpop.xlane.xlu0 %5491
    %v5493 = vrcp.pop %v5399
    %v5494 = vrcp.pop %v5402
    %v5495 = vrcp.pop %v5405
    %v5496 = vrcp.pop %v5408
    %v5497 = vrcp.pop %v5411
    %v5498 = vrcp.pop %v5414
    %v5499 = vrcp.pop %v5417
    %v5500 = vrcp.pop %v5420
    %v5501 = vrcp.pop %v5423
    %v5502 = vrcp.pop %v5426
    %v5503 = vrcp.pop %v5429
    %v5504 = vrcp.pop %v5432
    %v5505 = vrcp.pop %v5435
    %v5506 = vrcp.pop %v5438
    %v5507 = vrcp.pop %v5441
    %v5508 = vrcp.pop %v5444
    %v5509 = vrcp.pop %v5447
    %v5510 = vrcp.pop %v5450
    %v5511 = vrcp.pop %v5453
    %v5512 = vrcp.pop %v5456
    %v5513 = vrcp.pop %v5459
    %v5514 = vrcp.pop %v5462
    %v5515 = vrcp.pop %v5465
    %v5516 = vrcp.pop %v5468
    %v5517 = vrcp.pop %v5471
    %v5518 = vrcp.pop %v5474
    %v5519 = vrcp.pop %v5477
    %v5520 = vrcp.pop %v5480
    %v5521 = vrcp.pop %v5483
    %v5522 = vrcp.pop %v5486
    %v5523 = vrcp.pop %v5489
    %v5524 = vrcp.pop %v5492
    %v5525 = vmul.f32 %v5334, %v5493
    %v5526 = vmul.f32 %v5336, %v5494
    %v5527 = vmul.f32 %v5338, %v5495
    %v5528 = vmul.f32 %v5340, %v5496
    %v5529 = vmul.f32 %v5342, %v5497
    %v5530 = vmul.f32 %v5344, %v5498
    %v5531 = vmul.f32 %v5346, %v5499
    %v5532 = vmul.f32 %v5348, %v5500
    %v5533 = vmul.f32 %v5350, %v5501
    %v5534 = vmul.f32 %v5352, %v5502
    %v5535 = vmul.f32 %v5354, %v5503
    %v5536 = vmul.f32 %v5356, %v5504
    %v5537 = vmul.f32 %v5358, %v5505
    %v5538 = vmul.f32 %v5360, %v5506
    %v5539 = vmul.f32 %v5362, %v5507
    %v5540 = vmul.f32 %v5364, %v5508
    %v5541 = vmul.f32 %v5366, %v5509
    %v5542 = vmul.f32 %v5368, %v5510
    %v5543 = vmul.f32 %v5370, %v5511
    %v5544 = vmul.f32 %v5372, %v5512
    %v5545 = vmul.f32 %v5374, %v5513
    %v5546 = vmul.f32 %v5376, %v5514
    %v5547 = vmul.f32 %v5378, %v5515
    %v5548 = vmul.f32 %v5380, %v5516
    %v5549 = vmul.f32 %v5382, %v5517
    %v5550 = vmul.f32 %v5384, %v5518
    %v5551 = vmul.f32 %v5386, %v5519
    %v5552 = vmul.f32 %v5388, %v5520
    %v5553 = vmul.f32 %v5390, %v5521
    %v5554 = vmul.f32 %v5392, %v5522
    %v5555 = vmul.f32 %v5394, %v5523
    %v5556 = vmul.f32 %v5396, %v5524
    %v5557 = vpack.c.bf16 %v5526, %v5525
    %v5558 = vpack.c.bf16 %v5528, %v5527
    %v5559 = vpack.c.bf16 %v5530, %v5529
    %v5560 = vpack.c.bf16 %v5532, %v5531
    %v5561 = vpack.c.bf16 %v5534, %v5533
    %v5562 = vpack.c.bf16 %v5536, %v5535
    %v5563 = vpack.c.bf16 %v5538, %v5537
    %v5564 = vpack.c.bf16 %v5540, %v5539
    %v5565 = vpack.c.bf16 %v5542, %v5541
    %v5566 = vpack.c.bf16 %v5544, %v5543
    %v5567 = vpack.c.bf16 %v5546, %v5545
    %v5568 = vpack.c.bf16 %v5548, %v5547
    %v5569 = vpack.c.bf16 %v5550, %v5549
    %v5570 = vpack.c.bf16 %v5552, %v5551
    %v5571 = vpack.c.bf16 %v5554, %v5553
    %v5572 = vpack.c.bf16 %v5556, %v5555
    %5573 = vrot.lane.b32.xlu0 %v4721, 64
    %v5574 = vpop.permute.xlu0 %5573
    %5575 = vrot.lane.b32.xlu0 %v4722, 64
    %v5576 = vpop.permute.xlu0 %5575
    %5577 = vrot.lane.b32.xlu0 %v4723, 64
    %v5578 = vpop.permute.xlu0 %5577
    %5579 = vrot.lane.b32.xlu0 %v4724, 64
    %v5580 = vpop.permute.xlu0 %5579
    %v5586 = vsel %vm866, %v5557, 0
    %v5589 = vsel %vm866, %v5558, 0
    %v5592 = vsel %vm866, %v5559, 0
    %v5595 = vsel %vm866, %v5560, 0
    %5597 = vmatprep.subr.bf16.mxu0 0
    %5598 = vmatpush1.bf16.msra.mxu0 %v5574
    %5599 = vmatprep.subr.bf16.mxu0 0
    %5600 = vmatpush1.bf16.msra.mxu0 %v5576
    %5601 = vmatprep.subr.bf16.mxu0 0
    %5602 = vmatpush1.bf16.msra.mxu0 %v5578
    %5603 = vmatprep.subr.bf16.mxu0 0
    %5604 = vmatpush1.bf16.msra.mxu0 %v5580
    %5605 = vmatprep.subr.bf16.mxu0 0
    %5606 = vmatpush1.bf16.msra.mxu0 0
    %5607 = vmatprep.subr.bf16.mxu0 0
    %5608 = vmatpush1.bf16.msra.mxu0 0
    %5609 = vmatprep.subr.bf16.mxu0 0
    %5610 = vmatpush1.bf16.msra.mxu0 0
    %5611 = vmatprep.subr.bf16.mxu0 0
    %5612 = vmatpush1.bf16.msra.mxu0 0
    %5613 = vmatprep.subr.bf16.mxu0 0
    %5614 = vmatpush1.bf16.msra.mxu0 0
    %5615 = vmatprep.subr.bf16.mxu0 0
    %5616 = vmatpush1.bf16.msra.mxu0 0
    %5617 = vmatprep.subr.bf16.mxu0 0
    %5618 = vmatpush1.bf16.msra.mxu0 0
    %5619 = vmatprep.subr.bf16.mxu0 0
    %5620 = vmatpush1.bf16.msra.mxu0 0
    %5621 = vmatprep.subr.bf16.mxu0 0
    %5622 = vmatpush1.bf16.msra.mxu0 0
    %5623 = vmatprep.subr.bf16.mxu0 0
    %5624 = vmatpush1.bf16.msra.mxu0 0
    %5625 = vmatprep.subr.bf16.mxu0 0
    %5626 = vmatpush1.bf16.msra.mxu0 0
    %5627 = vmatprep.subr.bf16.mxu0 0
    %5628 = vmatpush1.bf16.msra.mxu0 0
    %5629 = vmatprep.mubr.bf16.mxu0 0
    %5630 = vmatmul.mubr.bf16.gmra.mrb[0].mxu0 %v5586
    %v5631 = vpop.f32.mrb[0].mxu0
    %v5632 = vadd.f32 0.0, %v5631
    %v5633 = vpop.f32.mrb[0].mxu0
    %v5634 = vpop.f32.mrb[0].mxu0
    %v5635 = vadd.f32 0.0, %v5634
    %v5636 = vpop.f32.mrb[0].mxu0
    %5637 = vmatprep.mubr.bf16.mxu0 0
    %5638 = vmatmul.mubr.bf16.gmra.mrb[0].mxu0 %v5589
    %v5639 = vpop.f32.mrb[0].mxu0
    %v5640 = vadd.f32 0.0, %v5639
    %v5641 = vpop.f32.mrb[0].mxu0
    %v5642 = vpop.f32.mrb[0].mxu0
    %v5643 = vadd.f32 0.0, %v5642
    %v5644 = vpop.f32.mrb[0].mxu0
    %5645 = vmatprep.mubr.bf16.mxu0 0
    %5646 = vmatmul.mubr.bf16.gmra.mrb[0].mxu0 %v5592
    %v5647 = vpop.f32.mrb[0].mxu0
    %v5648 = vadd.f32 0.0, %v5647
    %v5649 = vpop.f32.mrb[0].mxu0
    %v5650 = vpop.f32.mrb[0].mxu0
    %v5651 = vadd.f32 0.0, %v5650
    %v5652 = vpop.f32.mrb[0].mxu0
    %5653 = vmatprep.mubr.bf16.mxu0 0
    %5654 = vmatmul.mubr.bf16.gmra.mrb[0].mxu0 %v5595
    %v5655 = vpop.f32.mrb[0].mxu0
    %v5656 = vadd.f32 0.0, %v5655
    %v5657 = vpop.f32.mrb[0].mxu0
    %v5658 = vpop.f32.mrb[0].mxu0
    %v5659 = vadd.f32 0.0, %v5658
    %v5660 = vpop.f32.mrb[0].mxu0
    %5661 = vdwg.mxu0
    %5662 = vrot.lane.b32.xlu0 %v4725, 64
    %v5663 = vpop.permute.xlu0 %5662
    %5664 = vrot.lane.b32.xlu0 %v4726, 64
    %v5665 = vpop.permute.xlu0 %5664
    %5666 = vrot.lane.b32.xlu0 %v4727, 64
    %v5667 = vpop.permute.xlu0 %5666
    %5668 = vrot.lane.b32.xlu0 %v4728, 64
    %v5669 = vpop.permute.xlu0 %5668
    %v5675 = vsel %vm866, %v5561, 0
    %v5678 = vsel %vm866, %v5562, 0
    %v5681 = vsel %vm866, %v5563, 0
    %v5684 = vsel %vm866, %v5564, 0
    %5686 = vmatprep.subr.bf16.mxu0 0
    %5687 = vmatpush1.bf16.msra.mxu0 %v5663
    %5688 = vmatprep.subr.bf16.mxu0 0
    %5689 = vmatpush1.bf16.msra.mxu0 %v5665
    %5690 = vmatprep.subr.bf16.mxu0 0
    %5691 = vmatpush1.bf16.msra.mxu0 %v5667
    %5692 = vmatprep.subr.bf16.mxu0 0
    %5693 = vmatpush1.bf16.msra.mxu0 %v5669
    %5694 = vmatprep.subr.bf16.mxu0 0
    %5695 = vmatpush1.bf16.msra.mxu0 0
    %5696 = vmatprep.subr.bf16.mxu0 0
    %5697 = vmatpush1.bf16.msra.mxu0 0
    %5698 = vmatprep.subr.bf16.mxu0 0
    %5699 = vmatpush1.bf16.msra.mxu0 0
    %5700 = vmatprep.subr.bf16.mxu0 0
    %5701 = vmatpush1.bf16.msra.mxu0 0
    %5702 = vmatprep.subr.bf16.mxu0 0
    %5703 = vmatpush1.bf16.msra.mxu0 0
    %5704 = vmatprep.subr.bf16.mxu0 0
    %5705 = vmatpush1.bf16.msra.mxu0 0
    %5706 = vmatprep.subr.bf16.mxu0 0
    %5707 = vmatpush1.bf16.msra.mxu0 0
    %5708 = vmatprep.subr.bf16.mxu0 0
    %5709 = vmatpush1.bf16.msra.mxu0 0
    %5710 = vmatprep.subr.bf16.mxu0 0
    %5711 = vmatpush1.bf16.msra.mxu0 0
    %5712 = vmatprep.subr.bf16.mxu0 0
    %5713 = vmatpush1.bf16.msra.mxu0 0
    %5714 = vmatprep.subr.bf16.mxu0 0
    %5715 = vmatpush1.bf16.msra.mxu0 0
    %5716 = vmatprep.subr.bf16.mxu0 0
    %5717 = vmatpush1.bf16.msra.mxu0 0
    %5718 = vmatprep.mubr.bf16.mxu0 0
    %5719 = vmatmul.mubr.bf16.gmra.mrb[0].mxu0 %v5675
    %v5720 = vpop.f32.mrb[0].mxu0
    %v5721 = vadd.f32 0.0, %v5720
    %v5722 = vpop.f32.mrb[0].mxu0
    %v5723 = vpop.f32.mrb[0].mxu0
    %v5724 = vadd.f32 0.0, %v5723
    %v5725 = vpop.f32.mrb[0].mxu0
    %5726 = vmatprep.mubr.bf16.mxu0 0
    %5727 = vmatmul.mubr.bf16.gmra.mrb[0].mxu0 %v5678
    %v5728 = vpop.f32.mrb[0].mxu0
    %v5729 = vadd.f32 0.0, %v5728
    %v5730 = vpop.f32.mrb[0].mxu0
    %v5731 = vpop.f32.mrb[0].mxu0
    %v5732 = vadd.f32 0.0, %v5731
    %v5733 = vpop.f32.mrb[0].mxu0
    %5734 = vmatprep.mubr.bf16.mxu0 0
    %5735 = vmatmul.mubr.bf16.gmra.mrb[0].mxu0 %v5681
    %v5736 = vpop.f32.mrb[0].mxu0
    %v5737 = vadd.f32 0.0, %v5736
    %v5738 = vpop.f32.mrb[0].mxu0
    %v5739 = vpop.f32.mrb[0].mxu0
    %v5740 = vadd.f32 0.0, %v5739
    %v5741 = vpop.f32.mrb[0].mxu0
    %5742 = vmatprep.mubr.bf16.mxu0 0
    %5743 = vmatmul.mubr.bf16.gmra.mrb[0].mxu0 %v5684
    %v5744 = vpop.f32.mrb[0].mxu0
    %v5745 = vadd.f32 0.0, %v5744
    %v5746 = vpop.f32.mrb[0].mxu0
    %v5747 = vpop.f32.mrb[0].mxu0
    %v5748 = vadd.f32 0.0, %v5747
    %v5749 = vpop.f32.mrb[0].mxu0
    %5750 = vdwg.mxu0
    %5751 = vrot.lane.b32.xlu0 %v4729, 64
    %v5752 = vpop.permute.xlu0 %5751
    %5753 = vrot.lane.b32.xlu0 %v4730, 64
    %v5754 = vpop.permute.xlu0 %5753
    %5755 = vrot.lane.b32.xlu0 %v4731, 64
    %v5756 = vpop.permute.xlu0 %5755
    %5757 = vrot.lane.b32.xlu0 %v4732, 64
    %v5758 = vpop.permute.xlu0 %5757
    %v5764 = vsel %vm866, %v5565, 0
    %v5767 = vsel %vm866, %v5566, 0
    %v5770 = vsel %vm866, %v5567, 0
    %v5773 = vsel %vm866, %v5568, 0
    %5775 = vmatprep.subr.bf16.mxu0 0
    %5776 = vmatpush1.bf16.msra.mxu0 %v5752
    %5777 = vmatprep.subr.bf16.mxu0 0
    %5778 = vmatpush1.bf16.msra.mxu0 %v5754
    %5779 = vmatprep.subr.bf16.mxu0 0
    %5780 = vmatpush1.bf16.msra.mxu0 %v5756
    %5781 = vmatprep.subr.bf16.mxu0 0
    %5782 = vmatpush1.bf16.msra.mxu0 %v5758
    %5783 = vmatprep.subr.bf16.mxu0 0
    %5784 = vmatpush1.bf16.msra.mxu0 0
    %5785 = vmatprep.subr.bf16.mxu0 0
    %5786 = vmatpush1.bf16.msra.mxu0 0
    %5787 = vmatprep.subr.bf16.mxu0 0
    %5788 = vmatpush1.bf16.msra.mxu0 0
    %5789 = vmatprep.subr.bf16.mxu0 0
    %5790 = vmatpush1.bf16.msra.mxu0 0
    %5791 = vmatprep.subr.bf16.mxu0 0
    %5792 = vmatpush1.bf16.msra.mxu0 0
    %5793 = vmatprep.subr.bf16.mxu0 0
    %5794 = vmatpush1.bf16.msra.mxu0 0
    %5795 = vmatprep.subr.bf16.mxu0 0
    %5796 = vmatpush1.bf16.msra.mxu0 0
    %5797 = vmatprep.subr.bf16.mxu0 0
    %5798 = vmatpush1.bf16.msra.mxu0 0
    %5799 = vmatprep.subr.bf16.mxu0 0
    %5800 = vmatpush1.bf16.msra.mxu0 0
    %5801 = vmatprep.subr.bf16.mxu0 0
    %5802 = vmatpush1.bf16.msra.mxu0 0
    %5803 = vmatprep.subr.bf16.mxu0 0
    %5804 = vmatpush1.bf16.msra.mxu0 0
    %5805 = vmatprep.subr.bf16.mxu0 0
    %5806 = vmatpush1.bf16.msra.mxu0 0
    %5807 = vmatprep.mubr.bf16.mxu0 0
    %5808 = vmatmul.mubr.bf16.gmra.mrb[0].mxu0 %v5764
    %v5809 = vpop.f32.mrb[0].mxu0
    %v5810 = vadd.f32 0.0, %v5809
    %v5811 = vpop.f32.mrb[0].mxu0
    %v5812 = vpop.f32.mrb[0].mxu0
    %v5813 = vadd.f32 0.0, %v5812
    %v5814 = vpop.f32.mrb[0].mxu0
    %5815 = vmatprep.mubr.bf16.mxu0 0
    %5816 = vmatmul.mubr.bf16.gmra.mrb[0].mxu0 %v5767
    %v5817 = vpop.f32.mrb[0].mxu0
    %v5818 = vadd.f32 0.0, %v5817
    %v5819 = vpop.f32.mrb[0].mxu0
    %v5820 = vpop.f32.mrb[0].mxu0
    %v5821 = vadd.f32 0.0, %v5820
    %v5822 = vpop.f32.mrb[0].mxu0
    %5823 = vmatprep.mubr.bf16.mxu0 0
    %5824 = vmatmul.mubr.bf16.gmra.mrb[0].mxu0 %v5770
    %v5825 = vpop.f32.mrb[0].mxu0
    %v5826 = vadd.f32 0.0, %v5825
    %v5827 = vpop.f32.mrb[0].mxu0
    %v5828 = vpop.f32.mrb[0].mxu0
    %v5829 = vadd.f32 0.0, %v5828
    %v5830 = vpop.f32.mrb[0].mxu0
    %5831 = vmatprep.mubr.bf16.mxu0 0
    %5832 = vmatmul.mubr.bf16.gmra.mrb[0].mxu0 %v5773
    %v5833 = vpop.f32.mrb[0].mxu0
    %v5834 = vadd.f32 0.0, %v5833
    %v5835 = vpop.f32.mrb[0].mxu0
    %v5836 = vpop.f32.mrb[0].mxu0
    %v5837 = vadd.f32 0.0, %v5836
    %v5838 = vpop.f32.mrb[0].mxu0
    %5839 = vdwg.mxu0
    %5840 = vrot.lane.b32.xlu0 %v4733, 64
    %v5841 = vpop.permute.xlu0 %5840
    %5842 = vrot.lane.b32.xlu0 %v4734, 64
    %v5843 = vpop.permute.xlu0 %5842
    %5844 = vrot.lane.b32.xlu0 %v4735, 64
    %v5845 = vpop.permute.xlu0 %5844
    %5846 = vrot.lane.b32.xlu0 %v4736, 64
    %v5847 = vpop.permute.xlu0 %5846
    %v5853 = vsel %vm866, %v5569, 0
    %v5856 = vsel %vm866, %v5570, 0
    %v5859 = vsel %vm866, %v5571, 0
    %v5862 = vsel %vm866, %v5572, 0
    %5864 = vmatprep.subr.bf16.mxu0 0
    %5865 = vmatpush1.bf16.msra.mxu0 %v5841
    %5866 = vmatprep.subr.bf16.mxu0 0
    %5867 = vmatpush1.bf16.msra.mxu0 %v5843
    %5868 = vmatprep.subr.bf16.mxu0 0
    %5869 = vmatpush1.bf16.msra.mxu0 %v5845
    %5870 = vmatprep.subr.bf16.mxu0 0
    %5871 = vmatpush1.bf16.msra.mxu0 %v5847
    %5872 = vmatprep.subr.bf16.mxu0 0
    %5873 = vmatpush1.bf16.msra.mxu0 0
    %5874 = vmatprep.subr.bf16.mxu0 0
    %5875 = vmatpush1.bf16.msra.mxu0 0
    %5876 = vmatprep.subr.bf16.mxu0 0
    %5877 = vmatpush1.bf16.msra.mxu0 0
    %5878 = vmatprep.subr.bf16.mxu0 0
    %5879 = vmatpush1.bf16.msra.mxu0 0
    %5880 = vmatprep.subr.bf16.mxu0 0
    %5881 = vmatpush1.bf16.msra.mxu0 0
    %5882 = vmatprep.subr.bf16.mxu0 0
    %5883 = vmatpush1.bf16.msra.mxu0 0
    %5884 = vmatprep.subr.bf16.mxu0 0
    %5885 = vmatpush1.bf16.msra.mxu0 0
    %5886 = vmatprep.subr.bf16.mxu0 0
    %5887 = vmatpush1.bf16.msra.mxu0 0
    %5888 = vmatprep.subr.bf16.mxu0 0
    %5889 = vmatpush1.bf16.msra.mxu0 0
    %5890 = vmatprep.subr.bf16.mxu0 0
    %5891 = vmatpush1.bf16.msra.mxu0 0
    %5892 = vmatprep.subr.bf16.mxu0 0
    %5893 = vmatpush1.bf16.msra.mxu0 0
    %5894 = vmatprep.subr.bf16.mxu0 0
    %5895 = vmatpush1.bf16.msra.mxu0 0
    %5896 = vmatprep.mubr.bf16.mxu0 0
    %5897 = vmatmul.mubr.bf16.gmra.mrb[0].mxu0 %v5853
    %v5898 = vpop.f32.mrb[0].mxu0
    %v5899 = vadd.f32 0.0, %v5898
    %v5900 = vpop.f32.mrb[0].mxu0
    %v5901 = vpop.f32.mrb[0].mxu0
    %v5902 = vadd.f32 0.0, %v5901
    %v5903 = vpop.f32.mrb[0].mxu0
    %5904 = vmatprep.mubr.bf16.mxu0 0
    %5905 = vmatmul.mubr.bf16.gmra.mrb[0].mxu0 %v5856
    %v5906 = vpop.f32.mrb[0].mxu0
    %v5907 = vadd.f32 0.0, %v5906
    %v5908 = vpop.f32.mrb[0].mxu0
    %v5909 = vpop.f32.mrb[0].mxu0
    %v5910 = vadd.f32 0.0, %v5909
    %v5911 = vpop.f32.mrb[0].mxu0
    %5912 = vmatprep.mubr.bf16.mxu0 0
    %5913 = vmatmul.mubr.bf16.gmra.mrb[0].mxu0 %v5859
    %v5914 = vpop.f32.mrb[0].mxu0
    %v5915 = vadd.f32 0.0, %v5914
    %v5916 = vpop.f32.mrb[0].mxu0
    %v5917 = vpop.f32.mrb[0].mxu0
    %v5918 = vadd.f32 0.0, %v5917
    %v5919 = vpop.f32.mrb[0].mxu0
    %5920 = vmatprep.mubr.bf16.mxu0 0
    %5921 = vmatmul.mubr.bf16.gmra.mrb[0].mxu0 %v5862
    %v5922 = vpop.f32.mrb[0].mxu0
    %v5923 = vadd.f32 0.0, %v5922
    %v5924 = vpop.f32.mrb[0].mxu0
    %v5925 = vpop.f32.mrb[0].mxu0
    %v5926 = vadd.f32 0.0, %v5925
    %v5927 = vpop.f32.mrb[0].mxu0
    %5928 = vdwg.mxu0
    %5937 = vrot.lane.b32.xlu0 %v5721, 8
    %v5938 = vpop.permute.xlu0 %5937
    %5939 = vrot.lane.b32.xlu0 %v5724, 8
    %v5940 = vpop.permute.xlu0 %5939
    %5941 = vrot.lane.b32.xlu0 %v5729, 8
    %v5942 = vpop.permute.xlu0 %5941
    %5943 = vrot.lane.b32.xlu0 %v5732, 8
    %v5944 = vpop.permute.xlu0 %5943
    %5945 = vrot.lane.b32.xlu0 %v5737, 8
    %v5946 = vpop.permute.xlu0 %5945
    %5947 = vrot.lane.b32.xlu0 %v5740, 8
    %v5948 = vpop.permute.xlu0 %5947
    %5949 = vrot.lane.b32.xlu0 %v5745, 8
    %v5950 = vpop.permute.xlu0 %5949
    %5951 = vrot.lane.b32.xlu0 %v5748, 8
    %v5952 = vpop.permute.xlu0 %5951
    %5969 = vrot.lane.b32.xlu0 %v5810, 16
    %v5970 = vpop.permute.xlu0 %5969
    %5971 = vrot.lane.b32.xlu0 %v5813, 16
    %v5972 = vpop.permute.xlu0 %5971
    %5973 = vrot.lane.b32.xlu0 %v5818, 16
    %v5974 = vpop.permute.xlu0 %5973
    %5975 = vrot.lane.b32.xlu0 %v5821, 16
    %v5976 = vpop.permute.xlu0 %5975
    %5977 = vrot.lane.b32.xlu0 %v5826, 16
    %v5978 = vpop.permute.xlu0 %5977
    %5979 = vrot.lane.b32.xlu0 %v5829, 16
    %v5980 = vpop.permute.xlu0 %5979
    %5981 = vrot.lane.b32.xlu0 %v5834, 16
    %v5982 = vpop.permute.xlu0 %5981
    %5983 = vrot.lane.b32.xlu0 %v5837, 16
    %v5984 = vpop.permute.xlu0 %5983
    %6001 = vrot.lane.b32.xlu0 %v5899, 24
    %v6002 = vpop.permute.xlu0 %6001
    %6003 = vrot.lane.b32.xlu0 %v5902, 24
    %v6004 = vpop.permute.xlu0 %6003
    %6005 = vrot.lane.b32.xlu0 %v5907, 24
    %v6006 = vpop.permute.xlu0 %6005
    %6007 = vrot.lane.b32.xlu0 %v5910, 24
    %v6008 = vpop.permute.xlu0 %6007
    %6009 = vrot.lane.b32.xlu0 %v5915, 24
    %v6010 = vpop.permute.xlu0 %6009
    %6011 = vrot.lane.b32.xlu0 %v5918, 24
    %v6012 = vpop.permute.xlu0 %6011
    %6013 = vrot.lane.b32.xlu0 %v5923, 24
    %v6014 = vpop.permute.xlu0 %6013
    %6015 = vrot.lane.b32.xlu0 %v5926, 24
    %v6016 = vpop.permute.xlu0 %6015
    %v6025 = vsel %vm409, %v5632, %v5938
    %v6026 = vsel %vm409, %v5635, %v5940
    %v6027 = vsel %vm409, %v5640, %v5942
    %v6028 = vsel %vm409, %v5643, %v5944
    %v6029 = vsel %vm409, %v5648, %v5946
    %v6030 = vsel %vm409, %v5651, %v5948
    %v6031 = vsel %vm409, %v5656, %v5950
    %v6032 = vsel %vm409, %v5659, %v5952
    %v6033 = vsel %vm1695, %v6025, %v5970
    %v6034 = vsel %vm1695, %v6026, %v5972
    %v6035 = vsel %vm1695, %v6027, %v5974
    %v6036 = vsel %vm1695, %v6028, %v5976
    %v6037 = vsel %vm1695, %v6029, %v5978
    %v6038 = vsel %vm1695, %v6030, %v5980
    %v6039 = vsel %vm1695, %v6031, %v5982
    %v6040 = vsel %vm1695, %v6032, %v5984
    %v6041 = vsel %vm1704, %v6033, %v6002
    %v6042 = vsel %vm1704, %v6034, %v6004
    %v6043 = vsel %vm1704, %v6035, %v6006
    %v6044 = vsel %vm1704, %v6036, %v6008
    %v6045 = vsel %vm1704, %v6037, %v6010
    %v6046 = vsel %vm1704, %v6038, %v6012
    %v6047 = vsel %vm1704, %v6039, %v6014
    %v6048 = vsel %vm1704, %v6040, %v6016
    %s6049 = scalar_lea.vmem %s5, 32
    %v6050 = vld [vmem:[%s6049] sm:$0xf]
    %v6051 = vld [vmem:[%s6049 + $0x4] sm:$0xf]
    %v6052 = vld [vmem:[%s6049 + $0x8] sm:$0xf]
    %v6053 = vld [vmem:[%s6049 + $0xc] sm:$0xf]
    %v6054 = vpack.c.bf16 %v6042, %v6041
    %v6055 = vpack.c.bf16 %v6044, %v6043
    %v6056 = vpack.c.bf16 %v6046, %v6045
    %v6057 = vpack.c.bf16 %v6048, %v6047
    %v6062 = vunpack.c.l.b16 %v6050
    %v6063 = vunpack.c.l.b16 %v6051
    %v6064 = vunpack.c.l.b16 %v6052
    %v6065 = vunpack.c.l.b16 %v6053
    %v6066 = vpack.c.b16 %v6063, %v6062
    %v6067 = vpack.c.b16 %v6065, %v6064
    %v6071 = vsel %vm70, %v6054, 0
    %v6074 = vsel %vm70, %v6055, 0
    %v6077 = vsel %vm70, %v6056, 0
    %v6080 = vsel %vm70, %v6057, 0
    %6082 = vmatprep.subr.bf16.mxu0 0
    %6083 = vmatpush1.bf16.msra.mxu0 %v6066
    %6084 = vmatprep.subr.bf16.mxu0 0
    %6085 = vmatpush1.bf16.msra.mxu0 %v6067
    %6086 = vmatprep.subr.bf16.mxu0 0
    %6087 = vmatpush1.bf16.msra.mxu0 0
    %6088 = vmatprep.subr.bf16.mxu0 0
    %6089 = vmatpush1.bf16.msra.mxu0 0
    %6090 = vmatprep.subr.bf16.mxu0 0
    %6091 = vmatpush1.bf16.msra.mxu0 0
    %6092 = vmatprep.subr.bf16.mxu0 0
    %6093 = vmatpush1.bf16.msra.mxu0 0
    %6094 = vmatprep.subr.bf16.mxu0 0
    %6095 = vmatpush1.bf16.msra.mxu0 0
    %6096 = vmatprep.subr.bf16.mxu0 0
    %6097 = vmatpush1.bf16.msra.mxu0 0
    %6098 = vmatprep.subr.bf16.mxu0 0
    %6099 = vmatpush1.bf16.msra.mxu0 0
    %6100 = vmatprep.subr.bf16.mxu0 0
    %6101 = vmatpush1.bf16.msra.mxu0 0
    %6102 = vmatprep.subr.bf16.mxu0 0
    %6103 = vmatpush1.bf16.msra.mxu0 0
    %6104 = vmatprep.subr.bf16.mxu0 0
    %6105 = vmatpush1.bf16.msra.mxu0 0
    %6106 = vmatprep.subr.bf16.mxu0 0
    %6107 = vmatpush1.bf16.msra.mxu0 0
    %6108 = vmatprep.subr.bf16.mxu0 0
    %6109 = vmatpush1.bf16.msra.mxu0 0
    %6110 = vmatprep.subr.bf16.mxu0 0
    %6111 = vmatpush1.bf16.msra.mxu0 0
    %6112 = vmatprep.subr.bf16.mxu0 0
    %6113 = vmatpush1.bf16.msra.mxu0 0
    %6114 = vmatprep.mubr.bf16.mxu0 0
    %6115 = vmatmul.mubr.bf16.gmra.mrb[0].mxu0 %v6071
    %v6116 = vpop.f32.mrb[0].mxu0
    %v6117 = vadd.f32 0.0, %v6116
    %v6118 = vpop.f32.mrb[0].mxu0
    %v6119 = vpop.f32.mrb[0].mxu0
    %v6120 = vadd.f32 0.0, %v6119
    %v6121 = vpop.f32.mrb[0].mxu0
    %6122 = vmatprep.mubr.bf16.mxu0 0
    %6123 = vmatmul.mubr.bf16.gmra.mrb[0].mxu0 %v6074
    %v6124 = vpop.f32.mrb[0].mxu0
    %v6125 = vadd.f32 0.0, %v6124
    %v6126 = vpop.f32.mrb[0].mxu0
    %v6127 = vpop.f32.mrb[0].mxu0
    %v6128 = vadd.f32 0.0, %v6127
    %v6129 = vpop.f32.mrb[0].mxu0
    %6130 = vmatprep.mubr.bf16.mxu0 0
    %6131 = vmatmul.mubr.bf16.gmra.mrb[0].mxu0 %v6077
    %v6132 = vpop.f32.mrb[0].mxu0
    %v6133 = vadd.f32 0.0, %v6132
    %v6134 = vpop.f32.mrb[0].mxu0
    %v6135 = vpop.f32.mrb[0].mxu0
    %v6136 = vadd.f32 0.0, %v6135
    %v6137 = vpop.f32.mrb[0].mxu0
    %6138 = vmatprep.mubr.bf16.mxu0 0
    %6139 = vmatmul.mubr.bf16.gmra.mrb[0].mxu0 %v6080
    %v6140 = vpop.f32.mrb[0].mxu0
    %v6141 = vadd.f32 0.0, %v6140
    %v6142 = vpop.f32.mrb[0].mxu0
    %v6143 = vpop.f32.mrb[0].mxu0
    %v6144 = vadd.f32 0.0, %v6143
    %v6145 = vpop.f32.mrb[0].mxu0
    %6146 = vdwg.mxu0
    %v6147 = vadd.f32 %v4399, %v6117
    %v6148 = vadd.f32 %v4400, %v6120
    %v6149 = vadd.f32 %v4401, %v6125
    %v6150 = vadd.f32 %v4402, %v6128
    %v6151 = vadd.f32 %v4403, %v6133
    %v6152 = vadd.f32 %v4404, %v6136
    %v6153 = vadd.f32 %v4405, %v6141
    %v6154 = vadd.f32 %v4406, %v6144
    %s6155 = scalar_lea.vmem %s6, 2
    %v6156 = vld [vmem:[%s6155] sm:$0x1]
    %v6158 = vlaneseq
    %v6159 = vshrl.u32 %v6158, 7
    %v6160 = vsub.s32 0, %v6159
    %v6161 = vrot.slane %v6156, %v6160
    %v6163 = vadd.f32 %v6147, %v6161
    %v6164 = vadd.f32 %v6148, %v6161
    %v6165 = vadd.f32 %v6149, %v6161
    %v6166 = vadd.f32 %v6150, %v6161
    %v6167 = vadd.f32 %v6151, %v6161
    %v6168 = vadd.f32 %v6152, %v6161
    %v6169 = vadd.f32 %v6153, %v6161
    %v6170 = vadd.f32 %v6154, %v6161
    %s6171 = scalar_lea.vmem %s7, 2
    %v6172 = vld [vmem:[%s6171] sm:$0x1]
    %s6173 = scalar_lea.vmem %s8, 2
    %v6174 = vld [vmem:[%s6173] sm:$0x1]
    %v6175 = vsel %vm70, %v6163, 0.0
    %6176 = vadd.xlane.f32.xlu0 %v6175
    %v6177 = vpop.xlane.xlu0 %6176
    %v6178 = vsel %vm70, %v6164, 0.0
    %6179 = vadd.xlane.f32.xlu0 %v6178
    %v6180 = vpop.xlane.xlu0 %6179
    %v6181 = vsel %vm70, %v6165, 0.0
    %6182 = vadd.xlane.f32.xlu0 %v6181
    %v6183 = vpop.xlane.xlu0 %6182
    %v6184 = vsel %vm70, %v6166, 0.0
    %6185 = vadd.xlane.f32.xlu0 %v6184
    %v6186 = vpop.xlane.xlu0 %6185
    %v6187 = vsel %vm70, %v6167, 0.0
    %6188 = vadd.xlane.f32.xlu0 %v6187
    %v6189 = vpop.xlane.xlu0 %6188
    %v6190 = vsel %vm70, %v6168, 0.0
    %6191 = vadd.xlane.f32.xlu0 %v6190
    %v6192 = vpop.xlane.xlu0 %6191
    %v6193 = vsel %vm70, %v6169, 0.0
    %6194 = vadd.xlane.f32.xlu0 %v6193
    %v6195 = vpop.xlane.xlu0 %6194
    %v6196 = vsel %vm70, %v6170, 0.0
    %6197 = vadd.xlane.f32.xlu0 %v6196
    %v6198 = vpop.xlane.xlu0 %6197
    %v6199 = vmul.f32 %v6177, %v95
    %v6200 = vmul.f32 %v6180, %v95
    %v6201 = vmul.f32 %v6183, %v95
    %v6202 = vmul.f32 %v6186, %v95
    %v6203 = vmul.f32 %v6189, %v95
    %v6204 = vmul.f32 %v6192, %v95
    %v6205 = vmul.f32 %v6195, %v95
    %v6206 = vmul.f32 %v6198, %v95
    %v6207 = vsub.f32 %v6163, %v6199
    %v6208 = vsub.f32 %v6164, %v6200
    %v6209 = vsub.f32 %v6165, %v6201
    %v6210 = vsub.f32 %v6166, %v6202
    %v6211 = vsub.f32 %v6167, %v6203
    %v6212 = vsub.f32 %v6168, %v6204
    %v6213 = vsub.f32 %v6169, %v6205
    %v6214 = vsub.f32 %v6170, %v6206
    %v6215 = vmul.f32 %v6207, %v6207
    %v6216 = vmul.f32 %v6208, %v6208
    %v6217 = vmul.f32 %v6209, %v6209
    %v6218 = vmul.f32 %v6210, %v6210
    %v6219 = vmul.f32 %v6211, %v6211
    %v6220 = vmul.f32 %v6212, %v6212
    %v6221 = vmul.f32 %v6213, %v6213
    %v6222 = vmul.f32 %v6214, %v6214
    %v6223 = vsel %vm70, %v6215, 0.0
    %6224 = vadd.xlane.f32.xlu0 %v6223
    %v6225 = vpop.xlane.xlu0 %6224
    %v6226 = vsel %vm70, %v6216, 0.0
    %6227 = vadd.xlane.f32.xlu0 %v6226
    %v6228 = vpop.xlane.xlu0 %6227
    %v6229 = vsel %vm70, %v6217, 0.0
    %6230 = vadd.xlane.f32.xlu0 %v6229
    %v6231 = vpop.xlane.xlu0 %6230
    %v6232 = vsel %vm70, %v6218, 0.0
    %6233 = vadd.xlane.f32.xlu0 %v6232
    %v6234 = vpop.xlane.xlu0 %6233
    %v6235 = vsel %vm70, %v6219, 0.0
    %6236 = vadd.xlane.f32.xlu0 %v6235
    %v6237 = vpop.xlane.xlu0 %6236
    %v6238 = vsel %vm70, %v6220, 0.0
    %6239 = vadd.xlane.f32.xlu0 %v6238
    %v6240 = vpop.xlane.xlu0 %6239
    %v6241 = vsel %vm70, %v6221, 0.0
    %6242 = vadd.xlane.f32.xlu0 %v6241
    %v6243 = vpop.xlane.xlu0 %6242
    %v6244 = vsel %vm70, %v6222, 0.0
    %6245 = vadd.xlane.f32.xlu0 %v6244
    %v6246 = vpop.xlane.xlu0 %6245
    %v6247 = vmul.f32 %v6225, %v95
    %v6248 = vmul.f32 %v6228, %v95
    %v6249 = vmul.f32 %v6231, %v95
    %v6250 = vmul.f32 %v6234, %v95
    %v6251 = vmul.f32 %v6237, %v95
    %v6252 = vmul.f32 %v6240, %v95
    %v6253 = vmul.f32 %v6243, %v95
    %v6254 = vmul.f32 %v6246, %v95
    %v6255 = vadd.f32 %v6247, 1e-05
    %v6256 = vadd.f32 %v6248, 1e-05
    %v6257 = vadd.f32 %v6249, 1e-05
    %v6258 = vadd.f32 %v6250, 1e-05
    %v6259 = vadd.f32 %v6251, 1e-05
    %v6260 = vadd.f32 %v6252, 1e-05
    %v6261 = vadd.f32 %v6253, 1e-05
    %v6262 = vadd.f32 %v6254, 1e-05
    %v6263 = vrsqrt.pop %v6255
    %v6264 = vrsqrt.pop %v6256
    %v6265 = vrsqrt.pop %v6257
    %v6266 = vrsqrt.pop %v6258
    %v6267 = vrsqrt.pop %v6259
    %v6268 = vrsqrt.pop %v6260
    %v6269 = vrsqrt.pop %v6261
    %v6270 = vrsqrt.pop %v6262
    %v6271 = vmul.f32 %v6207, %v6263
    %v6272 = vmul.f32 %v6208, %v6264
    %v6273 = vmul.f32 %v6209, %v6265
    %v6274 = vmul.f32 %v6210, %v6266
    %v6275 = vmul.f32 %v6211, %v6267
    %v6276 = vmul.f32 %v6212, %v6268
    %v6277 = vmul.f32 %v6213, %v6269
    %v6278 = vmul.f32 %v6214, %v6270
    %v6280 = vlaneseq
    %v6281 = vshrl.u32 %v6280, 7
    %v6282 = vsub.s32 0, %v6281
    %v6283 = vrot.slane %v6172, %v6282
    %v6285 = vmul.f32 %v6271, %v6283
    %v6286 = vmul.f32 %v6272, %v6283
    %v6287 = vmul.f32 %v6273, %v6283
    %v6288 = vmul.f32 %v6274, %v6283
    %v6289 = vmul.f32 %v6275, %v6283
    %v6290 = vmul.f32 %v6276, %v6283
    %v6291 = vmul.f32 %v6277, %v6283
    %v6292 = vmul.f32 %v6278, %v6283
    %v6294 = vlaneseq
    %v6295 = vshrl.u32 %v6294, 7
    %v6296 = vsub.s32 0, %v6295
    %v6297 = vrot.slane %v6174, %v6296
    %v6299 = vadd.f32 %v6285, %v6297
    %v6300 = vadd.f32 %v6286, %v6297
    %v6301 = vadd.f32 %v6287, %v6297
    %v6302 = vadd.f32 %v6288, %v6297
    %v6303 = vadd.f32 %v6289, %v6297
    %v6304 = vadd.f32 %v6290, %v6297
    %v6305 = vadd.f32 %v6291, %v6297
    %v6306 = vadd.f32 %v6292, %v6297
    %s6307 = scalar_lea.vmem %s9, 32
    %v6308 = vld [vmem:[%s6307] sm:$0xf]
    %v6309 = vld [vmem:[%s6307 + $0x4] sm:$0xf]
    %v6310 = vld [vmem:[%s6307 + $0x8] sm:$0xf]
    %v6311 = vld [vmem:[%s6307 + $0xc] sm:$0xf]
    %v6312 = vpack.c.bf16 %v6300, %v6299
    %v6313 = vpack.c.bf16 %v6302, %v6301
    %v6314 = vpack.c.bf16 %v6304, %v6303
    %v6315 = vpack.c.bf16 %v6306, %v6305
    %s6316 = scalar_lea.vmem %s10, 2
    %v6317 = vld [vmem:[%s6316] sm:$0x1]
    %v6319 = vlaneseq
    %v6320 = vshrl.u32 %v6319, 7
    %v6321 = vsub.s32 0, %v6320
    %v6322 = vrot.slane %v6317, %v6321
    %v6328 = vunpack.c.l.b16 %v6308
    %v6329 = vunpack.c.l.b16 %v6309
    %v6330 = vunpack.c.l.b16 %v6310
    %v6331 = vunpack.c.l.b16 %v6311
    %v6332 = vpack.c.b16 %v6329, %v6328
    %v6333 = vpack.c.b16 %v6331, %v6330
    %v6337 = vsel %vm70, %v6312, 0
    %v6340 = vsel %vm70, %v6313, 0
    %v6343 = vsel %vm70, %v6314, 0
    %v6346 = vsel %vm70, %v6315, 0
    %6348 = vmatprep.subr.bf16.mxu0 0
    %6349 = vmatpush1.bf16.msra.mxu0 %v6332
    %6350 = vmatprep.subr.bf16.mxu0 0
    %6351 = vmatpush1.bf16.msra.mxu0 %v6333
    %6352 = vmatprep.subr.bf16.mxu0 0
    %6353 = vmatpush1.bf16.msra.mxu0 0
    %6354 = vmatprep.subr.bf16.mxu0 0
    %6355 = vmatpush1.bf16.msra.mxu0 0
    %6356 = vmatprep.subr.bf16.mxu0 0
    %6357 = vmatpush1.bf16.msra.mxu0 0
    %6358 = vmatprep.subr.bf16.mxu0 0
    %6359 = vmatpush1.bf16.msra.mxu0 0
    %6360 = vmatprep.subr.bf16.mxu0 0
    %6361 = vmatpush1.bf16.msra.mxu0 0
    %6362 = vmatprep.subr.bf16.mxu0 0
    %6363 = vmatpush1.bf16.msra.mxu0 0
    %6364 = vmatprep.subr.bf16.mxu0 0
    %6365 = vmatpush1.bf16.msra.mxu0 0
    %6366 = vmatprep.subr.bf16.mxu0 0
    %6367 = vmatpush1.bf16.msra.mxu0 0
    %6368 = vmatprep.subr.bf16.mxu0 0
    %6369 = vmatpush1.bf16.msra.mxu0 0
    %6370 = vmatprep.subr.bf16.mxu0 0
    %6371 = vmatpush1.bf16.msra.mxu0 0
    %6372 = vmatprep.subr.bf16.mxu0 0
    %6373 = vmatpush1.bf16.msra.mxu0 0
    %6374 = vmatprep.subr.bf16.mxu0 0
    %6375 = vmatpush1.bf16.msra.mxu0 0
    %6376 = vmatprep.subr.bf16.mxu0 0
    %6377 = vmatpush1.bf16.msra.mxu0 0
    %6378 = vmatprep.subr.bf16.mxu0 0
    %6379 = vmatpush1.bf16.msra.mxu0 0
    %6380 = vmatprep.mubr.bf16.mxu0 0
    %6381 = vmatmul.mubr.bf16.gmra.mrb[0].mxu0 %v6337
    %v6382 = vpop.f32.mrb[0].mxu0
    %v6383 = vadd.f32 %v6322, %v6382
    %v6384 = vpop.f32.mrb[0].mxu0
    %v6385 = vpop.f32.mrb[0].mxu0
    %v6386 = vadd.f32 %v6322, %v6385
    %v6387 = vpop.f32.mrb[0].mxu0
    %6388 = vmatprep.mubr.bf16.mxu0 0
    %6389 = vmatmul.mubr.bf16.gmra.mrb[0].mxu0 %v6340
    %v6390 = vpop.f32.mrb[0].mxu0
    %v6391 = vadd.f32 %v6322, %v6390
    %v6392 = vpop.f32.mrb[0].mxu0
    %v6393 = vpop.f32.mrb[0].mxu0
    %v6394 = vadd.f32 %v6322, %v6393
    %v6395 = vpop.f32.mrb[0].mxu0
    %6396 = vmatprep.mubr.bf16.mxu0 0
    %6397 = vmatmul.mubr.bf16.gmra.mrb[0].mxu0 %v6343
    %v6398 = vpop.f32.mrb[0].mxu0
    %v6399 = vadd.f32 %v6322, %v6398
    %v6400 = vpop.f32.mrb[0].mxu0
    %v6401 = vpop.f32.mrb[0].mxu0
    %v6402 = vadd.f32 %v6322, %v6401
    %v6403 = vpop.f32.mrb[0].mxu0
    %6404 = vmatprep.mubr.bf16.mxu0 0
    %6405 = vmatmul.mubr.bf16.gmra.mrb[0].mxu0 %v6346
    %v6406 = vpop.f32.mrb[0].mxu0
    %v6407 = vadd.f32 %v6322, %v6406
    %v6408 = vpop.f32.mrb[0].mxu0
    %v6409 = vpop.f32.mrb[0].mxu0
    %v6410 = vadd.f32 %v6322, %v6409
    %v6411 = vpop.f32.mrb[0].mxu0
    %6412 = vdwg.mxu0
    %v6413 = vmax.f32 %v6383, 0.0
    %v6414 = vmax.f32 %v6386, 0.0
    %v6415 = vmax.f32 %v6391, 0.0
    %v6416 = vmax.f32 %v6394, 0.0
    %v6417 = vmax.f32 %v6399, 0.0
    %v6418 = vmax.f32 %v6402, 0.0
    %v6419 = vmax.f32 %v6407, 0.0
    %v6420 = vmax.f32 %v6410, 0.0
    %s6421 = scalar_lea.vmem %s11, 128
    %v6422 = vld [vmem:[%s6421] sm:$0xf]
    %v6423 = vld [vmem:[%s6421 + $0x4] sm:$0xf]
    %v6424 = vld [vmem:[%s6421 + $0x8] sm:$0xf]
    %v6425 = vld [vmem:[%s6421 + $0xc] sm:$0xf]
    %v6426 = vld [vmem:[%s6421 + $0x10] sm:$0xf]
    %v6427 = vld [vmem:[%s6421 + $0x14] sm:$0xf]
    %v6428 = vld [vmem:[%s6421 + $0x18] sm:$0xf]
    %v6429 = vld [vmem:[%s6421 + $0x1c] sm:$0xf]
    %v6430 = vld [vmem:[%s6421 + $0x20] sm:$0xf]
    %v6431 = vld [vmem:[%s6421 + $0x24] sm:$0xf]
    %v6432 = vld [vmem:[%s6421 + $0x28] sm:$0xf]
    %v6433 = vld [vmem:[%s6421 + $0x2c] sm:$0xf]
    %v6434 = vld [vmem:[%s6421 + $0x30] sm:$0xf]
    %v6435 = vld [vmem:[%s6421 + $0x34] sm:$0xf]
    %v6436 = vld [vmem:[%s6421 + $0x38] sm:$0xf]
    %v6437 = vld [vmem:[%s6421 + $0x3c] sm:$0xf]
    %v6438 = vpack.c.bf16 %v6414, %v6413
    %v6439 = vpack.c.bf16 %v6416, %v6415
    %v6440 = vpack.c.bf16 %v6418, %v6417
    %v6441 = vpack.c.bf16 %v6420, %v6419
    %v6458 = vunpack.c.l.b16 %v6422
    %v6459 = vunpack.c.l.b16 %v6423
    %v6460 = vunpack.c.l.b16 %v6424
    %v6461 = vunpack.c.l.b16 %v6425
    %v6462 = vunpack.c.l.b16 %v6426
    %v6463 = vunpack.c.l.b16 %v6427
    %v6464 = vunpack.c.l.b16 %v6428
    %v6465 = vunpack.c.l.b16 %v6429
    %v6466 = vunpack.c.l.b16 %v6430
    %v6467 = vunpack.c.l.b16 %v6431
    %v6468 = vunpack.c.l.b16 %v6432
    %v6469 = vunpack.c.l.b16 %v6433
    %v6470 = vunpack.c.l.b16 %v6434
    %v6471 = vunpack.c.l.b16 %v6435
    %v6472 = vunpack.c.l.b16 %v6436
    %v6473 = vunpack.c.l.b16 %v6437
    %v6474 = vpack.c.b16 %v6459, %v6458
    %v6475 = vpack.c.b16 %v6461, %v6460
    %v6476 = vpack.c.b16 %v6463, %v6462
    %v6477 = vpack.c.b16 %v6465, %v6464
    %v6478 = vpack.c.b16 %v6467, %v6466
    %v6479 = vpack.c.b16 %v6469, %v6468
    %v6480 = vpack.c.b16 %v6471, %v6470
    %v6481 = vpack.c.b16 %v6473, %v6472
    %6490 = vmatprep.subr.bf16.mxu0 0
    %6491 = vmatpush1.bf16.msra.mxu0 %v6474
    %6492 = vmatprep.subr.bf16.mxu0 0
    %6493 = vmatpush1.bf16.msra.mxu0 %v6475
    %6494 = vmatprep.subr.bf16.mxu0 0
    %6495 = vmatpush1.bf16.msra.mxu0 %v6476
    %6496 = vmatprep.subr.bf16.mxu0 0
    %6497 = vmatpush1.bf16.msra.mxu0 %v6477
    %6498 = vmatprep.subr.bf16.mxu0 0
    %6499 = vmatpush1.bf16.msra.mxu0 %v6478
    %6500 = vmatprep.subr.bf16.mxu0 0
    %6501 = vmatpush1.bf16.msra.mxu0 %v6479
    %6502 = vmatprep.subr.bf16.mxu0 0
    %6503 = vmatpush1.bf16.msra.mxu0 %v6480
    %6504 = vmatprep.subr.bf16.mxu0 0
    %6505 = vmatpush1.bf16.msra.mxu0 %v6481
    %6506 = vmatprep.subr.bf16.mxu0 0
    %6507 = vmatpush1.bf16.msra.mxu0 0
    %6508 = vmatprep.subr.bf16.mxu0 0
    %6509 = vmatpush1.bf16.msra.mxu0 0
    %6510 = vmatprep.subr.bf16.mxu0 0
    %6511 = vmatpush1.bf16.msra.mxu0 0
    %6512 = vmatprep.subr.bf16.mxu0 0
    %6513 = vmatpush1.bf16.msra.mxu0 0
    %6514 = vmatprep.subr.bf16.mxu0 0
    %6515 = vmatpush1.bf16.msra.mxu0 0
    %6516 = vmatprep.subr.bf16.mxu0 0
    %6517 = vmatpush1.bf16.msra.mxu0 0
    %6518 = vmatprep.subr.bf16.mxu0 0
    %6519 = vmatpush1.bf16.msra.mxu0 0
    %6520 = vmatprep.subr.bf16.mxu0 0
    %6521 = vmatpush1.bf16.msra.mxu0 0
    %6522 = vmatprep.mubr.bf16.mxu0 0
    %6523 = vmatmul.mubr.bf16.gmra.mrb[0].mxu0 %v6438
    %v6524 = vpop.f32.mrb[0].mxu0
    %v6525 = vadd.f32 0.0, %v6524
    %v6526 = vpop.f32.mrb[0].mxu0
    %v6527 = vpop.f32.mrb[0].mxu0
    %v6528 = vadd.f32 0.0, %v6527
    %v6529 = vpop.f32.mrb[0].mxu0
    %6530 = vmatprep.mubr.bf16.mxu0 0
    %6531 = vmatmul.mubr.bf16.gmra.mrb[0].mxu0 %v6439
    %v6532 = vpop.f32.mrb[0].mxu0
    %v6533 = vadd.f32 0.0, %v6532
    %v6534 = vpop.f32.mrb[0].mxu0
    %v6535 = vpop.f32.mrb[0].mxu0
    %v6536 = vadd.f32 0.0, %v6535
    %v6537 = vpop.f32.mrb[0].mxu0
    %6538 = vmatprep.mubr.bf16.mxu0 0
    %6539 = vmatmul.mubr.bf16.gmra.mrb[0].mxu0 %v6440
    %v6540 = vpop.f32.mrb[0].mxu0
    %v6541 = vadd.f32 0.0, %v6540
    %v6542 = vpop.f32.mrb[0].mxu0
    %v6543 = vpop.f32.mrb[0].mxu0
    %v6544 = vadd.f32 0.0, %v6543
    %v6545 = vpop.f32.mrb[0].mxu0
    %6546 = vmatprep.mubr.bf16.mxu0 0
    %6547 = vmatmul.mubr.bf16.gmra.mrb[0].mxu0 %v6441
    %v6548 = vpop.f32.mrb[0].mxu0
    %v6549 = vadd.f32 0.0, %v6548
    %v6550 = vpop.f32.mrb[0].mxu0
    %v6551 = vpop.f32.mrb[0].mxu0
    %v6552 = vadd.f32 0.0, %v6551
    %v6553 = vpop.f32.mrb[0].mxu0
    %6554 = vdwg.mxu0
    %v6555 = vadd.f32 %v6163, %v6525
    %v6556 = vadd.f32 %v6164, %v6528
    %v6557 = vadd.f32 %v6165, %v6533
    %v6558 = vadd.f32 %v6166, %v6536
    %v6559 = vadd.f32 %v6167, %v6541
    %v6560 = vadd.f32 %v6168, %v6544
    %v6561 = vadd.f32 %v6169, %v6549
    %v6562 = vadd.f32 %v6170, %v6552
    %s6563 = scalar_lea.vmem %s12, 2
    %v6564 = vld [vmem:[%s6563] sm:$0x1]
    %v6566 = vlaneseq
    %v6567 = vshrl.u32 %v6566, 7
    %v6568 = vsub.s32 0, %v6567
    %v6569 = vrot.slane %v6564, %v6568
    %v6571 = vadd.f32 %v6555, %v6569
    %v6572 = vadd.f32 %v6556, %v6569
    %v6573 = vadd.f32 %v6557, %v6569
    %v6574 = vadd.f32 %v6558, %v6569
    %v6575 = vadd.f32 %v6559, %v6569
    %v6576 = vadd.f32 %v6560, %v6569
    %v6577 = vadd.f32 %v6561, %v6569
    %v6578 = vadd.f32 %v6562, %v6569
    %s6579 = scalar_lea.vmem %s2, 3
    %v6580 = vld [vmem:[%s6579] sm:$0x1]
    %s6581 = scalar_lea.vmem %s3, 3
    %v6582 = vld [vmem:[%s6581] sm:$0x1]
    %v6583 = vsel %vm70, %v6571, 0.0
    %6584 = vadd.xlane.f32.xlu0 %v6583
    %v6585 = vpop.xlane.xlu0 %6584
    %v6586 = vsel %vm70, %v6572, 0.0
    %6587 = vadd.xlane.f32.xlu0 %v6586
    %v6588 = vpop.xlane.xlu0 %6587
    %v6589 = vsel %vm70, %v6573, 0.0
    %6590 = vadd.xlane.f32.xlu0 %v6589
    %v6591 = vpop.xlane.xlu0 %6590
    %v6592 = vsel %vm70, %v6574, 0.0
    %6593 = vadd.xlane.f32.xlu0 %v6592
    %v6594 = vpop.xlane.xlu0 %6593
    %v6595 = vsel %vm70, %v6575, 0.0
    %6596 = vadd.xlane.f32.xlu0 %v6595
    %v6597 = vpop.xlane.xlu0 %6596
    %v6598 = vsel %vm70, %v6576, 0.0
    %6599 = vadd.xlane.f32.xlu0 %v6598
    %v6600 = vpop.xlane.xlu0 %6599
    %v6601 = vsel %vm70, %v6577, 0.0
    %6602 = vadd.xlane.f32.xlu0 %v6601
    %v6603 = vpop.xlane.xlu0 %6602
    %v6604 = vsel %vm70, %v6578, 0.0
    %6605 = vadd.xlane.f32.xlu0 %v6604
    %v6606 = vpop.xlane.xlu0 %6605
    %v6607 = vmul.f32 %v6585, %v95
    %v6608 = vmul.f32 %v6588, %v95
    %v6609 = vmul.f32 %v6591, %v95
    %v6610 = vmul.f32 %v6594, %v95
    %v6611 = vmul.f32 %v6597, %v95
    %v6612 = vmul.f32 %v6600, %v95
    %v6613 = vmul.f32 %v6603, %v95
    %v6614 = vmul.f32 %v6606, %v95
    %v6615 = vsub.f32 %v6571, %v6607
    %v6616 = vsub.f32 %v6572, %v6608
    %v6617 = vsub.f32 %v6573, %v6609
    %v6618 = vsub.f32 %v6574, %v6610
    %v6619 = vsub.f32 %v6575, %v6611
    %v6620 = vsub.f32 %v6576, %v6612
    %v6621 = vsub.f32 %v6577, %v6613
    %v6622 = vsub.f32 %v6578, %v6614
    %v6623 = vmul.f32 %v6615, %v6615
    %v6624 = vmul.f32 %v6616, %v6616
    %v6625 = vmul.f32 %v6617, %v6617
    %v6626 = vmul.f32 %v6618, %v6618
    %v6627 = vmul.f32 %v6619, %v6619
    %v6628 = vmul.f32 %v6620, %v6620
    %v6629 = vmul.f32 %v6621, %v6621
    %v6630 = vmul.f32 %v6622, %v6622
    %v6631 = vsel %vm70, %v6623, 0.0
    %6632 = vadd.xlane.f32.xlu0 %v6631
    %v6633 = vpop.xlane.xlu0 %6632
    %v6634 = vsel %vm70, %v6624, 0.0
    %6635 = vadd.xlane.f32.xlu0 %v6634
    %v6636 = vpop.xlane.xlu0 %6635
    %v6637 = vsel %vm70, %v6625, 0.0
    %6638 = vadd.xlane.f32.xlu0 %v6637
    %v6639 = vpop.xlane.xlu0 %6638
    %v6640 = vsel %vm70, %v6626, 0.0
    %6641 = vadd.xlane.f32.xlu0 %v6640
    %v6642 = vpop.xlane.xlu0 %6641
    %v6643 = vsel %vm70, %v6627, 0.0
    %6644 = vadd.xlane.f32.xlu0 %v6643
    %v6645 = vpop.xlane.xlu0 %6644
    %v6646 = vsel %vm70, %v6628, 0.0
    %6647 = vadd.xlane.f32.xlu0 %v6646
    %v6648 = vpop.xlane.xlu0 %6647
    %v6649 = vsel %vm70, %v6629, 0.0
    %6650 = vadd.xlane.f32.xlu0 %v6649
    %v6651 = vpop.xlane.xlu0 %6650
    %v6652 = vsel %vm70, %v6630, 0.0
    %6653 = vadd.xlane.f32.xlu0 %v6652
    %v6654 = vpop.xlane.xlu0 %6653
    %v6655 = vmul.f32 %v6633, %v95
    %v6656 = vmul.f32 %v6636, %v95
    %v6657 = vmul.f32 %v6639, %v95
    %v6658 = vmul.f32 %v6642, %v95
    %v6659 = vmul.f32 %v6645, %v95
    %v6660 = vmul.f32 %v6648, %v95
    %v6661 = vmul.f32 %v6651, %v95
    %v6662 = vmul.f32 %v6654, %v95
    %v6663 = vadd.f32 %v6655, 1e-05
    %v6664 = vadd.f32 %v6656, 1e-05
    %v6665 = vadd.f32 %v6657, 1e-05
    %v6666 = vadd.f32 %v6658, 1e-05
    %v6667 = vadd.f32 %v6659, 1e-05
    %v6668 = vadd.f32 %v6660, 1e-05
    %v6669 = vadd.f32 %v6661, 1e-05
    %v6670 = vadd.f32 %v6662, 1e-05
    %v6671 = vrsqrt.pop %v6663
    %v6672 = vrsqrt.pop %v6664
    %v6673 = vrsqrt.pop %v6665
    %v6674 = vrsqrt.pop %v6666
    %v6675 = vrsqrt.pop %v6667
    %v6676 = vrsqrt.pop %v6668
    %v6677 = vrsqrt.pop %v6669
    %v6678 = vrsqrt.pop %v6670
    %v6679 = vmul.f32 %v6615, %v6671
    %v6680 = vmul.f32 %v6616, %v6672
    %v6681 = vmul.f32 %v6617, %v6673
    %v6682 = vmul.f32 %v6618, %v6674
    %v6683 = vmul.f32 %v6619, %v6675
    %v6684 = vmul.f32 %v6620, %v6676
    %v6685 = vmul.f32 %v6621, %v6677
    %v6686 = vmul.f32 %v6622, %v6678
    %v6688 = vlaneseq
    %v6689 = vshrl.u32 %v6688, 7
    %v6690 = vsub.s32 0, %v6689
    %v6691 = vrot.slane %v6580, %v6690
    %v6693 = vmul.f32 %v6679, %v6691
    %v6694 = vmul.f32 %v6680, %v6691
    %v6695 = vmul.f32 %v6681, %v6691
    %v6696 = vmul.f32 %v6682, %v6691
    %v6697 = vmul.f32 %v6683, %v6691
    %v6698 = vmul.f32 %v6684, %v6691
    %v6699 = vmul.f32 %v6685, %v6691
    %v6700 = vmul.f32 %v6686, %v6691
    %v6702 = vlaneseq
    %v6703 = vshrl.u32 %v6702, 7
    %v6704 = vsub.s32 0, %v6703
    %v6705 = vrot.slane %v6582, %v6704
    %v6707 = vadd.f32 %v6693, %v6705
    %v6708 = vadd.f32 %v6694, %v6705
    %v6709 = vadd.f32 %v6695, %v6705
    %v6710 = vadd.f32 %v6696, %v6705
    %v6711 = vadd.f32 %v6697, %v6705
    %v6712 = vadd.f32 %v6698, %v6705
    %v6713 = vadd.f32 %v6699, %v6705
    %v6714 = vadd.f32 %v6700, %v6705
    %s6715 = scalar_lea.vmem %s4, 48
    %v6716 = vld [vmem:[%s6715] sm:$0xf]
    %v6717 = vld [vmem:[%s6715 + $0x4] sm:$0xf]
    %v6718 = vld [vmem:[%s6715 + $0x8] sm:$0xf]
    %v6719 = vld [vmem:[%s6715 + $0xc] sm:$0xf]
    %v6720 = vpack.c.bf16 %v6708, %v6707
    %v6721 = vpack.c.bf16 %v6710, %v6709
    %v6722 = vpack.c.bf16 %v6712, %v6711
    %v6723 = vpack.c.bf16 %v6714, %v6713
    %v6728 = vunpack.c.l.b16 %v6716
    %v6729 = vunpack.c.l.b16 %v6717
    %v6730 = vunpack.c.l.b16 %v6718
    %v6731 = vunpack.c.l.b16 %v6719
    %v6732 = vpack.c.b16 %v6729, %v6728
    %v6733 = vpack.c.b16 %v6731, %v6730
    %v6737 = vsel %vm70, %v6720, 0
    %v6740 = vsel %vm70, %v6721, 0
    %v6743 = vsel %vm70, %v6722, 0
    %v6746 = vsel %vm70, %v6723, 0
    %6748 = vmatprep.subr.bf16.mxu0 0
    %6749 = vmatpush1.bf16.msra.mxu0 %v6732
    %6750 = vmatprep.subr.bf16.mxu0 0
    %6751 = vmatpush1.bf16.msra.mxu0 %v6733
    %6752 = vmatprep.subr.bf16.mxu0 0
    %6753 = vmatpush1.bf16.msra.mxu0 0
    %6754 = vmatprep.subr.bf16.mxu0 0
    %6755 = vmatpush1.bf16.msra.mxu0 0
    %6756 = vmatprep.subr.bf16.mxu0 0
    %6757 = vmatpush1.bf16.msra.mxu0 0
    %6758 = vmatprep.subr.bf16.mxu0 0
    %6759 = vmatpush1.bf16.msra.mxu0 0
    %6760 = vmatprep.subr.bf16.mxu0 0
    %6761 = vmatpush1.bf16.msra.mxu0 0
    %6762 = vmatprep.subr.bf16.mxu0 0
    %6763 = vmatpush1.bf16.msra.mxu0 0
    %6764 = vmatprep.subr.bf16.mxu0 0
    %6765 = vmatpush1.bf16.msra.mxu0 0
    %6766 = vmatprep.subr.bf16.mxu0 0
    %6767 = vmatpush1.bf16.msra.mxu0 0
    %6768 = vmatprep.subr.bf16.mxu0 0
    %6769 = vmatpush1.bf16.msra.mxu0 0
    %6770 = vmatprep.subr.bf16.mxu0 0
    %6771 = vmatpush1.bf16.msra.mxu0 0
    %6772 = vmatprep.subr.bf16.mxu0 0
    %6773 = vmatpush1.bf16.msra.mxu0 0
    %6774 = vmatprep.subr.bf16.mxu0 0
    %6775 = vmatpush1.bf16.msra.mxu0 0
    %6776 = vmatprep.subr.bf16.mxu0 0
    %6777 = vmatpush1.bf16.msra.mxu0 0
    %6778 = vmatprep.subr.bf16.mxu0 0
    %6779 = vmatpush1.bf16.msra.mxu0 0
    %6780 = vmatprep.mubr.bf16.mxu0 0
    %6781 = vmatmul.mubr.bf16.gmra.mrb[0].mxu0 %v6737
    %v6782 = vpop.f32.mrb[0].mxu0
    %v6783 = vadd.f32 0.0, %v6782
    %v6784 = vpop.f32.mrb[0].mxu0
    %v6785 = vpop.f32.mrb[0].mxu0
    %v6786 = vadd.f32 0.0, %v6785
    %v6787 = vpop.f32.mrb[0].mxu0
    %6788 = vmatprep.mubr.bf16.mxu0 0
    %6789 = vmatmul.mubr.bf16.gmra.mrb[0].mxu0 %v6740
    %v6790 = vpop.f32.mrb[0].mxu0
    %v6791 = vadd.f32 0.0, %v6790
    %v6792 = vpop.f32.mrb[0].mxu0
    %v6793 = vpop.f32.mrb[0].mxu0
    %v6794 = vadd.f32 0.0, %v6793
    %v6795 = vpop.f32.mrb[0].mxu0
    %6796 = vmatprep.mubr.bf16.mxu0 0
    %6797 = vmatmul.mubr.bf16.gmra.mrb[0].mxu0 %v6743
    %v6798 = vpop.f32.mrb[0].mxu0
    %v6799 = vadd.f32 0.0, %v6798
    %v6800 = vpop.f32.mrb[0].mxu0
    %v6801 = vpop.f32.mrb[0].mxu0
    %v6802 = vadd.f32 0.0, %v6801
    %v6803 = vpop.f32.mrb[0].mxu0
    %6804 = vmatprep.mubr.bf16.mxu0 0
    %6805 = vmatmul.mubr.bf16.gmra.mrb[0].mxu0 %v6746
    %v6806 = vpop.f32.mrb[0].mxu0
    %v6807 = vadd.f32 0.0, %v6806
    %v6808 = vpop.f32.mrb[0].mxu0
    %v6809 = vpop.f32.mrb[0].mxu0
    %v6810 = vadd.f32 0.0, %v6809
    %v6811 = vpop.f32.mrb[0].mxu0
    %6812 = vdwg.mxu0
    %6821 = vrot.lane.b32.xlu0 %v6783, 120
    %v6822 = vpop.permute.xlu0 %6821
    %6823 = vrot.lane.b32.xlu0 %v6786, 120
    %v6824 = vpop.permute.xlu0 %6823
    %6825 = vrot.lane.b32.xlu0 %v6791, 120
    %v6826 = vpop.permute.xlu0 %6825
    %6827 = vrot.lane.b32.xlu0 %v6794, 120
    %v6828 = vpop.permute.xlu0 %6827
    %6829 = vrot.lane.b32.xlu0 %v6799, 120
    %v6830 = vpop.permute.xlu0 %6829
    %6831 = vrot.lane.b32.xlu0 %v6802, 120
    %v6832 = vpop.permute.xlu0 %6831
    %6833 = vrot.lane.b32.xlu0 %v6807, 120
    %v6834 = vpop.permute.xlu0 %6833
    %6835 = vrot.lane.b32.xlu0 %v6810, 120
    %v6836 = vpop.permute.xlu0 %6835
    %6845 = vrot.lane.b32.xlu0 %v6783, 112
    %v6846 = vpop.permute.xlu0 %6845
    %6847 = vrot.lane.b32.xlu0 %v6786, 112
    %v6848 = vpop.permute.xlu0 %6847
    %6849 = vrot.lane.b32.xlu0 %v6791, 112
    %v6850 = vpop.permute.xlu0 %6849
    %6851 = vrot.lane.b32.xlu0 %v6794, 112
    %v6852 = vpop.permute.xlu0 %6851
    %6853 = vrot.lane.b32.xlu0 %v6799, 112
    %v6854 = vpop.permute.xlu0 %6853
    %6855 = vrot.lane.b32.xlu0 %v6802, 112
    %v6856 = vpop.permute.xlu0 %6855
    %6857 = vrot.lane.b32.xlu0 %v6807, 112
    %v6858 = vpop.permute.xlu0 %6857
    %6859 = vrot.lane.b32.xlu0 %v6810, 112
    %v6860 = vpop.permute.xlu0 %6859
    %6869 = vrot.lane.b32.xlu0 %v6783, 104
    %v6870 = vpop.permute.xlu0 %6869
    %6871 = vrot.lane.b32.xlu0 %v6786, 104
    %v6872 = vpop.permute.xlu0 %6871
    %6873 = vrot.lane.b32.xlu0 %v6791, 104
    %v6874 = vpop.permute.xlu0 %6873
    %6875 = vrot.lane.b32.xlu0 %v6794, 104
    %v6876 = vpop.permute.xlu0 %6875
    %6877 = vrot.lane.b32.xlu0 %v6799, 104
    %v6878 = vpop.permute.xlu0 %6877
    %6879 = vrot.lane.b32.xlu0 %v6802, 104
    %v6880 = vpop.permute.xlu0 %6879
    %6881 = vrot.lane.b32.xlu0 %v6807, 104
    %v6882 = vpop.permute.xlu0 %6881
    %6883 = vrot.lane.b32.xlu0 %v6810, 104
    %v6884 = vpop.permute.xlu0 %6883
    %v6893 = vpack.c.bf16 %v6786, %v6783
    %v6894 = vpack.c.bf16 %v6794, %v6791
    %v6895 = vpack.c.bf16 %v6802, %v6799
    %v6896 = vpack.c.bf16 %v6810, %v6807
    %v6897 = vpack.c.bf16 %v6824, %v6822
    %v6898 = vpack.c.bf16 %v6828, %v6826
    %v6899 = vpack.c.bf16 %v6832, %v6830
    %v6900 = vpack.c.bf16 %v6836, %v6834
    %v6901 = vpack.c.bf16 %v6848, %v6846
    %v6902 = vpack.c.bf16 %v6852, %v6850
    %v6903 = vpack.c.bf16 %v6856, %v6854
    %v6904 = vpack.c.bf16 %v6860, %v6858
    %v6905 = vpack.c.bf16 %v6872, %v6870
    %v6906 = vpack.c.bf16 %v6876, %v6874
    %v6907 = vpack.c.bf16 %v6880, %v6878
    %v6908 = vpack.c.bf16 %v6884, %v6882
    %6913 = vrot.lane.b32.xlu0 %v6893, 96
    %v6914 = vpop.permute.xlu0 %6913
    %6915 = vrot.lane.b32.xlu0 %v6894, 96
    %v6916 = vpop.permute.xlu0 %6915
    %6917 = vrot.lane.b32.xlu0 %v6895, 96
    %v6918 = vpop.permute.xlu0 %6917
    %6919 = vrot.lane.b32.xlu0 %v6896, 96
    %v6920 = vpop.permute.xlu0 %6919
    %v6922 = vsel %vm409, %v6893, 0
    %v6925 = vsel %vm409, %v6894, 0
    %v6928 = vsel %vm409, %v6895, 0
    %v6931 = vsel %vm409, %v6896, 0
    %v6934 = vsel %vm409, %v6914, 0
    %v6937 = vsel %vm409, %v6916, 0
    %v6940 = vsel %vm409, %v6918, 0
    %v6943 = vsel %vm409, %v6920, 0
    %6945 = vmatprep.subr.bf16.mxu0 0
    %6946 = vmatpush1.bf16.xpose.msra.mxu0 %v6934
    %6947 = vmatprep.subr.bf16.mxu0 0
    %6948 = vmatpush1.bf16.xpose.msra.mxu0 %v6937
    %6949 = vmatprep.subr.bf16.mxu0 0
    %6950 = vmatpush1.bf16.xpose.msra.mxu0 %v6940
    %6951 = vmatprep.subr.bf16.mxu0 0
    %6952 = vmatpush1.bf16.xpose.msra.mxu0 %v6943
    %6953 = vmatprep.subr.bf16.mxu0 0
    %6954 = vmatpush1.bf16.xpose.msra.mxu0 0
    %6955 = vmatprep.subr.bf16.mxu0 0
    %6956 = vmatpush1.bf16.xpose.msra.mxu0 0
    %6957 = vmatprep.subr.bf16.mxu0 0
    %6958 = vmatpush1.bf16.xpose.msra.mxu0 0
    %6959 = vmatprep.subr.bf16.mxu0 0
    %6960 = vmatpush1.bf16.xpose.msra.mxu0 0
    %6961 = vmatprep.subr.bf16.mxu0 0
    %6962 = vmatpush1.bf16.xpose.msra.mxu0 0
    %6963 = vmatprep.subr.bf16.mxu0 0
    %6964 = vmatpush1.bf16.xpose.msra.mxu0 0
    %6965 = vmatprep.subr.bf16.mxu0 0
    %6966 = vmatpush1.bf16.xpose.msra.mxu0 0
    %6967 = vmatprep.subr.bf16.mxu0 0
    %6968 = vmatpush1.bf16.xpose.msra.mxu0 0
    %6969 = vmatprep.subr.bf16.mxu0 0
    %6970 = vmatpush1.bf16.xpose.msra.mxu0 0
    %6971 = vmatprep.subr.bf16.mxu0 0
    %6972 = vmatpush1.bf16.xpose.msra.mxu0 0
    %6973 = vmatprep.subr.bf16.mxu0 0
    %6974 = vmatpush1.bf16.xpose.msra.mxu0 0
    %6975 = vmatprep.subr.bf16.mxu0 0
    %6976 = vmatpush1.bf16.xpose.msra.mxu0 0
    %6977 = vmatprep.mubr.bf16.mxu0 0
    %6978 = vmatmul.mubr.bf16.gmra.mrb[0].mxu0 %v6922
    %v6979 = vpop.f32.mrb[0].mxu0
    %v6980 = vadd.f32 0.0, %v6979
    %v6981 = vpop.f32.mrb[0].mxu0
    %v6982 = vpop.f32.mrb[0].mxu0
    %v6983 = vadd.f32 0.0, %v6982
    %v6984 = vpop.f32.mrb[0].mxu0
    %6985 = vmatprep.mubr.bf16.mxu0 0
    %6986 = vmatmul.mubr.bf16.gmra.mrb[0].mxu0 %v6925
    %v6987 = vpop.f32.mrb[0].mxu0
    %v6988 = vadd.f32 0.0, %v6987
    %v6989 = vpop.f32.mrb[0].mxu0
    %v6990 = vpop.f32.mrb[0].mxu0
    %v6991 = vadd.f32 0.0, %v6990
    %v6992 = vpop.f32.mrb[0].mxu0
    %6993 = vmatprep.mubr.bf16.mxu0 0
    %6994 = vmatmul.mubr.bf16.gmra.mrb[0].mxu0 %v6928
    %v6995 = vpop.f32.mrb[0].mxu0
    %v6996 = vadd.f32 0.0, %v6995
    %v6997 = vpop.f32.mrb[0].mxu0
    %v6998 = vpop.f32.mrb[0].mxu0
    %v6999 = vadd.f32 0.0, %v6998
    %v7000 = vpop.f32.mrb[0].mxu0
    %7001 = vmatprep.mubr.bf16.mxu0 0
    %7002 = vmatmul.mubr.bf16.gmra.mrb[0].mxu0 %v6931
    %v7003 = vpop.f32.mrb[0].mxu0
    %v7004 = vadd.f32 0.0, %v7003
    %v7005 = vpop.f32.mrb[0].mxu0
    %v7006 = vpop.f32.mrb[0].mxu0
    %v7007 = vadd.f32 0.0, %v7006
    %v7008 = vpop.f32.mrb[0].mxu0
    %7009 = vdwg.mxu0
    %7014 = vrot.lane.b32.xlu0 %v6897, 96
    %v7015 = vpop.permute.xlu0 %7014
    %7016 = vrot.lane.b32.xlu0 %v6898, 96
    %v7017 = vpop.permute.xlu0 %7016
    %7018 = vrot.lane.b32.xlu0 %v6899, 96
    %v7019 = vpop.permute.xlu0 %7018
    %7020 = vrot.lane.b32.xlu0 %v6900, 96
    %v7021 = vpop.permute.xlu0 %7020
    %v7023 = vsel %vm409, %v6897, 0
    %v7026 = vsel %vm409, %v6898, 0
    %v7029 = vsel %vm409, %v6899, 0
    %v7032 = vsel %vm409, %v6900, 0
    %v7035 = vsel %vm409, %v7015, 0
    %v7038 = vsel %vm409, %v7017, 0
    %v7041 = vsel %vm409, %v7019, 0
    %v7044 = vsel %vm409, %v7021, 0
    %7046 = vmatprep.subr.bf16.mxu0 0
    %7047 = vmatpush1.bf16.xpose.msra.mxu0 %v7035
    %7048 = vmatprep.subr.bf16.mxu0 0
    %7049 = vmatpush1.bf16.xpose.msra.mxu0 %v7038
    %7050 = vmatprep.subr.bf16.mxu0 0
    %7051 = vmatpush1.bf16.xpose.msra.mxu0 %v7041
    %7052 = vmatprep.subr.bf16.mxu0 0
    %7053 = vmatpush1.bf16.xpose.msra.mxu0 %v7044
    %7054 = vmatprep.subr.bf16.mxu0 0
    %7055 = vmatpush1.bf16.xpose.msra.mxu0 0
    %7056 = vmatprep.subr.bf16.mxu0 0
    %7057 = vmatpush1.bf16.xpose.msra.mxu0 0
    %7058 = vmatprep.subr.bf16.mxu0 0
    %7059 = vmatpush1.bf16.xpose.msra.mxu0 0
    %7060 = vmatprep.subr.bf16.mxu0 0
    %7061 = vmatpush1.bf16.xpose.msra.mxu0 0
    %7062 = vmatprep.subr.bf16.mxu0 0
    %7063 = vmatpush1.bf16.xpose.msra.mxu0 0
    %7064 = vmatprep.subr.bf16.mxu0 0
    %7065 = vmatpush1.bf16.xpose.msra.mxu0 0
    %7066 = vmatprep.subr.bf16.mxu0 0
    %7067 = vmatpush1.bf16.xpose.msra.mxu0 0
    %7068 = vmatprep.subr.bf16.mxu0 0
    %7069 = vmatpush1.bf16.xpose.msra.mxu0 0
    %7070 = vmatprep.subr.bf16.mxu0 0
    %7071 = vmatpush1.bf16.xpose.msra.mxu0 0
    %7072 = vmatprep.subr.bf16.mxu0 0
    %7073 = vmatpush1.bf16.xpose.msra.mxu0 0
    %7074 = vmatprep.subr.bf16.mxu0 0
    %7075 = vmatpush1.bf16.xpose.msra.mxu0 0
    %7076 = vmatprep.subr.bf16.mxu0 0
    %7077 = vmatpush1.bf16.xpose.msra.mxu0 0
    %7078 = vmatprep.mubr.bf16.mxu0 0
    %7079 = vmatmul.mubr.bf16.gmra.mrb[0].mxu0 %v7023
    %v7080 = vpop.f32.mrb[0].mxu0
    %v7081 = vadd.f32 0.0, %v7080
    %v7082 = vpop.f32.mrb[0].mxu0
    %v7083 = vpop.f32.mrb[0].mxu0
    %v7084 = vadd.f32 0.0, %v7083
    %v7085 = vpop.f32.mrb[0].mxu0
    %7086 = vmatprep.mubr.bf16.mxu0 0
    %7087 = vmatmul.mubr.bf16.gmra.mrb[0].mxu0 %v7026
    %v7088 = vpop.f32.mrb[0].mxu0
    %v7089 = vadd.f32 0.0, %v7088
    %v7090 = vpop.f32.mrb[0].mxu0
    %v7091 = vpop.f32.mrb[0].mxu0
    %v7092 = vadd.f32 0.0, %v7091
    %v7093 = vpop.f32.mrb[0].mxu0
    %7094 = vmatprep.mubr.bf16.mxu0 0
    %7095 = vmatmul.mubr.bf16.gmra.mrb[0].mxu0 %v7029
    %v7096 = vpop.f32.mrb[0].mxu0
    %v7097 = vadd.f32 0.0, %v7096
    %v7098 = vpop.f32.mrb[0].mxu0
    %v7099 = vpop.f32.mrb[0].mxu0
    %v7100 = vadd.f32 0.0, %v7099
    %v7101 = vpop.f32.mrb[0].mxu0
    %7102 = vmatprep.mubr.bf16.mxu0 0
    %7103 = vmatmul.mubr.bf16.gmra.mrb[0].mxu0 %v7032
    %v7104 = vpop.f32.mrb[0].mxu0
    %v7105 = vadd.f32 0.0, %v7104
    %v7106 = vpop.f32.mrb[0].mxu0
    %v7107 = vpop.f32.mrb[0].mxu0
    %v7108 = vadd.f32 0.0, %v7107
    %v7109 = vpop.f32.mrb[0].mxu0
    %7110 = vdwg.mxu0
    %7115 = vrot.lane.b32.xlu0 %v6901, 96
    %v7116 = vpop.permute.xlu0 %7115
    %7117 = vrot.lane.b32.xlu0 %v6902, 96
    %v7118 = vpop.permute.xlu0 %7117
    %7119 = vrot.lane.b32.xlu0 %v6903, 96
    %v7120 = vpop.permute.xlu0 %7119
    %7121 = vrot.lane.b32.xlu0 %v6904, 96
    %v7122 = vpop.permute.xlu0 %7121
    %v7124 = vsel %vm409, %v6901, 0
    %v7127 = vsel %vm409, %v6902, 0
    %v7130 = vsel %vm409, %v6903, 0
    %v7133 = vsel %vm409, %v6904, 0
    %v7136 = vsel %vm409, %v7116, 0
    %v7139 = vsel %vm409, %v7118, 0
    %v7142 = vsel %vm409, %v7120, 0
    %v7145 = vsel %vm409, %v7122, 0
    %7147 = vmatprep.subr.bf16.mxu0 0
    %7148 = vmatpush1.bf16.xpose.msra.mxu0 %v7136
    %7149 = vmatprep.subr.bf16.mxu0 0
    %7150 = vmatpush1.bf16.xpose.msra.mxu0 %v7139
    %7151 = vmatprep.subr.bf16.mxu0 0
    %7152 = vmatpush1.bf16.xpose.msra.mxu0 %v7142
    %7153 = vmatprep.subr.bf16.mxu0 0
    %7154 = vmatpush1.bf16.xpose.msra.mxu0 %v7145
    %7155 = vmatprep.subr.bf16.mxu0 0
    %7156 = vmatpush1.bf16.xpose.msra.mxu0 0
    %7157 = vmatprep.subr.bf16.mxu0 0
    %7158 = vmatpush1.bf16.xpose.msra.mxu0 0
    %7159 = vmatprep.subr.bf16.mxu0 0
    %7160 = vmatpush1.bf16.xpose.msra.mxu0 0
    %7161 = vmatprep.subr.bf16.mxu0 0
    %7162 = vmatpush1.bf16.xpose.msra.mxu0 0
    %7163 = vmatprep.subr.bf16.mxu0 0
    %7164 = vmatpush1.bf16.xpose.msra.mxu0 0
    %7165 = vmatprep.subr.bf16.mxu0 0
    %7166 = vmatpush1.bf16.xpose.msra.mxu0 0
    %7167 = vmatprep.subr.bf16.mxu0 0
    %7168 = vmatpush1.bf16.xpose.msra.mxu0 0
    %7169 = vmatprep.subr.bf16.mxu0 0
    %7170 = vmatpush1.bf16.xpose.msra.mxu0 0
    %7171 = vmatprep.subr.bf16.mxu0 0
    %7172 = vmatpush1.bf16.xpose.msra.mxu0 0
    %7173 = vmatprep.subr.bf16.mxu0 0
    %7174 = vmatpush1.bf16.xpose.msra.mxu0 0
    %7175 = vmatprep.subr.bf16.mxu0 0
    %7176 = vmatpush1.bf16.xpose.msra.mxu0 0
    %7177 = vmatprep.subr.bf16.mxu0 0
    %7178 = vmatpush1.bf16.xpose.msra.mxu0 0
    %7179 = vmatprep.mubr.bf16.mxu0 0
    %7180 = vmatmul.mubr.bf16.gmra.mrb[0].mxu0 %v7124
    %v7181 = vpop.f32.mrb[0].mxu0
    %v7182 = vadd.f32 0.0, %v7181
    %v7183 = vpop.f32.mrb[0].mxu0
    %v7184 = vpop.f32.mrb[0].mxu0
    %v7185 = vadd.f32 0.0, %v7184
    %v7186 = vpop.f32.mrb[0].mxu0
    %7187 = vmatprep.mubr.bf16.mxu0 0
    %7188 = vmatmul.mubr.bf16.gmra.mrb[0].mxu0 %v7127
    %v7189 = vpop.f32.mrb[0].mxu0
    %v7190 = vadd.f32 0.0, %v7189
    %v7191 = vpop.f32.mrb[0].mxu0
    %v7192 = vpop.f32.mrb[0].mxu0
    %v7193 = vadd.f32 0.0, %v7192
    %v7194 = vpop.f32.mrb[0].mxu0
    %7195 = vmatprep.mubr.bf16.mxu0 0
    %7196 = vmatmul.mubr.bf16.gmra.mrb[0].mxu0 %v7130
    %v7197 = vpop.f32.mrb[0].mxu0
    %v7198 = vadd.f32 0.0, %v7197
    %v7199 = vpop.f32.mrb[0].mxu0
    %v7200 = vpop.f32.mrb[0].mxu0
    %v7201 = vadd.f32 0.0, %v7200
    %v7202 = vpop.f32.mrb[0].mxu0
    %7203 = vmatprep.mubr.bf16.mxu0 0
    %7204 = vmatmul.mubr.bf16.gmra.mrb[0].mxu0 %v7133
    %v7205 = vpop.f32.mrb[0].mxu0
    %v7206 = vadd.f32 0.0, %v7205
    %v7207 = vpop.f32.mrb[0].mxu0
    %v7208 = vpop.f32.mrb[0].mxu0
    %v7209 = vadd.f32 0.0, %v7208
    %v7210 = vpop.f32.mrb[0].mxu0
    %7211 = vdwg.mxu0
    %7216 = vrot.lane.b32.xlu0 %v6905, 96
    %v7217 = vpop.permute.xlu0 %7216
    %7218 = vrot.lane.b32.xlu0 %v6906, 96
    %v7219 = vpop.permute.xlu0 %7218
    %7220 = vrot.lane.b32.xlu0 %v6907, 96
    %v7221 = vpop.permute.xlu0 %7220
    %7222 = vrot.lane.b32.xlu0 %v6908, 96
    %v7223 = vpop.permute.xlu0 %7222
    %v7225 = vsel %vm409, %v6905, 0
    %v7228 = vsel %vm409, %v6906, 0
    %v7231 = vsel %vm409, %v6907, 0
    %v7234 = vsel %vm409, %v6908, 0
    %v7237 = vsel %vm409, %v7217, 0
    %v7240 = vsel %vm409, %v7219, 0
    %v7243 = vsel %vm409, %v7221, 0
    %v7246 = vsel %vm409, %v7223, 0
    %7248 = vmatprep.subr.bf16.mxu0 0
    %7249 = vmatpush1.bf16.xpose.msra.mxu0 %v7237
    %7250 = vmatprep.subr.bf16.mxu0 0
    %7251 = vmatpush1.bf16.xpose.msra.mxu0 %v7240
    %7252 = vmatprep.subr.bf16.mxu0 0
    %7253 = vmatpush1.bf16.xpose.msra.mxu0 %v7243
    %7254 = vmatprep.subr.bf16.mxu0 0
    %7255 = vmatpush1.bf16.xpose.msra.mxu0 %v7246
    %7256 = vmatprep.subr.bf16.mxu0 0
    %7257 = vmatpush1.bf16.xpose.msra.mxu0 0
    %7258 = vmatprep.subr.bf16.mxu0 0
    %7259 = vmatpush1.bf16.xpose.msra.mxu0 0
    %7260 = vmatprep.subr.bf16.mxu0 0
    %7261 = vmatpush1.bf16.xpose.msra.mxu0 0
    %7262 = vmatprep.subr.bf16.mxu0 0
    %7263 = vmatpush1.bf16.xpose.msra.mxu0 0
    %7264 = vmatprep.subr.bf16.mxu0 0
    %7265 = vmatpush1.bf16.xpose.msra.mxu0 0
    %7266 = vmatprep.subr.bf16.mxu0 0
    %7267 = vmatpush1.bf16.xpose.msra.mxu0 0
    %7268 = vmatprep.subr.bf16.mxu0 0
    %7269 = vmatpush1.bf16.xpose.msra.mxu0 0
    %7270 = vmatprep.subr.bf16.mxu0 0
    %7271 = vmatpush1.bf16.xpose.msra.mxu0 0
    %7272 = vmatprep.subr.bf16.mxu0 0
    %7273 = vmatpush1.bf16.xpose.msra.mxu0 0
    %7274 = vmatprep.subr.bf16.mxu0 0
    %7275 = vmatpush1.bf16.xpose.msra.mxu0 0
    %7276 = vmatprep.subr.bf16.mxu0 0
    %7277 = vmatpush1.bf16.xpose.msra.mxu0 0
    %7278 = vmatprep.subr.bf16.mxu0 0
    %7279 = vmatpush1.bf16.xpose.msra.mxu0 0
    %7280 = vmatprep.mubr.bf16.mxu0 0
    %7281 = vmatmul.mubr.bf16.gmra.mrb[0].mxu0 %v7225
    %v7282 = vpop.f32.mrb[0].mxu0
    %v7283 = vadd.f32 0.0, %v7282
    %v7284 = vpop.f32.mrb[0].mxu0
    %v7285 = vpop.f32.mrb[0].mxu0
    %v7286 = vadd.f32 0.0, %v7285
    %v7287 = vpop.f32.mrb[0].mxu0
    %7288 = vmatprep.mubr.bf16.mxu0 0
    %7289 = vmatmul.mubr.bf16.gmra.mrb[0].mxu0 %v7228
    %v7290 = vpop.f32.mrb[0].mxu0
    %v7291 = vadd.f32 0.0, %v7290
    %v7292 = vpop.f32.mrb[0].mxu0
    %v7293 = vpop.f32.mrb[0].mxu0
    %v7294 = vadd.f32 0.0, %v7293
    %v7295 = vpop.f32.mrb[0].mxu0
    %7296 = vmatprep.mubr.bf16.mxu0 0
    %7297 = vmatmul.mubr.bf16.gmra.mrb[0].mxu0 %v7231
    %v7298 = vpop.f32.mrb[0].mxu0
    %v7299 = vadd.f32 0.0, %v7298
    %v7300 = vpop.f32.mrb[0].mxu0
    %v7301 = vpop.f32.mrb[0].mxu0
    %v7302 = vadd.f32 0.0, %v7301
    %v7303 = vpop.f32.mrb[0].mxu0
    %7304 = vmatprep.mubr.bf16.mxu0 0
    %7305 = vmatmul.mubr.bf16.gmra.mrb[0].mxu0 %v7234
    %v7306 = vpop.f32.mrb[0].mxu0
    %v7307 = vadd.f32 0.0, %v7306
    %v7308 = vpop.f32.mrb[0].mxu0
    %v7309 = vpop.f32.mrb[0].mxu0
    %v7310 = vadd.f32 0.0, %v7309
    %v7311 = vpop.f32.mrb[0].mxu0
    %7312 = vdwg.mxu0
    %v7313 = vmul.f32 %v6980, 0.17677669
    %v7314 = vmul.f32 %v6983, 0.17677669
    %v7315 = vmul.f32 %v6988, 0.17677669
    %v7316 = vmul.f32 %v6991, 0.17677669
    %v7317 = vmul.f32 %v6996, 0.17677669
    %v7318 = vmul.f32 %v6999, 0.17677669
    %v7319 = vmul.f32 %v7004, 0.17677669
    %v7320 = vmul.f32 %v7007, 0.17677669
    %v7321 = vmul.f32 %v7081, 0.17677669
    %v7322 = vmul.f32 %v7084, 0.17677669
    %v7323 = vmul.f32 %v7089, 0.17677669
    %v7324 = vmul.f32 %v7092, 0.17677669
    %v7325 = vmul.f32 %v7097, 0.17677669
    %v7326 = vmul.f32 %v7100, 0.17677669
    %v7327 = vmul.f32 %v7105, 0.17677669
    %v7328 = vmul.f32 %v7108, 0.17677669
    %v7329 = vmul.f32 %v7182, 0.17677669
    %v7330 = vmul.f32 %v7185, 0.17677669
    %v7331 = vmul.f32 %v7190, 0.17677669
    %v7332 = vmul.f32 %v7193, 0.17677669
    %v7333 = vmul.f32 %v7198, 0.17677669
    %v7334 = vmul.f32 %v7201, 0.17677669
    %v7335 = vmul.f32 %v7206, 0.17677669
    %v7336 = vmul.f32 %v7209, 0.17677669
    %v7337 = vmul.f32 %v7283, 0.17677669
    %v7338 = vmul.f32 %v7286, 0.17677669
    %v7339 = vmul.f32 %v7291, 0.17677669
    %v7340 = vmul.f32 %v7294, 0.17677669
    %v7341 = vmul.f32 %v7299, 0.17677669
    %v7342 = vmul.f32 %v7302, 0.17677669
    %v7343 = vmul.f32 %v7307, 0.17677669
    %v7344 = vmul.f32 %v7310, 0.17677669
    %v7345 = vadd.f32 %v7313, %v60
    %v7346 = vadd.f32 %v7314, %v61
    %v7347 = vadd.f32 %v7315, %v62
    %v7348 = vadd.f32 %v7316, %v63
    %v7349 = vadd.f32 %v7317, %v64
    %v7350 = vadd.f32 %v7318, %v65
    %v7351 = vadd.f32 %v7319, %v66
    %v7352 = vadd.f32 %v7320, %v67
    %v7353 = vadd.f32 %v7321, %v60
    %v7354 = vadd.f32 %v7322, %v61
    %v7355 = vadd.f32 %v7323, %v62
    %v7356 = vadd.f32 %v7324, %v63
    %v7357 = vadd.f32 %v7325, %v64
    %v7358 = vadd.f32 %v7326, %v65
    %v7359 = vadd.f32 %v7327, %v66
    %v7360 = vadd.f32 %v7328, %v67
    %v7361 = vadd.f32 %v7329, %v60
    %v7362 = vadd.f32 %v7330, %v61
    %v7363 = vadd.f32 %v7331, %v62
    %v7364 = vadd.f32 %v7332, %v63
    %v7365 = vadd.f32 %v7333, %v64
    %v7366 = vadd.f32 %v7334, %v65
    %v7367 = vadd.f32 %v7335, %v66
    %v7368 = vadd.f32 %v7336, %v67
    %v7369 = vadd.f32 %v7337, %v60
    %v7370 = vadd.f32 %v7338, %v61
    %v7371 = vadd.f32 %v7339, %v62
    %v7372 = vadd.f32 %v7340, %v63
    %v7373 = vadd.f32 %v7341, %v64
    %v7374 = vadd.f32 %v7342, %v65
    %v7375 = vadd.f32 %v7343, %v66
    %v7376 = vadd.f32 %v7344, %v67
    %v7377 = vsel %vm866, %v7345, -inf
    %7378 = vmax.xlane.f32.xlu0 %v7377
    %v7379 = vpop.xlane.xlu0 %7378
    %v7380 = vsel %vm866, %v7346, -inf
    %7381 = vmax.xlane.f32.xlu0 %v7380
    %v7382 = vpop.xlane.xlu0 %7381
    %v7383 = vsel %vm866, %v7347, -inf
    %7384 = vmax.xlane.f32.xlu0 %v7383
    %v7385 = vpop.xlane.xlu0 %7384
    %v7386 = vsel %vm866, %v7348, -inf
    %7387 = vmax.xlane.f32.xlu0 %v7386
    %v7388 = vpop.xlane.xlu0 %7387
    %v7389 = vsel %vm866, %v7349, -inf
    %7390 = vmax.xlane.f32.xlu0 %v7389
    %v7391 = vpop.xlane.xlu0 %7390
    %v7392 = vsel %vm866, %v7350, -inf
    %7393 = vmax.xlane.f32.xlu0 %v7392
    %v7394 = vpop.xlane.xlu0 %7393
    %v7395 = vsel %vm866, %v7351, -inf
    %7396 = vmax.xlane.f32.xlu0 %v7395
    %v7397 = vpop.xlane.xlu0 %7396
    %v7398 = vsel %vm866, %v7352, -inf
    %7399 = vmax.xlane.f32.xlu0 %v7398
    %v7400 = vpop.xlane.xlu0 %7399
    %v7401 = vsel %vm866, %v7353, -inf
    %7402 = vmax.xlane.f32.xlu0 %v7401
    %v7403 = vpop.xlane.xlu0 %7402
    %v7404 = vsel %vm866, %v7354, -inf
    %7405 = vmax.xlane.f32.xlu0 %v7404
    %v7406 = vpop.xlane.xlu0 %7405
    %v7407 = vsel %vm866, %v7355, -inf
    %7408 = vmax.xlane.f32.xlu0 %v7407
    %v7409 = vpop.xlane.xlu0 %7408
    %v7410 = vsel %vm866, %v7356, -inf
    %7411 = vmax.xlane.f32.xlu0 %v7410
    %v7412 = vpop.xlane.xlu0 %7411
    %v7413 = vsel %vm866, %v7357, -inf
    %7414 = vmax.xlane.f32.xlu0 %v7413
    %v7415 = vpop.xlane.xlu0 %7414
    %v7416 = vsel %vm866, %v7358, -inf
    %7417 = vmax.xlane.f32.xlu0 %v7416
    %v7418 = vpop.xlane.xlu0 %7417
    %v7419 = vsel %vm866, %v7359, -inf
    %7420 = vmax.xlane.f32.xlu0 %v7419
    %v7421 = vpop.xlane.xlu0 %7420
    %v7422 = vsel %vm866, %v7360, -inf
    %7423 = vmax.xlane.f32.xlu0 %v7422
    %v7424 = vpop.xlane.xlu0 %7423
    %v7425 = vsel %vm866, %v7361, -inf
    %7426 = vmax.xlane.f32.xlu0 %v7425
    %v7427 = vpop.xlane.xlu0 %7426
    %v7428 = vsel %vm866, %v7362, -inf
    %7429 = vmax.xlane.f32.xlu0 %v7428
    %v7430 = vpop.xlane.xlu0 %7429
    %v7431 = vsel %vm866, %v7363, -inf
    %7432 = vmax.xlane.f32.xlu0 %v7431
    %v7433 = vpop.xlane.xlu0 %7432
    %v7434 = vsel %vm866, %v7364, -inf
    %7435 = vmax.xlane.f32.xlu0 %v7434
    %v7436 = vpop.xlane.xlu0 %7435
    %v7437 = vsel %vm866, %v7365, -inf
    %7438 = vmax.xlane.f32.xlu0 %v7437
    %v7439 = vpop.xlane.xlu0 %7438
    %v7440 = vsel %vm866, %v7366, -inf
    %7441 = vmax.xlane.f32.xlu0 %v7440
    %v7442 = vpop.xlane.xlu0 %7441
    %v7443 = vsel %vm866, %v7367, -inf
    %7444 = vmax.xlane.f32.xlu0 %v7443
    %v7445 = vpop.xlane.xlu0 %7444
    %v7446 = vsel %vm866, %v7368, -inf
    %7447 = vmax.xlane.f32.xlu0 %v7446
    %v7448 = vpop.xlane.xlu0 %7447
    %v7449 = vsel %vm866, %v7369, -inf
    %7450 = vmax.xlane.f32.xlu0 %v7449
    %v7451 = vpop.xlane.xlu0 %7450
    %v7452 = vsel %vm866, %v7370, -inf
    %7453 = vmax.xlane.f32.xlu0 %v7452
    %v7454 = vpop.xlane.xlu0 %7453
    %v7455 = vsel %vm866, %v7371, -inf
    %7456 = vmax.xlane.f32.xlu0 %v7455
    %v7457 = vpop.xlane.xlu0 %7456
    %v7458 = vsel %vm866, %v7372, -inf
    %7459 = vmax.xlane.f32.xlu0 %v7458
    %v7460 = vpop.xlane.xlu0 %7459
    %v7461 = vsel %vm866, %v7373, -inf
    %7462 = vmax.xlane.f32.xlu0 %v7461
    %v7463 = vpop.xlane.xlu0 %7462
    %v7464 = vsel %vm866, %v7374, -inf
    %7465 = vmax.xlane.f32.xlu0 %v7464
    %v7466 = vpop.xlane.xlu0 %7465
    %v7467 = vsel %vm866, %v7375, -inf
    %7468 = vmax.xlane.f32.xlu0 %v7467
    %v7469 = vpop.xlane.xlu0 %7468
    %v7470 = vsel %vm866, %v7376, -inf
    %7471 = vmax.xlane.f32.xlu0 %v7470
    %v7472 = vpop.xlane.xlu0 %7471
    %v7473 = vsub.f32 %v7345, %v7379
    %v7474 = vsub.f32 %v7346, %v7382
    %v7475 = vsub.f32 %v7347, %v7385
    %v7476 = vsub.f32 %v7348, %v7388
    %v7477 = vsub.f32 %v7349, %v7391
    %v7478 = vsub.f32 %v7350, %v7394
    %v7479 = vsub.f32 %v7351, %v7397
    %v7480 = vsub.f32 %v7352, %v7400
    %v7481 = vsub.f32 %v7353, %v7403
    %v7482 = vsub.f32 %v7354, %v7406
    %v7483 = vsub.f32 %v7355, %v7409
    %v7484 = vsub.f32 %v7356, %v7412
    %v7485 = vsub.f32 %v7357, %v7415
    %v7486 = vsub.f32 %v7358, %v7418
    %v7487 = vsub.f32 %v7359, %v7421
    %v7488 = vsub.f32 %v7360, %v7424
    %v7489 = vsub.f32 %v7361, %v7427
    %v7490 = vsub.f32 %v7362, %v7430
    %v7491 = vsub.f32 %v7363, %v7433
    %v7492 = vsub.f32 %v7364, %v7436
    %v7493 = vsub.f32 %v7365, %v7439
    %v7494 = vsub.f32 %v7366, %v7442
    %v7495 = vsub.f32 %v7367, %v7445
    %v7496 = vsub.f32 %v7368, %v7448
    %v7497 = vsub.f32 %v7369, %v7451
    %v7498 = vsub.f32 %v7370, %v7454
    %v7499 = vsub.f32 %v7371, %v7457
    %v7500 = vsub.f32 %v7372, %v7460
    %v7501 = vsub.f32 %v7373, %v7463
    %v7502 = vsub.f32 %v7374, %v7466
    %v7503 = vsub.f32 %v7375, %v7469
    %v7504 = vsub.f32 %v7376, %v7472
    %v7505 = vmul.f32 %v7473, 1.442695
    %v7506 = vpow.pop %v7505
    %v7507 = vmul.f32 %v7474, 1.442695
    %v7508 = vpow.pop %v7507
    %v7509 = vmul.f32 %v7475, 1.442695
    %v7510 = vpow.pop %v7509
    %v7511 = vmul.f32 %v7476, 1.442695
    %v7512 = vpow.pop %v7511
    %v7513 = vmul.f32 %v7477, 1.442695
    %v7514 = vpow.pop %v7513
    %v7515 = vmul.f32 %v7478, 1.442695
    %v7516 = vpow.pop %v7515
    %v7517 = vmul.f32 %v7479, 1.442695
    %v7518 = vpow.pop %v7517
    %v7519 = vmul.f32 %v7480, 1.442695
    %v7520 = vpow.pop %v7519
    %v7521 = vmul.f32 %v7481, 1.442695
    %v7522 = vpow.pop %v7521
    %v7523 = vmul.f32 %v7482, 1.442695
    %v7524 = vpow.pop %v7523
    %v7525 = vmul.f32 %v7483, 1.442695
    %v7526 = vpow.pop %v7525
    %v7527 = vmul.f32 %v7484, 1.442695
    %v7528 = vpow.pop %v7527
    %v7529 = vmul.f32 %v7485, 1.442695
    %v7530 = vpow.pop %v7529
    %v7531 = vmul.f32 %v7486, 1.442695
    %v7532 = vpow.pop %v7531
    %v7533 = vmul.f32 %v7487, 1.442695
    %v7534 = vpow.pop %v7533
    %v7535 = vmul.f32 %v7488, 1.442695
    %v7536 = vpow.pop %v7535
    %v7537 = vmul.f32 %v7489, 1.442695
    %v7538 = vpow.pop %v7537
    %v7539 = vmul.f32 %v7490, 1.442695
    %v7540 = vpow.pop %v7539
    %v7541 = vmul.f32 %v7491, 1.442695
    %v7542 = vpow.pop %v7541
    %v7543 = vmul.f32 %v7492, 1.442695
    %v7544 = vpow.pop %v7543
    %v7545 = vmul.f32 %v7493, 1.442695
    %v7546 = vpow.pop %v7545
    %v7547 = vmul.f32 %v7494, 1.442695
    %v7548 = vpow.pop %v7547
    %v7549 = vmul.f32 %v7495, 1.442695
    %v7550 = vpow.pop %v7549
    %v7551 = vmul.f32 %v7496, 1.442695
    %v7552 = vpow.pop %v7551
    %v7553 = vmul.f32 %v7497, 1.442695
    %v7554 = vpow.pop %v7553
    %v7555 = vmul.f32 %v7498, 1.442695
    %v7556 = vpow.pop %v7555
    %v7557 = vmul.f32 %v7499, 1.442695
    %v7558 = vpow.pop %v7557
    %v7559 = vmul.f32 %v7500, 1.442695
    %v7560 = vpow.pop %v7559
    %v7561 = vmul.f32 %v7501, 1.442695
    %v7562 = vpow.pop %v7561
    %v7563 = vmul.f32 %v7502, 1.442695
    %v7564 = vpow.pop %v7563
    %v7565 = vmul.f32 %v7503, 1.442695
    %v7566 = vpow.pop %v7565
    %v7567 = vmul.f32 %v7504, 1.442695
    %v7568 = vpow.pop %v7567
    %v7569 = vsel %vm866, %v7506, 0.0
    %7570 = vadd.xlane.f32.xlu0 %v7569
    %v7571 = vpop.xlane.xlu0 %7570
    %v7572 = vsel %vm866, %v7508, 0.0
    %7573 = vadd.xlane.f32.xlu0 %v7572
    %v7574 = vpop.xlane.xlu0 %7573
    %v7575 = vsel %vm866, %v7510, 0.0
    %7576 = vadd.xlane.f32.xlu0 %v7575
    %v7577 = vpop.xlane.xlu0 %7576
    %v7578 = vsel %vm866, %v7512, 0.0
    %7579 = vadd.xlane.f32.xlu0 %v7578
    %v7580 = vpop.xlane.xlu0 %7579
    %v7581 = vsel %vm866, %v7514, 0.0
    %7582 = vadd.xlane.f32.xlu0 %v7581
    %v7583 = vpop.xlane.xlu0 %7582
    %v7584 = vsel %vm866, %v7516, 0.0
    %7585 = vadd.xlane.f32.xlu0 %v7584
    %v7586 = vpop.xlane.xlu0 %7585
    %v7587 = vsel %vm866, %v7518, 0.0
    %7588 = vadd.xlane.f32.xlu0 %v7587
    %v7589 = vpop.xlane.xlu0 %7588
    %v7590 = vsel %vm866, %v7520, 0.0
    %7591 = vadd.xlane.f32.xlu0 %v7590
    %v7592 = vpop.xlane.xlu0 %7591
    %v7593 = vsel %vm866, %v7522, 0.0
    %7594 = vadd.xlane.f32.xlu0 %v7593
    %v7595 = vpop.xlane.xlu0 %7594
    %v7596 = vsel %vm866, %v7524, 0.0
    %7597 = vadd.xlane.f32.xlu0 %v7596
    %v7598 = vpop.xlane.xlu0 %7597
    %v7599 = vsel %vm866, %v7526, 0.0
    %7600 = vadd.xlane.f32.xlu0 %v7599
    %v7601 = vpop.xlane.xlu0 %7600
    %v7602 = vsel %vm866, %v7528, 0.0
    %7603 = vadd.xlane.f32.xlu0 %v7602
    %v7604 = vpop.xlane.xlu0 %7603
    %v7605 = vsel %vm866, %v7530, 0.0
    %7606 = vadd.xlane.f32.xlu0 %v7605
    %v7607 = vpop.xlane.xlu0 %7606
    %v7608 = vsel %vm866, %v7532, 0.0
    %7609 = vadd.xlane.f32.xlu0 %v7608
    %v7610 = vpop.xlane.xlu0 %7609
    %v7611 = vsel %vm866, %v7534, 0.0
    %7612 = vadd.xlane.f32.xlu0 %v7611
    %v7613 = vpop.xlane.xlu0 %7612
    %v7614 = vsel %vm866, %v7536, 0.0
    %7615 = vadd.xlane.f32.xlu0 %v7614
    %v7616 = vpop.xlane.xlu0 %7615
    %v7617 = vsel %vm866, %v7538, 0.0
    %7618 = vadd.xlane.f32.xlu0 %v7617
    %v7619 = vpop.xlane.xlu0 %7618
    %v7620 = vsel %vm866, %v7540, 0.0
    %7621 = vadd.xlane.f32.xlu0 %v7620
    %v7622 = vpop.xlane.xlu0 %7621
    %v7623 = vsel %vm866, %v7542, 0.0
    %7624 = vadd.xlane.f32.xlu0 %v7623
    %v7625 = vpop.xlane.xlu0 %7624
    %v7626 = vsel %vm866, %v7544, 0.0
    %7627 = vadd.xlane.f32.xlu0 %v7626
    %v7628 = vpop.xlane.xlu0 %7627
    %v7629 = vsel %vm866, %v7546, 0.0
    %7630 = vadd.xlane.f32.xlu0 %v7629
    %v7631 = vpop.xlane.xlu0 %7630
    %v7632 = vsel %vm866, %v7548, 0.0
    %7633 = vadd.xlane.f32.xlu0 %v7632
    %v7634 = vpop.xlane.xlu0 %7633
    %v7635 = vsel %vm866, %v7550, 0.0
    %7636 = vadd.xlane.f32.xlu0 %v7635
    %v7637 = vpop.xlane.xlu0 %7636
    %v7638 = vsel %vm866, %v7552, 0.0
    %7639 = vadd.xlane.f32.xlu0 %v7638
    %v7640 = vpop.xlane.xlu0 %7639
    %v7641 = vsel %vm866, %v7554, 0.0
    %7642 = vadd.xlane.f32.xlu0 %v7641
    %v7643 = vpop.xlane.xlu0 %7642
    %v7644 = vsel %vm866, %v7556, 0.0
    %7645 = vadd.xlane.f32.xlu0 %v7644
    %v7646 = vpop.xlane.xlu0 %7645
    %v7647 = vsel %vm866, %v7558, 0.0
    %7648 = vadd.xlane.f32.xlu0 %v7647
    %v7649 = vpop.xlane.xlu0 %7648
    %v7650 = vsel %vm866, %v7560, 0.0
    %7651 = vadd.xlane.f32.xlu0 %v7650
    %v7652 = vpop.xlane.xlu0 %7651
    %v7653 = vsel %vm866, %v7562, 0.0
    %7654 = vadd.xlane.f32.xlu0 %v7653
    %v7655 = vpop.xlane.xlu0 %7654
    %v7656 = vsel %vm866, %v7564, 0.0
    %7657 = vadd.xlane.f32.xlu0 %v7656
    %v7658 = vpop.xlane.xlu0 %7657
    %v7659 = vsel %vm866, %v7566, 0.0
    %7660 = vadd.xlane.f32.xlu0 %v7659
    %v7661 = vpop.xlane.xlu0 %7660
    %v7662 = vsel %vm866, %v7568, 0.0
    %7663 = vadd.xlane.f32.xlu0 %v7662
    %v7664 = vpop.xlane.xlu0 %7663
    %v7665 = vrcp.pop %v7571
    %v7666 = vrcp.pop %v7574
    %v7667 = vrcp.pop %v7577
    %v7668 = vrcp.pop %v7580
    %v7669 = vrcp.pop %v7583
    %v7670 = vrcp.pop %v7586
    %v7671 = vrcp.pop %v7589
    %v7672 = vrcp.pop %v7592
    %v7673 = vrcp.pop %v7595
    %v7674 = vrcp.pop %v7598
    %v7675 = vrcp.pop %v7601
    %v7676 = vrcp.pop %v7604
    %v7677 = vrcp.pop %v7607
    %v7678 = vrcp.pop %v7610
    %v7679 = vrcp.pop %v7613
    %v7680 = vrcp.pop %v7616
    %v7681 = vrcp.pop %v7619
    %v7682 = vrcp.pop %v7622
    %v7683 = vrcp.pop %v7625
    %v7684 = vrcp.pop %v7628
    %v7685 = vrcp.pop %v7631
    %v7686 = vrcp.pop %v7634
    %v7687 = vrcp.pop %v7637
    %v7688 = vrcp.pop %v7640
    %v7689 = vrcp.pop %v7643
    %v7690 = vrcp.pop %v7646
    %v7691 = vrcp.pop %v7649
    %v7692 = vrcp.pop %v7652
    %v7693 = vrcp.pop %v7655
    %v7694 = vrcp.pop %v7658
    %v7695 = vrcp.pop %v7661
    %v7696 = vrcp.pop %v7664
    %v7697 = vmul.f32 %v7506, %v7665
    %v7698 = vmul.f32 %v7508, %v7666
    %v7699 = vmul.f32 %v7510, %v7667
    %v7700 = vmul.f32 %v7512, %v7668
    %v7701 = vmul.f32 %v7514, %v7669
    %v7702 = vmul.f32 %v7516, %v7670
    %v7703 = vmul.f32 %v7518, %v7671
    %v7704 = vmul.f32 %v7520, %v7672
    %v7705 = vmul.f32 %v7522, %v7673
    %v7706 = vmul.f32 %v7524, %v7674
    %v7707 = vmul.f32 %v7526, %v7675
    %v7708 = vmul.f32 %v7528, %v7676
    %v7709 = vmul.f32 %v7530, %v7677
    %v7710 = vmul.f32 %v7532, %v7678
    %v7711 = vmul.f32 %v7534, %v7679
    %v7712 = vmul.f32 %v7536, %v7680
    %v7713 = vmul.f32 %v7538, %v7681
    %v7714 = vmul.f32 %v7540, %v7682
    %v7715 = vmul.f32 %v7542, %v7683
    %v7716 = vmul.f32 %v7544, %v7684
    %v7717 = vmul.f32 %v7546, %v7685
    %v7718 = vmul.f32 %v7548, %v7686
    %v7719 = vmul.f32 %v7550, %v7687
    %v7720 = vmul.f32 %v7552, %v7688
    %v7721 = vmul.f32 %v7554, %v7689
    %v7722 = vmul.f32 %v7556, %v7690
    %v7723 = vmul.f32 %v7558, %v7691
    %v7724 = vmul.f32 %v7560, %v7692
    %v7725 = vmul.f32 %v7562, %v7693
    %v7726 = vmul.f32 %v7564, %v7694
    %v7727 = vmul.f32 %v7566, %v7695
    %v7728 = vmul.f32 %v7568, %v7696
    %v7729 = vpack.c.bf16 %v7698, %v7697
    %v7730 = vpack.c.bf16 %v7700, %v7699
    %v7731 = vpack.c.bf16 %v7702, %v7701
    %v7732 = vpack.c.bf16 %v7704, %v7703
    %v7733 = vpack.c.bf16 %v7706, %v7705
    %v7734 = vpack.c.bf16 %v7708, %v7707
    %v7735 = vpack.c.bf16 %v7710, %v7709
    %v7736 = vpack.c.bf16 %v7712, %v7711
    %v7737 = vpack.c.bf16 %v7714, %v7713
    %v7738 = vpack.c.bf16 %v7716, %v7715
    %v7739 = vpack.c.bf16 %v7718, %v7717
    %v7740 = vpack.c.bf16 %v7720, %v7719
    %v7741 = vpack.c.bf16 %v7722, %v7721
    %v7742 = vpack.c.bf16 %v7724, %v7723
    %v7743 = vpack.c.bf16 %v7726, %v7725
    %v7744 = vpack.c.bf16 %v7728, %v7727
    %7745 = vrot.lane.b32.xlu0 %v6893, 64
    %v7746 = vpop.permute.xlu0 %7745
    %7747 = vrot.lane.b32.xlu0 %v6894, 64
    %v7748 = vpop.permute.xlu0 %7747
    %7749 = vrot.lane.b32.xlu0 %v6895, 64
    %v7750 = vpop.permute.xlu0 %7749
    %7751 = vrot.lane.b32.xlu0 %v6896, 64
    %v7752 = vpop.permute.xlu0 %7751
    %v7758 = vsel %vm866, %v7729, 0
    %v7761 = vsel %vm866, %v7730, 0
    %v7764 = vsel %vm866, %v7731, 0
    %v7767 = vsel %vm866, %v7732, 0
    %7769 = vmatprep.subr.bf16.mxu0 0
    %7770 = vmatpush1.bf16.msra.mxu0 %v7746
    %7771 = vmatprep.subr.bf16.mxu0 0
    %7772 = vmatpush1.bf16.msra.mxu0 %v7748
    %7773 = vmatprep.subr.bf16.mxu0 0
    %7774 = vmatpush1.bf16.msra.mxu0 %v7750
    %7775 = vmatprep.subr.bf16.mxu0 0
    %7776 = vmatpush1.bf16.msra.mxu0 %v7752
    %7777 = vmatprep.subr.bf16.mxu0 0
    %7778 = vmatpush1.bf16.msra.mxu0 0
    %7779 = vmatprep.subr.bf16.mxu0 0
    %7780 = vmatpush1.bf16.msra.mxu0 0
    %7781 = vmatprep.subr.bf16.mxu0 0
    %7782 = vmatpush1.bf16.msra.mxu0 0
    %7783 = vmatprep.subr.bf16.mxu0 0
    %7784 = vmatpush1.bf16.msra.mxu0 0
    %7785 = vmatprep.subr.bf16.mxu0 0
    %7786 = vmatpush1.bf16.msra.mxu0 0
    %7787 = vmatprep.subr.bf16.mxu0 0
    %7788 = vmatpush1.bf16.msra.mxu0 0
    %7789 = vmatprep.subr.bf16.mxu0 0
    %7790 = vmatpush1.bf16.msra.mxu0 0
    %7791 = vmatprep.subr.bf16.mxu0 0
    %7792 = vmatpush1.bf16.msra.mxu0 0
    %7793 = vmatprep.subr.bf16.mxu0 0
    %7794 = vmatpush1.bf16.msra.mxu0 0
    %7795 = vmatprep.subr.bf16.mxu0 0
    %7796 = vmatpush1.bf16.msra.mxu0 0
    %7797 = vmatprep.subr.bf16.mxu0 0
    %7798 = vmatpush1.bf16.msra.mxu0 0
    %7799 = vmatprep.subr.bf16.mxu0 0
    %7800 = vmatpush1.bf16.msra.mxu0 0
    %7801 = vmatprep.mubr.bf16.mxu0 0
    %7802 = vmatmul.mubr.bf16.gmra.mrb[0].mxu0 %v7758
    %v7803 = vpop.f32.mrb[0].mxu0
    %v7804 = vadd.f32 0.0, %v7803
    %v7805 = vpop.f32.mrb[0].mxu0
    %v7806 = vpop.f32.mrb[0].mxu0
    %v7807 = vadd.f32 0.0, %v7806
    %v7808 = vpop.f32.mrb[0].mxu0
    %7809 = vmatprep.mubr.bf16.mxu0 0
    %7810 = vmatmul.mubr.bf16.gmra.mrb[0].mxu0 %v7761
    %v7811 = vpop.f32.mrb[0].mxu0
    %v7812 = vadd.f32 0.0, %v7811
    %v7813 = vpop.f32.mrb[0].mxu0
    %v7814 = vpop.f32.mrb[0].mxu0
    %v7815 = vadd.f32 0.0, %v7814
    %v7816 = vpop.f32.mrb[0].mxu0
    %7817 = vmatprep.mubr.bf16.mxu0 0
    %7818 = vmatmul.mubr.bf16.gmra.mrb[0].mxu0 %v7764
    %v7819 = vpop.f32.mrb[0].mxu0
    %v7820 = vadd.f32 0.0, %v7819
    %v7821 = vpop.f32.mrb[0].mxu0
    %v7822 = vpop.f32.mrb[0].mxu0
    %v7823 = vadd.f32 0.0, %v7822
    %v7824 = vpop.f32.mrb[0].mxu0
    %7825 = vmatprep.mubr.bf16.mxu0 0
    %7826 = vmatmul.mubr.bf16.gmra.mrb[0].mxu0 %v7767
    %v7827 = vpop.f32.mrb[0].mxu0
    %v7828 = vadd.f32 0.0, %v7827
    %v7829 = vpop.f32.mrb[0].mxu0
    %v7830 = vpop.f32.mrb[0].mxu0
    %v7831 = vadd.f32 0.0, %v7830
    %v7832 = vpop.f32.mrb[0].mxu0
    %7833 = vdwg.mxu0
    %7834 = vrot.lane.b32.xlu0 %v6897, 64
    %v7835 = vpop.permute.xlu0 %7834
    %7836 = vrot.lane.b32.xlu0 %v6898, 64
    %v7837 = vpop.permute.xlu0 %7836
    %7838 = vrot.lane.b32.xlu0 %v6899, 64
    %v7839 = vpop.permute.xlu0 %7838
    %7840 = vrot.lane.b32.xlu0 %v6900, 64
    %v7841 = vpop.permute.xlu0 %7840
    %v7847 = vsel %vm866, %v7733, 0
    %v7850 = vsel %vm866, %v7734, 0
    %v7853 = vsel %vm866, %v7735, 0
    %v7856 = vsel %vm866, %v7736, 0
    %7858 = vmatprep.subr.bf16.mxu0 0
    %7859 = vmatpush1.bf16.msra.mxu0 %v7835
    %7860 = vmatprep.subr.bf16.mxu0 0
    %7861 = vmatpush1.bf16.msra.mxu0 %v7837
    %7862 = vmatprep.subr.bf16.mxu0 0
    %7863 = vmatpush1.bf16.msra.mxu0 %v7839
    %7864 = vmatprep.subr.bf16.mxu0 0
    %7865 = vmatpush1.bf16.msra.mxu0 %v7841
    %7866 = vmatprep.subr.bf16.mxu0 0
    %7867 = vmatpush1.bf16.msra.mxu0 0
    %7868 = vmatprep.subr.bf16.mxu0 0
    %7869 = vmatpush1.bf16.msra.mxu0 0
    %7870 = vmatprep.subr.bf16.mxu0 0
    %7871 = vmatpush1.bf16.msra.mxu0 0
    %7872 = vmatprep.subr.bf16.mxu0 0
    %7873 = vmatpush1.bf16.msra.mxu0 0
    %7874 = vmatprep.subr.bf16.mxu0 0
    %7875 = vmatpush1.bf16.msra.mxu0 0
    %7876 = vmatprep.subr.bf16.mxu0 0
    %7877 = vmatpush1.bf16.msra.mxu0 0
    %7878 = vmatprep.subr.bf16.mxu0 0
    %7879 = vmatpush1.bf16.msra.mxu0 0
    %7880 = vmatprep.subr.bf16.mxu0 0
    %7881 = vmatpush1.bf16.msra.mxu0 0
    %7882 = vmatprep.subr.bf16.mxu0 0
    %7883 = vmatpush1.bf16.msra.mxu0 0
    %7884 = vmatprep.subr.bf16.mxu0 0
    %7885 = vmatpush1.bf16.msra.mxu0 0
    %7886 = vmatprep.subr.bf16.mxu0 0
    %7887 = vmatpush1.bf16.msra.mxu0 0
    %7888 = vmatprep.subr.bf16.mxu0 0
    %7889 = vmatpush1.bf16.msra.mxu0 0
    %7890 = vmatprep.mubr.bf16.mxu0 0
    %7891 = vmatmul.mubr.bf16.gmra.mrb[0].mxu0 %v7847
    %v7892 = vpop.f32.mrb[0].mxu0
    %v7893 = vadd.f32 0.0, %v7892
    %v7894 = vpop.f32.mrb[0].mxu0
    %v7895 = vpop.f32.mrb[0].mxu0
    %v7896 = vadd.f32 0.0, %v7895
    %v7897 = vpop.f32.mrb[0].mxu0
    %7898 = vmatprep.mubr.bf16.mxu0 0
    %7899 = vmatmul.mubr.bf16.gmra.mrb[0].mxu0 %v7850
    %v7900 = vpop.f32.mrb[0].mxu0
    %v7901 = vadd.f32 0.0, %v7900
    %v7902 = vpop.f32.mrb[0].mxu0
    %v7903 = vpop.f32.mrb[0].mxu0
    %v7904 = vadd.f32 0.0, %v7903
    %v7905 = vpop.f32.mrb[0].mxu0
    %7906 = vmatprep.mubr.bf16.mxu0 0
    %7907 = vmatmul.mubr.bf16.gmra.mrb[0].mxu0 %v7853
    %v7908 = vpop.f32.mrb[0].mxu0
    %v7909 = vadd.f32 0.0, %v7908
    %v7910 = vpop.f32.mrb[0].mxu0
    %v7911 = vpop.f32.mrb[0].mxu0
    %v7912 = vadd.f32 0.0, %v7911
    %v7913 = vpop.f32.mrb[0].mxu0
    %7914 = vmatprep.mubr.bf16.mxu0 0
    %7915 = vmatmul.mubr.bf16.gmra.mrb[0].mxu0 %v7856
    %v7916 = vpop.f32.mrb[0].mxu0
    %v7917 = vadd.f32 0.0, %v7916
    %v7918 = vpop.f32.mrb[0].mxu0
    %v7919 = vpop.f32.mrb[0].mxu0
    %v7920 = vadd.f32 0.0, %v7919
    %v7921 = vpop.f32.mrb[0].mxu0
    %7922 = vdwg.mxu0
    %7923 = vrot.lane.b32.xlu0 %v6901, 64
    %v7924 = vpop.permute.xlu0 %7923
    %7925 = vrot.lane.b32.xlu0 %v6902, 64
    %v7926 = vpop.permute.xlu0 %7925
    %7927 = vrot.lane.b32.xlu0 %v6903, 64
    %v7928 = vpop.permute.xlu0 %7927
    %7929 = vrot.lane.b32.xlu0 %v6904, 64
    %v7930 = vpop.permute.xlu0 %7929
    %v7936 = vsel %vm866, %v7737, 0
    %v7939 = vsel %vm866, %v7738, 0
    %v7942 = vsel %vm866, %v7739, 0
    %v7945 = vsel %vm866, %v7740, 0
    %7947 = vmatprep.subr.bf16.mxu0 0
    %7948 = vmatpush1.bf16.msra.mxu0 %v7924
    %7949 = vmatprep.subr.bf16.mxu0 0
    %7950 = vmatpush1.bf16.msra.mxu0 %v7926
    %7951 = vmatprep.subr.bf16.mxu0 0
    %7952 = vmatpush1.bf16.msra.mxu0 %v7928
    %7953 = vmatprep.subr.bf16.mxu0 0
    %7954 = vmatpush1.bf16.msra.mxu0 %v7930
    %7955 = vmatprep.subr.bf16.mxu0 0
    %7956 = vmatpush1.bf16.msra.mxu0 0
    %7957 = vmatprep.subr.bf16.mxu0 0
    %7958 = vmatpush1.bf16.msra.mxu0 0
    %7959 = vmatprep.subr.bf16.mxu0 0
    %7960 = vmatpush1.bf16.msra.mxu0 0
    %7961 = vmatprep.subr.bf16.mxu0 0
    %7962 = vmatpush1.bf16.msra.mxu0 0
    %7963 = vmatprep.subr.bf16.mxu0 0
    %7964 = vmatpush1.bf16.msra.mxu0 0
    %7965 = vmatprep.subr.bf16.mxu0 0
    %7966 = vmatpush1.bf16.msra.mxu0 0
    %7967 = vmatprep.subr.bf16.mxu0 0
    %7968 = vmatpush1.bf16.msra.mxu0 0
    %7969 = vmatprep.subr.bf16.mxu0 0
    %7970 = vmatpush1.bf16.msra.mxu0 0
    %7971 = vmatprep.subr.bf16.mxu0 0
    %7972 = vmatpush1.bf16.msra.mxu0 0
    %7973 = vmatprep.subr.bf16.mxu0 0
    %7974 = vmatpush1.bf16.msra.mxu0 0
    %7975 = vmatprep.subr.bf16.mxu0 0
    %7976 = vmatpush1.bf16.msra.mxu0 0
    %7977 = vmatprep.subr.bf16.mxu0 0
    %7978 = vmatpush1.bf16.msra.mxu0 0
    %7979 = vmatprep.mubr.bf16.mxu0 0
    %7980 = vmatmul.mubr.bf16.gmra.mrb[0].mxu0 %v7936
    %v7981 = vpop.f32.mrb[0].mxu0
    %v7982 = vadd.f32 0.0, %v7981
    %v7983 = vpop.f32.mrb[0].mxu0
    %v7984 = vpop.f32.mrb[0].mxu0
    %v7985 = vadd.f32 0.0, %v7984
    %v7986 = vpop.f32.mrb[0].mxu0
    %7987 = vmatprep.mubr.bf16.mxu0 0
    %7988 = vmatmul.mubr.bf16.gmra.mrb[0].mxu0 %v7939
    %v7989 = vpop.f32.mrb[0].mxu0
    %v7990 = vadd.f32 0.0, %v7989
    %v7991 = vpop.f32.mrb[0].mxu0
    %v7992 = vpop.f32.mrb[0].mxu0
    %v7993 = vadd.f32 0.0, %v7992
    %v7994 = vpop.f32.mrb[0].mxu0
    %7995 = vmatprep.mubr.bf16.mxu0 0
    %7996 = vmatmul.mubr.bf16.gmra.mrb[0].mxu0 %v7942
    %v7997 = vpop.f32.mrb[0].mxu0
    %v7998 = vadd.f32 0.0, %v7997
    %v7999 = vpop.f32.mrb[0].mxu0
    %v8000 = vpop.f32.mrb[0].mxu0
    %v8001 = vadd.f32 0.0, %v8000
    %v8002 = vpop.f32.mrb[0].mxu0
    %8003 = vmatprep.mubr.bf16.mxu0 0
    %8004 = vmatmul.mubr.bf16.gmra.mrb[0].mxu0 %v7945
    %v8005 = vpop.f32.mrb[0].mxu0
    %v8006 = vadd.f32 0.0, %v8005
    %v8007 = vpop.f32.mrb[0].mxu0
    %v8008 = vpop.f32.mrb[0].mxu0
    %v8009 = vadd.f32 0.0, %v8008
    %v8010 = vpop.f32.mrb[0].mxu0
    %8011 = vdwg.mxu0
    %8012 = vrot.lane.b32.xlu0 %v6905, 64
    %v8013 = vpop.permute.xlu0 %8012
    %8014 = vrot.lane.b32.xlu0 %v6906, 64
    %v8015 = vpop.permute.xlu0 %8014
    %8016 = vrot.lane.b32.xlu0 %v6907, 64
    %v8017 = vpop.permute.xlu0 %8016
    %8018 = vrot.lane.b32.xlu0 %v6908, 64
    %v8019 = vpop.permute.xlu0 %8018
    %v8025 = vsel %vm866, %v7741, 0
    %v8028 = vsel %vm866, %v7742, 0
    %v8031 = vsel %vm866, %v7743, 0
    %v8034 = vsel %vm866, %v7744, 0
    %8036 = vmatprep.subr.bf16.mxu0 0
    %8037 = vmatpush1.bf16.msra.mxu0 %v8013
    %8038 = vmatprep.subr.bf16.mxu0 0
    %8039 = vmatpush1.bf16.msra.mxu0 %v8015
    %8040 = vmatprep.subr.bf16.mxu0 0
    %8041 = vmatpush1.bf16.msra.mxu0 %v8017
    %8042 = vmatprep.subr.bf16.mxu0 0
    %8043 = vmatpush1.bf16.msra.mxu0 %v8019
    %8044 = vmatprep.subr.bf16.mxu0 0
    %8045 = vmatpush1.bf16.msra.mxu0 0
    %8046 = vmatprep.subr.bf16.mxu0 0
    %8047 = vmatpush1.bf16.msra.mxu0 0
    %8048 = vmatprep.subr.bf16.mxu0 0
    %8049 = vmatpush1.bf16.msra.mxu0 0
    %8050 = vmatprep.subr.bf16.mxu0 0
    %8051 = vmatpush1.bf16.msra.mxu0 0
    %8052 = vmatprep.subr.bf16.mxu0 0
    %8053 = vmatpush1.bf16.msra.mxu0 0
    %8054 = vmatprep.subr.bf16.mxu0 0
    %8055 = vmatpush1.bf16.msra.mxu0 0
    %8056 = vmatprep.subr.bf16.mxu0 0
    %8057 = vmatpush1.bf16.msra.mxu0 0
    %8058 = vmatprep.subr.bf16.mxu0 0
    %8059 = vmatpush1.bf16.msra.mxu0 0
    %8060 = vmatprep.subr.bf16.mxu0 0
    %8061 = vmatpush1.bf16.msra.mxu0 0
    %8062 = vmatprep.subr.bf16.mxu0 0
    %8063 = vmatpush1.bf16.msra.mxu0 0
    %8064 = vmatprep.subr.bf16.mxu0 0
    %8065 = vmatpush1.bf16.msra.mxu0 0
    %8066 = vmatprep.subr.bf16.mxu0 0
    %8067 = vmatpush1.bf16.msra.mxu0 0
    %8068 = vmatprep.mubr.bf16.mxu0 0
    %8069 = vmatmul.mubr.bf16.gmra.mrb[0].mxu0 %v8025
    %v8070 = vpop.f32.mrb[0].mxu0
    %v8071 = vadd.f32 0.0, %v8070
    %v8072 = vpop.f32.mrb[0].mxu0
    %v8073 = vpop.f32.mrb[0].mxu0
    %v8074 = vadd.f32 0.0, %v8073
    %v8075 = vpop.f32.mrb[0].mxu0
    %8076 = vmatprep.mubr.bf16.mxu0 0
    %8077 = vmatmul.mubr.bf16.gmra.mrb[0].mxu0 %v8028
    %v8078 = vpop.f32.mrb[0].mxu0
    %v8079 = vadd.f32 0.0, %v8078
    %v8080 = vpop.f32.mrb[0].mxu0
    %v8081 = vpop.f32.mrb[0].mxu0
    %v8082 = vadd.f32 0.0, %v8081
    %v8083 = vpop.f32.mrb[0].mxu0
    %8084 = vmatprep.mubr.bf16.mxu0 0
    %8085 = vmatmul.mubr.bf16.gmra.mrb[0].mxu0 %v8031
    %v8086 = vpop.f32.mrb[0].mxu0
    %v8087 = vadd.f32 0.0, %v8086
    %v8088 = vpop.f32.mrb[0].mxu0
    %v8089 = vpop.f32.mrb[0].mxu0
    %v8090 = vadd.f32 0.0, %v8089
    %v8091 = vpop.f32.mrb[0].mxu0
    %8092 = vmatprep.mubr.bf16.mxu0 0
    %8093 = vmatmul.mubr.bf16.gmra.mrb[0].mxu0 %v8034
    %v8094 = vpop.f32.mrb[0].mxu0
    %v8095 = vadd.f32 0.0, %v8094
    %v8096 = vpop.f32.mrb[0].mxu0
    %v8097 = vpop.f32.mrb[0].mxu0
    %v8098 = vadd.f32 0.0, %v8097
    %v8099 = vpop.f32.mrb[0].mxu0
    %8100 = vdwg.mxu0
    %8109 = vrot.lane.b32.xlu0 %v7893, 8
    %v8110 = vpop.permute.xlu0 %8109
    %8111 = vrot.lane.b32.xlu0 %v7896, 8
    %v8112 = vpop.permute.xlu0 %8111
    %8113 = vrot.lane.b32.xlu0 %v7901, 8
    %v8114 = vpop.permute.xlu0 %8113
    %8115 = vrot.lane.b32.xlu0 %v7904, 8
    %v8116 = vpop.permute.xlu0 %8115
    %8117 = vrot.lane.b32.xlu0 %v7909, 8
    %v8118 = vpop.permute.xlu0 %8117
    %8119 = vrot.lane.b32.xlu0 %v7912, 8
    %v8120 = vpop.permute.xlu0 %8119
    %8121 = vrot.lane.b32.xlu0 %v7917, 8
    %v8122 = vpop.permute.xlu0 %8121
    %8123 = vrot.lane.b32.xlu0 %v7920, 8
    %v8124 = vpop.permute.xlu0 %8123
    %8141 = vrot.lane.b32.xlu0 %v7982, 16
    %v8142 = vpop.permute.xlu0 %8141
    %8143 = vrot.lane.b32.xlu0 %v7985, 16
    %v8144 = vpop.permute.xlu0 %8143
    %8145 = vrot.lane.b32.xlu0 %v7990, 16
    %v8146 = vpop.permute.xlu0 %8145
    %8147 = vrot.lane.b32.xlu0 %v7993, 16
    %v8148 = vpop.permute.xlu0 %8147
    %8149 = vrot.lane.b32.xlu0 %v7998, 16
    %v8150 = vpop.permute.xlu0 %8149
    %8151 = vrot.lane.b32.xlu0 %v8001, 16
    %v8152 = vpop.permute.xlu0 %8151
    %8153 = vrot.lane.b32.xlu0 %v8006, 16
    %v8154 = vpop.permute.xlu0 %8153
    %8155 = vrot.lane.b32.xlu0 %v8009, 16
    %v8156 = vpop.permute.xlu0 %8155
    %8173 = vrot.lane.b32.xlu0 %v8071, 24
    %v8174 = vpop.permute.xlu0 %8173
    %8175 = vrot.lane.b32.xlu0 %v8074, 24
    %v8176 = vpop.permute.xlu0 %8175
    %8177 = vrot.lane.b32.xlu0 %v8079, 24
    %v8178 = vpop.permute.xlu0 %8177
    %8179 = vrot.lane.b32.xlu0 %v8082, 24
    %v8180 = vpop.permute.xlu0 %8179
    %8181 = vrot.lane.b32.xlu0 %v8087, 24
    %v8182 = vpop.permute.xlu0 %8181
    %8183 = vrot.lane.b32.xlu0 %v8090, 24
    %v8184 = vpop.permute.xlu0 %8183
    %8185 = vrot.lane.b32.xlu0 %v8095, 24
    %v8186 = vpop.permute.xlu0 %8185
    %8187 = vrot.lane.b32.xlu0 %v8098, 24
    %v8188 = vpop.permute.xlu0 %8187
    %v8197 = vsel %vm409, %v7804, %v8110
    %v8198 = vsel %vm409, %v7807, %v8112
    %v8199 = vsel %vm409, %v7812, %v8114
    %v8200 = vsel %vm409, %v7815, %v8116
    %v8201 = vsel %vm409, %v7820, %v8118
    %v8202 = vsel %vm409, %v7823, %v8120
    %v8203 = vsel %vm409, %v7828, %v8122
    %v8204 = vsel %vm409, %v7831, %v8124
    %v8205 = vsel %vm1695, %v8197, %v8142
    %v8206 = vsel %vm1695, %v8198, %v8144
    %v8207 = vsel %vm1695, %v8199, %v8146
    %v8208 = vsel %vm1695, %v8200, %v8148
    %v8209 = vsel %vm1695, %v8201, %v8150
    %v8210 = vsel %vm1695, %v8202, %v8152
    %v8211 = vsel %vm1695, %v8203, %v8154
    %v8212 = vsel %vm1695, %v8204, %v8156
    %v8213 = vsel %vm1704, %v8205, %v8174
    %v8214 = vsel %vm1704, %v8206, %v8176
    %v8215 = vsel %vm1704, %v8207, %v8178
    %v8216 = vsel %vm1704, %v8208, %v8180
    %v8217 = vsel %vm1704, %v8209, %v8182
    %v8218 = vsel %vm1704, %v8210, %v8184
    %v8219 = vsel %vm1704, %v8211, %v8186
    %v8220 = vsel %vm1704, %v8212, %v8188
    %s8221 = scalar_lea.vmem %s5, 48
    %v8222 = vld [vmem:[%s8221] sm:$0xf]
    %v8223 = vld [vmem:[%s8221 + $0x4] sm:$0xf]
    %v8224 = vld [vmem:[%s8221 + $0x8] sm:$0xf]
    %v8225 = vld [vmem:[%s8221 + $0xc] sm:$0xf]
    %v8226 = vpack.c.bf16 %v8214, %v8213
    %v8227 = vpack.c.bf16 %v8216, %v8215
    %v8228 = vpack.c.bf16 %v8218, %v8217
    %v8229 = vpack.c.bf16 %v8220, %v8219
    %v8234 = vunpack.c.l.b16 %v8222
    %v8235 = vunpack.c.l.b16 %v8223
    %v8236 = vunpack.c.l.b16 %v8224
    %v8237 = vunpack.c.l.b16 %v8225
    %v8238 = vpack.c.b16 %v8235, %v8234
    %v8239 = vpack.c.b16 %v8237, %v8236
    %v8243 = vsel %vm70, %v8226, 0
    %v8246 = vsel %vm70, %v8227, 0
    %v8249 = vsel %vm70, %v8228, 0
    %v8252 = vsel %vm70, %v8229, 0
    %8254 = vmatprep.subr.bf16.mxu0 0
    %8255 = vmatpush1.bf16.msra.mxu0 %v8238
    %8256 = vmatprep.subr.bf16.mxu0 0
    %8257 = vmatpush1.bf16.msra.mxu0 %v8239
    %8258 = vmatprep.subr.bf16.mxu0 0
    %8259 = vmatpush1.bf16.msra.mxu0 0
    %8260 = vmatprep.subr.bf16.mxu0 0
    %8261 = vmatpush1.bf16.msra.mxu0 0
    %8262 = vmatprep.subr.bf16.mxu0 0
    %8263 = vmatpush1.bf16.msra.mxu0 0
    %8264 = vmatprep.subr.bf16.mxu0 0
    %8265 = vmatpush1.bf16.msra.mxu0 0
    %8266 = vmatprep.subr.bf16.mxu0 0
    %8267 = vmatpush1.bf16.msra.mxu0 0
    %8268 = vmatprep.subr.bf16.mxu0 0
    %8269 = vmatpush1.bf16.msra.mxu0 0
    %8270 = vmatprep.subr.bf16.mxu0 0
    %8271 = vmatpush1.bf16.msra.mxu0 0
    %8272 = vmatprep.subr.bf16.mxu0 0
    %8273 = vmatpush1.bf16.msra.mxu0 0
    %8274 = vmatprep.subr.bf16.mxu0 0
    %8275 = vmatpush1.bf16.msra.mxu0 0
    %8276 = vmatprep.subr.bf16.mxu0 0
    %8277 = vmatpush1.bf16.msra.mxu0 0
    %8278 = vmatprep.subr.bf16.mxu0 0
    %8279 = vmatpush1.bf16.msra.mxu0 0
    %8280 = vmatprep.subr.bf16.mxu0 0
    %8281 = vmatpush1.bf16.msra.mxu0 0
    %8282 = vmatprep.subr.bf16.mxu0 0
    %8283 = vmatpush1.bf16.msra.mxu0 0
    %8284 = vmatprep.subr.bf16.mxu0 0
    %8285 = vmatpush1.bf16.msra.mxu0 0
    %8286 = vmatprep.mubr.bf16.mxu0 0
    %8287 = vmatmul.mubr.bf16.gmra.mrb[0].mxu0 %v8243
    %v8288 = vpop.f32.mrb[0].mxu0
    %v8289 = vadd.f32 0.0, %v8288
    %v8290 = vpop.f32.mrb[0].mxu0
    %v8291 = vpop.f32.mrb[0].mxu0
    %v8292 = vadd.f32 0.0, %v8291
    %v8293 = vpop.f32.mrb[0].mxu0
    %8294 = vmatprep.mubr.bf16.mxu0 0
    %8295 = vmatmul.mubr.bf16.gmra.mrb[0].mxu0 %v8246
    %v8296 = vpop.f32.mrb[0].mxu0
    %v8297 = vadd.f32 0.0, %v8296
    %v8298 = vpop.f32.mrb[0].mxu0
    %v8299 = vpop.f32.mrb[0].mxu0
    %v8300 = vadd.f32 0.0, %v8299
    %v8301 = vpop.f32.mrb[0].mxu0
    %8302 = vmatprep.mubr.bf16.mxu0 0
    %8303 = vmatmul.mubr.bf16.gmra.mrb[0].mxu0 %v8249
    %v8304 = vpop.f32.mrb[0].mxu0
    %v8305 = vadd.f32 0.0, %v8304
    %v8306 = vpop.f32.mrb[0].mxu0
    %v8307 = vpop.f32.mrb[0].mxu0
    %v8308 = vadd.f32 0.0, %v8307
    %v8309 = vpop.f32.mrb[0].mxu0
    %8310 = vmatprep.mubr.bf16.mxu0 0
    %8311 = vmatmul.mubr.bf16.gmra.mrb[0].mxu0 %v8252
    %v8312 = vpop.f32.mrb[0].mxu0
    %v8313 = vadd.f32 0.0, %v8312
    %v8314 = vpop.f32.mrb[0].mxu0
    %v8315 = vpop.f32.mrb[0].mxu0
    %v8316 = vadd.f32 0.0, %v8315
    %v8317 = vpop.f32.mrb[0].mxu0
    %8318 = vdwg.mxu0
    %v8319 = vadd.f32 %v6571, %v8289
    %v8320 = vadd.f32 %v6572, %v8292
    %v8321 = vadd.f32 %v6573, %v8297
    %v8322 = vadd.f32 %v6574, %v8300
    %v8323 = vadd.f32 %v6575, %v8305
    %v8324 = vadd.f32 %v6576, %v8308
    %v8325 = vadd.f32 %v6577, %v8313
    %v8326 = vadd.f32 %v6578, %v8316
    %s8327 = scalar_lea.vmem %s6, 3
    %v8328 = vld [vmem:[%s8327] sm:$0x1]
    %v8330 = vlaneseq
    %v8331 = vshrl.u32 %v8330, 7
    %v8332 = vsub.s32 0, %v8331
    %v8333 = vrot.slane %v8328, %v8332
    %v8335 = vadd.f32 %v8319, %v8333
    %v8336 = vadd.f32 %v8320, %v8333
    %v8337 = vadd.f32 %v8321, %v8333
    %v8338 = vadd.f32 %v8322, %v8333
    %v8339 = vadd.f32 %v8323, %v8333
    %v8340 = vadd.f32 %v8324, %v8333
    %v8341 = vadd.f32 %v8325, %v8333
    %v8342 = vadd.f32 %v8326, %v8333
    %s8343 = scalar_lea.vmem %s7, 3
    %v8344 = vld [vmem:[%s8343] sm:$0x1]
    %s8345 = scalar_lea.vmem %s8, 3
    %v8346 = vld [vmem:[%s8345] sm:$0x1]
    %v8347 = vsel %vm70, %v8335, 0.0
    %8348 = vadd.xlane.f32.xlu0 %v8347
    %v8349 = vpop.xlane.xlu0 %8348
    %v8350 = vsel %vm70, %v8336, 0.0
    %8351 = vadd.xlane.f32.xlu0 %v8350
    %v8352 = vpop.xlane.xlu0 %8351
    %v8353 = vsel %vm70, %v8337, 0.0
    %8354 = vadd.xlane.f32.xlu0 %v8353
    %v8355 = vpop.xlane.xlu0 %8354
    %v8356 = vsel %vm70, %v8338, 0.0
    %8357 = vadd.xlane.f32.xlu0 %v8356
    %v8358 = vpop.xlane.xlu0 %8357
    %v8359 = vsel %vm70, %v8339, 0.0
    %8360 = vadd.xlane.f32.xlu0 %v8359
    %v8361 = vpop.xlane.xlu0 %8360
    %v8362 = vsel %vm70, %v8340, 0.0
    %8363 = vadd.xlane.f32.xlu0 %v8362
    %v8364 = vpop.xlane.xlu0 %8363
    %v8365 = vsel %vm70, %v8341, 0.0
    %8366 = vadd.xlane.f32.xlu0 %v8365
    %v8367 = vpop.xlane.xlu0 %8366
    %v8368 = vsel %vm70, %v8342, 0.0
    %8369 = vadd.xlane.f32.xlu0 %v8368
    %v8370 = vpop.xlane.xlu0 %8369
    %v8371 = vmul.f32 %v8349, %v95
    %v8372 = vmul.f32 %v8352, %v95
    %v8373 = vmul.f32 %v8355, %v95
    %v8374 = vmul.f32 %v8358, %v95
    %v8375 = vmul.f32 %v8361, %v95
    %v8376 = vmul.f32 %v8364, %v95
    %v8377 = vmul.f32 %v8367, %v95
    %v8378 = vmul.f32 %v8370, %v95
    %v8379 = vsub.f32 %v8335, %v8371
    %v8380 = vsub.f32 %v8336, %v8372
    %v8381 = vsub.f32 %v8337, %v8373
    %v8382 = vsub.f32 %v8338, %v8374
    %v8383 = vsub.f32 %v8339, %v8375
    %v8384 = vsub.f32 %v8340, %v8376
    %v8385 = vsub.f32 %v8341, %v8377
    %v8386 = vsub.f32 %v8342, %v8378
    %v8387 = vmul.f32 %v8379, %v8379
    %v8388 = vmul.f32 %v8380, %v8380
    %v8389 = vmul.f32 %v8381, %v8381
    %v8390 = vmul.f32 %v8382, %v8382
    %v8391 = vmul.f32 %v8383, %v8383
    %v8392 = vmul.f32 %v8384, %v8384
    %v8393 = vmul.f32 %v8385, %v8385
    %v8394 = vmul.f32 %v8386, %v8386
    %v8395 = vsel %vm70, %v8387, 0.0
    %8396 = vadd.xlane.f32.xlu0 %v8395
    %v8397 = vpop.xlane.xlu0 %8396
    %v8398 = vsel %vm70, %v8388, 0.0
    %8399 = vadd.xlane.f32.xlu0 %v8398
    %v8400 = vpop.xlane.xlu0 %8399
    %v8401 = vsel %vm70, %v8389, 0.0
    %8402 = vadd.xlane.f32.xlu0 %v8401
    %v8403 = vpop.xlane.xlu0 %8402
    %v8404 = vsel %vm70, %v8390, 0.0
    %8405 = vadd.xlane.f32.xlu0 %v8404
    %v8406 = vpop.xlane.xlu0 %8405
    %v8407 = vsel %vm70, %v8391, 0.0
    %8408 = vadd.xlane.f32.xlu0 %v8407
    %v8409 = vpop.xlane.xlu0 %8408
    %v8410 = vsel %vm70, %v8392, 0.0
    %8411 = vadd.xlane.f32.xlu0 %v8410
    %v8412 = vpop.xlane.xlu0 %8411
    %v8413 = vsel %vm70, %v8393, 0.0
    %8414 = vadd.xlane.f32.xlu0 %v8413
    %v8415 = vpop.xlane.xlu0 %8414
    %v8416 = vsel %vm70, %v8394, 0.0
    %8417 = vadd.xlane.f32.xlu0 %v8416
    %v8418 = vpop.xlane.xlu0 %8417
    %v8419 = vmul.f32 %v8397, %v95
    %v8420 = vmul.f32 %v8400, %v95
    %v8421 = vmul.f32 %v8403, %v95
    %v8422 = vmul.f32 %v8406, %v95
    %v8423 = vmul.f32 %v8409, %v95
    %v8424 = vmul.f32 %v8412, %v95
    %v8425 = vmul.f32 %v8415, %v95
    %v8426 = vmul.f32 %v8418, %v95
    %v8427 = vadd.f32 %v8419, 1e-05
    %v8428 = vadd.f32 %v8420, 1e-05
    %v8429 = vadd.f32 %v8421, 1e-05
    %v8430 = vadd.f32 %v8422, 1e-05
    %v8431 = vadd.f32 %v8423, 1e-05
    %v8432 = vadd.f32 %v8424, 1e-05
    %v8433 = vadd.f32 %v8425, 1e-05
    %v8434 = vadd.f32 %v8426, 1e-05
    %v8435 = vrsqrt.pop %v8427
    %v8436 = vrsqrt.pop %v8428
    %v8437 = vrsqrt.pop %v8429
    %v8438 = vrsqrt.pop %v8430
    %v8439 = vrsqrt.pop %v8431
    %v8440 = vrsqrt.pop %v8432
    %v8441 = vrsqrt.pop %v8433
    %v8442 = vrsqrt.pop %v8434
    %v8443 = vmul.f32 %v8379, %v8435
    %v8444 = vmul.f32 %v8380, %v8436
    %v8445 = vmul.f32 %v8381, %v8437
    %v8446 = vmul.f32 %v8382, %v8438
    %v8447 = vmul.f32 %v8383, %v8439
    %v8448 = vmul.f32 %v8384, %v8440
    %v8449 = vmul.f32 %v8385, %v8441
    %v8450 = vmul.f32 %v8386, %v8442
    %v8452 = vlaneseq
    %v8453 = vshrl.u32 %v8452, 7
    %v8454 = vsub.s32 0, %v8453
    %v8455 = vrot.slane %v8344, %v8454
    %v8457 = vmul.f32 %v8443, %v8455
    %v8458 = vmul.f32 %v8444, %v8455
    %v8459 = vmul.f32 %v8445, %v8455
    %v8460 = vmul.f32 %v8446, %v8455
    %v8461 = vmul.f32 %v8447, %v8455
    %v8462 = vmul.f32 %v8448, %v8455
    %v8463 = vmul.f32 %v8449, %v8455
    %v8464 = vmul.f32 %v8450, %v8455
    %v8466 = vlaneseq
    %v8467 = vshrl.u32 %v8466, 7
    %v8468 = vsub.s32 0, %v8467
    %v8469 = vrot.slane %v8346, %v8468
    %v8471 = vadd.f32 %v8457, %v8469
    %v8472 = vadd.f32 %v8458, %v8469
    %v8473 = vadd.f32 %v8459, %v8469
    %v8474 = vadd.f32 %v8460, %v8469
    %v8475 = vadd.f32 %v8461, %v8469
    %v8476 = vadd.f32 %v8462, %v8469
    %v8477 = vadd.f32 %v8463, %v8469
    %v8478 = vadd.f32 %v8464, %v8469
    %s8479 = scalar_lea.vmem %s9, 48
    %v8480 = vld [vmem:[%s8479] sm:$0xf]
    %v8481 = vld [vmem:[%s8479 + $0x4] sm:$0xf]
    %v8482 = vld [vmem:[%s8479 + $0x8] sm:$0xf]
    %v8483 = vld [vmem:[%s8479 + $0xc] sm:$0xf]
    %v8484 = vpack.c.bf16 %v8472, %v8471
    %v8485 = vpack.c.bf16 %v8474, %v8473
    %v8486 = vpack.c.bf16 %v8476, %v8475
    %v8487 = vpack.c.bf16 %v8478, %v8477
    %s8488 = scalar_lea.vmem %s10, 3
    %v8489 = vld [vmem:[%s8488] sm:$0x1]
    %v8491 = vlaneseq
    %v8492 = vshrl.u32 %v8491, 7
    %v8493 = vsub.s32 0, %v8492
    %v8494 = vrot.slane %v8489, %v8493
    %v8500 = vunpack.c.l.b16 %v8480
    %v8501 = vunpack.c.l.b16 %v8481
    %v8502 = vunpack.c.l.b16 %v8482
    %v8503 = vunpack.c.l.b16 %v8483
    %v8504 = vpack.c.b16 %v8501, %v8500
    %v8505 = vpack.c.b16 %v8503, %v8502
    %v8509 = vsel %vm70, %v8484, 0
    %v8512 = vsel %vm70, %v8485, 0
    %v8515 = vsel %vm70, %v8486, 0
    %v8518 = vsel %vm70, %v8487, 0
    %8520 = vmatprep.subr.bf16.mxu0 0
    %8521 = vmatpush1.bf16.msra.mxu0 %v8504
    %8522 = vmatprep.subr.bf16.mxu0 0
    %8523 = vmatpush1.bf16.msra.mxu0 %v8505
    %8524 = vmatprep.subr.bf16.mxu0 0
    %8525 = vmatpush1.bf16.msra.mxu0 0
    %8526 = vmatprep.subr.bf16.mxu0 0
    %8527 = vmatpush1.bf16.msra.mxu0 0
    %8528 = vmatprep.subr.bf16.mxu0 0
    %8529 = vmatpush1.bf16.msra.mxu0 0
    %8530 = vmatprep.subr.bf16.mxu0 0
    %8531 = vmatpush1.bf16.msra.mxu0 0
    %8532 = vmatprep.subr.bf16.mxu0 0
    %8533 = vmatpush1.bf16.msra.mxu0 0
    %8534 = vmatprep.subr.bf16.mxu0 0
    %8535 = vmatpush1.bf16.msra.mxu0 0
    %8536 = vmatprep.subr.bf16.mxu0 0
    %8537 = vmatpush1.bf16.msra.mxu0 0
    %8538 = vmatprep.subr.bf16.mxu0 0
    %8539 = vmatpush1.bf16.msra.mxu0 0
    %8540 = vmatprep.subr.bf16.mxu0 0
    %8541 = vmatpush1.bf16.msra.mxu0 0
    %8542 = vmatprep.subr.bf16.mxu0 0
    %8543 = vmatpush1.bf16.msra.mxu0 0
    %8544 = vmatprep.subr.bf16.mxu0 0
    %8545 = vmatpush1.bf16.msra.mxu0 0
    %8546 = vmatprep.subr.bf16.mxu0 0
    %8547 = vmatpush1.bf16.msra.mxu0 0
    %8548 = vmatprep.subr.bf16.mxu0 0
    %8549 = vmatpush1.bf16.msra.mxu0 0
    %8550 = vmatprep.subr.bf16.mxu0 0
    %8551 = vmatpush1.bf16.msra.mxu0 0
    %8552 = vmatprep.mubr.bf16.mxu0 0
    %8553 = vmatmul.mubr.bf16.gmra.mrb[0].mxu0 %v8509
    %v8554 = vpop.f32.mrb[0].mxu0
    %v8555 = vadd.f32 %v8494, %v8554
    %v8556 = vpop.f32.mrb[0].mxu0
    %v8557 = vpop.f32.mrb[0].mxu0
    %v8558 = vadd.f32 %v8494, %v8557
    %v8559 = vpop.f32.mrb[0].mxu0
    %8560 = vmatprep.mubr.bf16.mxu0 0
    %8561 = vmatmul.mubr.bf16.gmra.mrb[0].mxu0 %v8512
    %v8562 = vpop.f32.mrb[0].mxu0
    %v8563 = vadd.f32 %v8494, %v8562
    %v8564 = vpop.f32.mrb[0].mxu0
    %v8565 = vpop.f32.mrb[0].mxu0
    %v8566 = vadd.f32 %v8494, %v8565
    %v8567 = vpop.f32.mrb[0].mxu0
    %8568 = vmatprep.mubr.bf16.mxu0 0
    %8569 = vmatmul.mubr.bf16.gmra.mrb[0].mxu0 %v8515
    %v8570 = vpop.f32.mrb[0].mxu0
    %v8571 = vadd.f32 %v8494, %v8570
    %v8572 = vpop.f32.mrb[0].mxu0
    %v8573 = vpop.f32.mrb[0].mxu0
    %v8574 = vadd.f32 %v8494, %v8573
    %v8575 = vpop.f32.mrb[0].mxu0
    %8576 = vmatprep.mubr.bf16.mxu0 0
    %8577 = vmatmul.mubr.bf16.gmra.mrb[0].mxu0 %v8518
    %v8578 = vpop.f32.mrb[0].mxu0
    %v8579 = vadd.f32 %v8494, %v8578
    %v8580 = vpop.f32.mrb[0].mxu0
    %v8581 = vpop.f32.mrb[0].mxu0
    %v8582 = vadd.f32 %v8494, %v8581
    %v8583 = vpop.f32.mrb[0].mxu0
    %8584 = vdwg.mxu0
    %v8585 = vmax.f32 %v8555, 0.0
    %v8586 = vmax.f32 %v8558, 0.0
    %v8587 = vmax.f32 %v8563, 0.0
    %v8588 = vmax.f32 %v8566, 0.0
    %v8589 = vmax.f32 %v8571, 0.0
    %v8590 = vmax.f32 %v8574, 0.0
    %v8591 = vmax.f32 %v8579, 0.0
    %v8592 = vmax.f32 %v8582, 0.0
    %s8593 = scalar_lea.vmem %s11, 192
    %v8594 = vld [vmem:[%s8593] sm:$0xf]
    %v8595 = vld [vmem:[%s8593 + $0x4] sm:$0xf]
    %v8596 = vld [vmem:[%s8593 + $0x8] sm:$0xf]
    %v8597 = vld [vmem:[%s8593 + $0xc] sm:$0xf]
    %v8598 = vld [vmem:[%s8593 + $0x10] sm:$0xf]
    %v8599 = vld [vmem:[%s8593 + $0x14] sm:$0xf]
    %v8600 = vld [vmem:[%s8593 + $0x18] sm:$0xf]
    %v8601 = vld [vmem:[%s8593 + $0x1c] sm:$0xf]
    %v8602 = vld [vmem:[%s8593 + $0x20] sm:$0xf]
    %v8603 = vld [vmem:[%s8593 + $0x24] sm:$0xf]
    %v8604 = vld [vmem:[%s8593 + $0x28] sm:$0xf]
    %v8605 = vld [vmem:[%s8593 + $0x2c] sm:$0xf]
    %v8606 = vld [vmem:[%s8593 + $0x30] sm:$0xf]
    %v8607 = vld [vmem:[%s8593 + $0x34] sm:$0xf]
    %v8608 = vld [vmem:[%s8593 + $0x38] sm:$0xf]
    %v8609 = vld [vmem:[%s8593 + $0x3c] sm:$0xf]
    %v8610 = vpack.c.bf16 %v8586, %v8585
    %v8611 = vpack.c.bf16 %v8588, %v8587
    %v8612 = vpack.c.bf16 %v8590, %v8589
    %v8613 = vpack.c.bf16 %v8592, %v8591
    %v8630 = vunpack.c.l.b16 %v8594
    %v8631 = vunpack.c.l.b16 %v8595
    %v8632 = vunpack.c.l.b16 %v8596
    %v8633 = vunpack.c.l.b16 %v8597
    %v8634 = vunpack.c.l.b16 %v8598
    %v8635 = vunpack.c.l.b16 %v8599
    %v8636 = vunpack.c.l.b16 %v8600
    %v8637 = vunpack.c.l.b16 %v8601
    %v8638 = vunpack.c.l.b16 %v8602
    %v8639 = vunpack.c.l.b16 %v8603
    %v8640 = vunpack.c.l.b16 %v8604
    %v8641 = vunpack.c.l.b16 %v8605
    %v8642 = vunpack.c.l.b16 %v8606
    %v8643 = vunpack.c.l.b16 %v8607
    %v8644 = vunpack.c.l.b16 %v8608
    %v8645 = vunpack.c.l.b16 %v8609
    %v8646 = vpack.c.b16 %v8631, %v8630
    %v8647 = vpack.c.b16 %v8633, %v8632
    %v8648 = vpack.c.b16 %v8635, %v8634
    %v8649 = vpack.c.b16 %v8637, %v8636
    %v8650 = vpack.c.b16 %v8639, %v8638
    %v8651 = vpack.c.b16 %v8641, %v8640
    %v8652 = vpack.c.b16 %v8643, %v8642
    %v8653 = vpack.c.b16 %v8645, %v8644
    %8662 = vmatprep.subr.bf16.mxu0 0
    %8663 = vmatpush1.bf16.msra.mxu0 %v8646
    %8664 = vmatprep.subr.bf16.mxu0 0
    %8665 = vmatpush1.bf16.msra.mxu0 %v8647
    %8666 = vmatprep.subr.bf16.mxu0 0
    %8667 = vmatpush1.bf16.msra.mxu0 %v8648
    %8668 = vmatprep.subr.bf16.mxu0 0
    %8669 = vmatpush1.bf16.msra.mxu0 %v8649
    %8670 = vmatprep.subr.bf16.mxu0 0
    %8671 = vmatpush1.bf16.msra.mxu0 %v8650
    %8672 = vmatprep.subr.bf16.mxu0 0
    %8673 = vmatpush1.bf16.msra.mxu0 %v8651
    %8674 = vmatprep.subr.bf16.mxu0 0
    %8675 = vmatpush1.bf16.msra.mxu0 %v8652
    %8676 = vmatprep.subr.bf16.mxu0 0
    %8677 = vmatpush1.bf16.msra.mxu0 %v8653
    %8678 = vmatprep.subr.bf16.mxu0 0
    %8679 = vmatpush1.bf16.msra.mxu0 0
    %8680 = vmatprep.subr.bf16.mxu0 0
    %8681 = vmatpush1.bf16.msra.mxu0 0
    %8682 = vmatprep.subr.bf16.mxu0 0
    %8683 = vmatpush1.bf16.msra.mxu0 0
    %8684 = vmatprep.subr.bf16.mxu0 0
    %8685 = vmatpush1.bf16.msra.mxu0 0
    %8686 = vmatprep.subr.bf16.mxu0 0
    %8687 = vmatpush1.bf16.msra.mxu0 0
    %8688 = vmatprep.subr.bf16.mxu0 0
    %8689 = vmatpush1.bf16.msra.mxu0 0
    %8690 = vmatprep.subr.bf16.mxu0 0
    %8691 = vmatpush1.bf16.msra.mxu0 0
    %8692 = vmatprep.subr.bf16.mxu0 0
    %8693 = vmatpush1.bf16.msra.mxu0 0
    %8694 = vmatprep.mubr.bf16.mxu0 0
    %8695 = vmatmul.mubr.bf16.gmra.mrb[0].mxu0 %v8610
    %v8696 = vpop.f32.mrb[0].mxu0
    %v8697 = vadd.f32 0.0, %v8696
    %v8698 = vpop.f32.mrb[0].mxu0
    %v8699 = vpop.f32.mrb[0].mxu0
    %v8700 = vadd.f32 0.0, %v8699
    %v8701 = vpop.f32.mrb[0].mxu0
    %8702 = vmatprep.mubr.bf16.mxu0 0
    %8703 = vmatmul.mubr.bf16.gmra.mrb[0].mxu0 %v8611
    %v8704 = vpop.f32.mrb[0].mxu0
    %v8705 = vadd.f32 0.0, %v8704
    %v8706 = vpop.f32.mrb[0].mxu0
    %v8707 = vpop.f32.mrb[0].mxu0
    %v8708 = vadd.f32 0.0, %v8707
    %v8709 = vpop.f32.mrb[0].mxu0
    %8710 = vmatprep.mubr.bf16.mxu0 0
    %8711 = vmatmul.mubr.bf16.gmra.mrb[0].mxu0 %v8612
    %v8712 = vpop.f32.mrb[0].mxu0
    %v8713 = vadd.f32 0.0, %v8712
    %v8714 = vpop.f32.mrb[0].mxu0
    %v8715 = vpop.f32.mrb[0].mxu0
    %v8716 = vadd.f32 0.0, %v8715
    %v8717 = vpop.f32.mrb[0].mxu0
    %8718 = vmatprep.mubr.bf16.mxu0 0
    %8719 = vmatmul.mubr.bf16.gmra.mrb[0].mxu0 %v8613
    %v8720 = vpop.f32.mrb[0].mxu0
    %v8721 = vadd.f32 0.0, %v8720
    %v8722 = vpop.f32.mrb[0].mxu0
    %v8723 = vpop.f32.mrb[0].mxu0
    %v8724 = vadd.f32 0.0, %v8723
    %v8725 = vpop.f32.mrb[0].mxu0
    %8726 = vdwg.mxu0
    %v8727 = vadd.f32 %v8335, %v8697
    %v8728 = vadd.f32 %v8336, %v8700
    %v8729 = vadd.f32 %v8337, %v8705
    %v8730 = vadd.f32 %v8338, %v8708
    %v8731 = vadd.f32 %v8339, %v8713
    %v8732 = vadd.f32 %v8340, %v8716
    %v8733 = vadd.f32 %v8341, %v8721
    %v8734 = vadd.f32 %v8342, %v8724
    %s8735 = scalar_lea.vmem %s12, 3
    %v8736 = vld [vmem:[%s8735] sm:$0x1]
    %v8738 = vlaneseq
    %v8739 = vshrl.u32 %v8738, 7
    %v8740 = vsub.s32 0, %v8739
    %v8741 = vrot.slane %v8736, %v8740
    %v8743 = vadd.f32 %v8727, %v8741
    %v8744 = vadd.f32 %v8728, %v8741
    %v8745 = vadd.f32 %v8729, %v8741
    %v8746 = vadd.f32 %v8730, %v8741
    %v8747 = vadd.f32 %v8731, %v8741
    %v8748 = vadd.f32 %v8732, %v8741
    %v8749 = vadd.f32 %v8733, %v8741
    %v8750 = vadd.f32 %v8734, %v8741
    %v8751 = vld [vmem:[%s13] sm:$0xf]
    %v8752 = vld [vmem:[%s13 + $0x4] sm:$0xf]
    %v8753 = vld [vmem:[%s13 + $0x8] sm:$0xf]
    %v8754 = vld [vmem:[%s13 + $0xc] sm:$0xf]
    %v8755 = vpack.c.bf16 %v8744, %v8743
    %v8756 = vpack.c.bf16 %v8746, %v8745
    %v8757 = vpack.c.bf16 %v8748, %v8747
    %v8758 = vpack.c.bf16 %v8750, %v8749
    %v8759 = vld [vmem:[%s14] sm:$0x1]
    %v8761 = vlaneseq
    %v8762 = vshrl.u32 %v8761, 7
    %v8763 = vsub.s32 0, %v8762
    %v8764 = vrot.slane %v8759, %v8763
    %v8770 = vunpack.c.l.b16 %v8751
    %v8771 = vunpack.c.l.b16 %v8752
    %v8772 = vunpack.c.l.b16 %v8753
    %v8773 = vunpack.c.l.b16 %v8754
    %v8774 = vpack.c.b16 %v8771, %v8770
    %v8775 = vpack.c.b16 %v8773, %v8772
    %v8779 = vsel %vm70, %v8755, 0
    %v8782 = vsel %vm70, %v8756, 0
    %v8785 = vsel %vm70, %v8757, 0
    %v8788 = vsel %vm70, %v8758, 0
    %8790 = vmatprep.subr.bf16.mxu0 0
    %8791 = vmatpush1.bf16.msra.mxu0 %v8774
    %8792 = vmatprep.subr.bf16.mxu0 0
    %8793 = vmatpush1.bf16.msra.mxu0 %v8775
    %8794 = vmatprep.subr.bf16.mxu0 0
    %8795 = vmatpush1.bf16.msra.mxu0 0
    %8796 = vmatprep.subr.bf16.mxu0 0
    %8797 = vmatpush1.bf16.msra.mxu0 0
    %8798 = vmatprep.subr.bf16.mxu0 0
    %8799 = vmatpush1.bf16.msra.mxu0 0
    %8800 = vmatprep.subr.bf16.mxu0 0
    %8801 = vmatpush1.bf16.msra.mxu0 0
    %8802 = vmatprep.subr.bf16.mxu0 0
    %8803 = vmatpush1.bf16.msra.mxu0 0
    %8804 = vmatprep.subr.bf16.mxu0 0
    %8805 = vmatpush1.bf16.msra.mxu0 0
    %8806 = vmatprep.subr.bf16.mxu0 0
    %8807 = vmatpush1.bf16.msra.mxu0 0
    %8808 = vmatprep.subr.bf16.mxu0 0
    %8809 = vmatpush1.bf16.msra.mxu0 0
    %8810 = vmatprep.subr.bf16.mxu0 0
    %8811 = vmatpush1.bf16.msra.mxu0 0
    %8812 = vmatprep.subr.bf16.mxu0 0
    %8813 = vmatpush1.bf16.msra.mxu0 0
    %8814 = vmatprep.subr.bf16.mxu0 0
    %8815 = vmatpush1.bf16.msra.mxu0 0
    %8816 = vmatprep.subr.bf16.mxu0 0
    %8817 = vmatpush1.bf16.msra.mxu0 0
    %8818 = vmatprep.subr.bf16.mxu0 0
    %8819 = vmatpush1.bf16.msra.mxu0 0
    %8820 = vmatprep.subr.bf16.mxu0 0
    %8821 = vmatpush1.bf16.msra.mxu0 0
    %8822 = vmatprep.mubr.bf16.mxu0 0
    %8823 = vmatmul.mubr.bf16.gmra.mrb[0].mxu0 %v8779
    %v8824 = vpop.f32.mrb[0].mxu0
    %v8825 = vadd.f32 %v8764, %v8824
    %v8826 = vpop.f32.mrb[0].mxu0
    %v8827 = vpop.f32.mrb[0].mxu0
    %v8828 = vadd.f32 %v8764, %v8827
    %v8829 = vpop.f32.mrb[0].mxu0
    %8830 = vmatprep.mubr.bf16.mxu0 0
    %8831 = vmatmul.mubr.bf16.gmra.mrb[0].mxu0 %v8782
    %v8832 = vpop.f32.mrb[0].mxu0
    %v8833 = vadd.f32 %v8764, %v8832
    %v8834 = vpop.f32.mrb[0].mxu0
    %v8835 = vpop.f32.mrb[0].mxu0
    %v8836 = vadd.f32 %v8764, %v8835
    %v8837 = vpop.f32.mrb[0].mxu0
    %8838 = vmatprep.mubr.bf16.mxu0 0
    %8839 = vmatmul.mubr.bf16.gmra.mrb[0].mxu0 %v8785
    %v8840 = vpop.f32.mrb[0].mxu0
    %v8841 = vadd.f32 %v8764, %v8840
    %v8842 = vpop.f32.mrb[0].mxu0
    %v8843 = vpop.f32.mrb[0].mxu0
    %v8844 = vadd.f32 %v8764, %v8843
    %v8845 = vpop.f32.mrb[0].mxu0
    %8846 = vmatprep.mubr.bf16.mxu0 0
    %8847 = vmatmul.mubr.bf16.gmra.mrb[0].mxu0 %v8788
    %v8848 = vpop.f32.mrb[0].mxu0
    %v8849 = vadd.f32 %v8764, %v8848
    %v8850 = vpop.f32.mrb[0].mxu0
    %v8851 = vpop.f32.mrb[0].mxu0
    %v8852 = vadd.f32 %v8764, %v8851
    %v8853 = vpop.f32.mrb[0].mxu0
    %8854 = vdwg.mxu0
    %8855 = vst [vmem:[#allocation2] sm:$0xff] %v8825
    %8856 = vst [vmem:[#allocation2 + $0x8] sm:$0xff] %v8828
    %8857 = vst [vmem:[#allocation2 + $0x10] sm:$0xff] %v8833
    %8858 = vst [vmem:[#allocation2 + $0x18] sm:$0xff] %v8836
    %8859 = vst [vmem:[#allocation2 + $0x20] sm:$0xff] %v8841
    %8860 = vst [vmem:[#allocation2 + $0x28] sm:$0xff] %v8844
    %8861 = vst [vmem:[#allocation2 + $0x30] sm:$0xff] %v8849
    %8862 = vst [vmem:[#allocation2 + $0x38] sm:$0xff] %v8852
    // Predicated region
    $region62: #{tpu_custom_call.1} parent=1 // pred_check
      _
    $region63: #{tpu_custom_call.1} parent=1 // pred_check_branch
      %8864 = sbr.rel (0) target = $region65
    $region64: #{tpu_custom_call.1} parent=1 // pred_region
      %s8866 = ssub.s32 1024, 1024
      %8867 = vsyncadd [#allocation3], %s8866
      %s8868 = sshll.u32 [#allocation2], 4
      %s8869 = int_to_ptr.vmem [resolvable:$true] %s8868
      %8874 = dma.vmem_to_hbm [thread:$0]  %s8869, 1024, %s15, [#allocation3], 128, 128, 8
    $region65: #{tpu_custom_call.1} parent=1 // pred_fallthru
      _
    // Predicated region
    $region66: #{tpu_custom_call.1} parent=1 // pred_check
      _
    $region67: #{tpu_custom_call.1} parent=1 // pred_check_branch
      %8876 = sbr.rel (0) target = $region69
    $region68: #{tpu_custom_call.1} parent=1 // pred_region
      %8877 = dma.done [#allocation3], 1024
    $region69: #{tpu_custom_call.1} parent=1 // pred_fallthru
      _
    %8878 = vsyncpa [#allocation3], 1

</llo_original>
